<compile_context>
chip_gen: v7x
topology: tpu7x:2x2x1
jax: 0.10.0
libtpu: 0.0.40
codegen_flags: <defaults>
</compile_context>

<pallas_src>
import functools

import jax
import jax.numpy as jnp
from jax.experimental import pallas as pl
from jax.experimental.pallas import tpu as pltpu


_LN_EPS = 1e-5          # torch.nn.LayerNorm default
_L2_EPS = 1e-12         # torch.nn.functional.normalize default


def _round_up(v, m):
    return (v + m - 1) // m * m


def krafft_kernel(
    a_ref, x_ref,                     # [Bb, Np, Np], [Bb, Np, Fin]  (Fin unpadded)
    w1_ref, w2_ref,                   # [Fin, Hp], [Hp, Hp]
    wc1_ref, wc2_ref, wc3_ref,        # [2Hp, Hp], [Hp, Hp], [Hp, Cp]
    bc3_ref,                          # [1, Cp] f32 classifier bias (kept in f32)
    vec_ref,                          # [16, Hp] f32: b1,b2,bc1,bc2,g1,be1,g2,be2,g3,be3,g4,be4
    out_ref,                          # [Bb, Cp] f32
    *, n_real, h_real, hp, compute_dtype,
):
    Bb, Np, _ = a_ref.shape
    fin = x_ref.shape[-1]
    cd = compute_dtype

    vec = vec_ref[...]
    b1, b2, bc1, bc2 = vec[0:1], vec[1:2], vec[2:3], vec[3:4]
    g1, be1, g2, be2 = vec[4:5], vec[5:6], vec[6:7], vec[7:8]
    g3, be3, g4, be4 = vec[8:9], vec[9:10], vec[10:11], vec[11:12]

    # hoisted masks: real feature columns (LayerNorm stats) and real node rows (readout)
    feat_mask = (jax.lax.broadcasted_iota(jnp.int32, (1, hp), 1) < h_real).astype(jnp.float32)
    node_mask = (jax.lax.broadcasted_iota(jnp.int32, (1, Np, 1), 1) < n_real).astype(jnp.float32)

    inv_h = 1.0 / float(h_real)
    inv_n = 1.0 / float(n_real)

    def masked_ln(v, gamma, beta):
        # padded feature columns of v are exactly zero by construction
        mu = jnp.sum(v, axis=-1, keepdims=True) * inv_h
        diff = (v - mu) * feat_mask
        var = jnp.sum(diff * diff, axis=-1, keepdims=True) * inv_h
        return diff * jax.lax.rsqrt(var + _LN_EPS) * gamma + beta

    def l2norm(v):
        # padded feature columns are zero -> norm over Hp == norm over H
        n2 = jnp.sum(v * v, axis=-1, keepdims=True)
        return v * jax.lax.rsqrt(jnp.maximum(n2, _L2_EPS * _L2_EPS))

    a = a_ref[...]                                    # compute dtype, [Bb, Np, Np]
    x2 = x_ref[...].reshape(Bb * Np, fin)             # compute dtype, [Bb*Np, Fin]

    # ---- GraphConv 1:  A_hat @ (X @ W1) + b1  ->  LayerNorm -> ReLU  (lane-dense order)
    if fin < 16:
        # tiny contraction: Fin rank-1 VPU updates instead of a (mostly empty) MXU pass
        xw = x2[:, 0:1].astype(jnp.float32) * w1_ref[0:1, :].astype(jnp.float32)
        for f in range(1, fin):
            xw = xw + (x2[:, f:f + 1].astype(jnp.float32)
                       * w1_ref[f:f + 1, :].astype(jnp.float32))
    else:
        xw = jnp.dot(x2, w1_ref[...], preferred_element_type=jnp.float32)     # [Bb*Np, Hp]
    h = jnp.einsum("bnm,bmh->bnh", a, xw.reshape(Bb, Np, hp).astype(cd),
                   preferred_element_type=jnp.float32)                        # [Bb, Np, Hp]
    h = h.reshape(Bb * Np, hp) + b1
    h = jnp.maximum(masked_ln(h, g1, be1), 0.0)

    # ---- GraphConv 2:  A_hat @ (H @ W2) + b2  ->  LayerNorm -> ReLU
    hw = jnp.dot(h.astype(cd), w2_ref[...], preferred_element_type=jnp.float32)
    h = jnp.einsum("bnm,bmh->bnh", a, hw.reshape(Bb, Np, hp).astype(cd),
                   preferred_element_type=jnp.float32)
    h = h.reshape(Bb * Np, hp) + b2
    h = jnp.maximum(masked_ln(h, g2, be2), 0.0)

    # ---- readouts over the real nodes (h >= 0 after ReLU, so zero-masking is exact for max)
    h3 = h.reshape(Bb, Np, hp) * node_mask
    hg_mean = l2norm(jnp.sum(h3, axis=1) * inv_n)     # [Bb, Hp]
    hg_max = l2norm(jnp.max(h3, axis=1))              # [Bb, Hp]

    # ---- classify1 as one fused [mean || max] matmul: K = 2*Hp fills the 256-deep MXU
    hg = jnp.concatenate([hg_mean, hg_max], axis=-1).astype(cd)               # [Bb, 2Hp]
    o = jnp.dot(hg, wc1_ref[...], preferred_element_type=jnp.float32) + bc1
    o = jnp.maximum(masked_ln(o, g3, be3), 0.0)

    o = jnp.dot(o.astype(cd), wc2_ref[...], preferred_element_type=jnp.float32) + bc2
    o = jnp.maximum(masked_ln(o, g4, be4), 0.0)

    logits = (jnp.dot(o.astype(cd), wc3_ref[...], preferred_element_type=jnp.float32)
              + bc3_ref[...])                          # f32 bias, f32 accumulation
    out_ref[...] = logits                              # [Bb, Cp] lane-dense store


def _device_kind():
    try:
        return jax.devices()[0].device_kind.lower()
    except Exception:
        return ""


def _vmem_bytes_estimate(bb, np_, fin, hp, cp, cbytes):
    """Lane-padding-aware VMEM footprint estimate for one grid step (conservative)."""
    lane = lambda d: _round_up(max(d, 1), 128)
    a_blk = 2 * bb * np_ * lane(np_) * cbytes          # double-buffered adjacency block
    x_blk = 2 * bb * np_ * lane(fin) * cbytes          # double-buffered feature block
    o_blk = 2 * max(bb, 8) * lane(cp) * 4              # output block
    w_blk = 2 * (cbytes * (_round_up(fin, 16) * hp + 4 * hp * hp + hp * lane(cp))
                 + 4 * (16 * hp + 8 * lane(cp)))       # weights (worst case double-buffered)
    interm = 6 * bb * np_ * hp * 4                     # f32 temporaries inside the body
    return a_blk + x_blk + o_blk + w_blk + interm


def _pick_graphs_per_block(B, np_, kind):
    # v5e MXU is 128 rows deep; v6e/v7x are 256 -> target merged slab rows accordingly.
    target_rows = 128 if "v5" in kind else 256
    bb = max(1, min(B, max(1, target_rows // np_)))
    if "7" in kind:
        # v7x has two TensorCores: keep an even, >= 2 step batch grid so both stay busy;
        # a single-step grid idles one TC, which costs more than half-filled MXU rows.
        while bb > 1 and (pl.cdiv(B, bb) < 2 or pl.cdiv(B, bb) % 2 == 1):
            bb //= 2
    return bb


def krafft_forward(a_norm, x, params, *, graphs_per_block=None,
                   compute_dtype=jnp.bfloat16, vmem_limit_bytes=None,
                   single_buffer_weights=True):
    """a_norm: [B, N, N] f32; x: [B, N, Fin] f32; returns [B, n_classes] f32."""
    B, N, Fin = x.shape
    H = params["w1"].shape[1]
    C = params["wc3"].shape[1]

    Hp = _round_up(H, 128)
    Cp = _round_up(C, 128)
    cbytes = jnp.dtype(compute_dtype).itemsize
    n_sub = 16 if cbytes == 2 else 8
    Np = _round_up(N, n_sub)

    kind = _device_kind()
    if vmem_limit_bytes is None:
        # v7x has 64 MiB physical VMEM per TC; v5e/v6e have 128 MiB.
        vmem_limit_bytes = (48 << 20) if "7" in kind else (100 << 20)

    if graphs_per_block is None:
        Bb = _pick_graphs_per_block(B, Np, kind)
    else:
        Bb = max(1, min(graphs_per_block, B))
    # shrink the batch block until the lane-padded footprint fits comfortably
    while Bb > 1 and _vmem_bytes_estimate(Bb, Np, Fin, Hp, Cp, cbytes) > int(0.7 * vmem_limit_bytes):
        Bb //= 2
    # keep the output block's second-minor dim layout-friendly when multi-block
    if Bb < B and Bb % 8 != 0:
        Bb = _round_up(Bb, 8)
    Bp = _round_up(B, Bb)

    def pad2(w, r, c):
        return jnp.pad(w, ((0, r - w.shape[0]), (0, c - w.shape[1])))

    # --- pack parameters -----------------------------------------------------------------
    w1 = pad2(params["w1"], Fin, Hp).astype(compute_dtype)          # rows stay at the real Fin
    w2 = pad2(params["w2"], Hp, Hp).astype(compute_dtype)
    wc1 = jnp.concatenate([pad2(params["wc1"][:H], Hp, Hp),         # mean half -> rows [0, Hp)
                           pad2(params["wc1"][H:], Hp, Hp)],        # max half  -> rows [Hp, 2Hp)
                          axis=0).astype(compute_dtype)
    wc2 = pad2(params["wc2"], Hp, Hp).astype(compute_dtype)
    wc3 = pad2(params["wc3"], Hp, Cp).astype(compute_dtype)
    bc3 = pad2(params["bc3"], 1, Cp).astype(jnp.float32)            # f32 bias (not bf16-rounded)

    def padv(v):
        return jnp.pad(v.reshape(1, -1), ((0, 0), (0, Hp - H)))
    vec_rows = ["b1", "b2", "bc1", "bc2", "g1", "be1", "g2", "be2", "g3", "be3", "g4", "be4"]
    vec = jnp.concatenate([padv(params[k]) for k in vec_rows]
                          + [jnp.zeros((4, Hp), jnp.float32)], axis=0)          # [16, Hp] f32

    # --- pad + cast graph inputs (feature dim stays at the real Fin: 32x less X HBM traffic)
    a_p = jnp.pad(a_norm, ((0, Bp - B), (0, Np - N), (0, Np - N))).astype(compute_dtype)
    x_p = jnp.pad(x, ((0, Bp - B), (0, Np - N), (0, 0))).astype(compute_dtype)

    weights = (w1, w2, wc1, wc2, wc3, bc3, vec)

    # advisory cost estimate so XLA schedules/overlaps around the custom call
    flops = int(2 * Bp * Np * Hp * (Fin + 2 * Np + Hp) + 2 * Bp * Hp * (2 * Hp + Hp + Cp))
    transcendentals = int(Bp * (2 * Np + 6))
    bytes_accessed = int(a_p.size * a_p.dtype.itemsize + x_p.size * x_p.dtype.itemsize
                         + sum(w.size * w.dtype.itemsize for w in weights) + Bp * Cp * 4)
    cost = pl.CostEstimate(flops=flops, transcendentals=transcendentals,
                           bytes_accessed=bytes_accessed)

    kernel = functools.partial(krafft_kernel, n_real=N, h_real=H, hp=Hp,
                               compute_dtype=compute_dtype)

    def run(use_single_buffer):
        def w_spec(arr):
            nd = arr.ndim
            kwargs = {}
            if use_single_buffer:
                # constant index_map -> fetched once; single-buffer to free VMEM headroom
                kwargs["pipeline_mode"] = pl.Buffered(1)
            return pl.BlockSpec(arr.shape, lambda b: (0,) * nd, **kwargs)

        in_specs = [
            pl.BlockSpec((Bb, Np, Np), lambda b: (b, 0, 0)),
            pl.BlockSpec((Bb, Np, Fin), lambda b: (b, 0, 0)),
        ] + [w_spec(w) for w in weights]
        out_specs = pl.BlockSpec((Bb, Cp), lambda b: (b, 0))

        return pl.pallas_call(
            kernel,
            out_shape=jax.ShapeDtypeStruct((Bp, Cp), jnp.float32),
            grid=(Bp // Bb,),
            in_specs=in_specs,
            out_specs=out_specs,
            compiler_params=pltpu.CompilerParams(
                dimension_semantics=("parallel",),
                vmem_limit_bytes=int(vmem_limit_bytes)),
            cost_estimate=cost,
        )(a_p, x_p, *weights)

    if single_buffer_weights:
        try:
            out = run(True)
        except Exception:
            # pl.Buffered(1) not supported by this jax build -> default double-buffering
            out = run(False)
    else:
        out = run(False)
    return out[:B, :C]


def make_params(key, in_dim, hidden_dim, n_classes):
    ks = jax.random.split(key, 6)

    def lin(k, fan_in, fan_out):
        s = 1.0 / jnp.sqrt(fan_in)
        return jax.random.uniform(k, (fan_in, fan_out), jnp.float32, -s, s)

    return {
        # GraphConv weights/biases
        "w1": lin(ks[0], in_dim, hidden_dim),
        "b1": jnp.zeros((1, hidden_dim), jnp.float32),
        "w2": lin(ks[1], hidden_dim, hidden_dim),
        "b2": jnp.zeros((1, hidden_dim), jnp.float32),
        # classifier head
        "wc1": lin(ks[2], 2 * hidden_dim, hidden_dim),
        "bc1": jnp.full((1, hidden_dim), 0.01, jnp.float32),
        "wc2": lin(ks[3], hidden_dim, hidden_dim),
        "bc2": jnp.full((1, hidden_dim), -0.01, jnp.float32),
        "wc3": lin(ks[4], hidden_dim, n_classes),
        "bc3": jnp.zeros((1, n_classes), jnp.float32),
        # layernorm affine params (PyTorch init: ones/zeros)
        "g1": jnp.ones((1, hidden_dim), jnp.float32), "be1": jnp.zeros((1, hidden_dim), jnp.float32),
        "g2": jnp.ones((1, hidden_dim), jnp.float32), "be2": jnp.zeros((1, hidden_dim), jnp.float32),
        "g3": jnp.ones((1, hidden_dim), jnp.float32), "be3": jnp.zeros((1, hidden_dim), jnp.float32),
        "g4": jnp.ones((1, hidden_dim), jnp.float32), "be4": jnp.zeros((1, hidden_dim), jnp.float32),
    }


def reference_forward(a_norm, x, params):
    """Pure-JAX f32 reference of the same forward (unpadded)."""
    def ln(v, g, b):
        mu = v.mean(-1, keepdims=True)
        var = ((v - mu) ** 2).mean(-1, keepdims=True)
        return (v - mu) / jnp.sqrt(var + _LN_EPS) * g + b

    h = jnp.einsum("bnm,bmf->bnf", a_norm, x) @ params["w1"] + params["b1"]
    h = jax.nn.relu(ln(h, params["g1"], params["be1"]))
    h = jnp.einsum("bnm,bmf->bnf", a_norm, h) @ params["w2"] + params["b2"]
    h = jax.nn.relu(ln(h, params["g2"], params["be2"]))
    hg_mean = h.mean(axis=1)
    hg_max = h.max(axis=1)

    def l2(v):
        return v / jnp.maximum(jnp.linalg.norm(v, axis=-1, keepdims=True), _L2_EPS)

    hg = jnp.concatenate([l2(hg_mean), l2(hg_max)], axis=1)
    o = jax.nn.relu(ln(hg @ params["wc1"] + params["bc1"], params["g3"], params["be3"]))
    o = jax.nn.relu(ln(o @ params["wc2"] + params["bc2"], params["g4"], params["be4"]))
    return o @ params["wc3"] + params["bc3"]


if __name__ == "__main__":
    B, N = 16, 10                      # 16 graphs, 10 nodes each (N padded to 16 inside)
    in_dim, hidden_dim, n_classes = 4, 32, 3

    key = jax.random.PRNGKey(0)
    k_adj, k_x, k_p = jax.random.split(key, 3)

    # node features
    x = jax.random.normal(k_x, (B, N, in_dim), jnp.float32)

    # random symmetric adjacency with self-loops, DGL-style 'both' normalization
    raw = (jax.random.uniform(k_adj, (B, N, N)) > 0.6).astype(jnp.float32)
    adj = jnp.clip(raw + jnp.swapaxes(raw, 1, 2), 0.0, 1.0)
    adj = jnp.maximum(adj, jnp.eye(N, dtype=jnp.float32)[None])
    deg = adj.sum(axis=-1)
    d_inv_sqrt = 1.0 / jnp.sqrt(deg)
    a_norm = adj * d_inv_sqrt[:, :, None] * d_inv_sqrt[:, None, :]

    params = make_params(k_p, in_dim, hidden_dim, n_classes)
    ref = reference_forward(a_norm, x, params)

    # exact-precision path (f32 matmuls): tight correctness check
    out_f32 = jax.block_until_ready(
        krafft_forward(a_norm, x, params, compute_dtype=jnp.float32))
    assert out_f32.shape == (B, n_classes)
    assert jnp.allclose(out_f32, ref, atol=1e-4, rtol=1e-4), (out_f32, ref)

    # MXU-native bf16 path (default, f32 accumulation): looser numerical check
    # (dominant error source: A_hat cast to bf16, not matmul accumulation)
    out_bf16 = jax.block_until_ready(krafft_forward(a_norm, x, params))
    assert out_bf16.shape == (B, n_classes)
    assert jnp.allclose(out_bf16, ref, atol=5e-2, rtol=5e-2), (out_bf16, ref)

    print("KERNEL_OK")
</pallas_src>

<mosaic_0001>
module attributes {stable_mosaic.version = 11 : i64} {
  func.func @krafft_kernel(%arg0: i32, %arg1: memref<16x16x16xf32, #tpu.memory_space<vmem>>, %arg2: memref<16x16x4xf32, #tpu.memory_space<vmem>>, %arg3: memref<4x128xf32, #tpu.memory_space<vmem>>, %arg4: memref<128x128xf32, #tpu.memory_space<vmem>>, %arg5: memref<256x128xf32, #tpu.memory_space<vmem>>, %arg6: memref<128x128xf32, #tpu.memory_space<vmem>>, %arg7: memref<128x128xf32, #tpu.memory_space<vmem>>, %arg8: memref<1x128xf32, #tpu.memory_space<vmem>>, %arg9: memref<16x128xf32, #tpu.memory_space<vmem>>, %arg10: memref<16x128xf32, #tpu.memory_space<vmem>>) attributes {dimension_semantics = [#tpu.dimension_semantics<parallel>], iteration_bounds = array<i64: 1>, scalar_prefetch = 0 : i64, scratch_operands = 0 : i64, tpu.core_type = #tpu.core_type<tc>, window_params = [{transform_indices = @transform_0, window_bounds = array<i64: 16, 16, 16>}, {transform_indices = @transform_1, window_bounds = array<i64: 16, 16, 4>}, {pipeline_mode = #tpu.pipeline_mode<synchronous>, transform_indices = @transform_2, window_bounds = array<i64: 4, 128>}, {pipeline_mode = #tpu.pipeline_mode<synchronous>, transform_indices = @transform_3, window_bounds = array<i64: 128, 128>}, {pipeline_mode = #tpu.pipeline_mode<synchronous>, transform_indices = @transform_4, window_bounds = array<i64: 256, 128>}, {pipeline_mode = #tpu.pipeline_mode<synchronous>, transform_indices = @transform_5, window_bounds = array<i64: 128, 128>}, {pipeline_mode = #tpu.pipeline_mode<synchronous>, transform_indices = @transform_6, window_bounds = array<i64: 128, 128>}, {pipeline_mode = #tpu.pipeline_mode<synchronous>, transform_indices = @transform_7, window_bounds = array<i64: 1, 128>}, {pipeline_mode = #tpu.pipeline_mode<synchronous>, transform_indices = @transform_8, window_bounds = array<i64: 16, 128>}, {transform_indices = @transform_9, window_bounds = array<i64: 16, 128>}]} {
    %c0 = arith.constant 0 : index
    %c0_0 = arith.constant 0 : index
    %0 = vector.load %arg9[%c0, %c0_0] : memref<16x128xf32, #tpu.memory_space<vmem>>, vector<16x128xf32>
    %1 = vector.extract_strided_slice %0 {offsets = [0, 0], sizes = [1, 128], strides = [1, 1]} : vector<16x128xf32> to vector<1x128xf32>
    %2 = vector.extract_strided_slice %0 {offsets = [1, 0], sizes = [1, 128], strides = [1, 1]} : vector<16x128xf32> to vector<1x128xf32>
    %3 = vector.extract_strided_slice %0 {offsets = [2, 0], sizes = [1, 128], strides = [1, 1]} : vector<16x128xf32> to vector<1x128xf32>
    %4 = vector.extract_strided_slice %0 {offsets = [3, 0], sizes = [1, 128], strides = [1, 1]} : vector<16x128xf32> to vector<1x128xf32>
    %5 = vector.extract_strided_slice %0 {offsets = [4, 0], sizes = [1, 128], strides = [1, 1]} : vector<16x128xf32> to vector<1x128xf32>
    %6 = vector.extract_strided_slice %0 {offsets = [5, 0], sizes = [1, 128], strides = [1, 1]} : vector<16x128xf32> to vector<1x128xf32>
    %7 = vector.extract_strided_slice %0 {offsets = [6, 0], sizes = [1, 128], strides = [1, 1]} : vector<16x128xf32> to vector<1x128xf32>
    %8 = vector.extract_strided_slice %0 {offsets = [7, 0], sizes = [1, 128], strides = [1, 1]} : vector<16x128xf32> to vector<1x128xf32>
    %9 = vector.extract_strided_slice %0 {offsets = [8, 0], sizes = [1, 128], strides = [1, 1]} : vector<16x128xf32> to vector<1x128xf32>
    %10 = vector.extract_strided_slice %0 {offsets = [9, 0], sizes = [1, 128], strides = [1, 1]} : vector<16x128xf32> to vector<1x128xf32>
    %11 = vector.extract_strided_slice %0 {offsets = [10, 0], sizes = [1, 128], strides = [1, 1]} : vector<16x128xf32> to vector<1x128xf32>
    %12 = vector.extract_strided_slice %0 {offsets = [11, 0], sizes = [1, 128], strides = [1, 1]} : vector<16x128xf32> to vector<1x128xf32>
    %13 = tpu.iota {dimensions = array<i32: 1>} : vector<1x128xi32>
    %c32_i32 = arith.constant 32 : i32
    %14 = vector.broadcast %c32_i32 : i32 to vector<1x128xi32>
    %15 = arith.cmpi slt, %13, %14 : vector<1x128xi32>
    %16 = arith.extui %15 : vector<1x128xi1> to vector<1x128xi32>
    %17 = arith.sitofp %16 : vector<1x128xi32> to vector<1x128xf32>
    %18 = tpu.iota {dimensions = array<i32: 1>} : vector<1x16x1xi32>
    %c10_i32 = arith.constant 10 : i32
    %19 = vector.broadcast %c10_i32 : i32 to vector<1x16x1xi32>
    %20 = arith.cmpi slt, %18, %19 : vector<1x16x1xi32>
    %21 = arith.extui %20 : vector<1x16x1xi1> to vector<1x16x1xi32>
    %22 = arith.sitofp %21 : vector<1x16x1xi32> to vector<1x16x1xf32>
    %c0_1 = arith.constant 0 : index
    %c0_2 = arith.constant 0 : index
    %c0_3 = arith.constant 0 : index
    %23 = vector.load %arg1[%c0_1, %c0_2, %c0_3] : memref<16x16x16xf32, #tpu.memory_space<vmem>>, vector<16x16x16xf32>
    %c0_4 = arith.constant 0 : index
    %c0_5 = arith.constant 0 : index
    %c0_6 = arith.constant 0 : index
    %24 = vector.load %arg2[%c0_4, %c0_5, %c0_6] : memref<16x16x4xf32, #tpu.memory_space<vmem>>, vector<16x16x4xf32>
    %25 = vector.shape_cast %24 : vector<16x16x4xf32> to vector<256x4xf32>
    %26 = vector.extract_strided_slice %25 {offsets = [0, 0], sizes = [256, 1], strides = [1, 1]} : vector<256x4xf32> to vector<256x1xf32>
    %c0_7 = arith.constant 0 : index
    %c0_8 = arith.constant 0 : index
    %27 = vector.load %arg3[%c0_7, %c0_8] : memref<4x128xf32, #tpu.memory_space<vmem>>, vector<1x128xf32>
    %28 = vector.broadcast %26 : vector<256x1xf32> to vector<256x128xf32>
    %29 = vector.broadcast %27 : vector<1x128xf32> to vector<256x128xf32>
    %30 = arith.mulf %28, %29 : vector<256x128xf32>
    %31 = vector.extract_strided_slice %25 {offsets = [0, 1], sizes = [256, 1], strides = [1, 1]} : vector<256x4xf32> to vector<256x1xf32>
    %c1 = arith.constant 1 : index
    %c0_9 = arith.constant 0 : index
    %32 = vector.load %arg3[%c1, %c0_9] : memref<4x128xf32, #tpu.memory_space<vmem>>, vector<1x128xf32>
    %33 = vector.broadcast %31 : vector<256x1xf32> to vector<256x128xf32>
    %34 = vector.broadcast %32 : vector<1x128xf32> to vector<256x128xf32>
    %35 = arith.mulf %33, %34 : vector<256x128xf32>
    %36 = arith.addf %30, %35 : vector<256x128xf32>
    %37 = vector.extract_strided_slice %25 {offsets = [0, 2], sizes = [256, 1], strides = [1, 1]} : vector<256x4xf32> to vector<256x1xf32>
    %c2 = arith.constant 2 : index
    %c0_10 = arith.constant 0 : index
    %38 = vector.load %arg3[%c2, %c0_10] : memref<4x128xf32, #tpu.memory_space<vmem>>, vector<1x128xf32>
    %39 = vector.broadcast %37 : vector<256x1xf32> to vector<256x128xf32>
    %40 = vector.broadcast %38 : vector<1x128xf32> to vector<256x128xf32>
    %41 = arith.mulf %39, %40 : vector<256x128xf32>
    %42 = arith.addf %36, %41 : vector<256x128xf32>
    %43 = vector.extract_strided_slice %25 {offsets = [0, 3], sizes = [256, 1], strides = [1, 1]} : vector<256x4xf32> to vector<256x1xf32>
    %c3 = arith.constant 3 : index
    %c0_11 = arith.constant 0 : index
    %44 = vector.load %arg3[%c3, %c0_11] : memref<4x128xf32, #tpu.memory_space<vmem>>, vector<1x128xf32>
    %45 = vector.broadcast %43 : vector<256x1xf32> to vector<256x128xf32>
    %46 = vector.broadcast %44 : vector<1x128xf32> to vector<256x128xf32>
    %47 = arith.mulf %45, %46 : vector<256x128xf32>
    %48 = arith.addf %42, %47 : vector<256x128xf32>
    %49 = vector.shape_cast %48 : vector<256x128xf32> to vector<16x16x128xf32>
    "tpu.trace_start"() <{level = 10 : i32, message = "bnm,bmh->bnh"}> : () -> ()
    %cst = arith.constant dense<0.000000e+00> : vector<16x16x128xf32>
    %50 = tpu.matmul %23, %49, %cst {dimension_numbers = #tpu.dot_dimension_numbers<[2], [1], [1], [2], [0, 0, 0, 1, 1, 2], [0], [0]>} : vector<16x16x16xf32>, vector<16x16x128xf32>, vector<16x16x128xf32> -> vector<16x16x128xf32>
    "tpu.trace_stop"() : () -> ()
    %51 = vector.shape_cast %50 : vector<16x16x128xf32> to vector<256x128xf32>
    %52 = vector.broadcast %1 : vector<1x128xf32> to vector<256x128xf32>
    %53 = arith.addf %51, %52 : vector<256x128xf32>
    %cst_12 = arith.constant dense<0.000000e+00> : vector<256xf32>
    %54 = vector.multi_reduction <add>, %53, %cst_12 [1] : vector<256x128xf32> to vector<256xf32>
    %55 = vector.shape_cast %54 : vector<256xf32> to vector<256x1xf32>
    %cst_13 = arith.constant 3.125000e-02 : f32
    %56 = vector.broadcast %cst_13 : f32 to vector<256x1xf32>
    %57 = arith.mulf %55, %56 : vector<256x1xf32>
    %58 = vector.broadcast %57 : vector<256x1xf32> to vector<256x128xf32>
    %59 = arith.subf %53, %58 : vector<256x128xf32>
    %60 = vector.broadcast %17 : vector<1x128xf32> to vector<256x128xf32>
    %61 = arith.mulf %59, %60 : vector<256x128xf32>
    %62 = arith.mulf %61, %61 : vector<256x128xf32>
    %cst_14 = arith.constant dense<0.000000e+00> : vector<256xf32>
    %63 = vector.multi_reduction <add>, %62, %cst_14 [1] : vector<256x128xf32> to vector<256xf32>
    %64 = vector.shape_cast %63 : vector<256xf32> to vector<256x1xf32>
    %cst_15 = arith.constant 3.125000e-02 : f32
    %65 = vector.broadcast %cst_15 : f32 to vector<256x1xf32>
    %66 = arith.mulf %64, %65 : vector<256x1xf32>
    %cst_16 = arith.constant 9.99999974E-6 : f32
    %67 = vector.broadcast %cst_16 : f32 to vector<256x1xf32>
    %68 = arith.addf %66, %67 : vector<256x1xf32>
    %69 = math.rsqrt %68 : vector<256x1xf32>
    %70 = vector.broadcast %69 : vector<256x1xf32> to vector<256x128xf32>
    %71 = arith.mulf %61, %70 : vector<256x128xf32>
    %72 = vector.broadcast %5 : vector<1x128xf32> to vector<256x128xf32>
    %73 = arith.mulf %71, %72 : vector<256x128xf32>
    %74 = vector.broadcast %6 : vector<1x128xf32> to vector<256x128xf32>
    %75 = arith.addf %73, %74 : vector<256x128xf32>
    %cst_17 = arith.constant 0.000000e+00 : f32
    %76 = vector.broadcast %cst_17 : f32 to vector<256x128xf32>
    %77 = arith.maximumf %75, %76 : vector<256x128xf32>
    %c0_18 = arith.constant 0 : index
    %c0_19 = arith.constant 0 : index
    %78 = vector.load %arg4[%c0_18, %c0_19] : memref<128x128xf32, #tpu.memory_space<vmem>>, vector<128x128xf32>
    %cst_20 = arith.constant dense<0.000000e+00> : vector<256x128xf32>
    %79 = tpu.matmul %77, %78, %cst_20 {dimension_numbers = #tpu.dot_dimension_numbers<[1], [0], [0], [1], [0, 0, 1, 1], [], []>} : vector<256x128xf32>, vector<128x128xf32>, vector<256x128xf32> -> vector<256x128xf32>
    %80 = vector.shape_cast %79 : vector<256x128xf32> to vector<16x16x128xf32>
    "tpu.trace_start"() <{level = 10 : i32, message = "bnm,bmh->bnh"}> : () -> ()
    %cst_21 = arith.constant dense<0.000000e+00> : vector<16x16x128xf32>
    %81 = tpu.matmul %23, %80, %cst_21 {dimension_numbers = #tpu.dot_dimension_numbers<[2], [1], [1], [2], [0, 0, 0, 1, 1, 2], [0], [0]>} : vector<16x16x16xf32>, vector<16x16x128xf32>, vector<16x16x128xf32> -> vector<16x16x128xf32>
    "tpu.trace_stop"() : () -> ()
    %82 = vector.shape_cast %81 : vector<16x16x128xf32> to vector<256x128xf32>
    %83 = vector.broadcast %2 : vector<1x128xf32> to vector<256x128xf32>
    %84 = arith.addf %82, %83 : vector<256x128xf32>
    %cst_22 = arith.constant dense<0.000000e+00> : vector<256xf32>
    %85 = vector.multi_reduction <add>, %84, %cst_22 [1] : vector<256x128xf32> to vector<256xf32>
    %86 = vector.shape_cast %85 : vector<256xf32> to vector<256x1xf32>
    %cst_23 = arith.constant 3.125000e-02 : f32
    %87 = vector.broadcast %cst_23 : f32 to vector<256x1xf32>
    %88 = arith.mulf %86, %87 : vector<256x1xf32>
    %89 = vector.broadcast %88 : vector<256x1xf32> to vector<256x128xf32>
    %90 = arith.subf %84, %89 : vector<256x128xf32>
    %91 = vector.broadcast %17 : vector<1x128xf32> to vector<256x128xf32>
    %92 = arith.mulf %90, %91 : vector<256x128xf32>
    %93 = arith.mulf %92, %92 : vector<256x128xf32>
    %cst_24 = arith.constant dense<0.000000e+00> : vector<256xf32>
    %94 = vector.multi_reduction <add>, %93, %cst_24 [1] : vector<256x128xf32> to vector<256xf32>
    %95 = vector.shape_cast %94 : vector<256xf32> to vector<256x1xf32>
    %cst_25 = arith.constant 3.125000e-02 : f32
    %96 = vector.broadcast %cst_25 : f32 to vector<256x1xf32>
    %97 = arith.mulf %95, %96 : vector<256x1xf32>
    %cst_26 = arith.constant 9.99999974E-6 : f32
    %98 = vector.broadcast %cst_26 : f32 to vector<256x1xf32>
    %99 = arith.addf %97, %98 : vector<256x1xf32>
    %100 = math.rsqrt %99 : vector<256x1xf32>
    %101 = vector.broadcast %100 : vector<256x1xf32> to vector<256x128xf32>
    %102 = arith.mulf %92, %101 : vector<256x128xf32>
    %103 = vector.broadcast %7 : vector<1x128xf32> to vector<256x128xf32>
    %104 = arith.mulf %102, %103 : vector<256x128xf32>
    %105 = vector.broadcast %8 : vector<1x128xf32> to vector<256x128xf32>
    %106 = arith.addf %104, %105 : vector<256x128xf32>
    %cst_27 = arith.constant 0.000000e+00 : f32
    %107 = vector.broadcast %cst_27 : f32 to vector<256x128xf32>
    %108 = arith.maximumf %106, %107 : vector<256x128xf32>
    %109 = vector.shape_cast %108 : vector<256x128xf32> to vector<16x16x128xf32>
    %110 = vector.broadcast %22 : vector<1x16x1xf32> to vector<16x16x128xf32>
    %111 = arith.mulf %109, %110 : vector<16x16x128xf32>
    %cst_28 = arith.constant dense<0.000000e+00> : vector<16x128xf32>
    %112 = vector.multi_reduction <add>, %111, %cst_28 [1] : vector<16x16x128xf32> to vector<16x128xf32>
    %cst_29 = arith.constant 1.000000e-01 : f32
    %113 = vector.broadcast %cst_29 : f32 to vector<16x128xf32>
    %114 = arith.mulf %112, %113 : vector<16x128xf32>
    %115 = arith.mulf %114, %114 : vector<16x128xf32>
    %cst_30 = arith.constant dense<0.000000e+00> : vector<16xf32>
    %116 = vector.multi_reduction <add>, %115, %cst_30 [1] : vector<16x128xf32> to vector<16xf32>
    %117 = vector.shape_cast %116 : vector<16xf32> to vector<16x1xf32>
    %cst_31 = arith.constant 1.000000e-24 : f32
    %118 = vector.broadcast %cst_31 : f32 to vector<16x1xf32>
    %119 = arith.maximumf %117, %118 : vector<16x1xf32>
    %120 = math.rsqrt %119 : vector<16x1xf32>
    %121 = vector.broadcast %120 : vector<16x1xf32> to vector<16x128xf32>
    %122 = arith.mulf %114, %121 : vector<16x128xf32>
    %cst_32 = arith.constant dense<0xFF800000> : vector<16x128xf32>
    %123 = vector.multi_reduction <maximumf>, %111, %cst_32 [1] : vector<16x16x128xf32> to vector<16x128xf32>
    %124 = arith.mulf %123, %123 : vector<16x128xf32>
    %cst_33 = arith.constant dense<0.000000e+00> : vector<16xf32>
    %125 = vector.multi_reduction <add>, %124, %cst_33 [1] : vector<16x128xf32> to vector<16xf32>
    %126 = vector.shape_cast %125 : vector<16xf32> to vector<16x1xf32>
    %cst_34 = arith.constant 1.000000e-24 : f32
    %127 = vector.broadcast %cst_34 : f32 to vector<16x1xf32>
    %128 = arith.maximumf %126, %127 : vector<16x1xf32>
    %129 = math.rsqrt %128 : vector<16x1xf32>
    %130 = vector.broadcast %129 : vector<16x1xf32> to vector<16x128xf32>
    %131 = arith.mulf %123, %130 : vector<16x128xf32>
    %132 = tpu.concatenate %122, %131 in 1 : vector<16x128xf32>, vector<16x128xf32> -> vector<16x256xf32>
    %c0_35 = arith.constant 0 : index
    %c0_36 = arith.constant 0 : index
    %133 = vector.load %arg5[%c0_35, %c0_36] : memref<256x128xf32, #tpu.memory_space<vmem>>, vector<256x128xf32>
    %cst_37 = arith.constant dense<0.000000e+00> : vector<16x128xf32>
    %134 = tpu.matmul %132, %133, %cst_37 {dimension_numbers = #tpu.dot_dimension_numbers<[1], [0], [0], [1], [0, 0, 1, 1], [], []>} : vector<16x256xf32>, vector<256x128xf32>, vector<16x128xf32> -> vector<16x128xf32>
    %135 = vector.broadcast %3 : vector<1x128xf32> to vector<16x128xf32>
    %136 = arith.addf %134, %135 : vector<16x128xf32>
    %cst_38 = arith.constant dense<0.000000e+00> : vector<16xf32>
    %137 = vector.multi_reduction <add>, %136, %cst_38 [1] : vector<16x128xf32> to vector<16xf32>
    %138 = vector.shape_cast %137 : vector<16xf32> to vector<16x1xf32>
    %cst_39 = arith.constant 3.125000e-02 : f32
    %139 = vector.broadcast %cst_39 : f32 to vector<16x1xf32>
    %140 = arith.mulf %138, %139 : vector<16x1xf32>
    %141 = vector.broadcast %140 : vector<16x1xf32> to vector<16x128xf32>
    %142 = arith.subf %136, %141 : vector<16x128xf32>
    %143 = vector.broadcast %17 : vector<1x128xf32> to vector<16x128xf32>
    %144 = arith.mulf %142, %143 : vector<16x128xf32>
    %145 = arith.mulf %144, %144 : vector<16x128xf32>
    %cst_40 = arith.constant dense<0.000000e+00> : vector<16xf32>
    %146 = vector.multi_reduction <add>, %145, %cst_40 [1] : vector<16x128xf32> to vector<16xf32>
    %147 = vector.shape_cast %146 : vector<16xf32> to vector<16x1xf32>
    %cst_41 = arith.constant 3.125000e-02 : f32
    %148 = vector.broadcast %cst_41 : f32 to vector<16x1xf32>
    %149 = arith.mulf %147, %148 : vector<16x1xf32>
    %cst_42 = arith.constant 9.99999974E-6 : f32
    %150 = vector.broadcast %cst_42 : f32 to vector<16x1xf32>
    %151 = arith.addf %149, %150 : vector<16x1xf32>
    %152 = math.rsqrt %151 : vector<16x1xf32>
    %153 = vector.broadcast %152 : vector<16x1xf32> to vector<16x128xf32>
    %154 = arith.mulf %144, %153 : vector<16x128xf32>
    %155 = vector.broadcast %9 : vector<1x128xf32> to vector<16x128xf32>
    %156 = arith.mulf %154, %155 : vector<16x128xf32>
    %157 = vector.broadcast %10 : vector<1x128xf32> to vector<16x128xf32>
    %158 = arith.addf %156, %157 : vector<16x128xf32>
    %cst_43 = arith.constant 0.000000e+00 : f32
    %159 = vector.broadcast %cst_43 : f32 to vector<16x128xf32>
    %160 = arith.maximumf %158, %159 : vector<16x128xf32>
    %c0_44 = arith.constant 0 : index
    %c0_45 = arith.constant 0 : index
    %161 = vector.load %arg6[%c0_44, %c0_45] : memref<128x128xf32, #tpu.memory_space<vmem>>, vector<128x128xf32>
    %cst_46 = arith.constant dense<0.000000e+00> : vector<16x128xf32>
    %162 = tpu.matmul %160, %161, %cst_46 {dimension_numbers = #tpu.dot_dimension_numbers<[1], [0], [0], [1], [0, 0, 1, 1], [], []>} : vector<16x128xf32>, vector<128x128xf32>, vector<16x128xf32> -> vector<16x128xf32>
    %163 = vector.broadcast %4 : vector<1x128xf32> to vector<16x128xf32>
    %164 = arith.addf %162, %163 : vector<16x128xf32>
    %cst_47 = arith.constant dense<0.000000e+00> : vector<16xf32>
    %165 = vector.multi_reduction <add>, %164, %cst_47 [1] : vector<16x128xf32> to vector<16xf32>
    %166 = vector.shape_cast %165 : vector<16xf32> to vector<16x1xf32>
    %cst_48 = arith.constant 3.125000e-02 : f32
    %167 = vector.broadcast %cst_48 : f32 to vector<16x1xf32>
    %168 = arith.mulf %166, %167 : vector<16x1xf32>
    %169 = vector.broadcast %168 : vector<16x1xf32> to vector<16x128xf32>
    %170 = arith.subf %164, %169 : vector<16x128xf32>
    %171 = vector.broadcast %17 : vector<1x128xf32> to vector<16x128xf32>
    %172 = arith.mulf %170, %171 : vector<16x128xf32>
    %173 = arith.mulf %172, %172 : vector<16x128xf32>
    %cst_49 = arith.constant dense<0.000000e+00> : vector<16xf32>
    %174 = vector.multi_reduction <add>, %173, %cst_49 [1] : vector<16x128xf32> to vector<16xf32>
    %175 = vector.shape_cast %174 : vector<16xf32> to vector<16x1xf32>
    %cst_50 = arith.constant 3.125000e-02 : f32
    %176 = vector.broadcast %cst_50 : f32 to vector<16x1xf32>
    %177 = arith.mulf %175, %176 : vector<16x1xf32>
    %cst_51 = arith.constant 9.99999974E-6 : f32
    %178 = vector.broadcast %cst_51 : f32 to vector<16x1xf32>
    %179 = arith.addf %177, %178 : vector<16x1xf32>
    %180 = math.rsqrt %179 : vector<16x1xf32>
    %181 = vector.broadcast %180 : vector<16x1xf32> to vector<16x128xf32>
    %182 = arith.mulf %172, %181 : vector<16x128xf32>
    %183 = vector.broadcast %11 : vector<1x128xf32> to vector<16x128xf32>
    %184 = arith.mulf %182, %183 : vector<16x128xf32>
    %185 = vector.broadcast %12 : vector<1x128xf32> to vector<16x128xf32>
    %186 = arith.addf %184, %185 : vector<16x128xf32>
    %cst_52 = arith.constant 0.000000e+00 : f32
    %187 = vector.broadcast %cst_52 : f32 to vector<16x128xf32>
    %188 = arith.maximumf %186, %187 : vector<16x128xf32>
    %c0_53 = arith.constant 0 : index
    %c0_54 = arith.constant 0 : index
    %189 = vector.load %arg7[%c0_53, %c0_54] : memref<128x128xf32, #tpu.memory_space<vmem>>, vector<128x128xf32>
    %cst_55 = arith.constant dense<0.000000e+00> : vector<16x128xf32>
    %190 = tpu.matmul %188, %189, %cst_55 {dimension_numbers = #tpu.dot_dimension_numbers<[1], [0], [0], [1], [0, 0, 1, 1], [], []>} : vector<16x128xf32>, vector<128x128xf32>, vector<16x128xf32> -> vector<16x128xf32>
    %c0_56 = arith.constant 0 : index
    %c0_57 = arith.constant 0 : index
    %191 = vector.load %arg8[%c0_56, %c0_57] : memref<1x128xf32, #tpu.memory_space<vmem>>, vector<1x128xf32>
    %192 = vector.broadcast %191 : vector<1x128xf32> to vector<16x128xf32>
    %193 = arith.addf %190, %192 : vector<16x128xf32>
    %c0_58 = arith.constant 0 : index
    %c0_59 = arith.constant 0 : index
    %194 = vector.load %arg10[%c0_58, %c0_59] : memref<16x128xf32, #tpu.memory_space<vmem>>, vector<16x128xf32>
    tpu.vector_store %arg10[%c0_58, %c0_59], %193 {strides = array<i32>} : memref<16x128xf32, #tpu.memory_space<vmem>>, vector<16x128xf32>,
    return
  }
  func.func @transform_0(%arg0: i32) -> (i32, i32, i32) {
    %c0_i32 = arith.constant 0 : i32
    %c0_i32_0 = arith.constant 0 : i32
    %c0_i32_1 = arith.constant 0 : i32
    return %arg0, %c0_i32, %c0_i32_0 : i32, i32, i32
  }
  func.func @transform_1(%arg0: i32) -> (i32, i32, i32) {
    %c0_i32 = arith.constant 0 : i32
    %c0_i32_0 = arith.constant 0 : i32
    %c0_i32_1 = arith.constant 0 : i32
    return %arg0, %c0_i32, %c0_i32_0 : i32, i32, i32
  }
  func.func @transform_2(%arg0: i32) -> (i32, i32) {
    %c0_i32 = arith.constant 0 : i32
    %c0_i32_0 = arith.constant 0 : i32
    %c0_i32_1 = arith.constant 0 : i32
    return %c0_i32, %c0_i32_0 : i32, i32
  }
  func.func @transform_3(%arg0: i32) -> (i32, i32) {
    %c0_i32 = arith.constant 0 : i32
    %c0_i32_0 = arith.constant 0 : i32
    %c0_i32_1 = arith.constant 0 : i32
    return %c0_i32, %c0_i32_0 : i32, i32
  }
  func.func @transform_4(%arg0: i32) -> (i32, i32) {
    %c0_i32 = arith.constant 0 : i32
    %c0_i32_0 = arith.constant 0 : i32
    %c0_i32_1 = arith.constant 0 : i32
    return %c0_i32, %c0_i32_0 : i32, i32
  }
  func.func @transform_5(%arg0: i32) -> (i32, i32) {
    %c0_i32 = arith.constant 0 : i32
    %c0_i32_0 = arith.constant 0 : i32
    %c0_i32_1 = arith.constant 0 : i32
    return %c0_i32, %c0_i32_0 : i32, i32
  }
  func.func @transform_6(%arg0: i32) -> (i32, i32) {
    %c0_i32 = arith.constant 0 : i32
    %c0_i32_0 = arith.constant 0 : i32
    %c0_i32_1 = arith.constant 0 : i32
    return %c0_i32, %c0_i32_0 : i32, i32
  }
  func.func @transform_7(%arg0: i32) -> (i32, i32) {
    %c0_i32 = arith.constant 0 : i32
    %c0_i32_0 = arith.constant 0 : i32
    %c0_i32_1 = arith.constant 0 : i32
    return %c0_i32, %c0_i32_0 : i32, i32
  }
  func.func @transform_8(%arg0: i32) -> (i32, i32) {
    %c0_i32 = arith.constant 0 : i32
    %c0_i32_0 = arith.constant 0 : i32
    %c0_i32_1 = arith.constant 0 : i32
    return %c0_i32, %c0_i32_0 : i32, i32
  }
  func.func @transform_9(%arg0: i32) -> (i32, i32) {
    %c0_i32 = arith.constant 0 : i32
    %c0_i32_0 = arith.constant 0 : i32
    return %arg0, %c0_i32 : i32, i32
  }
}

module attributes {stable_mosaic.version = 11 : i64} {
  func.func @krafft_kernel(%arg0: i32, %arg1: memref<16x16x16xf32, #tpu.memory_space<vmem>>, %arg2: memref<16x16x4xf32, #tpu.memory_space<vmem>>, %arg3: memref<4x128xf32, #tpu.memory_space<vmem>>, %arg4: memref<128x128xf32, #tpu.memory_space<vmem>>, %arg5: memref<256x128xf32, #tpu.memory_space<vmem>>, %arg6: memref<128x128xf32, #tpu.memory_space<vmem>>, %arg7: memref<128x128xf32, #tpu.memory_space<vmem>>, %arg8: memref<1x128xf32, #tpu.memory_space<vmem>>, %arg9: memref<16x128xf32, #tpu.memory_space<vmem>>, %arg10: memref<16x128xf32, #tpu.memory_space<vmem>>) attributes {dimension_semantics = [#tpu.dimension_semantics<parallel>], iteration_bounds = array<i64: 1>, scalar_prefetch = 0 : i64, scratch_operands = 0 : i64, tpu.core_type = #tpu.core_type<tc>, window_params = [{transform_indices = @transform_0, window_bounds = array<i64: 16, 16, 16>}, {transform_indices = @transform_1, window_bounds = array<i64: 16, 16, 4>}, {pipeline_mode = #tpu.pipeline_mode<synchronous>, transform_indices = @transform_2, window_bounds = array<i64: 4, 128>}, {pipeline_mode = #tpu.pipeline_mode<synchronous>, transform_indices = @transform_3, window_bounds = array<i64: 128, 128>}, {pipeline_mode = #tpu.pipeline_mode<synchronous>, transform_indices = @transform_4, window_bounds = array<i64: 256, 128>}, {pipeline_mode = #tpu.pipeline_mode<synchronous>, transform_indices = @transform_5, window_bounds = array<i64: 128, 128>}, {pipeline_mode = #tpu.pipeline_mode<synchronous>, transform_indices = @transform_6, window_bounds = array<i64: 128, 128>}, {pipeline_mode = #tpu.pipeline_mode<synchronous>, transform_indices = @transform_7, window_bounds = array<i64: 1, 128>}, {pipeline_mode = #tpu.pipeline_mode<synchronous>, transform_indices = @transform_8, window_bounds = array<i64: 16, 128>}, {transform_indices = @transform_9, window_bounds = array<i64: 16, 128>}]} {
    %c0 = arith.constant 0 : index
    %c0_0 = arith.constant 0 : index
    %0 = vector.load %arg9[%c0, %c0_0] : memref<16x128xf32, #tpu.memory_space<vmem>>, vector<16x128xf32>
    %1 = vector.extract_strided_slice %0 {offsets = [0, 0], sizes = [1, 128], strides = [1, 1]} : vector<16x128xf32> to vector<1x128xf32>
    %2 = vector.extract_strided_slice %0 {offsets = [1, 0], sizes = [1, 128], strides = [1, 1]} : vector<16x128xf32> to vector<1x128xf32>
    %3 = vector.extract_strided_slice %0 {offsets = [2, 0], sizes = [1, 128], strides = [1, 1]} : vector<16x128xf32> to vector<1x128xf32>
    %4 = vector.extract_strided_slice %0 {offsets = [3, 0], sizes = [1, 128], strides = [1, 1]} : vector<16x128xf32> to vector<1x128xf32>
    %5 = vector.extract_strided_slice %0 {offsets = [4, 0], sizes = [1, 128], strides = [1, 1]} : vector<16x128xf32> to vector<1x128xf32>
    %6 = vector.extract_strided_slice %0 {offsets = [5, 0], sizes = [1, 128], strides = [1, 1]} : vector<16x128xf32> to vector<1x128xf32>
    %7 = vector.extract_strided_slice %0 {offsets = [6, 0], sizes = [1, 128], strides = [1, 1]} : vector<16x128xf32> to vector<1x128xf32>
    %8 = vector.extract_strided_slice %0 {offsets = [7, 0], sizes = [1, 128], strides = [1, 1]} : vector<16x128xf32> to vector<1x128xf32>
    %9 = vector.extract_strided_slice %0 {offsets = [8, 0], sizes = [1, 128], strides = [1, 1]} : vector<16x128xf32> to vector<1x128xf32>
    %10 = vector.extract_strided_slice %0 {offsets = [9, 0], sizes = [1, 128], strides = [1, 1]} : vector<16x128xf32> to vector<1x128xf32>
    %11 = vector.extract_strided_slice %0 {offsets = [10, 0], sizes = [1, 128], strides = [1, 1]} : vector<16x128xf32> to vector<1x128xf32>
    %12 = vector.extract_strided_slice %0 {offsets = [11, 0], sizes = [1, 128], strides = [1, 1]} : vector<16x128xf32> to vector<1x128xf32>
    %13 = tpu.iota {dimensions = array<i32: 1>} : vector<1x128xi32>
    %c32_i32 = arith.constant 32 : i32
    %14 = vector.broadcast %c32_i32 : i32 to vector<1x128xi32>
    %15 = arith.cmpi slt, %13, %14 : vector<1x128xi32>
    %16 = arith.extui %15 : vector<1x128xi1> to vector<1x128xi32>
    %17 = arith.sitofp %16 : vector<1x128xi32> to vector<1x128xf32>
    %18 = tpu.iota {dimensions = array<i32: 1>} : vector<1x16x1xi32>
    %c10_i32 = arith.constant 10 : i32
    %19 = vector.broadcast %c10_i32 : i32 to vector<1x16x1xi32>
    %20 = arith.cmpi slt, %18, %19 : vector<1x16x1xi32>
    %21 = arith.extui %20 : vector<1x16x1xi1> to vector<1x16x1xi32>
    %22 = arith.sitofp %21 : vector<1x16x1xi32> to vector<1x16x1xf32>
    %c0_1 = arith.constant 0 : index
    %c0_2 = arith.constant 0 : index
    %c0_3 = arith.constant 0 : index
    %23 = vector.load %arg1[%c0_1, %c0_2, %c0_3] : memref<16x16x16xf32, #tpu.memory_space<vmem>>, vector<16x16x16xf32>
    %c0_4 = arith.constant 0 : index
    %c0_5 = arith.constant 0 : index
    %c0_6 = arith.constant 0 : index
    %24 = vector.load %arg2[%c0_4, %c0_5, %c0_6] : memref<16x16x4xf32, #tpu.memory_space<vmem>>, vector<16x16x4xf32>
    %25 = vector.shape_cast %24 : vector<16x16x4xf32> to vector<256x4xf32>
    %26 = vector.extract_strided_slice %25 {offsets = [0, 0], sizes = [256, 1], strides = [1, 1]} : vector<256x4xf32> to vector<256x1xf32>
    %c0_7 = arith.constant 0 : index
    %c0_8 = arith.constant 0 : index
    %27 = vector.load %arg3[%c0_7, %c0_8] : memref<4x128xf32, #tpu.memory_space<vmem>>, vector<1x128xf32>
    %28 = vector.broadcast %26 : vector<256x1xf32> to vector<256x128xf32>
    %29 = vector.broadcast %27 : vector<1x128xf32> to vector<256x128xf32>
    %30 = arith.mulf %28, %29 : vector<256x128xf32>
    %31 = vector.extract_strided_slice %25 {offsets = [0, 1], sizes = [256, 1], strides = [1, 1]} : vector<256x4xf32> to vector<256x1xf32>
    %c1 = arith.constant 1 : index
    %c0_9 = arith.constant 0 : index
    %32 = vector.load %arg3[%c1, %c0_9] : memref<4x128xf32, #tpu.memory_space<vmem>>, vector<1x128xf32>
    %33 = vector.broadcast %31 : vector<256x1xf32> to vector<256x128xf32>
    %34 = vector.broadcast %32 : vector<1x128xf32> to vector<256x128xf32>
    %35 = arith.mulf %33, %34 : vector<256x128xf32>
    %36 = arith.addf %30, %35 : vector<256x128xf32>
    %37 = vector.extract_strided_slice %25 {offsets = [0, 2], sizes = [256, 1], strides = [1, 1]} : vector<256x4xf32> to vector<256x1xf32>
    %c2 = arith.constant 2 : index
    %c0_10 = arith.constant 0 : index
    %38 = vector.load %arg3[%c2, %c0_10] : memref<4x128xf32, #tpu.memory_space<vmem>>, vector<1x128xf32>
    %39 = vector.broadcast %37 : vector<256x1xf32> to vector<256x128xf32>
    %40 = vector.broadcast %38 : vector<1x128xf32> to vector<256x128xf32>
    %41 = arith.mulf %39, %40 : vector<256x128xf32>
    %42 = arith.addf %36, %41 : vector<256x128xf32>
    %43 = vector.extract_strided_slice %25 {offsets = [0, 3], sizes = [256, 1], strides = [1, 1]} : vector<256x4xf32> to vector<256x1xf32>
    %c3 = arith.constant 3 : index
    %c0_11 = arith.constant 0 : index
    %44 = vector.load %arg3[%c3, %c0_11] : memref<4x128xf32, #tpu.memory_space<vmem>>, vector<1x128xf32>
    %45 = vector.broadcast %43 : vector<256x1xf32> to vector<256x128xf32>
    %46 = vector.broadcast %44 : vector<1x128xf32> to vector<256x128xf32>
    %47 = arith.mulf %45, %46 : vector<256x128xf32>
    %48 = arith.addf %42, %47 : vector<256x128xf32>
    %49 = vector.shape_cast %48 : vector<256x128xf32> to vector<16x16x128xf32>
    "tpu.trace_start"() <{level = 10 : i32, message = "bnm,bmh->bnh"}> : () -> ()
    %cst = arith.constant dense<0.000000e+00> : vector<16x16x128xf32>
    %50 = tpu.matmul %23, %49, %cst {dimension_numbers = #tpu.dot_dimension_numbers<[2], [1], [1], [2], [0, 0, 0, 1, 1, 2], [0], [0]>} : vector<16x16x16xf32>, vector<16x16x128xf32>, vector<16x16x128xf32> -> vector<16x16x128xf32>
    "tpu.trace_stop"() : () -> ()
    %51 = vector.shape_cast %50 : vector<16x16x128xf32> to vector<256x128xf32>
    %52 = vector.broadcast %1 : vector<1x128xf32> to vector<256x128xf32>
    %53 = arith.addf %51, %52 : vector<256x128xf32>
    %cst_12 = arith.constant dense<0.000000e+00> : vector<256xf32>
    %54 = vector.multi_reduction <add>, %53, %cst_12 [1] : vector<256x128xf32> to vector<256xf32>
    %55 = vector.shape_cast %54 : vector<256xf32> to vector<256x1xf32>
    %cst_13 = arith.constant 3.125000e-02 : f32
    %56 = vector.broadcast %cst_13 : f32 to vector<256x1xf32>
    %57 = arith.mulf %55, %56 : vector<256x1xf32>
    %58 = vector.broadcast %57 : vector<256x1xf32> to vector<256x128xf32>
    %59 = arith.subf %53, %58 : vector<256x128xf32>
    %60 = vector.broadcast %17 : vector<1x128xf32> to vector<256x128xf32>
    %61 = arith.mulf %59, %60 : vector<256x128xf32>
    %62 = arith.mulf %61, %61 : vector<256x128xf32>
    %cst_14 = arith.constant dense<0.000000e+00> : vector<256xf32>
    %63 = vector.multi_reduction <add>, %62, %cst_14 [1] : vector<256x128xf32> to vector<256xf32>
    %64 = vector.shape_cast %63 : vector<256xf32> to vector<256x1xf32>
    %cst_15 = arith.constant 3.125000e-02 : f32
    %65 = vector.broadcast %cst_15 : f32 to vector<256x1xf32>
    %66 = arith.mulf %64, %65 : vector<256x1xf32>
    %cst_16 = arith.constant 9.99999974E-6 : f32
    %67 = vector.broadcast %cst_16 : f32 to vector<256x1xf32>
    %68 = arith.addf %66, %67 : vector<256x1xf32>
    %69 = math.rsqrt %68 : vector<256x1xf32>
    %70 = vector.broadcast %69 : vector<256x1xf32> to vector<256x128xf32>
    %71 = arith.mulf %61, %70 : vector<256x128xf32>
    %72 = vector.broadcast %5 : vector<1x128xf32> to vector<256x128xf32>
    %73 = arith.mulf %71, %72 : vector<256x128xf32>
    %74 = vector.broadcast %6 : vector<1x128xf32> to vector<256x128xf32>
    %75 = arith.addf %73, %74 : vector<256x128xf32>
    %cst_17 = arith.constant 0.000000e+00 : f32
    %76 = vector.broadcast %cst_17 : f32 to vector<256x128xf32>
    %77 = arith.maximumf %75, %76 : vector<256x128xf32>
    %c0_18 = arith.constant 0 : index
    %c0_19 = arith.constant 0 : index
    %78 = vector.load %arg4[%c0_18, %c0_19] : memref<128x128xf32, #tpu.memory_space<vmem>>, vector<128x128xf32>
    %cst_20 = arith.constant dense<0.000000e+00> : vector<256x128xf32>
    %79 = tpu.matmul %77, %78, %cst_20 {dimension_numbers = #tpu.dot_dimension_numbers<[1], [0], [0], [1], [0, 0, 1, 1], [], []>} : vector<256x128xf32>, vector<128x128xf32>, vector<256x128xf32> -> vector<256x128xf32>
    %80 = vector.shape_cast %79 : vector<256x128xf32> to vector<16x16x128xf32>
    "tpu.trace_start"() <{level = 10 : i32, message = "bnm,bmh->bnh"}> : () -> ()
    %cst_21 = arith.constant dense<0.000000e+00> : vector<16x16x128xf32>
    %81 = tpu.matmul %23, %80, %cst_21 {dimension_numbers = #tpu.dot_dimension_numbers<[2], [1], [1], [2], [0, 0, 0, 1, 1, 2], [0], [0]>} : vector<16x16x16xf32>, vector<16x16x128xf32>, vector<16x16x128xf32> -> vector<16x16x128xf32>
    "tpu.trace_stop"() : () -> ()
    %82 = vector.shape_cast %81 : vector<16x16x128xf32> to vector<256x128xf32>
    %83 = vector.broadcast %2 : vector<1x128xf32> to vector<256x128xf32>
    %84 = arith.addf %82, %83 : vector<256x128xf32>
    %cst_22 = arith.constant dense<0.000000e+00> : vector<256xf32>
    %85 = vector.multi_reduction <add>, %84, %cst_22 [1] : vector<256x128xf32> to vector<256xf32>
    %86 = vector.shape_cast %85 : vector<256xf32> to vector<256x1xf32>
    %cst_23 = arith.constant 3.125000e-02 : f32
    %87 = vector.broadcast %cst_23 : f32 to vector<256x1xf32>
    %88 = arith.mulf %86, %87 : vector<256x1xf32>
    %89 = vector.broadcast %88 : vector<256x1xf32> to vector<256x128xf32>
    %90 = arith.subf %84, %89 : vector<256x128xf32>
    %91 = vector.broadcast %17 : vector<1x128xf32> to vector<256x128xf32>
    %92 = arith.mulf %90, %91 : vector<256x128xf32>
    %93 = arith.mulf %92, %92 : vector<256x128xf32>
    %cst_24 = arith.constant dense<0.000000e+00> : vector<256xf32>
    %94 = vector.multi_reduction <add>, %93, %cst_24 [1] : vector<256x128xf32> to vector<256xf32>
    %95 = vector.shape_cast %94 : vector<256xf32> to vector<256x1xf32>
    %cst_25 = arith.constant 3.125000e-02 : f32
    %96 = vector.broadcast %cst_25 : f32 to vector<256x1xf32>
    %97 = arith.mulf %95, %96 : vector<256x1xf32>
    %cst_26 = arith.constant 9.99999974E-6 : f32
    %98 = vector.broadcast %cst_26 : f32 to vector<256x1xf32>
    %99 = arith.addf %97, %98 : vector<256x1xf32>
    %100 = math.rsqrt %99 : vector<256x1xf32>
    %101 = vector.broadcast %100 : vector<256x1xf32> to vector<256x128xf32>
    %102 = arith.mulf %92, %101 : vector<256x128xf32>
    %103 = vector.broadcast %7 : vector<1x128xf32> to vector<256x128xf32>
    %104 = arith.mulf %102, %103 : vector<256x128xf32>
    %105 = vector.broadcast %8 : vector<1x128xf32> to vector<256x128xf32>
    %106 = arith.addf %104, %105 : vector<256x128xf32>
    %cst_27 = arith.constant 0.000000e+00 : f32
    %107 = vector.broadcast %cst_27 : f32 to vector<256x128xf32>
    %108 = arith.maximumf %106, %107 : vector<256x128xf32>
    %109 = vector.shape_cast %108 : vector<256x128xf32> to vector<16x16x128xf32>
    %110 = vector.broadcast %22 : vector<1x16x1xf32> to vector<16x16x128xf32>
    %111 = arith.mulf %109, %110 : vector<16x16x128xf32>
    %cst_28 = arith.constant dense<0.000000e+00> : vector<16x128xf32>
    %112 = vector.multi_reduction <add>, %111, %cst_28 [1] : vector<16x16x128xf32> to vector<16x128xf32>
    %cst_29 = arith.constant 1.000000e-01 : f32
    %113 = vector.broadcast %cst_29 : f32 to vector<16x128xf32>
    %114 = arith.mulf %112, %113 : vector<16x128xf32>
    %115 = arith.mulf %114, %114 : vector<16x128xf32>
    %cst_30 = arith.constant dense<0.000000e+00> : vector<16xf32>
    %116 = vector.multi_reduction <add>, %115, %cst_30 [1] : vector<16x128xf32> to vector<16xf32>
    %117 = vector.shape_cast %116 : vector<16xf32> to vector<16x1xf32>
    %cst_31 = arith.constant 1.000000e-24 : f32
    %118 = vector.broadcast %cst_31 : f32 to vector<16x1xf32>
    %119 = arith.maximumf %117, %118 : vector<16x1xf32>
    %120 = math.rsqrt %119 : vector<16x1xf32>
    %121 = vector.broadcast %120 : vector<16x1xf32> to vector<16x128xf32>
    %122 = arith.mulf %114, %121 : vector<16x128xf32>
    %cst_32 = arith.constant dense<0xFF800000> : vector<16x128xf32>
    %123 = vector.multi_reduction <maximumf>, %111, %cst_32 [1] : vector<16x16x128xf32> to vector<16x128xf32>
    %124 = arith.mulf %123, %123 : vector<16x128xf32>
    %cst_33 = arith.constant dense<0.000000e+00> : vector<16xf32>
    %125 = vector.multi_reduction <add>, %124, %cst_33 [1] : vector<16x128xf32> to vector<16xf32>
    %126 = vector.shape_cast %125 : vector<16xf32> to vector<16x1xf32>
    %cst_34 = arith.constant 1.000000e-24 : f32
    %127 = vector.broadcast %cst_34 : f32 to vector<16x1xf32>
    %128 = arith.maximumf %126, %127 : vector<16x1xf32>
    %129 = math.rsqrt %128 : vector<16x1xf32>
    %130 = vector.broadcast %129 : vector<16x1xf32> to vector<16x128xf32>
    %131 = arith.mulf %123, %130 : vector<16x128xf32>
    %132 = tpu.concatenate %122, %131 in 1 : vector<16x128xf32>, vector<16x128xf32> -> vector<16x256xf32>
    %c0_35 = arith.constant 0 : index
    %c0_36 = arith.constant 0 : index
    %133 = vector.load %arg5[%c0_35, %c0_36] : memref<256x128xf32, #tpu.memory_space<vmem>>, vector<256x128xf32>
    %cst_37 = arith.constant dense<0.000000e+00> : vector<16x128xf32>
    %134 = tpu.matmul %132, %133, %cst_37 {dimension_numbers = #tpu.dot_dimension_numbers<[1], [0], [0], [1], [0, 0, 1, 1], [], []>} : vector<16x256xf32>, vector<256x128xf32>, vector<16x128xf32> -> vector<16x128xf32>
    %135 = vector.broadcast %3 : vector<1x128xf32> to vector<16x128xf32>
    %136 = arith.addf %134, %135 : vector<16x128xf32>
    %cst_38 = arith.constant dense<0.000000e+00> : vector<16xf32>
    %137 = vector.multi_reduction <add>, %136, %cst_38 [1] : vector<16x128xf32> to vector<16xf32>
    %138 = vector.shape_cast %137 : vector<16xf32> to vector<16x1xf32>
    %cst_39 = arith.constant 3.125000e-02 : f32
    %139 = vector.broadcast %cst_39 : f32 to vector<16x1xf32>
    %140 = arith.mulf %138, %139 : vector<16x1xf32>
    %141 = vector.broadcast %140 : vector<16x1xf32> to vector<16x128xf32>
    %142 = arith.subf %136, %141 : vector<16x128xf32>
    %143 = vector.broadcast %17 : vector<1x128xf32> to vector<16x128xf32>
    %144 = arith.mulf %142, %143 : vector<16x128xf32>
    %145 = arith.mulf %144, %144 : vector<16x128xf32>
    %cst_40 = arith.constant dense<0.000000e+00> : vector<16xf32>
    %146 = vector.multi_reduction <add>, %145, %cst_40 [1] : vector<16x128xf32> to vector<16xf32>
    %147 = vector.shape_cast %146 : vector<16xf32> to vector<16x1xf32>
    %cst_41 = arith.constant 3.125000e-02 : f32
    %148 = vector.broadcast %cst_41 : f32 to vector<16x1xf32>
    %149 = arith.mulf %147, %148 : vector<16x1xf32>
    %cst_42 = arith.constant 9.99999974E-6 : f32
    %150 = vector.broadcast %cst_42 : f32 to vector<16x1xf32>
    %151 = arith.addf %149, %150 : vector<16x1xf32>
    %152 = math.rsqrt %151 : vector<16x1xf32>
    %153 = vector.broadcast %152 : vector<16x1xf32> to vector<16x128xf32>
    %154 = arith.mulf %144, %153 : vector<16x128xf32>
    %155 = vector.broadcast %9 : vector<1x128xf32> to vector<16x128xf32>
    %156 = arith.mulf %154, %155 : vector<16x128xf32>
    %157 = vector.broadcast %10 : vector<1x128xf32> to vector<16x128xf32>
    %158 = arith.addf %156, %157 : vector<16x128xf32>
    %cst_43 = arith.constant 0.000000e+00 : f32
    %159 = vector.broadcast %cst_43 : f32 to vector<16x128xf32>
    %160 = arith.maximumf %158, %159 : vector<16x128xf32>
    %c0_44 = arith.constant 0 : index
    %c0_45 = arith.constant 0 : index
    %161 = vector.load %arg6[%c0_44, %c0_45] : memref<128x128xf32, #tpu.memory_space<vmem>>, vector<128x128xf32>
    %cst_46 = arith.constant dense<0.000000e+00> : vector<16x128xf32>
    %162 = tpu.matmul %160, %161, %cst_46 {dimension_numbers = #tpu.dot_dimension_numbers<[1], [0], [0], [1], [0, 0, 1, 1], [], []>} : vector<16x128xf32>, vector<128x128xf32>, vector<16x128xf32> -> vector<16x128xf32>
    %163 = vector.broadcast %4 : vector<1x128xf32> to vector<16x128xf32>
    %164 = arith.addf %162, %163 : vector<16x128xf32>
    %cst_47 = arith.constant dense<0.000000e+00> : vector<16xf32>
    %165 = vector.multi_reduction <add>, %164, %cst_47 [1] : vector<16x128xf32> to vector<16xf32>
    %166 = vector.shape_cast %165 : vector<16xf32> to vector<16x1xf32>
    %cst_48 = arith.constant 3.125000e-02 : f32
    %167 = vector.broadcast %cst_48 : f32 to vector<16x1xf32>
    %168 = arith.mulf %166, %167 : vector<16x1xf32>
    %169 = vector.broadcast %168 : vector<16x1xf32> to vector<16x128xf32>
    %170 = arith.subf %164, %169 : vector<16x128xf32>
    %171 = vector.broadcast %17 : vector<1x128xf32> to vector<16x128xf32>
    %172 = arith.mulf %170, %171 : vector<16x128xf32>
    %173 = arith.mulf %172, %172 : vector<16x128xf32>
    %cst_49 = arith.constant dense<0.000000e+00> : vector<16xf32>
    %174 = vector.multi_reduction <add>, %173, %cst_49 [1] : vector<16x128xf32> to vector<16xf32>
    %175 = vector.shape_cast %174 : vector<16xf32> to vector<16x1xf32>
    %cst_50 = arith.constant 3.125000e-02 : f32
    %176 = vector.broadcast %cst_50 : f32 to vector<16x1xf32>
    %177 = arith.mulf %175, %176 : vector<16x1xf32>
    %cst_51 = arith.constant 9.99999974E-6 : f32
    %178 = vector.broadcast %cst_51 : f32 to vector<16x1xf32>
    %179 = arith.addf %177, %178 : vector<16x1xf32>
    %180 = math.rsqrt %179 : vector<16x1xf32>
    %181 = vector.broadcast %180 : vector<16x1xf32> to vector<16x128xf32>
    %182 = arith.mulf %172, %181 : vector<16x128xf32>
    %183 = vector.broadcast %11 : vector<1x128xf32> to vector<16x128xf32>
    %184 = arith.mulf %182, %183 : vector<16x128xf32>
    %185 = vector.broadcast %12 : vector<1x128xf32> to vector<16x128xf32>
    %186 = arith.addf %184, %185 : vector<16x128xf32>
    %cst_52 = arith.constant 0.000000e+00 : f32
    %187 = vector.broadcast %cst_52 : f32 to vector<16x128xf32>
    %188 = arith.maximumf %186, %187 : vector<16x128xf32>
    %c0_53 = arith.constant 0 : index
    %c0_54 = arith.constant 0 : index
    %189 = vector.load %arg7[%c0_53, %c0_54] : memref<128x128xf32, #tpu.memory_space<vmem>>, vector<128x128xf32>
    %cst_55 = arith.constant dense<0.000000e+00> : vector<16x128xf32>
    %190 = tpu.matmul %188, %189, %cst_55 {dimension_numbers = #tpu.dot_dimension_numbers<[1], [0], [0], [1], [0, 0, 1, 1], [], []>} : vector<16x128xf32>, vector<128x128xf32>, vector<16x128xf32> -> vector<16x128xf32>
    %c0_56 = arith.constant 0 : index
    %c0_57 = arith.constant 0 : index
    %191 = vector.load %arg8[%c0_56, %c0_57] : memref<1x128xf32, #tpu.memory_space<vmem>>, vector<1x128xf32>
    %192 = vector.broadcast %191 : vector<1x128xf32> to vector<16x128xf32>
    %193 = arith.addf %190, %192 : vector<16x128xf32>
    %c0_58 = arith.constant 0 : index
    %c0_59 = arith.constant 0 : index
    %194 = vector.load %arg10[%c0_58, %c0_59] : memref<16x128xf32, #tpu.memory_space<vmem>>, vector<16x128xf32>
    tpu.vector_store %arg10[%c0_58, %c0_59], %193 {strides = array<i32>} : memref<16x128xf32, #tpu.memory_space<vmem>>, vector<16x128xf32>,
    return
  }
  func.func @transform_0(%arg0: i32) -> (i32, i32, i32) {
    %c0_i32 = arith.constant 0 : i32
    %c0_i32_0 = arith.constant 0 : i32
    %c0_i32_1 = arith.constant 0 : i32
    return %arg0, %c0_i32, %c0_i32_0 : i32, i32, i32
  }
  func.func @transform_1(%arg0: i32) -> (i32, i32, i32) {
    %c0_i32 = arith.constant 0 : i32
    %c0_i32_0 = arith.constant 0 : i32
    %c0_i32_1 = arith.constant 0 : i32
    return %arg0, %c0_i32, %c0_i32_0 : i32, i32, i32
  }
  func.func @transform_2(%arg0: i32) -> (i32, i32) {
    %c0_i32 = arith.constant 0 : i32
    %c0_i32_0 = arith.constant 0 : i32
    %c0_i32_1 = arith.constant 0 : i32
    return %c0_i32, %c0_i32_0 : i32, i32
  }
  func.func @transform_3(%arg0: i32) -> (i32, i32) {
    %c0_i32 = arith.constant 0 : i32
    %c0_i32_0 = arith.constant 0 : i32
    %c0_i32_1 = arith.constant 0 : i32
    return %c0_i32, %c0_i32_0 : i32, i32
  }
  func.func @transform_4(%arg0: i32) -> (i32, i32) {
    %c0_i32 = arith.constant 0 : i32
    %c0_i32_0 = arith.constant 0 : i32
    %c0_i32_1 = arith.constant 0 : i32
    return %c0_i32, %c0_i32_0 : i32, i32
  }
  func.func @transform_5(%arg0: i32) -> (i32, i32) {
    %c0_i32 = arith.constant 0 : i32
    %c0_i32_0 = arith.constant 0 : i32
    %c0_i32_1 = arith.constant 0 : i32
    return %c0_i32, %c0_i32_0 : i32, i32
  }
  func.func @transform_6(%arg0: i32) -> (i32, i32) {
    %c0_i32 = arith.constant 0 : i32
    %c0_i32_0 = arith.constant 0 : i32
    %c0_i32_1 = arith.constant 0 : i32
    return %c0_i32, %c0_i32_0 : i32, i32
  }
  func.func @transform_7(%arg0: i32) -> (i32, i32) {
    %c0_i32 = arith.constant 0 : i32
    %c0_i32_0 = arith.constant 0 : i32
    %c0_i32_1 = arith.constant 0 : i32
    return %c0_i32, %c0_i32_0 : i32, i32
  }
  func.func @transform_8(%arg0: i32) -> (i32, i32) {
    %c0_i32 = arith.constant 0 : i32
    %c0_i32_0 = arith.constant 0 : i32
    %c0_i32_1 = arith.constant 0 : i32
    return %c0_i32, %c0_i32_0 : i32, i32
  }
  func.func @transform_9(%arg0: i32) -> (i32, i32) {
    %c0_i32 = arith.constant 0 : i32
    %c0_i32_0 = arith.constant 0 : i32
    return %arg0, %c0_i32 : i32, i32
  }
}

</mosaic_0001>

<llo_original>
// kernel: tpu_custom_call.1
$region0: #{tpu_custom_call.1}
  #allocation0 [shape = 'u32[]', space=smem, size = 0x4, offset = 0x4, fixed_abs, tag = 'smem constant byte address 0x4 - core index']
  #allocation1 [shape = 'u32[144,128]{1,0:T(1,128)}', space=vmem, size = 0x12000, scoped, tag = 'internal scratch']
  %s0 = inlined_call_operand.hbm [shape: f32[16,16,16], index: 0, kind: input, shape index: {}]
  %s1 = inlined_call_operand.hbm [shape: f32[16,16,4], index: 1, kind: input, shape index: {}]
  %s2 = inlined_call_operand.hbm [shape: f32[4,128], index: 2, kind: input, shape index: {}]
  %s3 = inlined_call_operand.hbm [shape: f32[128,128], index: 3, kind: input, shape index: {}]
  %s4 = inlined_call_operand.hbm [shape: f32[256,128], index: 4, kind: input, shape index: {}]
  %s5 = inlined_call_operand.hbm [shape: f32[128,128], index: 5, kind: input, shape index: {}]
  %s6 = inlined_call_operand.hbm [shape: f32[128,128], index: 6, kind: input, shape index: {}]
  %s7 = inlined_call_operand.hbm [shape: f32[1,128], index: 7, kind: input, shape index: {}]
  %s8 = inlined_call_operand.hbm [shape: f32[16,128], index: 8, kind: input, shape index: {}]
  %s9 = inlined_call_operand.hbm [shape: f32[16,128], index: 9, kind: output, shape index: {}]
  %s10 = sld [smem:[#allocation0]]
  $region82: #{tpu_custom_call.1} parent=0
    _
  %s12 = ssub.s32 1, %s10
  %s13 = scalar_select 0, %s12, %s10
  $region1: #{tpu_custom_call.1} parent=0
    #allocation2 [shape = 'u8[131072]{0}', space=vmem, size = 0x20000, scoped, tag = 'input window, operand 0, single buffered']
    #allocation3 [shape = 's32[1]{0}', space=sflag, size = 0x4, scoped, tag = 'scoped memory for tpu_custom_call.1']
    #allocation4 [shape = 's32[1]{0}', space=sflag, size = 0x4, scoped, tag = 'scoped memory for tpu_custom_call.1']
    #allocation5 [shape = 'u8[131072]{0}', space=vmem, size = 0x20000, scoped, tag = 'input window, operand 1, single buffered']
    #allocation6 [shape = 's32[1]{0}', space=sflag, size = 0x4, scoped, tag = 'scoped memory for tpu_custom_call.1']
    #allocation7 [shape = 'u8[2048]{0}', space=vmem, size = 0x800, scoped, tag = 'input window, operand 2, single buffered']
    #allocation8 [shape = 'u8[65536]{0}', space=vmem, size = 0x10000, scoped, tag = 'input window, operand 3, single buffered']
    #allocation9 [shape = 's32[1]{0}', space=sflag, size = 0x4, scoped, tag = 'scoped memory for tpu_custom_call.1']
    #allocation10 [shape = 'u8[131072]{0}', space=vmem, size = 0x20000, scoped, tag = 'input window, operand 4, single buffered']
    #allocation11 [shape = 'u8[65536]{0}', space=vmem, size = 0x10000, scoped, tag = 'input window, operand 5, single buffered']
    #allocation12 [shape = 's32[1]{0}', space=sflag, size = 0x4, scoped, tag = 'scoped memory for tpu_custom_call.1']
    #allocation13 [shape = 'u8[65536]{0}', space=vmem, size = 0x10000, scoped, tag = 'input window, operand 6, single buffered']
    #allocation14 [shape = 'u8[512]{0}', space=vmem, size = 0x400, scoped, tag = 'input window, operand 7, single buffered']
    #allocation15 [shape = 's32[1]{0}', space=sflag, size = 0x4, scoped, tag = 'scoped memory for tpu_custom_call.1']
    #allocation16 [shape = 'u8[8192]{0}', space=vmem, size = 0x2000, scoped, tag = 'input window, operand 8, single buffered']
    #allocation17 [shape = 'u8[8192]{0}', space=vmem, size = 0x2000, scoped, tag = 'output window, operand 0, single buffered']
    %14 = vsyncpa [#allocation3], 0
    %15 = vsyncpa [#allocation6], 0
    %16 = vsyncpa [#allocation9], 0
    %17 = vsyncpa [#allocation12], 0
    %18 = vsyncpa [#allocation15], 0
    %19 = vsyncpa [#allocation4], 0
    // Predicated region
    $region2: #{tpu_custom_call.1} parent=1 // pred_check
      _
    $region3: #{tpu_custom_call.1} parent=1 // pred_check_branch
      %21 = sbr.rel (0) target = $region5
    $region4: #{tpu_custom_call.1} parent=1 // pred_region
      %s23 = ssub.s32 4096, 4096
      %24 = vsyncadd [#allocation3], %s23
      %s25 = sshll.u32 [#allocation2], 4
      %s26 = int_to_ptr.vmem [resolvable:$true] %s25
      %31 = dma.hbm_to_vmem [thread:$0]  %s0, 4096, %s26, [#allocation3], 128, 128, 8
    $region5: #{tpu_custom_call.1} parent=1 // pred_fallthru
      _
    // Predicated region
    $region6: #{tpu_custom_call.1} parent=1 // pred_check
      _
    $region7: #{tpu_custom_call.1} parent=1 // pred_check_branch
      %33 = sbr.rel (0) target = $region9
    $region8: #{tpu_custom_call.1} parent=1 // pred_region
      %s35 = ssub.s32 4096, 4096
      %36 = vsyncadd [#allocation6], %s35
      %s37 = sshll.u32 [#allocation5], 4
      %s38 = int_to_ptr.vmem [resolvable:$true] %s37
      %43 = dma.hbm_to_vmem [thread:$0]  %s1, 4096, %s38, [#allocation6], 128, 128, 8
    $region9: #{tpu_custom_call.1} parent=1 // pred_fallthru
      _
    // Predicated region
    $region10: #{tpu_custom_call.1} parent=1 // pred_check
      _
    $region11: #{tpu_custom_call.1} parent=1 // pred_check_branch
      %45 = sbr.rel (0) target = $region13
    $region12: #{tpu_custom_call.1} parent=1 // pred_region
      %s47 = ssub.s32 64, 64
      %48 = vsyncadd [#allocation6], %s47
      %s50 = sshll.u32 [#allocation7], 4
      %s51 = int_to_ptr.vmem [resolvable:$true] %s50
      %53 = dma.hbm_to_vmem [thread:$0]  %s2, 64, %s51, [#allocation6]
    $region13: #{tpu_custom_call.1} parent=1 // pred_fallthru
      _
    // Predicated region
    $region14: #{tpu_custom_call.1} parent=1 // pred_check
      _
    $region15: #{tpu_custom_call.1} parent=1 // pred_check_branch
      %55 = sbr.rel (0) target = $region17
    $region16: #{tpu_custom_call.1} parent=1 // pred_region
      %s57 = ssub.s32 2048, 2048
      %58 = vsyncadd [#allocation9], %s57
      %s59 = sshll.u32 [#allocation8], 4
      %s60 = int_to_ptr.vmem [resolvable:$true] %s59
      %65 = dma.hbm_to_vmem [thread:$0]  %s3, 2048, %s60, [#allocation9], 128, 128, 8
    $region17: #{tpu_custom_call.1} parent=1 // pred_fallthru
      _
    // Predicated region
    $region18: #{tpu_custom_call.1} parent=1 // pred_check
      _
    $region19: #{tpu_custom_call.1} parent=1 // pred_check_branch
      %67 = sbr.rel (0) target = $region21
    $region20: #{tpu_custom_call.1} parent=1 // pred_region
      %s69 = ssub.s32 4096, 4096
      %70 = vsyncadd [#allocation9], %s69
      %s71 = sshll.u32 [#allocation10], 4
      %s72 = int_to_ptr.vmem [resolvable:$true] %s71
      %77 = dma.hbm_to_vmem [thread:$0]  %s4, 4096, %s72, [#allocation9], 128, 128, 8
    $region21: #{tpu_custom_call.1} parent=1 // pred_fallthru
      _
    // Predicated region
    $region22: #{tpu_custom_call.1} parent=1 // pred_check
      _
    $region23: #{tpu_custom_call.1} parent=1 // pred_check_branch
      %79 = sbr.rel (0) target = $region25
    $region24: #{tpu_custom_call.1} parent=1 // pred_region
      %s81 = ssub.s32 2048, 2048
      %82 = vsyncadd [#allocation12], %s81
      %s83 = sshll.u32 [#allocation11], 4
      %s84 = int_to_ptr.vmem [resolvable:$true] %s83
      %89 = dma.hbm_to_vmem [thread:$0]  %s5, 2048, %s84, [#allocation12], 128, 128, 8
    $region25: #{tpu_custom_call.1} parent=1 // pred_fallthru
      _
    // Predicated region
    $region26: #{tpu_custom_call.1} parent=1 // pred_check
      _
    $region27: #{tpu_custom_call.1} parent=1 // pred_check_branch
      %91 = sbr.rel (0) target = $region29
    $region28: #{tpu_custom_call.1} parent=1 // pred_region
      %s93 = ssub.s32 2048, 2048
      %94 = vsyncadd [#allocation12], %s93
      %s95 = sshll.u32 [#allocation13], 4
      %s96 = int_to_ptr.vmem [resolvable:$true] %s95
      %101 = dma.hbm_to_vmem [thread:$0]  %s6, 2048, %s96, [#allocation12], 128, 128, 8
    $region29: #{tpu_custom_call.1} parent=1 // pred_fallthru
      _
    // Predicated region
    $region30: #{tpu_custom_call.1} parent=1 // pred_check
      _
    $region31: #{tpu_custom_call.1} parent=1 // pred_check_branch
      %103 = sbr.rel (0) target = $region33
    $region32: #{tpu_custom_call.1} parent=1 // pred_region
      %s105 = ssub.s32 16, 16
      %106 = vsyncadd [#allocation15], %s105
      %s108 = sshll.u32 [#allocation14], 4
      %s109 = int_to_ptr.vmem [resolvable:$true] %s108
      %111 = dma.hbm_to_vmem [thread:$0]  %s7, 16, %s109, [#allocation15]
    $region33: #{tpu_custom_call.1} parent=1 // pred_fallthru
      _
    // Predicated region
    $region34: #{tpu_custom_call.1} parent=1 // pred_check
      _
    $region35: #{tpu_custom_call.1} parent=1 // pred_check_branch
      %113 = sbr.rel (0) target = $region37
    $region36: #{tpu_custom_call.1} parent=1 // pred_region
      %s115 = ssub.s32 256, 256
      %116 = vsyncadd [#allocation15], %s115
      %s117 = sshll.u32 [#allocation16], 4
      %s118 = int_to_ptr.vmem [resolvable:$true] %s117
      %123 = dma.hbm_to_vmem [thread:$0]  %s8, 256, %s118, [#allocation15], 128, 128, 8
    $region37: #{tpu_custom_call.1} parent=1 // pred_fallthru
      _
    // Predicated region
    $region38: #{tpu_custom_call.1} parent=1 // pred_check
      _
    $region39: #{tpu_custom_call.1} parent=1 // pred_check_branch
      %125 = sbr.rel (0) target = $region41
    $region40: #{tpu_custom_call.1} parent=1 // pred_region
      %126 = dma.done [#allocation3], 4096
    $region41: #{tpu_custom_call.1} parent=1 // pred_fallthru
      _
    // Predicated region
    $region42: #{tpu_custom_call.1} parent=1 // pred_check
      _
    $region43: #{tpu_custom_call.1} parent=1 // pred_check_branch
      %128 = sbr.rel (0) target = $region45
    $region44: #{tpu_custom_call.1} parent=1 // pred_region
      %129 = dma.done [#allocation6], 4096
    $region45: #{tpu_custom_call.1} parent=1 // pred_fallthru
      _
    // Predicated region
    $region46: #{tpu_custom_call.1} parent=1 // pred_check
      _
    $region47: #{tpu_custom_call.1} parent=1 // pred_check_branch
      %131 = sbr.rel (0) target = $region49
    $region48: #{tpu_custom_call.1} parent=1 // pred_region
      %132 = dma.done [#allocation6], 64
    $region49: #{tpu_custom_call.1} parent=1 // pred_fallthru
      _
    // Predicated region
    $region50: #{tpu_custom_call.1} parent=1 // pred_check
      _
    $region51: #{tpu_custom_call.1} parent=1 // pred_check_branch
      %134 = sbr.rel (0) target = $region53
    $region52: #{tpu_custom_call.1} parent=1 // pred_region
      %135 = dma.done [#allocation9], 2048
    $region53: #{tpu_custom_call.1} parent=1 // pred_fallthru
      _
    // Predicated region
    $region54: #{tpu_custom_call.1} parent=1 // pred_check
      _
    $region55: #{tpu_custom_call.1} parent=1 // pred_check_branch
      %137 = sbr.rel (0) target = $region57
    $region56: #{tpu_custom_call.1} parent=1 // pred_region
      %138 = dma.done [#allocation9], 4096
    $region57: #{tpu_custom_call.1} parent=1 // pred_fallthru
      _
    // Predicated region
    $region58: #{tpu_custom_call.1} parent=1 // pred_check
      _
    $region59: #{tpu_custom_call.1} parent=1 // pred_check_branch
      %140 = sbr.rel (0) target = $region61
    $region60: #{tpu_custom_call.1} parent=1 // pred_region
      %141 = dma.done [#allocation12], 2048
    $region61: #{tpu_custom_call.1} parent=1 // pred_fallthru
      _
    // Predicated region
    $region62: #{tpu_custom_call.1} parent=1 // pred_check
      _
    $region63: #{tpu_custom_call.1} parent=1 // pred_check_branch
      %143 = sbr.rel (0) target = $region65
    $region64: #{tpu_custom_call.1} parent=1 // pred_region
      %144 = dma.done [#allocation12], 2048
    $region65: #{tpu_custom_call.1} parent=1 // pred_fallthru
      _
    // Predicated region
    $region66: #{tpu_custom_call.1} parent=1 // pred_check
      _
    $region67: #{tpu_custom_call.1} parent=1 // pred_check_branch
      %146 = sbr.rel (0) target = $region69
    $region68: #{tpu_custom_call.1} parent=1 // pred_region
      %147 = dma.done [#allocation15], 16
    $region69: #{tpu_custom_call.1} parent=1 // pred_fallthru
      _
    // Predicated region
    $region70: #{tpu_custom_call.1} parent=1 // pred_check
      _
    $region71: #{tpu_custom_call.1} parent=1 // pred_check_branch
      %149 = sbr.rel (0) target = $region73
    $region72: #{tpu_custom_call.1} parent=1 // pred_region
      %150 = dma.done [#allocation15], 256
    $region73: #{tpu_custom_call.1} parent=1 // pred_fallthru
      _
    %v151 = vld [vmem:[#allocation16] sm:$0xff]
    %v152 = vld [vmem:[#allocation16 + $0x8] sm:$0xff]
    %v153 = vlaneseq
    %v154 = vand.u32 %v153, 127
    %vm155 = vcmp.lt.s32.totalorder %v154, 32
    %v156 = vsel %vm155, 1, 0
    %v157 = vcvt.s32.f32 %v156
    %v158 = vlaneseq
    %v159 = vshrl.u32 %v158, 7
    %v160 = vadd.s32 %v159, 8
    %vm161 = vcmp.lt.s32.totalorder %v159, 10
    %vm162 = vcmp.lt.s32.totalorder %v160, 10
    %v163 = vsel %vm161, 1, 0
    %v164 = vsel %vm162, 1, 0
    %v165 = vcvt.s32.f32 %v163
    %v166 = vcvt.s32.f32 %v164
    %v167 = vld [vmem:[#allocation2] sm:$0xff]
    %v168 = vld [vmem:[#allocation2 + $0x8] sm:$0xff]
    %v169 = vld [vmem:[#allocation2 + $0x10] sm:$0xff]
    %v170 = vld [vmem:[#allocation2 + $0x18] sm:$0xff]
    %v171 = vld [vmem:[#allocation2 + $0x20] sm:$0xff]
    %v172 = vld [vmem:[#allocation2 + $0x28] sm:$0xff]
    %v173 = vld [vmem:[#allocation2 + $0x30] sm:$0xff]
    %v174 = vld [vmem:[#allocation2 + $0x38] sm:$0xff]
    %v175 = vld [vmem:[#allocation2 + $0x40] sm:$0xff]
    %v176 = vld [vmem:[#allocation2 + $0x48] sm:$0xff]
    %v177 = vld [vmem:[#allocation2 + $0x50] sm:$0xff]
    %v178 = vld [vmem:[#allocation2 + $0x58] sm:$0xff]
    %v179 = vld [vmem:[#allocation2 + $0x60] sm:$0xff]
    %v180 = vld [vmem:[#allocation2 + $0x68] sm:$0xff]
    %v181 = vld [vmem:[#allocation2 + $0x70] sm:$0xff]
    %v182 = vld [vmem:[#allocation2 + $0x78] sm:$0xff]
    %v183 = vld [vmem:[#allocation2 + $0x80] sm:$0xff]
    %v184 = vld [vmem:[#allocation2 + $0x88] sm:$0xff]
    %v185 = vld [vmem:[#allocation2 + $0x90] sm:$0xff]
    %v186 = vld [vmem:[#allocation2 + $0x98] sm:$0xff]
    %v187 = vld [vmem:[#allocation2 + $0xa0] sm:$0xff]
    %v188 = vld [vmem:[#allocation2 + $0xa8] sm:$0xff]
    %v189 = vld [vmem:[#allocation2 + $0xb0] sm:$0xff]
    %v190 = vld [vmem:[#allocation2 + $0xb8] sm:$0xff]
    %v191 = vld [vmem:[#allocation2 + $0xc0] sm:$0xff]
    %v192 = vld [vmem:[#allocation2 + $0xc8] sm:$0xff]
    %v193 = vld [vmem:[#allocation2 + $0xd0] sm:$0xff]
    %v194 = vld [vmem:[#allocation2 + $0xd8] sm:$0xff]
    %v195 = vld [vmem:[#allocation2 + $0xe0] sm:$0xff]
    %v196 = vld [vmem:[#allocation2 + $0xe8] sm:$0xff]
    %v197 = vld [vmem:[#allocation2 + $0xf0] sm:$0xff]
    %v198 = vld [vmem:[#allocation2 + $0xf8] sm:$0xff]
    %v199 = vld [vmem:[#allocation5] sm:$0xff]
    %v200 = vld [vmem:[#allocation5 + $0x8] sm:$0xff]
    %v201 = vld [vmem:[#allocation5 + $0x10] sm:$0xff]
    %v202 = vld [vmem:[#allocation5 + $0x18] sm:$0xff]
    %v203 = vld [vmem:[#allocation5 + $0x20] sm:$0xff]
    %v204 = vld [vmem:[#allocation5 + $0x28] sm:$0xff]
    %v205 = vld [vmem:[#allocation5 + $0x30] sm:$0xff]
    %v206 = vld [vmem:[#allocation5 + $0x38] sm:$0xff]
    %v207 = vld [vmem:[#allocation5 + $0x40] sm:$0xff]
    %v208 = vld [vmem:[#allocation5 + $0x48] sm:$0xff]
    %v209 = vld [vmem:[#allocation5 + $0x50] sm:$0xff]
    %v210 = vld [vmem:[#allocation5 + $0x58] sm:$0xff]
    %v211 = vld [vmem:[#allocation5 + $0x60] sm:$0xff]
    %v212 = vld [vmem:[#allocation5 + $0x68] sm:$0xff]
    %v213 = vld [vmem:[#allocation5 + $0x70] sm:$0xff]
    %v214 = vld [vmem:[#allocation5 + $0x78] sm:$0xff]
    %v215 = vld [vmem:[#allocation5 + $0x80] sm:$0xff]
    %v216 = vld [vmem:[#allocation5 + $0x88] sm:$0xff]
    %v217 = vld [vmem:[#allocation5 + $0x90] sm:$0xff]
    %v218 = vld [vmem:[#allocation5 + $0x98] sm:$0xff]
    %v219 = vld [vmem:[#allocation5 + $0xa0] sm:$0xff]
    %v220 = vld [vmem:[#allocation5 + $0xa8] sm:$0xff]
    %v221 = vld [vmem:[#allocation5 + $0xb0] sm:$0xff]
    %v222 = vld [vmem:[#allocation5 + $0xb8] sm:$0xff]
    %v223 = vld [vmem:[#allocation5 + $0xc0] sm:$0xff]
    %v224 = vld [vmem:[#allocation5 + $0xc8] sm:$0xff]
    %v225 = vld [vmem:[#allocation5 + $0xd0] sm:$0xff]
    %v226 = vld [vmem:[#allocation5 + $0xd8] sm:$0xff]
    %v227 = vld [vmem:[#allocation5 + $0xe0] sm:$0xff]
    %v228 = vld [vmem:[#allocation5 + $0xe8] sm:$0xff]
    %v229 = vld [vmem:[#allocation5 + $0xf0] sm:$0xff]
    %v230 = vld [vmem:[#allocation5 + $0xf8] sm:$0xff]
    %v231 = vld [vmem:[#allocation7] sm:$0x1]
    %233 = vset.pattern.permute.xlu0 0
    %234 = vperm.xlu0 %233, %v199
    %v235 = vpop.permute.xlu0 %234
    %238 = vset.pattern.permute.xlu0 0
    %239 = vperm.xlu0 %238, %v200
    %v240 = vpop.permute.xlu0 %239
    %243 = vset.pattern.permute.xlu0 0
    %244 = vperm.xlu0 %243, %v201
    %v245 = vpop.permute.xlu0 %244
    %248 = vset.pattern.permute.xlu0 0
    %249 = vperm.xlu0 %248, %v202
    %v250 = vpop.permute.xlu0 %249
    %253 = vset.pattern.permute.xlu0 0
    %254 = vperm.xlu0 %253, %v203
    %v255 = vpop.permute.xlu0 %254
    %258 = vset.pattern.permute.xlu0 0
    %259 = vperm.xlu0 %258, %v204
    %v260 = vpop.permute.xlu0 %259
    %263 = vset.pattern.permute.xlu0 0
    %264 = vperm.xlu0 %263, %v205
    %v265 = vpop.permute.xlu0 %264
    %268 = vset.pattern.permute.xlu0 0
    %269 = vperm.xlu0 %268, %v206
    %v270 = vpop.permute.xlu0 %269
    %273 = vset.pattern.permute.xlu0 0
    %274 = vperm.xlu0 %273, %v207
    %v275 = vpop.permute.xlu0 %274
    %278 = vset.pattern.permute.xlu0 0
    %279 = vperm.xlu0 %278, %v208
    %v280 = vpop.permute.xlu0 %279
    %283 = vset.pattern.permute.xlu0 0
    %284 = vperm.xlu0 %283, %v209
    %v285 = vpop.permute.xlu0 %284
    %288 = vset.pattern.permute.xlu0 0
    %289 = vperm.xlu0 %288, %v210
    %v290 = vpop.permute.xlu0 %289
    %293 = vset.pattern.permute.xlu0 0
    %294 = vperm.xlu0 %293, %v211
    %v295 = vpop.permute.xlu0 %294
    %298 = vset.pattern.permute.xlu0 0
    %299 = vperm.xlu0 %298, %v212
    %v300 = vpop.permute.xlu0 %299
    %303 = vset.pattern.permute.xlu0 0
    %304 = vperm.xlu0 %303, %v213
    %v305 = vpop.permute.xlu0 %304
    %308 = vset.pattern.permute.xlu0 0
    %309 = vperm.xlu0 %308, %v214
    %v310 = vpop.permute.xlu0 %309
    %313 = vset.pattern.permute.xlu0 0
    %314 = vperm.xlu0 %313, %v215
    %v315 = vpop.permute.xlu0 %314
    %318 = vset.pattern.permute.xlu0 0
    %319 = vperm.xlu0 %318, %v216
    %v320 = vpop.permute.xlu0 %319
    %323 = vset.pattern.permute.xlu0 0
    %324 = vperm.xlu0 %323, %v217
    %v325 = vpop.permute.xlu0 %324
    %328 = vset.pattern.permute.xlu0 0
    %329 = vperm.xlu0 %328, %v218
    %v330 = vpop.permute.xlu0 %329
    %333 = vset.pattern.permute.xlu0 0
    %334 = vperm.xlu0 %333, %v219
    %v335 = vpop.permute.xlu0 %334
    %338 = vset.pattern.permute.xlu0 0
    %339 = vperm.xlu0 %338, %v220
    %v340 = vpop.permute.xlu0 %339
    %343 = vset.pattern.permute.xlu0 0
    %344 = vperm.xlu0 %343, %v221
    %v345 = vpop.permute.xlu0 %344
    %348 = vset.pattern.permute.xlu0 0
    %349 = vperm.xlu0 %348, %v222
    %v350 = vpop.permute.xlu0 %349
    %353 = vset.pattern.permute.xlu0 0
    %354 = vperm.xlu0 %353, %v223
    %v355 = vpop.permute.xlu0 %354
    %358 = vset.pattern.permute.xlu0 0
    %359 = vperm.xlu0 %358, %v224
    %v360 = vpop.permute.xlu0 %359
    %363 = vset.pattern.permute.xlu0 0
    %364 = vperm.xlu0 %363, %v225
    %v365 = vpop.permute.xlu0 %364
    %368 = vset.pattern.permute.xlu0 0
    %369 = vperm.xlu0 %368, %v226
    %v370 = vpop.permute.xlu0 %369
    %373 = vset.pattern.permute.xlu0 0
    %374 = vperm.xlu0 %373, %v227
    %v375 = vpop.permute.xlu0 %374
    %378 = vset.pattern.permute.xlu0 0
    %379 = vperm.xlu0 %378, %v228
    %v380 = vpop.permute.xlu0 %379
    %383 = vset.pattern.permute.xlu0 0
    %384 = vperm.xlu0 %383, %v229
    %v385 = vpop.permute.xlu0 %384
    %388 = vset.pattern.permute.xlu0 0
    %389 = vperm.xlu0 %388, %v230
    %v390 = vpop.permute.xlu0 %389
    %v392 = vlaneseq
    %v393 = vshrl.u32 %v392, 7
    %v394 = vsub.s32 0, %v393
    %v395 = vrot.slane %v231, %v394
    %v396 = vmul.f32 %v235, %v395
    %v397 = vmul.f32 %v240, %v395
    %v398 = vmul.f32 %v245, %v395
    %v399 = vmul.f32 %v250, %v395
    %v400 = vmul.f32 %v255, %v395
    %v401 = vmul.f32 %v260, %v395
    %v402 = vmul.f32 %v265, %v395
    %v403 = vmul.f32 %v270, %v395
    %v404 = vmul.f32 %v275, %v395
    %v405 = vmul.f32 %v280, %v395
    %v406 = vmul.f32 %v285, %v395
    %v407 = vmul.f32 %v290, %v395
    %v408 = vmul.f32 %v295, %v395
    %v409 = vmul.f32 %v300, %v395
    %v410 = vmul.f32 %v305, %v395
    %v411 = vmul.f32 %v310, %v395
    %v412 = vmul.f32 %v315, %v395
    %v413 = vmul.f32 %v320, %v395
    %v414 = vmul.f32 %v325, %v395
    %v415 = vmul.f32 %v330, %v395
    %v416 = vmul.f32 %v335, %v395
    %v417 = vmul.f32 %v340, %v395
    %v418 = vmul.f32 %v345, %v395
    %v419 = vmul.f32 %v350, %v395
    %v420 = vmul.f32 %v355, %v395
    %v421 = vmul.f32 %v360, %v395
    %v422 = vmul.f32 %v365, %v395
    %v423 = vmul.f32 %v370, %v395
    %v424 = vmul.f32 %v375, %v395
    %v425 = vmul.f32 %v380, %v395
    %v426 = vmul.f32 %v385, %v395
    %v427 = vmul.f32 %v390, %v395
    %v428 = vld [vmem:[#allocation7 + $0x1] sm:$0x1]
    %429 = vset.pattern.permute.xlu0 1
    %430 = vperm.xlu0 %429, %v199
    %v431 = vpop.permute.xlu0 %430
    %433 = vset.pattern.permute.xlu0 1
    %434 = vperm.xlu0 %433, %v200
    %v435 = vpop.permute.xlu0 %434
    %437 = vset.pattern.permute.xlu0 1
    %438 = vperm.xlu0 %437, %v201
    %v439 = vpop.permute.xlu0 %438
    %441 = vset.pattern.permute.xlu0 1
    %442 = vperm.xlu0 %441, %v202
    %v443 = vpop.permute.xlu0 %442
    %445 = vset.pattern.permute.xlu0 1
    %446 = vperm.xlu0 %445, %v203
    %v447 = vpop.permute.xlu0 %446
    %449 = vset.pattern.permute.xlu0 1
    %450 = vperm.xlu0 %449, %v204
    %v451 = vpop.permute.xlu0 %450
    %453 = vset.pattern.permute.xlu0 1
    %454 = vperm.xlu0 %453, %v205
    %v455 = vpop.permute.xlu0 %454
    %457 = vset.pattern.permute.xlu0 1
    %458 = vperm.xlu0 %457, %v206
    %v459 = vpop.permute.xlu0 %458
    %461 = vset.pattern.permute.xlu0 1
    %462 = vperm.xlu0 %461, %v207
    %v463 = vpop.permute.xlu0 %462
    %465 = vset.pattern.permute.xlu0 1
    %466 = vperm.xlu0 %465, %v208
    %v467 = vpop.permute.xlu0 %466
    %469 = vset.pattern.permute.xlu0 1
    %470 = vperm.xlu0 %469, %v209
    %v471 = vpop.permute.xlu0 %470
    %473 = vset.pattern.permute.xlu0 1
    %474 = vperm.xlu0 %473, %v210
    %v475 = vpop.permute.xlu0 %474
    %477 = vset.pattern.permute.xlu0 1
    %478 = vperm.xlu0 %477, %v211
    %v479 = vpop.permute.xlu0 %478
    %481 = vset.pattern.permute.xlu0 1
    %482 = vperm.xlu0 %481, %v212
    %v483 = vpop.permute.xlu0 %482
    %485 = vset.pattern.permute.xlu0 1
    %486 = vperm.xlu0 %485, %v213
    %v487 = vpop.permute.xlu0 %486
    %489 = vset.pattern.permute.xlu0 1
    %490 = vperm.xlu0 %489, %v214
    %v491 = vpop.permute.xlu0 %490
    %493 = vset.pattern.permute.xlu0 1
    %494 = vperm.xlu0 %493, %v215
    %v495 = vpop.permute.xlu0 %494
    %497 = vset.pattern.permute.xlu0 1
    %498 = vperm.xlu0 %497, %v216
    %v499 = vpop.permute.xlu0 %498
    %501 = vset.pattern.permute.xlu0 1
    %502 = vperm.xlu0 %501, %v217
    %v503 = vpop.permute.xlu0 %502
    %505 = vset.pattern.permute.xlu0 1
    %506 = vperm.xlu0 %505, %v218
    %v507 = vpop.permute.xlu0 %506
    %509 = vset.pattern.permute.xlu0 1
    %510 = vperm.xlu0 %509, %v219
    %v511 = vpop.permute.xlu0 %510
    %513 = vset.pattern.permute.xlu0 1
    %514 = vperm.xlu0 %513, %v220
    %v515 = vpop.permute.xlu0 %514
    %517 = vset.pattern.permute.xlu0 1
    %518 = vperm.xlu0 %517, %v221
    %v519 = vpop.permute.xlu0 %518
    %521 = vset.pattern.permute.xlu0 1
    %522 = vperm.xlu0 %521, %v222
    %v523 = vpop.permute.xlu0 %522
    %525 = vset.pattern.permute.xlu0 1
    %526 = vperm.xlu0 %525, %v223
    %v527 = vpop.permute.xlu0 %526
    %529 = vset.pattern.permute.xlu0 1
    %530 = vperm.xlu0 %529, %v224
    %v531 = vpop.permute.xlu0 %530
    %533 = vset.pattern.permute.xlu0 1
    %534 = vperm.xlu0 %533, %v225
    %v535 = vpop.permute.xlu0 %534
    %537 = vset.pattern.permute.xlu0 1
    %538 = vperm.xlu0 %537, %v226
    %v539 = vpop.permute.xlu0 %538
    %541 = vset.pattern.permute.xlu0 1
    %542 = vperm.xlu0 %541, %v227
    %v543 = vpop.permute.xlu0 %542
    %545 = vset.pattern.permute.xlu0 1
    %546 = vperm.xlu0 %545, %v228
    %v547 = vpop.permute.xlu0 %546
    %549 = vset.pattern.permute.xlu0 1
    %550 = vperm.xlu0 %549, %v229
    %v551 = vpop.permute.xlu0 %550
    %553 = vset.pattern.permute.xlu0 1
    %554 = vperm.xlu0 %553, %v230
    %v555 = vpop.permute.xlu0 %554
    %v557 = vlaneseq
    %v558 = vshrl.u32 %v557, 7
    %v559 = vsub.s32 0, %v558
    %v560 = vrot.slane %v428, %v559
    %v561 = vmul.f32 %v431, %v560
    %v562 = vmul.f32 %v435, %v560
    %v563 = vmul.f32 %v439, %v560
    %v564 = vmul.f32 %v443, %v560
    %v565 = vmul.f32 %v447, %v560
    %v566 = vmul.f32 %v451, %v560
    %v567 = vmul.f32 %v455, %v560
    %v568 = vmul.f32 %v459, %v560
    %v569 = vmul.f32 %v463, %v560
    %v570 = vmul.f32 %v467, %v560
    %v571 = vmul.f32 %v471, %v560
    %v572 = vmul.f32 %v475, %v560
    %v573 = vmul.f32 %v479, %v560
    %v574 = vmul.f32 %v483, %v560
    %v575 = vmul.f32 %v487, %v560
    %v576 = vmul.f32 %v491, %v560
    %v577 = vmul.f32 %v495, %v560
    %v578 = vmul.f32 %v499, %v560
    %v579 = vmul.f32 %v503, %v560
    %v580 = vmul.f32 %v507, %v560
    %v581 = vmul.f32 %v511, %v560
    %v582 = vmul.f32 %v515, %v560
    %v583 = vmul.f32 %v519, %v560
    %v584 = vmul.f32 %v523, %v560
    %v585 = vmul.f32 %v527, %v560
    %v586 = vmul.f32 %v531, %v560
    %v587 = vmul.f32 %v535, %v560
    %v588 = vmul.f32 %v539, %v560
    %v589 = vmul.f32 %v543, %v560
    %v590 = vmul.f32 %v547, %v560
    %v591 = vmul.f32 %v551, %v560
    %v592 = vmul.f32 %v555, %v560
    %v593 = vadd.f32 %v396, %v561
    %v594 = vadd.f32 %v397, %v562
    %v595 = vadd.f32 %v398, %v563
    %v596 = vadd.f32 %v399, %v564
    %v597 = vadd.f32 %v400, %v565
    %v598 = vadd.f32 %v401, %v566
    %v599 = vadd.f32 %v402, %v567
    %v600 = vadd.f32 %v403, %v568
    %v601 = vadd.f32 %v404, %v569
    %v602 = vadd.f32 %v405, %v570
    %v603 = vadd.f32 %v406, %v571
    %v604 = vadd.f32 %v407, %v572
    %v605 = vadd.f32 %v408, %v573
    %v606 = vadd.f32 %v409, %v574
    %v607 = vadd.f32 %v410, %v575
    %v608 = vadd.f32 %v411, %v576
    %v609 = vadd.f32 %v412, %v577
    %v610 = vadd.f32 %v413, %v578
    %v611 = vadd.f32 %v414, %v579
    %v612 = vadd.f32 %v415, %v580
    %v613 = vadd.f32 %v416, %v581
    %v614 = vadd.f32 %v417, %v582
    %v615 = vadd.f32 %v418, %v583
    %v616 = vadd.f32 %v419, %v584
    %v617 = vadd.f32 %v420, %v585
    %v618 = vadd.f32 %v421, %v586
    %v619 = vadd.f32 %v422, %v587
    %v620 = vadd.f32 %v423, %v588
    %v621 = vadd.f32 %v424, %v589
    %v622 = vadd.f32 %v425, %v590
    %v623 = vadd.f32 %v426, %v591
    %v624 = vadd.f32 %v427, %v592
    %v625 = vld [vmem:[#allocation7 + $0x2] sm:$0x1]
    %626 = vset.pattern.permute.xlu0 2
    %627 = vperm.xlu0 %626, %v199
    %v628 = vpop.permute.xlu0 %627
    %630 = vset.pattern.permute.xlu0 2
    %631 = vperm.xlu0 %630, %v200
    %v632 = vpop.permute.xlu0 %631
    %634 = vset.pattern.permute.xlu0 2
    %635 = vperm.xlu0 %634, %v201
    %v636 = vpop.permute.xlu0 %635
    %638 = vset.pattern.permute.xlu0 2
    %639 = vperm.xlu0 %638, %v202
    %v640 = vpop.permute.xlu0 %639
    %642 = vset.pattern.permute.xlu0 2
    %643 = vperm.xlu0 %642, %v203
    %v644 = vpop.permute.xlu0 %643
    %646 = vset.pattern.permute.xlu0 2
    %647 = vperm.xlu0 %646, %v204
    %v648 = vpop.permute.xlu0 %647
    %650 = vset.pattern.permute.xlu0 2
    %651 = vperm.xlu0 %650, %v205
    %v652 = vpop.permute.xlu0 %651
    %654 = vset.pattern.permute.xlu0 2
    %655 = vperm.xlu0 %654, %v206
    %v656 = vpop.permute.xlu0 %655
    %658 = vset.pattern.permute.xlu0 2
    %659 = vperm.xlu0 %658, %v207
    %v660 = vpop.permute.xlu0 %659
    %662 = vset.pattern.permute.xlu0 2
    %663 = vperm.xlu0 %662, %v208
    %v664 = vpop.permute.xlu0 %663
    %666 = vset.pattern.permute.xlu0 2
    %667 = vperm.xlu0 %666, %v209
    %v668 = vpop.permute.xlu0 %667
    %670 = vset.pattern.permute.xlu0 2
    %671 = vperm.xlu0 %670, %v210
    %v672 = vpop.permute.xlu0 %671
    %674 = vset.pattern.permute.xlu0 2
    %675 = vperm.xlu0 %674, %v211
    %v676 = vpop.permute.xlu0 %675
    %678 = vset.pattern.permute.xlu0 2
    %679 = vperm.xlu0 %678, %v212
    %v680 = vpop.permute.xlu0 %679
    %682 = vset.pattern.permute.xlu0 2
    %683 = vperm.xlu0 %682, %v213
    %v684 = vpop.permute.xlu0 %683
    %686 = vset.pattern.permute.xlu0 2
    %687 = vperm.xlu0 %686, %v214
    %v688 = vpop.permute.xlu0 %687
    %690 = vset.pattern.permute.xlu0 2
    %691 = vperm.xlu0 %690, %v215
    %v692 = vpop.permute.xlu0 %691
    %694 = vset.pattern.permute.xlu0 2
    %695 = vperm.xlu0 %694, %v216
    %v696 = vpop.permute.xlu0 %695
    %698 = vset.pattern.permute.xlu0 2
    %699 = vperm.xlu0 %698, %v217
    %v700 = vpop.permute.xlu0 %699
    %702 = vset.pattern.permute.xlu0 2
    %703 = vperm.xlu0 %702, %v218
    %v704 = vpop.permute.xlu0 %703
    %706 = vset.pattern.permute.xlu0 2
    %707 = vperm.xlu0 %706, %v219
    %v708 = vpop.permute.xlu0 %707
    %710 = vset.pattern.permute.xlu0 2
    %711 = vperm.xlu0 %710, %v220
    %v712 = vpop.permute.xlu0 %711
    %714 = vset.pattern.permute.xlu0 2
    %715 = vperm.xlu0 %714, %v221
    %v716 = vpop.permute.xlu0 %715
    %718 = vset.pattern.permute.xlu0 2
    %719 = vperm.xlu0 %718, %v222
    %v720 = vpop.permute.xlu0 %719
    %722 = vset.pattern.permute.xlu0 2
    %723 = vperm.xlu0 %722, %v223
    %v724 = vpop.permute.xlu0 %723
    %726 = vset.pattern.permute.xlu0 2
    %727 = vperm.xlu0 %726, %v224
    %v728 = vpop.permute.xlu0 %727
    %730 = vset.pattern.permute.xlu0 2
    %731 = vperm.xlu0 %730, %v225
    %v732 = vpop.permute.xlu0 %731
    %734 = vset.pattern.permute.xlu0 2
    %735 = vperm.xlu0 %734, %v226
    %v736 = vpop.permute.xlu0 %735
    %738 = vset.pattern.permute.xlu0 2
    %739 = vperm.xlu0 %738, %v227
    %v740 = vpop.permute.xlu0 %739
    %742 = vset.pattern.permute.xlu0 2
    %743 = vperm.xlu0 %742, %v228
    %v744 = vpop.permute.xlu0 %743
    %746 = vset.pattern.permute.xlu0 2
    %747 = vperm.xlu0 %746, %v229
    %v748 = vpop.permute.xlu0 %747
    %750 = vset.pattern.permute.xlu0 2
    %751 = vperm.xlu0 %750, %v230
    %v752 = vpop.permute.xlu0 %751
    %v754 = vlaneseq
    %v755 = vshrl.u32 %v754, 7
    %v756 = vsub.s32 0, %v755
    %v757 = vrot.slane %v625, %v756
    %v758 = vmul.f32 %v628, %v757
    %v759 = vmul.f32 %v632, %v757
    %v760 = vmul.f32 %v636, %v757
    %v761 = vmul.f32 %v640, %v757
    %v762 = vmul.f32 %v644, %v757
    %v763 = vmul.f32 %v648, %v757
    %v764 = vmul.f32 %v652, %v757
    %v765 = vmul.f32 %v656, %v757
    %v766 = vmul.f32 %v660, %v757
    %v767 = vmul.f32 %v664, %v757
    %v768 = vmul.f32 %v668, %v757
    %v769 = vmul.f32 %v672, %v757
    %v770 = vmul.f32 %v676, %v757
    %v771 = vmul.f32 %v680, %v757
    %v772 = vmul.f32 %v684, %v757
    %v773 = vmul.f32 %v688, %v757
    %v774 = vmul.f32 %v692, %v757
    %v775 = vmul.f32 %v696, %v757
    %v776 = vmul.f32 %v700, %v757
    %v777 = vmul.f32 %v704, %v757
    %v778 = vmul.f32 %v708, %v757
    %v779 = vmul.f32 %v712, %v757
    %v780 = vmul.f32 %v716, %v757
    %v781 = vmul.f32 %v720, %v757
    %v782 = vmul.f32 %v724, %v757
    %v783 = vmul.f32 %v728, %v757
    %v784 = vmul.f32 %v732, %v757
    %v785 = vmul.f32 %v736, %v757
    %v786 = vmul.f32 %v740, %v757
    %v787 = vmul.f32 %v744, %v757
    %v788 = vmul.f32 %v748, %v757
    %v789 = vmul.f32 %v752, %v757
    %v790 = vadd.f32 %v593, %v758
    %v791 = vadd.f32 %v594, %v759
    %v792 = vadd.f32 %v595, %v760
    %v793 = vadd.f32 %v596, %v761
    %v794 = vadd.f32 %v597, %v762
    %v795 = vadd.f32 %v598, %v763
    %v796 = vadd.f32 %v599, %v764
    %v797 = vadd.f32 %v600, %v765
    %v798 = vadd.f32 %v601, %v766
    %v799 = vadd.f32 %v602, %v767
    %v800 = vadd.f32 %v603, %v768
    %v801 = vadd.f32 %v604, %v769
    %v802 = vadd.f32 %v605, %v770
    %v803 = vadd.f32 %v606, %v771
    %v804 = vadd.f32 %v607, %v772
    %v805 = vadd.f32 %v608, %v773
    %v806 = vadd.f32 %v609, %v774
    %v807 = vadd.f32 %v610, %v775
    %v808 = vadd.f32 %v611, %v776
    %v809 = vadd.f32 %v612, %v777
    %v810 = vadd.f32 %v613, %v778
    %v811 = vadd.f32 %v614, %v779
    %v812 = vadd.f32 %v615, %v780
    %v813 = vadd.f32 %v616, %v781
    %v814 = vadd.f32 %v617, %v782
    %v815 = vadd.f32 %v618, %v783
    %v816 = vadd.f32 %v619, %v784
    %v817 = vadd.f32 %v620, %v785
    %v818 = vadd.f32 %v621, %v786
    %v819 = vadd.f32 %v622, %v787
    %v820 = vadd.f32 %v623, %v788
    %v821 = vadd.f32 %v624, %v789
    %v822 = vld [vmem:[#allocation7 + $0x3] sm:$0x1]
    %823 = vset.pattern.permute.xlu0 3
    %824 = vperm.xlu0 %823, %v199
    %v825 = vpop.permute.xlu0 %824
    %827 = vset.pattern.permute.xlu0 3
    %828 = vperm.xlu0 %827, %v200
    %v829 = vpop.permute.xlu0 %828
    %831 = vset.pattern.permute.xlu0 3
    %832 = vperm.xlu0 %831, %v201
    %v833 = vpop.permute.xlu0 %832
    %835 = vset.pattern.permute.xlu0 3
    %836 = vperm.xlu0 %835, %v202
    %v837 = vpop.permute.xlu0 %836
    %839 = vset.pattern.permute.xlu0 3
    %840 = vperm.xlu0 %839, %v203
    %v841 = vpop.permute.xlu0 %840
    %843 = vset.pattern.permute.xlu0 3
    %844 = vperm.xlu0 %843, %v204
    %v845 = vpop.permute.xlu0 %844
    %847 = vset.pattern.permute.xlu0 3
    %848 = vperm.xlu0 %847, %v205
    %v849 = vpop.permute.xlu0 %848
    %851 = vset.pattern.permute.xlu0 3
    %852 = vperm.xlu0 %851, %v206
    %v853 = vpop.permute.xlu0 %852
    %855 = vset.pattern.permute.xlu0 3
    %856 = vperm.xlu0 %855, %v207
    %v857 = vpop.permute.xlu0 %856
    %859 = vset.pattern.permute.xlu0 3
    %860 = vperm.xlu0 %859, %v208
    %v861 = vpop.permute.xlu0 %860
    %863 = vset.pattern.permute.xlu0 3
    %864 = vperm.xlu0 %863, %v209
    %v865 = vpop.permute.xlu0 %864
    %867 = vset.pattern.permute.xlu0 3
    %868 = vperm.xlu0 %867, %v210
    %v869 = vpop.permute.xlu0 %868
    %871 = vset.pattern.permute.xlu0 3
    %872 = vperm.xlu0 %871, %v211
    %v873 = vpop.permute.xlu0 %872
    %875 = vset.pattern.permute.xlu0 3
    %876 = vperm.xlu0 %875, %v212
    %v877 = vpop.permute.xlu0 %876
    %879 = vset.pattern.permute.xlu0 3
    %880 = vperm.xlu0 %879, %v213
    %v881 = vpop.permute.xlu0 %880
    %883 = vset.pattern.permute.xlu0 3
    %884 = vperm.xlu0 %883, %v214
    %v885 = vpop.permute.xlu0 %884
    %887 = vset.pattern.permute.xlu0 3
    %888 = vperm.xlu0 %887, %v215
    %v889 = vpop.permute.xlu0 %888
    %891 = vset.pattern.permute.xlu0 3
    %892 = vperm.xlu0 %891, %v216
    %v893 = vpop.permute.xlu0 %892
    %895 = vset.pattern.permute.xlu0 3
    %896 = vperm.xlu0 %895, %v217
    %v897 = vpop.permute.xlu0 %896
    %899 = vset.pattern.permute.xlu0 3
    %900 = vperm.xlu0 %899, %v218
    %v901 = vpop.permute.xlu0 %900
    %903 = vset.pattern.permute.xlu0 3
    %904 = vperm.xlu0 %903, %v219
    %v905 = vpop.permute.xlu0 %904
    %907 = vset.pattern.permute.xlu0 3
    %908 = vperm.xlu0 %907, %v220
    %v909 = vpop.permute.xlu0 %908
    %911 = vset.pattern.permute.xlu0 3
    %912 = vperm.xlu0 %911, %v221
    %v913 = vpop.permute.xlu0 %912
    %915 = vset.pattern.permute.xlu0 3
    %916 = vperm.xlu0 %915, %v222
    %v917 = vpop.permute.xlu0 %916
    %919 = vset.pattern.permute.xlu0 3
    %920 = vperm.xlu0 %919, %v223
    %v921 = vpop.permute.xlu0 %920
    %923 = vset.pattern.permute.xlu0 3
    %924 = vperm.xlu0 %923, %v224
    %v925 = vpop.permute.xlu0 %924
    %927 = vset.pattern.permute.xlu0 3
    %928 = vperm.xlu0 %927, %v225
    %v929 = vpop.permute.xlu0 %928
    %931 = vset.pattern.permute.xlu0 3
    %932 = vperm.xlu0 %931, %v226
    %v933 = vpop.permute.xlu0 %932
    %935 = vset.pattern.permute.xlu0 3
    %936 = vperm.xlu0 %935, %v227
    %v937 = vpop.permute.xlu0 %936
    %939 = vset.pattern.permute.xlu0 3
    %940 = vperm.xlu0 %939, %v228
    %v941 = vpop.permute.xlu0 %940
    %943 = vset.pattern.permute.xlu0 3
    %944 = vperm.xlu0 %943, %v229
    %v945 = vpop.permute.xlu0 %944
    %947 = vset.pattern.permute.xlu0 3
    %948 = vperm.xlu0 %947, %v230
    %v949 = vpop.permute.xlu0 %948
    %v951 = vlaneseq
    %v952 = vshrl.u32 %v951, 7
    %v953 = vsub.s32 0, %v952
    %v954 = vrot.slane %v822, %v953
    %v955 = vmul.f32 %v825, %v954
    %v956 = vmul.f32 %v829, %v954
    %v957 = vmul.f32 %v833, %v954
    %v958 = vmul.f32 %v837, %v954
    %v959 = vmul.f32 %v841, %v954
    %v960 = vmul.f32 %v845, %v954
    %v961 = vmul.f32 %v849, %v954
    %v962 = vmul.f32 %v853, %v954
    %v963 = vmul.f32 %v857, %v954
    %v964 = vmul.f32 %v861, %v954
    %v965 = vmul.f32 %v865, %v954
    %v966 = vmul.f32 %v869, %v954
    %v967 = vmul.f32 %v873, %v954
    %v968 = vmul.f32 %v877, %v954
    %v969 = vmul.f32 %v881, %v954
    %v970 = vmul.f32 %v885, %v954
    %v971 = vmul.f32 %v889, %v954
    %v972 = vmul.f32 %v893, %v954
    %v973 = vmul.f32 %v897, %v954
    %v974 = vmul.f32 %v901, %v954
    %v975 = vmul.f32 %v905, %v954
    %v976 = vmul.f32 %v909, %v954
    %v977 = vmul.f32 %v913, %v954
    %v978 = vmul.f32 %v917, %v954
    %v979 = vmul.f32 %v921, %v954
    %v980 = vmul.f32 %v925, %v954
    %v981 = vmul.f32 %v929, %v954
    %v982 = vmul.f32 %v933, %v954
    %v983 = vmul.f32 %v937, %v954
    %v984 = vmul.f32 %v941, %v954
    %v985 = vmul.f32 %v945, %v954
    %v986 = vmul.f32 %v949, %v954
    %v987 = vadd.f32 %v790, %v955
    %v988 = vadd.f32 %v791, %v956
    %v989 = vadd.f32 %v792, %v957
    %v990 = vadd.f32 %v793, %v958
    %v991 = vadd.f32 %v794, %v959
    %v992 = vadd.f32 %v795, %v960
    %v993 = vadd.f32 %v796, %v961
    %v994 = vadd.f32 %v797, %v962
    %v995 = vadd.f32 %v798, %v963
    %v996 = vadd.f32 %v799, %v964
    %v997 = vadd.f32 %v800, %v965
    %v998 = vadd.f32 %v801, %v966
    %v999 = vadd.f32 %v802, %v967
    %v1000 = vadd.f32 %v803, %v968
    %v1001 = vadd.f32 %v804, %v969
    %v1002 = vadd.f32 %v805, %v970
    %v1003 = vadd.f32 %v806, %v971
    %v1004 = vadd.f32 %v807, %v972
    %v1005 = vadd.f32 %v808, %v973
    %v1006 = vadd.f32 %v809, %v974
    %v1007 = vadd.f32 %v810, %v975
    %v1008 = vadd.f32 %v811, %v976
    %v1009 = vadd.f32 %v812, %v977
    %v1010 = vadd.f32 %v813, %v978
    %v1011 = vadd.f32 %v814, %v979
    %v1012 = vadd.f32 %v815, %v980
    %v1013 = vadd.f32 %v816, %v981
    %v1014 = vadd.f32 %v817, %v982
    %v1015 = vadd.f32 %v818, %v983
    %v1016 = vadd.f32 %v819, %v984
    %v1017 = vadd.f32 %v820, %v985
    %v1018 = vadd.f32 %v821, %v986
    %vm1019 = vcmask 130048
    %v1021 = vsel %vm1019, %v167, 0
    %v1024 = vsel %vm1019, %v168, 0
    %1026 = vmatprep.subr.mxu0 0.0
    %1027 = vmatpush1.msra.mxu0 %v987
    %1028 = vmatprep.subr.mxu0 0.0
    %1029 = vmatpush1.msra.mxu0 %v988
    %1030 = vmatprep.subr.mxu0 0.0
    %1031 = vmatpush1.msra.mxu0 0.0
    %1032 = vmatprep.subr.mxu0 0.0
    %1033 = vmatpush1.msra.mxu0 0.0
    %1034 = vmatprep.subr.mxu0 0.0
    %1035 = vmatpush1.msra.mxu0 0.0
    %1036 = vmatprep.subr.mxu0 0.0
    %1037 = vmatpush1.msra.mxu0 0.0
    %1038 = vmatprep.subr.mxu0 0.0
    %1039 = vmatpush1.msra.mxu0 0.0
    %1040 = vmatprep.subr.mxu0 0.0
    %1041 = vmatpush1.msra.mxu0 0.0
    %1042 = vmatprep.subr.mxu0 0.0
    %1043 = vmatpush1.msra.mxu0 0.0
    %1044 = vmatprep.subr.mxu0 0.0
    %1045 = vmatpush1.msra.mxu0 0.0
    %1046 = vmatprep.subr.mxu0 0.0
    %1047 = vmatpush1.msra.mxu0 0.0
    %1048 = vmatprep.subr.mxu0 0.0
    %1049 = vmatpush1.msra.mxu0 0.0
    %1050 = vmatprep.subr.mxu0 0.0
    %1051 = vmatpush1.msra.mxu0 0.0
    %1052 = vmatprep.subr.mxu0 0.0
    %1053 = vmatpush1.msra.mxu0 0.0
    %1054 = vmatprep.subr.mxu0 0.0
    %1055 = vmatpush1.msra.mxu0 0.0
    %1056 = vmatprep.subr.mxu0 0.0
    %1057 = vmatpush1.msra.mxu0 0.0
    %1058 = vmatprep.subr.mxu0 0.0
    %1059 = vmatpush1.msra.mxu0 0.0
    %1060 = vmatprep.subr.mxu0 0.0
    %1061 = vmatpush1.msra.mxu0 0.0
    %1062 = vmatprep.subr.mxu0 0.0
    %1063 = vmatpush1.msra.mxu0 0.0
    %1064 = vmatprep.subr.mxu0 0.0
    %1065 = vmatpush1.msra.mxu0 0.0
    %1066 = vmatprep.subr.mxu0 0.0
    %1067 = vmatpush1.msra.mxu0 0.0
    %1068 = vmatprep.subr.mxu0 0.0
    %1069 = vmatpush1.msra.mxu0 0.0
    %1070 = vmatprep.subr.mxu0 0.0
    %1071 = vmatpush1.msra.mxu0 0.0
    %1072 = vmatprep.subr.mxu0 0.0
    %1073 = vmatpush1.msra.mxu0 0.0
    %1074 = vmatprep.subr.mxu0 0.0
    %1075 = vmatpush1.msra.mxu0 0.0
    %1076 = vmatprep.subr.mxu0 0.0
    %1077 = vmatpush1.msra.mxu0 0.0
    %1078 = vmatprep.subr.mxu0 0.0
    %1079 = vmatpush1.msra.mxu0 0.0
    %1080 = vmatprep.subr.mxu0 0.0
    %1081 = vmatpush1.msra.mxu0 0.0
    %1082 = vmatprep.subr.mxu0 0.0
    %1083 = vmatpush1.msra.mxu0 0.0
    %1084 = vmatprep.subr.mxu0 0.0
    %1085 = vmatpush1.msra.mxu0 0.0
    %1086 = vmatprep.subr.mxu0 0.0
    %1087 = vmatpush1.msra.mxu0 0.0
    %1088 = vmatprep.subr.mxu0 0.0
    %1089 = vmatpush1.msra.mxu0 0.0
    %1090 = vmatprep.mubr.f32.mxu0 0.0
    %1091 = vmatmul.mubr.f32.gmra.mrb[0].mxu0 %v1021
    %v1092 = vpop.f32.mrb[0].mxu0
    %v1093 = vadd.f32 0.0, %v1092
    %v1094 = vpop.f32.mrb[0].mxu0
    %1095 = vmatprep.mubr.f32.mxu0 0.0
    %1096 = vmatmul.mubr.f32.gmra.mrb[0].mxu0 %v1024
    %v1097 = vpop.f32.mrb[0].mxu0
    %v1098 = vadd.f32 0.0, %v1097
    %v1099 = vpop.f32.mrb[0].mxu0
    %1100 = vdwg.mxu0
    %v1102 = vsel %vm1019, %v169, 0
    %v1105 = vsel %vm1019, %v170, 0
    %1107 = vmatprep.subr.mxu0 0.0
    %1108 = vmatpush1.msra.mxu0 %v989
    %1109 = vmatprep.subr.mxu0 0.0
    %1110 = vmatpush1.msra.mxu0 %v990
    %1111 = vmatprep.subr.mxu0 0.0
    %1112 = vmatpush1.msra.mxu0 0.0
    %1113 = vmatprep.subr.mxu0 0.0
    %1114 = vmatpush1.msra.mxu0 0.0
    %1115 = vmatprep.subr.mxu0 0.0
    %1116 = vmatpush1.msra.mxu0 0.0
    %1117 = vmatprep.subr.mxu0 0.0
    %1118 = vmatpush1.msra.mxu0 0.0
    %1119 = vmatprep.subr.mxu0 0.0
    %1120 = vmatpush1.msra.mxu0 0.0
    %1121 = vmatprep.subr.mxu0 0.0
    %1122 = vmatpush1.msra.mxu0 0.0
    %1123 = vmatprep.subr.mxu0 0.0
    %1124 = vmatpush1.msra.mxu0 0.0
    %1125 = vmatprep.subr.mxu0 0.0
    %1126 = vmatpush1.msra.mxu0 0.0
    %1127 = vmatprep.subr.mxu0 0.0
    %1128 = vmatpush1.msra.mxu0 0.0
    %1129 = vmatprep.subr.mxu0 0.0
    %1130 = vmatpush1.msra.mxu0 0.0
    %1131 = vmatprep.subr.mxu0 0.0
    %1132 = vmatpush1.msra.mxu0 0.0
    %1133 = vmatprep.subr.mxu0 0.0
    %1134 = vmatpush1.msra.mxu0 0.0
    %1135 = vmatprep.subr.mxu0 0.0
    %1136 = vmatpush1.msra.mxu0 0.0
    %1137 = vmatprep.subr.mxu0 0.0
    %1138 = vmatpush1.msra.mxu0 0.0
    %1139 = vmatprep.subr.mxu0 0.0
    %1140 = vmatpush1.msra.mxu0 0.0
    %1141 = vmatprep.subr.mxu0 0.0
    %1142 = vmatpush1.msra.mxu0 0.0
    %1143 = vmatprep.subr.mxu0 0.0
    %1144 = vmatpush1.msra.mxu0 0.0
    %1145 = vmatprep.subr.mxu0 0.0
    %1146 = vmatpush1.msra.mxu0 0.0
    %1147 = vmatprep.subr.mxu0 0.0
    %1148 = vmatpush1.msra.mxu0 0.0
    %1149 = vmatprep.subr.mxu0 0.0
    %1150 = vmatpush1.msra.mxu0 0.0
    %1151 = vmatprep.subr.mxu0 0.0
    %1152 = vmatpush1.msra.mxu0 0.0
    %1153 = vmatprep.subr.mxu0 0.0
    %1154 = vmatpush1.msra.mxu0 0.0
    %1155 = vmatprep.subr.mxu0 0.0
    %1156 = vmatpush1.msra.mxu0 0.0
    %1157 = vmatprep.subr.mxu0 0.0
    %1158 = vmatpush1.msra.mxu0 0.0
    %1159 = vmatprep.subr.mxu0 0.0
    %1160 = vmatpush1.msra.mxu0 0.0
    %1161 = vmatprep.subr.mxu0 0.0
    %1162 = vmatpush1.msra.mxu0 0.0
    %1163 = vmatprep.subr.mxu0 0.0
    %1164 = vmatpush1.msra.mxu0 0.0
    %1165 = vmatprep.subr.mxu0 0.0
    %1166 = vmatpush1.msra.mxu0 0.0
    %1167 = vmatprep.subr.mxu0 0.0
    %1168 = vmatpush1.msra.mxu0 0.0
    %1169 = vmatprep.subr.mxu0 0.0
    %1170 = vmatpush1.msra.mxu0 0.0
    %1171 = vmatprep.mubr.f32.mxu0 0.0
    %1172 = vmatmul.mubr.f32.gmra.mrb[0].mxu0 %v1102
    %v1173 = vpop.f32.mrb[0].mxu0
    %v1174 = vadd.f32 0.0, %v1173
    %v1175 = vpop.f32.mrb[0].mxu0
    %1176 = vmatprep.mubr.f32.mxu0 0.0
    %1177 = vmatmul.mubr.f32.gmra.mrb[0].mxu0 %v1105
    %v1178 = vpop.f32.mrb[0].mxu0
    %v1179 = vadd.f32 0.0, %v1178
    %v1180 = vpop.f32.mrb[0].mxu0
    %1181 = vdwg.mxu0
    %v1183 = vsel %vm1019, %v171, 0
    %v1186 = vsel %vm1019, %v172, 0
    %1188 = vmatprep.subr.mxu0 0.0
    %1189 = vmatpush1.msra.mxu0 %v991
    %1190 = vmatprep.subr.mxu0 0.0
    %1191 = vmatpush1.msra.mxu0 %v992
    %1192 = vmatprep.subr.mxu0 0.0
    %1193 = vmatpush1.msra.mxu0 0.0
    %1194 = vmatprep.subr.mxu0 0.0
    %1195 = vmatpush1.msra.mxu0 0.0
    %1196 = vmatprep.subr.mxu0 0.0
    %1197 = vmatpush1.msra.mxu0 0.0
    %1198 = vmatprep.subr.mxu0 0.0
    %1199 = vmatpush1.msra.mxu0 0.0
    %1200 = vmatprep.subr.mxu0 0.0
    %1201 = vmatpush1.msra.mxu0 0.0
    %1202 = vmatprep.subr.mxu0 0.0
    %1203 = vmatpush1.msra.mxu0 0.0
    %1204 = vmatprep.subr.mxu0 0.0
    %1205 = vmatpush1.msra.mxu0 0.0
    %1206 = vmatprep.subr.mxu0 0.0
    %1207 = vmatpush1.msra.mxu0 0.0
    %1208 = vmatprep.subr.mxu0 0.0
    %1209 = vmatpush1.msra.mxu0 0.0
    %1210 = vmatprep.subr.mxu0 0.0
    %1211 = vmatpush1.msra.mxu0 0.0
    %1212 = vmatprep.subr.mxu0 0.0
    %1213 = vmatpush1.msra.mxu0 0.0
    %1214 = vmatprep.subr.mxu0 0.0
    %1215 = vmatpush1.msra.mxu0 0.0
    %1216 = vmatprep.subr.mxu0 0.0
    %1217 = vmatpush1.msra.mxu0 0.0
    %1218 = vmatprep.subr.mxu0 0.0
    %1219 = vmatpush1.msra.mxu0 0.0
    %1220 = vmatprep.subr.mxu0 0.0
    %1221 = vmatpush1.msra.mxu0 0.0
    %1222 = vmatprep.subr.mxu0 0.0
    %1223 = vmatpush1.msra.mxu0 0.0
    %1224 = vmatprep.subr.mxu0 0.0
    %1225 = vmatpush1.msra.mxu0 0.0
    %1226 = vmatprep.subr.mxu0 0.0
    %1227 = vmatpush1.msra.mxu0 0.0
    %1228 = vmatprep.subr.mxu0 0.0
    %1229 = vmatpush1.msra.mxu0 0.0
    %1230 = vmatprep.subr.mxu0 0.0
    %1231 = vmatpush1.msra.mxu0 0.0
    %1232 = vmatprep.subr.mxu0 0.0
    %1233 = vmatpush1.msra.mxu0 0.0
    %1234 = vmatprep.subr.mxu0 0.0
    %1235 = vmatpush1.msra.mxu0 0.0
    %1236 = vmatprep.subr.mxu0 0.0
    %1237 = vmatpush1.msra.mxu0 0.0
    %1238 = vmatprep.subr.mxu0 0.0
    %1239 = vmatpush1.msra.mxu0 0.0
    %1240 = vmatprep.subr.mxu0 0.0
    %1241 = vmatpush1.msra.mxu0 0.0
    %1242 = vmatprep.subr.mxu0 0.0
    %1243 = vmatpush1.msra.mxu0 0.0
    %1244 = vmatprep.subr.mxu0 0.0
    %1245 = vmatpush1.msra.mxu0 0.0
    %1246 = vmatprep.subr.mxu0 0.0
    %1247 = vmatpush1.msra.mxu0 0.0
    %1248 = vmatprep.subr.mxu0 0.0
    %1249 = vmatpush1.msra.mxu0 0.0
    %1250 = vmatprep.subr.mxu0 0.0
    %1251 = vmatpush1.msra.mxu0 0.0
    %1252 = vmatprep.mubr.f32.mxu0 0.0
    %1253 = vmatmul.mubr.f32.gmra.mrb[0].mxu0 %v1183
    %v1254 = vpop.f32.mrb[0].mxu0
    %v1255 = vadd.f32 0.0, %v1254
    %v1256 = vpop.f32.mrb[0].mxu0
    %1257 = vmatprep.mubr.f32.mxu0 0.0
    %1258 = vmatmul.mubr.f32.gmra.mrb[0].mxu0 %v1186
    %v1259 = vpop.f32.mrb[0].mxu0
    %v1260 = vadd.f32 0.0, %v1259
    %v1261 = vpop.f32.mrb[0].mxu0
    %1262 = vdwg.mxu0
    %v1264 = vsel %vm1019, %v173, 0
    %v1267 = vsel %vm1019, %v174, 0
    %1269 = vmatprep.subr.mxu0 0.0
    %1270 = vmatpush1.msra.mxu0 %v993
    %1271 = vmatprep.subr.mxu0 0.0
    %1272 = vmatpush1.msra.mxu0 %v994
    %1273 = vmatprep.subr.mxu0 0.0
    %1274 = vmatpush1.msra.mxu0 0.0
    %1275 = vmatprep.subr.mxu0 0.0
    %1276 = vmatpush1.msra.mxu0 0.0
    %1277 = vmatprep.subr.mxu0 0.0
    %1278 = vmatpush1.msra.mxu0 0.0
    %1279 = vmatprep.subr.mxu0 0.0
    %1280 = vmatpush1.msra.mxu0 0.0
    %1281 = vmatprep.subr.mxu0 0.0
    %1282 = vmatpush1.msra.mxu0 0.0
    %1283 = vmatprep.subr.mxu0 0.0
    %1284 = vmatpush1.msra.mxu0 0.0
    %1285 = vmatprep.subr.mxu0 0.0
    %1286 = vmatpush1.msra.mxu0 0.0
    %1287 = vmatprep.subr.mxu0 0.0
    %1288 = vmatpush1.msra.mxu0 0.0
    %1289 = vmatprep.subr.mxu0 0.0
    %1290 = vmatpush1.msra.mxu0 0.0
    %1291 = vmatprep.subr.mxu0 0.0
    %1292 = vmatpush1.msra.mxu0 0.0
    %1293 = vmatprep.subr.mxu0 0.0
    %1294 = vmatpush1.msra.mxu0 0.0
    %1295 = vmatprep.subr.mxu0 0.0
    %1296 = vmatpush1.msra.mxu0 0.0
    %1297 = vmatprep.subr.mxu0 0.0
    %1298 = vmatpush1.msra.mxu0 0.0
    %1299 = vmatprep.subr.mxu0 0.0
    %1300 = vmatpush1.msra.mxu0 0.0
    %1301 = vmatprep.subr.mxu0 0.0
    %1302 = vmatpush1.msra.mxu0 0.0
    %1303 = vmatprep.subr.mxu0 0.0
    %1304 = vmatpush1.msra.mxu0 0.0
    %1305 = vmatprep.subr.mxu0 0.0
    %1306 = vmatpush1.msra.mxu0 0.0
    %1307 = vmatprep.subr.mxu0 0.0
    %1308 = vmatpush1.msra.mxu0 0.0
    %1309 = vmatprep.subr.mxu0 0.0
    %1310 = vmatpush1.msra.mxu0 0.0
    %1311 = vmatprep.subr.mxu0 0.0
    %1312 = vmatpush1.msra.mxu0 0.0
    %1313 = vmatprep.subr.mxu0 0.0
    %1314 = vmatpush1.msra.mxu0 0.0
    %1315 = vmatprep.subr.mxu0 0.0
    %1316 = vmatpush1.msra.mxu0 0.0
    %1317 = vmatprep.subr.mxu0 0.0
    %1318 = vmatpush1.msra.mxu0 0.0
    %1319 = vmatprep.subr.mxu0 0.0
    %1320 = vmatpush1.msra.mxu0 0.0
    %1321 = vmatprep.subr.mxu0 0.0
    %1322 = vmatpush1.msra.mxu0 0.0
    %1323 = vmatprep.subr.mxu0 0.0
    %1324 = vmatpush1.msra.mxu0 0.0
    %1325 = vmatprep.subr.mxu0 0.0
    %1326 = vmatpush1.msra.mxu0 0.0
    %1327 = vmatprep.subr.mxu0 0.0
    %1328 = vmatpush1.msra.mxu0 0.0
    %1329 = vmatprep.subr.mxu0 0.0
    %1330 = vmatpush1.msra.mxu0 0.0
    %1331 = vmatprep.subr.mxu0 0.0
    %1332 = vmatpush1.msra.mxu0 0.0
    %1333 = vmatprep.mubr.f32.mxu0 0.0
    %1334 = vmatmul.mubr.f32.gmra.mrb[0].mxu0 %v1264
    %v1335 = vpop.f32.mrb[0].mxu0
    %v1336 = vadd.f32 0.0, %v1335
    %v1337 = vpop.f32.mrb[0].mxu0
    %1338 = vmatprep.mubr.f32.mxu0 0.0
    %1339 = vmatmul.mubr.f32.gmra.mrb[0].mxu0 %v1267
    %v1340 = vpop.f32.mrb[0].mxu0
    %v1341 = vadd.f32 0.0, %v1340
    %v1342 = vpop.f32.mrb[0].mxu0
    %1343 = vdwg.mxu0
    %v1345 = vsel %vm1019, %v175, 0
    %v1348 = vsel %vm1019, %v176, 0
    %1350 = vmatprep.subr.mxu0 0.0
    %1351 = vmatpush1.msra.mxu0 %v995
    %1352 = vmatprep.subr.mxu0 0.0
    %1353 = vmatpush1.msra.mxu0 %v996
    %1354 = vmatprep.subr.mxu0 0.0
    %1355 = vmatpush1.msra.mxu0 0.0
    %1356 = vmatprep.subr.mxu0 0.0
    %1357 = vmatpush1.msra.mxu0 0.0
    %1358 = vmatprep.subr.mxu0 0.0
    %1359 = vmatpush1.msra.mxu0 0.0
    %1360 = vmatprep.subr.mxu0 0.0
    %1361 = vmatpush1.msra.mxu0 0.0
    %1362 = vmatprep.subr.mxu0 0.0
    %1363 = vmatpush1.msra.mxu0 0.0
    %1364 = vmatprep.subr.mxu0 0.0
    %1365 = vmatpush1.msra.mxu0 0.0
    %1366 = vmatprep.subr.mxu0 0.0
    %1367 = vmatpush1.msra.mxu0 0.0
    %1368 = vmatprep.subr.mxu0 0.0
    %1369 = vmatpush1.msra.mxu0 0.0
    %1370 = vmatprep.subr.mxu0 0.0
    %1371 = vmatpush1.msra.mxu0 0.0
    %1372 = vmatprep.subr.mxu0 0.0
    %1373 = vmatpush1.msra.mxu0 0.0
    %1374 = vmatprep.subr.mxu0 0.0
    %1375 = vmatpush1.msra.mxu0 0.0
    %1376 = vmatprep.subr.mxu0 0.0
    %1377 = vmatpush1.msra.mxu0 0.0
    %1378 = vmatprep.subr.mxu0 0.0
    %1379 = vmatpush1.msra.mxu0 0.0
    %1380 = vmatprep.subr.mxu0 0.0
    %1381 = vmatpush1.msra.mxu0 0.0
    %1382 = vmatprep.subr.mxu0 0.0
    %1383 = vmatpush1.msra.mxu0 0.0
    %1384 = vmatprep.subr.mxu0 0.0
    %1385 = vmatpush1.msra.mxu0 0.0
    %1386 = vmatprep.subr.mxu0 0.0
    %1387 = vmatpush1.msra.mxu0 0.0
    %1388 = vmatprep.subr.mxu0 0.0
    %1389 = vmatpush1.msra.mxu0 0.0
    %1390 = vmatprep.subr.mxu0 0.0
    %1391 = vmatpush1.msra.mxu0 0.0
    %1392 = vmatprep.subr.mxu0 0.0
    %1393 = vmatpush1.msra.mxu0 0.0
    %1394 = vmatprep.subr.mxu0 0.0
    %1395 = vmatpush1.msra.mxu0 0.0
    %1396 = vmatprep.subr.mxu0 0.0
    %1397 = vmatpush1.msra.mxu0 0.0
    %1398 = vmatprep.subr.mxu0 0.0
    %1399 = vmatpush1.msra.mxu0 0.0
    %1400 = vmatprep.subr.mxu0 0.0
    %1401 = vmatpush1.msra.mxu0 0.0
    %1402 = vmatprep.subr.mxu0 0.0
    %1403 = vmatpush1.msra.mxu0 0.0
    %1404 = vmatprep.subr.mxu0 0.0
    %1405 = vmatpush1.msra.mxu0 0.0
    %1406 = vmatprep.subr.mxu0 0.0
    %1407 = vmatpush1.msra.mxu0 0.0
    %1408 = vmatprep.subr.mxu0 0.0
    %1409 = vmatpush1.msra.mxu0 0.0
    %1410 = vmatprep.subr.mxu0 0.0
    %1411 = vmatpush1.msra.mxu0 0.0
    %1412 = vmatprep.subr.mxu0 0.0
    %1413 = vmatpush1.msra.mxu0 0.0
    %1414 = vmatprep.mubr.f32.mxu0 0.0
    %1415 = vmatmul.mubr.f32.gmra.mrb[0].mxu0 %v1345
    %v1416 = vpop.f32.mrb[0].mxu0
    %v1417 = vadd.f32 0.0, %v1416
    %v1418 = vpop.f32.mrb[0].mxu0
    %1419 = vmatprep.mubr.f32.mxu0 0.0
    %1420 = vmatmul.mubr.f32.gmra.mrb[0].mxu0 %v1348
    %v1421 = vpop.f32.mrb[0].mxu0
    %v1422 = vadd.f32 0.0, %v1421
    %v1423 = vpop.f32.mrb[0].mxu0
    %1424 = vdwg.mxu0
    %v1426 = vsel %vm1019, %v177, 0
    %v1429 = vsel %vm1019, %v178, 0
    %1431 = vmatprep.subr.mxu0 0.0
    %1432 = vmatpush1.msra.mxu0 %v997
    %1433 = vmatprep.subr.mxu0 0.0
    %1434 = vmatpush1.msra.mxu0 %v998
    %1435 = vmatprep.subr.mxu0 0.0
    %1436 = vmatpush1.msra.mxu0 0.0
    %1437 = vmatprep.subr.mxu0 0.0
    %1438 = vmatpush1.msra.mxu0 0.0
    %1439 = vmatprep.subr.mxu0 0.0
    %1440 = vmatpush1.msra.mxu0 0.0
    %1441 = vmatprep.subr.mxu0 0.0
    %1442 = vmatpush1.msra.mxu0 0.0
    %1443 = vmatprep.subr.mxu0 0.0
    %1444 = vmatpush1.msra.mxu0 0.0
    %1445 = vmatprep.subr.mxu0 0.0
    %1446 = vmatpush1.msra.mxu0 0.0
    %1447 = vmatprep.subr.mxu0 0.0
    %1448 = vmatpush1.msra.mxu0 0.0
    %1449 = vmatprep.subr.mxu0 0.0
    %1450 = vmatpush1.msra.mxu0 0.0
    %1451 = vmatprep.subr.mxu0 0.0
    %1452 = vmatpush1.msra.mxu0 0.0
    %1453 = vmatprep.subr.mxu0 0.0
    %1454 = vmatpush1.msra.mxu0 0.0
    %1455 = vmatprep.subr.mxu0 0.0
    %1456 = vmatpush1.msra.mxu0 0.0
    %1457 = vmatprep.subr.mxu0 0.0
    %1458 = vmatpush1.msra.mxu0 0.0
    %1459 = vmatprep.subr.mxu0 0.0
    %1460 = vmatpush1.msra.mxu0 0.0
    %1461 = vmatprep.subr.mxu0 0.0
    %1462 = vmatpush1.msra.mxu0 0.0
    %1463 = vmatprep.subr.mxu0 0.0
    %1464 = vmatpush1.msra.mxu0 0.0
    %1465 = vmatprep.subr.mxu0 0.0
    %1466 = vmatpush1.msra.mxu0 0.0
    %1467 = vmatprep.subr.mxu0 0.0
    %1468 = vmatpush1.msra.mxu0 0.0
    %1469 = vmatprep.subr.mxu0 0.0
    %1470 = vmatpush1.msra.mxu0 0.0
    %1471 = vmatprep.subr.mxu0 0.0
    %1472 = vmatpush1.msra.mxu0 0.0
    %1473 = vmatprep.subr.mxu0 0.0
    %1474 = vmatpush1.msra.mxu0 0.0
    %1475 = vmatprep.subr.mxu0 0.0
    %1476 = vmatpush1.msra.mxu0 0.0
    %1477 = vmatprep.subr.mxu0 0.0
    %1478 = vmatpush1.msra.mxu0 0.0
    %1479 = vmatprep.subr.mxu0 0.0
    %1480 = vmatpush1.msra.mxu0 0.0
    %1481 = vmatprep.subr.mxu0 0.0
    %1482 = vmatpush1.msra.mxu0 0.0
    %1483 = vmatprep.subr.mxu0 0.0
    %1484 = vmatpush1.msra.mxu0 0.0
    %1485 = vmatprep.subr.mxu0 0.0
    %1486 = vmatpush1.msra.mxu0 0.0
    %1487 = vmatprep.subr.mxu0 0.0
    %1488 = vmatpush1.msra.mxu0 0.0
    %1489 = vmatprep.subr.mxu0 0.0
    %1490 = vmatpush1.msra.mxu0 0.0
    %1491 = vmatprep.subr.mxu0 0.0
    %1492 = vmatpush1.msra.mxu0 0.0
    %1493 = vmatprep.subr.mxu0 0.0
    %1494 = vmatpush1.msra.mxu0 0.0
    %1495 = vmatprep.mubr.f32.mxu0 0.0
    %1496 = vmatmul.mubr.f32.gmra.mrb[0].mxu0 %v1426
    %v1497 = vpop.f32.mrb[0].mxu0
    %v1498 = vadd.f32 0.0, %v1497
    %v1499 = vpop.f32.mrb[0].mxu0
    %1500 = vmatprep.mubr.f32.mxu0 0.0
    %1501 = vmatmul.mubr.f32.gmra.mrb[0].mxu0 %v1429
    %v1502 = vpop.f32.mrb[0].mxu0
    %v1503 = vadd.f32 0.0, %v1502
    %v1504 = vpop.f32.mrb[0].mxu0
    %1505 = vdwg.mxu0
    %v1507 = vsel %vm1019, %v179, 0
    %v1510 = vsel %vm1019, %v180, 0
    %1512 = vmatprep.subr.mxu0 0.0
    %1513 = vmatpush1.msra.mxu0 %v999
    %1514 = vmatprep.subr.mxu0 0.0
    %1515 = vmatpush1.msra.mxu0 %v1000
    %1516 = vmatprep.subr.mxu0 0.0
    %1517 = vmatpush1.msra.mxu0 0.0
    %1518 = vmatprep.subr.mxu0 0.0
    %1519 = vmatpush1.msra.mxu0 0.0
    %1520 = vmatprep.subr.mxu0 0.0
    %1521 = vmatpush1.msra.mxu0 0.0
    %1522 = vmatprep.subr.mxu0 0.0
    %1523 = vmatpush1.msra.mxu0 0.0
    %1524 = vmatprep.subr.mxu0 0.0
    %1525 = vmatpush1.msra.mxu0 0.0
    %1526 = vmatprep.subr.mxu0 0.0
    %1527 = vmatpush1.msra.mxu0 0.0
    %1528 = vmatprep.subr.mxu0 0.0
    %1529 = vmatpush1.msra.mxu0 0.0
    %1530 = vmatprep.subr.mxu0 0.0
    %1531 = vmatpush1.msra.mxu0 0.0
    %1532 = vmatprep.subr.mxu0 0.0
    %1533 = vmatpush1.msra.mxu0 0.0
    %1534 = vmatprep.subr.mxu0 0.0
    %1535 = vmatpush1.msra.mxu0 0.0
    %1536 = vmatprep.subr.mxu0 0.0
    %1537 = vmatpush1.msra.mxu0 0.0
    %1538 = vmatprep.subr.mxu0 0.0
    %1539 = vmatpush1.msra.mxu0 0.0
    %1540 = vmatprep.subr.mxu0 0.0
    %1541 = vmatpush1.msra.mxu0 0.0
    %1542 = vmatprep.subr.mxu0 0.0
    %1543 = vmatpush1.msra.mxu0 0.0
    %1544 = vmatprep.subr.mxu0 0.0
    %1545 = vmatpush1.msra.mxu0 0.0
    %1546 = vmatprep.subr.mxu0 0.0
    %1547 = vmatpush1.msra.mxu0 0.0
    %1548 = vmatprep.subr.mxu0 0.0
    %1549 = vmatpush1.msra.mxu0 0.0
    %1550 = vmatprep.subr.mxu0 0.0
    %1551 = vmatpush1.msra.mxu0 0.0
    %1552 = vmatprep.subr.mxu0 0.0
    %1553 = vmatpush1.msra.mxu0 0.0
    %1554 = vmatprep.subr.mxu0 0.0
    %1555 = vmatpush1.msra.mxu0 0.0
    %1556 = vmatprep.subr.mxu0 0.0
    %1557 = vmatpush1.msra.mxu0 0.0
    %1558 = vmatprep.subr.mxu0 0.0
    %1559 = vmatpush1.msra.mxu0 0.0
    %1560 = vmatprep.subr.mxu0 0.0
    %1561 = vmatpush1.msra.mxu0 0.0
    %1562 = vmatprep.subr.mxu0 0.0
    %1563 = vmatpush1.msra.mxu0 0.0
    %1564 = vmatprep.subr.mxu0 0.0
    %1565 = vmatpush1.msra.mxu0 0.0
    %1566 = vmatprep.subr.mxu0 0.0
    %1567 = vmatpush1.msra.mxu0 0.0
    %1568 = vmatprep.subr.mxu0 0.0
    %1569 = vmatpush1.msra.mxu0 0.0
    %1570 = vmatprep.subr.mxu0 0.0
    %1571 = vmatpush1.msra.mxu0 0.0
    %1572 = vmatprep.subr.mxu0 0.0
    %1573 = vmatpush1.msra.mxu0 0.0
    %1574 = vmatprep.subr.mxu0 0.0
    %1575 = vmatpush1.msra.mxu0 0.0
    %1576 = vmatprep.mubr.f32.mxu0 0.0
    %1577 = vmatmul.mubr.f32.gmra.mrb[0].mxu0 %v1507
    %v1578 = vpop.f32.mrb[0].mxu0
    %v1579 = vadd.f32 0.0, %v1578
    %v1580 = vpop.f32.mrb[0].mxu0
    %1581 = vmatprep.mubr.f32.mxu0 0.0
    %1582 = vmatmul.mubr.f32.gmra.mrb[0].mxu0 %v1510
    %v1583 = vpop.f32.mrb[0].mxu0
    %v1584 = vadd.f32 0.0, %v1583
    %v1585 = vpop.f32.mrb[0].mxu0
    %1586 = vdwg.mxu0
    %v1588 = vsel %vm1019, %v181, 0
    %v1591 = vsel %vm1019, %v182, 0
    %1593 = vmatprep.subr.mxu0 0.0
    %1594 = vmatpush1.msra.mxu0 %v1001
    %1595 = vmatprep.subr.mxu0 0.0
    %1596 = vmatpush1.msra.mxu0 %v1002
    %1597 = vmatprep.subr.mxu0 0.0
    %1598 = vmatpush1.msra.mxu0 0.0
    %1599 = vmatprep.subr.mxu0 0.0
    %1600 = vmatpush1.msra.mxu0 0.0
    %1601 = vmatprep.subr.mxu0 0.0
    %1602 = vmatpush1.msra.mxu0 0.0
    %1603 = vmatprep.subr.mxu0 0.0
    %1604 = vmatpush1.msra.mxu0 0.0
    %1605 = vmatprep.subr.mxu0 0.0
    %1606 = vmatpush1.msra.mxu0 0.0
    %1607 = vmatprep.subr.mxu0 0.0
    %1608 = vmatpush1.msra.mxu0 0.0
    %1609 = vmatprep.subr.mxu0 0.0
    %1610 = vmatpush1.msra.mxu0 0.0
    %1611 = vmatprep.subr.mxu0 0.0
    %1612 = vmatpush1.msra.mxu0 0.0
    %1613 = vmatprep.subr.mxu0 0.0
    %1614 = vmatpush1.msra.mxu0 0.0
    %1615 = vmatprep.subr.mxu0 0.0
    %1616 = vmatpush1.msra.mxu0 0.0
    %1617 = vmatprep.subr.mxu0 0.0
    %1618 = vmatpush1.msra.mxu0 0.0
    %1619 = vmatprep.subr.mxu0 0.0
    %1620 = vmatpush1.msra.mxu0 0.0
    %1621 = vmatprep.subr.mxu0 0.0
    %1622 = vmatpush1.msra.mxu0 0.0
    %1623 = vmatprep.subr.mxu0 0.0
    %1624 = vmatpush1.msra.mxu0 0.0
    %1625 = vmatprep.subr.mxu0 0.0
    %1626 = vmatpush1.msra.mxu0 0.0
    %1627 = vmatprep.subr.mxu0 0.0
    %1628 = vmatpush1.msra.mxu0 0.0
    %1629 = vmatprep.subr.mxu0 0.0
    %1630 = vmatpush1.msra.mxu0 0.0
    %1631 = vmatprep.subr.mxu0 0.0
    %1632 = vmatpush1.msra.mxu0 0.0
    %1633 = vmatprep.subr.mxu0 0.0
    %1634 = vmatpush1.msra.mxu0 0.0
    %1635 = vmatprep.subr.mxu0 0.0
    %1636 = vmatpush1.msra.mxu0 0.0
    %1637 = vmatprep.subr.mxu0 0.0
    %1638 = vmatpush1.msra.mxu0 0.0
    %1639 = vmatprep.subr.mxu0 0.0
    %1640 = vmatpush1.msra.mxu0 0.0
    %1641 = vmatprep.subr.mxu0 0.0
    %1642 = vmatpush1.msra.mxu0 0.0
    %1643 = vmatprep.subr.mxu0 0.0
    %1644 = vmatpush1.msra.mxu0 0.0
    %1645 = vmatprep.subr.mxu0 0.0
    %1646 = vmatpush1.msra.mxu0 0.0
    %1647 = vmatprep.subr.mxu0 0.0
    %1648 = vmatpush1.msra.mxu0 0.0
    %1649 = vmatprep.subr.mxu0 0.0
    %1650 = vmatpush1.msra.mxu0 0.0
    %1651 = vmatprep.subr.mxu0 0.0
    %1652 = vmatpush1.msra.mxu0 0.0
    %1653 = vmatprep.subr.mxu0 0.0
    %1654 = vmatpush1.msra.mxu0 0.0
    %1655 = vmatprep.subr.mxu0 0.0
    %1656 = vmatpush1.msra.mxu0 0.0
    %1657 = vmatprep.mubr.f32.mxu0 0.0
    %1658 = vmatmul.mubr.f32.gmra.mrb[0].mxu0 %v1588
    %v1659 = vpop.f32.mrb[0].mxu0
    %v1660 = vadd.f32 0.0, %v1659
    %v1661 = vpop.f32.mrb[0].mxu0
    %1662 = vmatprep.mubr.f32.mxu0 0.0
    %1663 = vmatmul.mubr.f32.gmra.mrb[0].mxu0 %v1591
    %v1664 = vpop.f32.mrb[0].mxu0
    %v1665 = vadd.f32 0.0, %v1664
    %v1666 = vpop.f32.mrb[0].mxu0
    %1667 = vdwg.mxu0
    %v1669 = vsel %vm1019, %v183, 0
    %v1672 = vsel %vm1019, %v184, 0
    %1674 = vmatprep.subr.mxu0 0.0
    %1675 = vmatpush1.msra.mxu0 %v1003
    %1676 = vmatprep.subr.mxu0 0.0
    %1677 = vmatpush1.msra.mxu0 %v1004
    %1678 = vmatprep.subr.mxu0 0.0
    %1679 = vmatpush1.msra.mxu0 0.0
    %1680 = vmatprep.subr.mxu0 0.0
    %1681 = vmatpush1.msra.mxu0 0.0
    %1682 = vmatprep.subr.mxu0 0.0
    %1683 = vmatpush1.msra.mxu0 0.0
    %1684 = vmatprep.subr.mxu0 0.0
    %1685 = vmatpush1.msra.mxu0 0.0
    %1686 = vmatprep.subr.mxu0 0.0
    %1687 = vmatpush1.msra.mxu0 0.0
    %1688 = vmatprep.subr.mxu0 0.0
    %1689 = vmatpush1.msra.mxu0 0.0
    %1690 = vmatprep.subr.mxu0 0.0
    %1691 = vmatpush1.msra.mxu0 0.0
    %1692 = vmatprep.subr.mxu0 0.0
    %1693 = vmatpush1.msra.mxu0 0.0
    %1694 = vmatprep.subr.mxu0 0.0
    %1695 = vmatpush1.msra.mxu0 0.0
    %1696 = vmatprep.subr.mxu0 0.0
    %1697 = vmatpush1.msra.mxu0 0.0
    %1698 = vmatprep.subr.mxu0 0.0
    %1699 = vmatpush1.msra.mxu0 0.0
    %1700 = vmatprep.subr.mxu0 0.0
    %1701 = vmatpush1.msra.mxu0 0.0
    %1702 = vmatprep.subr.mxu0 0.0
    %1703 = vmatpush1.msra.mxu0 0.0
    %1704 = vmatprep.subr.mxu0 0.0
    %1705 = vmatpush1.msra.mxu0 0.0
    %1706 = vmatprep.subr.mxu0 0.0
    %1707 = vmatpush1.msra.mxu0 0.0
    %1708 = vmatprep.subr.mxu0 0.0
    %1709 = vmatpush1.msra.mxu0 0.0
    %1710 = vmatprep.subr.mxu0 0.0
    %1711 = vmatpush1.msra.mxu0 0.0
    %1712 = vmatprep.subr.mxu0 0.0
    %1713 = vmatpush1.msra.mxu0 0.0
    %1714 = vmatprep.subr.mxu0 0.0
    %1715 = vmatpush1.msra.mxu0 0.0
    %1716 = vmatprep.subr.mxu0 0.0
    %1717 = vmatpush1.msra.mxu0 0.0
    %1718 = vmatprep.subr.mxu0 0.0
    %1719 = vmatpush1.msra.mxu0 0.0
    %1720 = vmatprep.subr.mxu0 0.0
    %1721 = vmatpush1.msra.mxu0 0.0
    %1722 = vmatprep.subr.mxu0 0.0
    %1723 = vmatpush1.msra.mxu0 0.0
    %1724 = vmatprep.subr.mxu0 0.0
    %1725 = vmatpush1.msra.mxu0 0.0
    %1726 = vmatprep.subr.mxu0 0.0
    %1727 = vmatpush1.msra.mxu0 0.0
    %1728 = vmatprep.subr.mxu0 0.0
    %1729 = vmatpush1.msra.mxu0 0.0
    %1730 = vmatprep.subr.mxu0 0.0
    %1731 = vmatpush1.msra.mxu0 0.0
    %1732 = vmatprep.subr.mxu0 0.0
    %1733 = vmatpush1.msra.mxu0 0.0
    %1734 = vmatprep.subr.mxu0 0.0
    %1735 = vmatpush1.msra.mxu0 0.0
    %1736 = vmatprep.subr.mxu0 0.0
    %1737 = vmatpush1.msra.mxu0 0.0
    %1738 = vmatprep.mubr.f32.mxu0 0.0
    %1739 = vmatmul.mubr.f32.gmra.mrb[0].mxu0 %v1669
    %v1740 = vpop.f32.mrb[0].mxu0
    %v1741 = vadd.f32 0.0, %v1740
    %v1742 = vpop.f32.mrb[0].mxu0
    %1743 = vmatprep.mubr.f32.mxu0 0.0
    %1744 = vmatmul.mubr.f32.gmra.mrb[0].mxu0 %v1672
    %v1745 = vpop.f32.mrb[0].mxu0
    %v1746 = vadd.f32 0.0, %v1745
    %v1747 = vpop.f32.mrb[0].mxu0
    %1748 = vdwg.mxu0
    %v1750 = vsel %vm1019, %v185, 0
    %v1753 = vsel %vm1019, %v186, 0
    %1755 = vmatprep.subr.mxu0 0.0
    %1756 = vmatpush1.msra.mxu0 %v1005
    %1757 = vmatprep.subr.mxu0 0.0
    %1758 = vmatpush1.msra.mxu0 %v1006
    %1759 = vmatprep.subr.mxu0 0.0
    %1760 = vmatpush1.msra.mxu0 0.0
    %1761 = vmatprep.subr.mxu0 0.0
    %1762 = vmatpush1.msra.mxu0 0.0
    %1763 = vmatprep.subr.mxu0 0.0
    %1764 = vmatpush1.msra.mxu0 0.0
    %1765 = vmatprep.subr.mxu0 0.0
    %1766 = vmatpush1.msra.mxu0 0.0
    %1767 = vmatprep.subr.mxu0 0.0
    %1768 = vmatpush1.msra.mxu0 0.0
    %1769 = vmatprep.subr.mxu0 0.0
    %1770 = vmatpush1.msra.mxu0 0.0
    %1771 = vmatprep.subr.mxu0 0.0
    %1772 = vmatpush1.msra.mxu0 0.0
    %1773 = vmatprep.subr.mxu0 0.0
    %1774 = vmatpush1.msra.mxu0 0.0
    %1775 = vmatprep.subr.mxu0 0.0
    %1776 = vmatpush1.msra.mxu0 0.0
    %1777 = vmatprep.subr.mxu0 0.0
    %1778 = vmatpush1.msra.mxu0 0.0
    %1779 = vmatprep.subr.mxu0 0.0
    %1780 = vmatpush1.msra.mxu0 0.0
    %1781 = vmatprep.subr.mxu0 0.0
    %1782 = vmatpush1.msra.mxu0 0.0
    %1783 = vmatprep.subr.mxu0 0.0
    %1784 = vmatpush1.msra.mxu0 0.0
    %1785 = vmatprep.subr.mxu0 0.0
    %1786 = vmatpush1.msra.mxu0 0.0
    %1787 = vmatprep.subr.mxu0 0.0
    %1788 = vmatpush1.msra.mxu0 0.0
    %1789 = vmatprep.subr.mxu0 0.0
    %1790 = vmatpush1.msra.mxu0 0.0
    %1791 = vmatprep.subr.mxu0 0.0
    %1792 = vmatpush1.msra.mxu0 0.0
    %1793 = vmatprep.subr.mxu0 0.0
    %1794 = vmatpush1.msra.mxu0 0.0
    %1795 = vmatprep.subr.mxu0 0.0
    %1796 = vmatpush1.msra.mxu0 0.0
    %1797 = vmatprep.subr.mxu0 0.0
    %1798 = vmatpush1.msra.mxu0 0.0
    %1799 = vmatprep.subr.mxu0 0.0
    %1800 = vmatpush1.msra.mxu0 0.0
    %1801 = vmatprep.subr.mxu0 0.0
    %1802 = vmatpush1.msra.mxu0 0.0
    %1803 = vmatprep.subr.mxu0 0.0
    %1804 = vmatpush1.msra.mxu0 0.0
    %1805 = vmatprep.subr.mxu0 0.0
    %1806 = vmatpush1.msra.mxu0 0.0
    %1807 = vmatprep.subr.mxu0 0.0
    %1808 = vmatpush1.msra.mxu0 0.0
    %1809 = vmatprep.subr.mxu0 0.0
    %1810 = vmatpush1.msra.mxu0 0.0
    %1811 = vmatprep.subr.mxu0 0.0
    %1812 = vmatpush1.msra.mxu0 0.0
    %1813 = vmatprep.subr.mxu0 0.0
    %1814 = vmatpush1.msra.mxu0 0.0
    %1815 = vmatprep.subr.mxu0 0.0
    %1816 = vmatpush1.msra.mxu0 0.0
    %1817 = vmatprep.subr.mxu0 0.0
    %1818 = vmatpush1.msra.mxu0 0.0
    %1819 = vmatprep.mubr.f32.mxu0 0.0
    %1820 = vmatmul.mubr.f32.gmra.mrb[0].mxu0 %v1750
    %v1821 = vpop.f32.mrb[0].mxu0
    %v1822 = vadd.f32 0.0, %v1821
    %v1823 = vpop.f32.mrb[0].mxu0
    %1824 = vmatprep.mubr.f32.mxu0 0.0
    %1825 = vmatmul.mubr.f32.gmra.mrb[0].mxu0 %v1753
    %v1826 = vpop.f32.mrb[0].mxu0
    %v1827 = vadd.f32 0.0, %v1826
    %v1828 = vpop.f32.mrb[0].mxu0
    %1829 = vdwg.mxu0
    %v1831 = vsel %vm1019, %v187, 0
    %v1834 = vsel %vm1019, %v188, 0
    %1836 = vmatprep.subr.mxu0 0.0
    %1837 = vmatpush1.msra.mxu0 %v1007
    %1838 = vmatprep.subr.mxu0 0.0
    %1839 = vmatpush1.msra.mxu0 %v1008
    %1840 = vmatprep.subr.mxu0 0.0
    %1841 = vmatpush1.msra.mxu0 0.0
    %1842 = vmatprep.subr.mxu0 0.0
    %1843 = vmatpush1.msra.mxu0 0.0
    %1844 = vmatprep.subr.mxu0 0.0
    %1845 = vmatpush1.msra.mxu0 0.0
    %1846 = vmatprep.subr.mxu0 0.0
    %1847 = vmatpush1.msra.mxu0 0.0
    %1848 = vmatprep.subr.mxu0 0.0
    %1849 = vmatpush1.msra.mxu0 0.0
    %1850 = vmatprep.subr.mxu0 0.0
    %1851 = vmatpush1.msra.mxu0 0.0
    %1852 = vmatprep.subr.mxu0 0.0
    %1853 = vmatpush1.msra.mxu0 0.0
    %1854 = vmatprep.subr.mxu0 0.0
    %1855 = vmatpush1.msra.mxu0 0.0
    %1856 = vmatprep.subr.mxu0 0.0
    %1857 = vmatpush1.msra.mxu0 0.0
    %1858 = vmatprep.subr.mxu0 0.0
    %1859 = vmatpush1.msra.mxu0 0.0
    %1860 = vmatprep.subr.mxu0 0.0
    %1861 = vmatpush1.msra.mxu0 0.0
    %1862 = vmatprep.subr.mxu0 0.0
    %1863 = vmatpush1.msra.mxu0 0.0
    %1864 = vmatprep.subr.mxu0 0.0
    %1865 = vmatpush1.msra.mxu0 0.0
    %1866 = vmatprep.subr.mxu0 0.0
    %1867 = vmatpush1.msra.mxu0 0.0
    %1868 = vmatprep.subr.mxu0 0.0
    %1869 = vmatpush1.msra.mxu0 0.0
    %1870 = vmatprep.subr.mxu0 0.0
    %1871 = vmatpush1.msra.mxu0 0.0
    %1872 = vmatprep.subr.mxu0 0.0
    %1873 = vmatpush1.msra.mxu0 0.0
    %1874 = vmatprep.subr.mxu0 0.0
    %1875 = vmatpush1.msra.mxu0 0.0
    %1876 = vmatprep.subr.mxu0 0.0
    %1877 = vmatpush1.msra.mxu0 0.0
    %1878 = vmatprep.subr.mxu0 0.0
    %1879 = vmatpush1.msra.mxu0 0.0
    %1880 = vmatprep.subr.mxu0 0.0
    %1881 = vmatpush1.msra.mxu0 0.0
    %1882 = vmatprep.subr.mxu0 0.0
    %1883 = vmatpush1.msra.mxu0 0.0
    %1884 = vmatprep.subr.mxu0 0.0
    %1885 = vmatpush1.msra.mxu0 0.0
    %1886 = vmatprep.subr.mxu0 0.0
    %1887 = vmatpush1.msra.mxu0 0.0
    %1888 = vmatprep.subr.mxu0 0.0
    %1889 = vmatpush1.msra.mxu0 0.0
    %1890 = vmatprep.subr.mxu0 0.0
    %1891 = vmatpush1.msra.mxu0 0.0
    %1892 = vmatprep.subr.mxu0 0.0
    %1893 = vmatpush1.msra.mxu0 0.0
    %1894 = vmatprep.subr.mxu0 0.0
    %1895 = vmatpush1.msra.mxu0 0.0
    %1896 = vmatprep.subr.mxu0 0.0
    %1897 = vmatpush1.msra.mxu0 0.0
    %1898 = vmatprep.subr.mxu0 0.0
    %1899 = vmatpush1.msra.mxu0 0.0
    %1900 = vmatprep.mubr.f32.mxu0 0.0
    %1901 = vmatmul.mubr.f32.gmra.mrb[0].mxu0 %v1831
    %v1902 = vpop.f32.mrb[0].mxu0
    %v1903 = vadd.f32 0.0, %v1902
    %v1904 = vpop.f32.mrb[0].mxu0
    %1905 = vmatprep.mubr.f32.mxu0 0.0
    %1906 = vmatmul.mubr.f32.gmra.mrb[0].mxu0 %v1834
    %v1907 = vpop.f32.mrb[0].mxu0
    %v1908 = vadd.f32 0.0, %v1907
    %v1909 = vpop.f32.mrb[0].mxu0
    %1910 = vdwg.mxu0
    %v1912 = vsel %vm1019, %v189, 0
    %v1915 = vsel %vm1019, %v190, 0
    %1917 = vmatprep.subr.mxu0 0.0
    %1918 = vmatpush1.msra.mxu0 %v1009
    %1919 = vmatprep.subr.mxu0 0.0
    %1920 = vmatpush1.msra.mxu0 %v1010
    %1921 = vmatprep.subr.mxu0 0.0
    %1922 = vmatpush1.msra.mxu0 0.0
    %1923 = vmatprep.subr.mxu0 0.0
    %1924 = vmatpush1.msra.mxu0 0.0
    %1925 = vmatprep.subr.mxu0 0.0
    %1926 = vmatpush1.msra.mxu0 0.0
    %1927 = vmatprep.subr.mxu0 0.0
    %1928 = vmatpush1.msra.mxu0 0.0
    %1929 = vmatprep.subr.mxu0 0.0
    %1930 = vmatpush1.msra.mxu0 0.0
    %1931 = vmatprep.subr.mxu0 0.0
    %1932 = vmatpush1.msra.mxu0 0.0
    %1933 = vmatprep.subr.mxu0 0.0
    %1934 = vmatpush1.msra.mxu0 0.0
    %1935 = vmatprep.subr.mxu0 0.0
    %1936 = vmatpush1.msra.mxu0 0.0
    %1937 = vmatprep.subr.mxu0 0.0
    %1938 = vmatpush1.msra.mxu0 0.0
    %1939 = vmatprep.subr.mxu0 0.0
    %1940 = vmatpush1.msra.mxu0 0.0
    %1941 = vmatprep.subr.mxu0 0.0
    %1942 = vmatpush1.msra.mxu0 0.0
    %1943 = vmatprep.subr.mxu0 0.0
    %1944 = vmatpush1.msra.mxu0 0.0
    %1945 = vmatprep.subr.mxu0 0.0
    %1946 = vmatpush1.msra.mxu0 0.0
    %1947 = vmatprep.subr.mxu0 0.0
    %1948 = vmatpush1.msra.mxu0 0.0
    %1949 = vmatprep.subr.mxu0 0.0
    %1950 = vmatpush1.msra.mxu0 0.0
    %1951 = vmatprep.subr.mxu0 0.0
    %1952 = vmatpush1.msra.mxu0 0.0
    %1953 = vmatprep.subr.mxu0 0.0
    %1954 = vmatpush1.msra.mxu0 0.0
    %1955 = vmatprep.subr.mxu0 0.0
    %1956 = vmatpush1.msra.mxu0 0.0
    %1957 = vmatprep.subr.mxu0 0.0
    %1958 = vmatpush1.msra.mxu0 0.0
    %1959 = vmatprep.subr.mxu0 0.0
    %1960 = vmatpush1.msra.mxu0 0.0
    %1961 = vmatprep.subr.mxu0 0.0
    %1962 = vmatpush1.msra.mxu0 0.0
    %1963 = vmatprep.subr.mxu0 0.0
    %1964 = vmatpush1.msra.mxu0 0.0
    %1965 = vmatprep.subr.mxu0 0.0
    %1966 = vmatpush1.msra.mxu0 0.0
    %1967 = vmatprep.subr.mxu0 0.0
    %1968 = vmatpush1.msra.mxu0 0.0
    %1969 = vmatprep.subr.mxu0 0.0
    %1970 = vmatpush1.msra.mxu0 0.0
    %1971 = vmatprep.subr.mxu0 0.0
    %1972 = vmatpush1.msra.mxu0 0.0
    %1973 = vmatprep.subr.mxu0 0.0
    %1974 = vmatpush1.msra.mxu0 0.0
    %1975 = vmatprep.subr.mxu0 0.0
    %1976 = vmatpush1.msra.mxu0 0.0
    %1977 = vmatprep.subr.mxu0 0.0
    %1978 = vmatpush1.msra.mxu0 0.0
    %1979 = vmatprep.subr.mxu0 0.0
    %1980 = vmatpush1.msra.mxu0 0.0
    %1981 = vmatprep.mubr.f32.mxu0 0.0
    %1982 = vmatmul.mubr.f32.gmra.mrb[0].mxu0 %v1912
    %v1983 = vpop.f32.mrb[0].mxu0
    %v1984 = vadd.f32 0.0, %v1983
    %v1985 = vpop.f32.mrb[0].mxu0
    %1986 = vmatprep.mubr.f32.mxu0 0.0
    %1987 = vmatmul.mubr.f32.gmra.mrb[0].mxu0 %v1915
    %v1988 = vpop.f32.mrb[0].mxu0
    %v1989 = vadd.f32 0.0, %v1988
    %v1990 = vpop.f32.mrb[0].mxu0
    %1991 = vdwg.mxu0
    %v1993 = vsel %vm1019, %v191, 0
    %v1996 = vsel %vm1019, %v192, 0
    %1998 = vmatprep.subr.mxu0 0.0
    %1999 = vmatpush1.msra.mxu0 %v1011
    %2000 = vmatprep.subr.mxu0 0.0
    %2001 = vmatpush1.msra.mxu0 %v1012
    %2002 = vmatprep.subr.mxu0 0.0
    %2003 = vmatpush1.msra.mxu0 0.0
    %2004 = vmatprep.subr.mxu0 0.0
    %2005 = vmatpush1.msra.mxu0 0.0
    %2006 = vmatprep.subr.mxu0 0.0
    %2007 = vmatpush1.msra.mxu0 0.0
    %2008 = vmatprep.subr.mxu0 0.0
    %2009 = vmatpush1.msra.mxu0 0.0
    %2010 = vmatprep.subr.mxu0 0.0
    %2011 = vmatpush1.msra.mxu0 0.0
    %2012 = vmatprep.subr.mxu0 0.0
    %2013 = vmatpush1.msra.mxu0 0.0
    %2014 = vmatprep.subr.mxu0 0.0
    %2015 = vmatpush1.msra.mxu0 0.0
    %2016 = vmatprep.subr.mxu0 0.0
    %2017 = vmatpush1.msra.mxu0 0.0
    %2018 = vmatprep.subr.mxu0 0.0
    %2019 = vmatpush1.msra.mxu0 0.0
    %2020 = vmatprep.subr.mxu0 0.0
    %2021 = vmatpush1.msra.mxu0 0.0
    %2022 = vmatprep.subr.mxu0 0.0
    %2023 = vmatpush1.msra.mxu0 0.0
    %2024 = vmatprep.subr.mxu0 0.0
    %2025 = vmatpush1.msra.mxu0 0.0
    %2026 = vmatprep.subr.mxu0 0.0
    %2027 = vmatpush1.msra.mxu0 0.0
    %2028 = vmatprep.subr.mxu0 0.0
    %2029 = vmatpush1.msra.mxu0 0.0
    %2030 = vmatprep.subr.mxu0 0.0
    %2031 = vmatpush1.msra.mxu0 0.0
    %2032 = vmatprep.subr.mxu0 0.0
    %2033 = vmatpush1.msra.mxu0 0.0
    %2034 = vmatprep.subr.mxu0 0.0
    %2035 = vmatpush1.msra.mxu0 0.0
    %2036 = vmatprep.subr.mxu0 0.0
    %2037 = vmatpush1.msra.mxu0 0.0
    %2038 = vmatprep.subr.mxu0 0.0
    %2039 = vmatpush1.msra.mxu0 0.0
    %2040 = vmatprep.subr.mxu0 0.0
    %2041 = vmatpush1.msra.mxu0 0.0
    %2042 = vmatprep.subr.mxu0 0.0
    %2043 = vmatpush1.msra.mxu0 0.0
    %2044 = vmatprep.subr.mxu0 0.0
    %2045 = vmatpush1.msra.mxu0 0.0
    %2046 = vmatprep.subr.mxu0 0.0
    %2047 = vmatpush1.msra.mxu0 0.0
    %2048 = vmatprep.subr.mxu0 0.0
    %2049 = vmatpush1.msra.mxu0 0.0
    %2050 = vmatprep.subr.mxu0 0.0
    %2051 = vmatpush1.msra.mxu0 0.0
    %2052 = vmatprep.subr.mxu0 0.0
    %2053 = vmatpush1.msra.mxu0 0.0
    %2054 = vmatprep.subr.mxu0 0.0
    %2055 = vmatpush1.msra.mxu0 0.0
    %2056 = vmatprep.subr.mxu0 0.0
    %2057 = vmatpush1.msra.mxu0 0.0
    %2058 = vmatprep.subr.mxu0 0.0
    %2059 = vmatpush1.msra.mxu0 0.0
    %2060 = vmatprep.subr.mxu0 0.0
    %2061 = vmatpush1.msra.mxu0 0.0
    %2062 = vmatprep.mubr.f32.mxu0 0.0
    %2063 = vmatmul.mubr.f32.gmra.mrb[0].mxu0 %v1993
    %v2064 = vpop.f32.mrb[0].mxu0
    %v2065 = vadd.f32 0.0, %v2064
    %v2066 = vpop.f32.mrb[0].mxu0
    %2067 = vmatprep.mubr.f32.mxu0 0.0
    %2068 = vmatmul.mubr.f32.gmra.mrb[0].mxu0 %v1996
    %v2069 = vpop.f32.mrb[0].mxu0
    %v2070 = vadd.f32 0.0, %v2069
    %v2071 = vpop.f32.mrb[0].mxu0
    %2072 = vdwg.mxu0
    %v2074 = vsel %vm1019, %v193, 0
    %v2077 = vsel %vm1019, %v194, 0
    %2079 = vmatprep.subr.mxu0 0.0
    %2080 = vmatpush1.msra.mxu0 %v1013
    %2081 = vmatprep.subr.mxu0 0.0
    %2082 = vmatpush1.msra.mxu0 %v1014
    %2083 = vmatprep.subr.mxu0 0.0
    %2084 = vmatpush1.msra.mxu0 0.0
    %2085 = vmatprep.subr.mxu0 0.0
    %2086 = vmatpush1.msra.mxu0 0.0
    %2087 = vmatprep.subr.mxu0 0.0
    %2088 = vmatpush1.msra.mxu0 0.0
    %2089 = vmatprep.subr.mxu0 0.0
    %2090 = vmatpush1.msra.mxu0 0.0
    %2091 = vmatprep.subr.mxu0 0.0
    %2092 = vmatpush1.msra.mxu0 0.0
    %2093 = vmatprep.subr.mxu0 0.0
    %2094 = vmatpush1.msra.mxu0 0.0
    %2095 = vmatprep.subr.mxu0 0.0
    %2096 = vmatpush1.msra.mxu0 0.0
    %2097 = vmatprep.subr.mxu0 0.0
    %2098 = vmatpush1.msra.mxu0 0.0
    %2099 = vmatprep.subr.mxu0 0.0
    %2100 = vmatpush1.msra.mxu0 0.0
    %2101 = vmatprep.subr.mxu0 0.0
    %2102 = vmatpush1.msra.mxu0 0.0
    %2103 = vmatprep.subr.mxu0 0.0
    %2104 = vmatpush1.msra.mxu0 0.0
    %2105 = vmatprep.subr.mxu0 0.0
    %2106 = vmatpush1.msra.mxu0 0.0
    %2107 = vmatprep.subr.mxu0 0.0
    %2108 = vmatpush1.msra.mxu0 0.0
    %2109 = vmatprep.subr.mxu0 0.0
    %2110 = vmatpush1.msra.mxu0 0.0
    %2111 = vmatprep.subr.mxu0 0.0
    %2112 = vmatpush1.msra.mxu0 0.0
    %2113 = vmatprep.subr.mxu0 0.0
    %2114 = vmatpush1.msra.mxu0 0.0
    %2115 = vmatprep.subr.mxu0 0.0
    %2116 = vmatpush1.msra.mxu0 0.0
    %2117 = vmatprep.subr.mxu0 0.0
    %2118 = vmatpush1.msra.mxu0 0.0
    %2119 = vmatprep.subr.mxu0 0.0
    %2120 = vmatpush1.msra.mxu0 0.0
    %2121 = vmatprep.subr.mxu0 0.0
    %2122 = vmatpush1.msra.mxu0 0.0
    %2123 = vmatprep.subr.mxu0 0.0
    %2124 = vmatpush1.msra.mxu0 0.0
    %2125 = vmatprep.subr.mxu0 0.0
    %2126 = vmatpush1.msra.mxu0 0.0
    %2127 = vmatprep.subr.mxu0 0.0
    %2128 = vmatpush1.msra.mxu0 0.0
    %2129 = vmatprep.subr.mxu0 0.0
    %2130 = vmatpush1.msra.mxu0 0.0
    %2131 = vmatprep.subr.mxu0 0.0
    %2132 = vmatpush1.msra.mxu0 0.0
    %2133 = vmatprep.subr.mxu0 0.0
    %2134 = vmatpush1.msra.mxu0 0.0
    %2135 = vmatprep.subr.mxu0 0.0
    %2136 = vmatpush1.msra.mxu0 0.0
    %2137 = vmatprep.subr.mxu0 0.0
    %2138 = vmatpush1.msra.mxu0 0.0
    %2139 = vmatprep.subr.mxu0 0.0
    %2140 = vmatpush1.msra.mxu0 0.0
    %2141 = vmatprep.subr.mxu0 0.0
    %2142 = vmatpush1.msra.mxu0 0.0
    %2143 = vmatprep.mubr.f32.mxu0 0.0
    %2144 = vmatmul.mubr.f32.gmra.mrb[0].mxu0 %v2074
    %v2145 = vpop.f32.mrb[0].mxu0
    %v2146 = vadd.f32 0.0, %v2145
    %v2147 = vpop.f32.mrb[0].mxu0
    %2148 = vmatprep.mubr.f32.mxu0 0.0
    %2149 = vmatmul.mubr.f32.gmra.mrb[0].mxu0 %v2077
    %v2150 = vpop.f32.mrb[0].mxu0
    %v2151 = vadd.f32 0.0, %v2150
    %v2152 = vpop.f32.mrb[0].mxu0
    %2153 = vdwg.mxu0
    %v2155 = vsel %vm1019, %v195, 0
    %v2158 = vsel %vm1019, %v196, 0
    %2160 = vmatprep.subr.mxu0 0.0
    %2161 = vmatpush1.msra.mxu0 %v1015
    %2162 = vmatprep.subr.mxu0 0.0
    %2163 = vmatpush1.msra.mxu0 %v1016
    %2164 = vmatprep.subr.mxu0 0.0
    %2165 = vmatpush1.msra.mxu0 0.0
    %2166 = vmatprep.subr.mxu0 0.0
    %2167 = vmatpush1.msra.mxu0 0.0
    %2168 = vmatprep.subr.mxu0 0.0
    %2169 = vmatpush1.msra.mxu0 0.0
    %2170 = vmatprep.subr.mxu0 0.0
    %2171 = vmatpush1.msra.mxu0 0.0
    %2172 = vmatprep.subr.mxu0 0.0
    %2173 = vmatpush1.msra.mxu0 0.0
    %2174 = vmatprep.subr.mxu0 0.0
    %2175 = vmatpush1.msra.mxu0 0.0
    %2176 = vmatprep.subr.mxu0 0.0
    %2177 = vmatpush1.msra.mxu0 0.0
    %2178 = vmatprep.subr.mxu0 0.0
    %2179 = vmatpush1.msra.mxu0 0.0
    %2180 = vmatprep.subr.mxu0 0.0
    %2181 = vmatpush1.msra.mxu0 0.0
    %2182 = vmatprep.subr.mxu0 0.0
    %2183 = vmatpush1.msra.mxu0 0.0
    %2184 = vmatprep.subr.mxu0 0.0
    %2185 = vmatpush1.msra.mxu0 0.0
    %2186 = vmatprep.subr.mxu0 0.0
    %2187 = vmatpush1.msra.mxu0 0.0
    %2188 = vmatprep.subr.mxu0 0.0
    %2189 = vmatpush1.msra.mxu0 0.0
    %2190 = vmatprep.subr.mxu0 0.0
    %2191 = vmatpush1.msra.mxu0 0.0
    %2192 = vmatprep.subr.mxu0 0.0
    %2193 = vmatpush1.msra.mxu0 0.0
    %2194 = vmatprep.subr.mxu0 0.0
    %2195 = vmatpush1.msra.mxu0 0.0
    %2196 = vmatprep.subr.mxu0 0.0
    %2197 = vmatpush1.msra.mxu0 0.0
    %2198 = vmatprep.subr.mxu0 0.0
    %2199 = vmatpush1.msra.mxu0 0.0
    %2200 = vmatprep.subr.mxu0 0.0
    %2201 = vmatpush1.msra.mxu0 0.0
    %2202 = vmatprep.subr.mxu0 0.0
    %2203 = vmatpush1.msra.mxu0 0.0
    %2204 = vmatprep.subr.mxu0 0.0
    %2205 = vmatpush1.msra.mxu0 0.0
    %2206 = vmatprep.subr.mxu0 0.0
    %2207 = vmatpush1.msra.mxu0 0.0
    %2208 = vmatprep.subr.mxu0 0.0
    %2209 = vmatpush1.msra.mxu0 0.0
    %2210 = vmatprep.subr.mxu0 0.0
    %2211 = vmatpush1.msra.mxu0 0.0
    %2212 = vmatprep.subr.mxu0 0.0
    %2213 = vmatpush1.msra.mxu0 0.0
    %2214 = vmatprep.subr.mxu0 0.0
    %2215 = vmatpush1.msra.mxu0 0.0
    %2216 = vmatprep.subr.mxu0 0.0
    %2217 = vmatpush1.msra.mxu0 0.0
    %2218 = vmatprep.subr.mxu0 0.0
    %2219 = vmatpush1.msra.mxu0 0.0
    %2220 = vmatprep.subr.mxu0 0.0
    %2221 = vmatpush1.msra.mxu0 0.0
    %2222 = vmatprep.subr.mxu0 0.0
    %2223 = vmatpush1.msra.mxu0 0.0
    %2224 = vmatprep.mubr.f32.mxu0 0.0
    %2225 = vmatmul.mubr.f32.gmra.mrb[0].mxu0 %v2155
    %v2226 = vpop.f32.mrb[0].mxu0
    %v2227 = vadd.f32 0.0, %v2226
    %v2228 = vpop.f32.mrb[0].mxu0
    %2229 = vmatprep.mubr.f32.mxu0 0.0
    %2230 = vmatmul.mubr.f32.gmra.mrb[0].mxu0 %v2158
    %v2231 = vpop.f32.mrb[0].mxu0
    %v2232 = vadd.f32 0.0, %v2231
    %v2233 = vpop.f32.mrb[0].mxu0
    %2234 = vdwg.mxu0
    %v2236 = vsel %vm1019, %v197, 0
    %v2239 = vsel %vm1019, %v198, 0
    %2241 = vmatprep.subr.mxu0 0.0
    %2242 = vmatpush1.msra.mxu0 %v1017
    %2243 = vmatprep.subr.mxu0 0.0
    %2244 = vmatpush1.msra.mxu0 %v1018
    %2245 = vmatprep.subr.mxu0 0.0
    %2246 = vmatpush1.msra.mxu0 0.0
    %2247 = vmatprep.subr.mxu0 0.0
    %2248 = vmatpush1.msra.mxu0 0.0
    %2249 = vmatprep.subr.mxu0 0.0
    %2250 = vmatpush1.msra.mxu0 0.0
    %2251 = vmatprep.subr.mxu0 0.0
    %2252 = vmatpush1.msra.mxu0 0.0
    %2253 = vmatprep.subr.mxu0 0.0
    %2254 = vmatpush1.msra.mxu0 0.0
    %2255 = vmatprep.subr.mxu0 0.0
    %2256 = vmatpush1.msra.mxu0 0.0
    %2257 = vmatprep.subr.mxu0 0.0
    %2258 = vmatpush1.msra.mxu0 0.0
    %2259 = vmatprep.subr.mxu0 0.0
    %2260 = vmatpush1.msra.mxu0 0.0
    %2261 = vmatprep.subr.mxu0 0.0
    %2262 = vmatpush1.msra.mxu0 0.0
    %2263 = vmatprep.subr.mxu0 0.0
    %2264 = vmatpush1.msra.mxu0 0.0
    %2265 = vmatprep.subr.mxu0 0.0
    %2266 = vmatpush1.msra.mxu0 0.0
    %2267 = vmatprep.subr.mxu0 0.0
    %2268 = vmatpush1.msra.mxu0 0.0
    %2269 = vmatprep.subr.mxu0 0.0
    %2270 = vmatpush1.msra.mxu0 0.0
    %2271 = vmatprep.subr.mxu0 0.0
    %2272 = vmatpush1.msra.mxu0 0.0
    %2273 = vmatprep.subr.mxu0 0.0
    %2274 = vmatpush1.msra.mxu0 0.0
    %2275 = vmatprep.subr.mxu0 0.0
    %2276 = vmatpush1.msra.mxu0 0.0
    %2277 = vmatprep.subr.mxu0 0.0
    %2278 = vmatpush1.msra.mxu0 0.0
    %2279 = vmatprep.subr.mxu0 0.0
    %2280 = vmatpush1.msra.mxu0 0.0
    %2281 = vmatprep.subr.mxu0 0.0
    %2282 = vmatpush1.msra.mxu0 0.0
    %2283 = vmatprep.subr.mxu0 0.0
    %2284 = vmatpush1.msra.mxu0 0.0
    %2285 = vmatprep.subr.mxu0 0.0
    %2286 = vmatpush1.msra.mxu0 0.0
    %2287 = vmatprep.subr.mxu0 0.0
    %2288 = vmatpush1.msra.mxu0 0.0
    %2289 = vmatprep.subr.mxu0 0.0
    %2290 = vmatpush1.msra.mxu0 0.0
    %2291 = vmatprep.subr.mxu0 0.0
    %2292 = vmatpush1.msra.mxu0 0.0
    %2293 = vmatprep.subr.mxu0 0.0
    %2294 = vmatpush1.msra.mxu0 0.0
    %2295 = vmatprep.subr.mxu0 0.0
    %2296 = vmatpush1.msra.mxu0 0.0
    %2297 = vmatprep.subr.mxu0 0.0
    %2298 = vmatpush1.msra.mxu0 0.0
    %2299 = vmatprep.subr.mxu0 0.0
    %2300 = vmatpush1.msra.mxu0 0.0
    %2301 = vmatprep.subr.mxu0 0.0
    %2302 = vmatpush1.msra.mxu0 0.0
    %2303 = vmatprep.subr.mxu0 0.0
    %2304 = vmatpush1.msra.mxu0 0.0
    %2305 = vmatprep.mubr.f32.mxu0 0.0
    %2306 = vmatmul.mubr.f32.gmra.mrb[0].mxu0 %v2236
    %v2307 = vpop.f32.mrb[0].mxu0
    %v2308 = vadd.f32 0.0, %v2307
    %v2309 = vpop.f32.mrb[0].mxu0
    %2310 = vmatprep.mubr.f32.mxu0 0.0
    %2311 = vmatmul.mubr.f32.gmra.mrb[0].mxu0 %v2239
    %v2312 = vpop.f32.mrb[0].mxu0
    %v2313 = vadd.f32 0.0, %v2312
    %v2314 = vpop.f32.mrb[0].mxu0
    %2315 = vdwg.mxu0
    %v2316 = vlaneseq
    %v2317 = vshrl.u32 %v2316, 7
    %v2318 = vsub.s32 0, %v2317
    %v2319 = vrot.slane %v151, %v2318
    %v2320 = vadd.f32 %v1093, %v2319
    %v2321 = vadd.f32 %v1098, %v2319
    %v2322 = vadd.f32 %v1174, %v2319
    %v2323 = vadd.f32 %v1179, %v2319
    %v2324 = vadd.f32 %v1255, %v2319
    %v2325 = vadd.f32 %v1260, %v2319
    %v2326 = vadd.f32 %v1336, %v2319
    %v2327 = vadd.f32 %v1341, %v2319
    %v2328 = vadd.f32 %v1417, %v2319
    %v2329 = vadd.f32 %v1422, %v2319
    %v2330 = vadd.f32 %v1498, %v2319
    %v2331 = vadd.f32 %v1503, %v2319
    %v2332 = vadd.f32 %v1579, %v2319
    %v2333 = vadd.f32 %v1584, %v2319
    %v2334 = vadd.f32 %v1660, %v2319
    %v2335 = vadd.f32 %v1665, %v2319
    %v2336 = vadd.f32 %v1741, %v2319
    %v2337 = vadd.f32 %v1746, %v2319
    %v2338 = vadd.f32 %v1822, %v2319
    %v2339 = vadd.f32 %v1827, %v2319
    %v2340 = vadd.f32 %v1903, %v2319
    %v2341 = vadd.f32 %v1908, %v2319
    %v2342 = vadd.f32 %v1984, %v2319
    %v2343 = vadd.f32 %v1989, %v2319
    %v2344 = vadd.f32 %v2065, %v2319
    %v2345 = vadd.f32 %v2070, %v2319
    %v2346 = vadd.f32 %v2146, %v2319
    %v2347 = vadd.f32 %v2151, %v2319
    %v2348 = vadd.f32 %v2227, %v2319
    %v2349 = vadd.f32 %v2232, %v2319
    %v2350 = vadd.f32 %v2308, %v2319
    %v2351 = vadd.f32 %v2313, %v2319
    %2352 = vadd.xlane.f32.xlu0 %v2320
    %v2353 = vpop.xlane.xlu0 %2352
    %2354 = vadd.xlane.f32.xlu0 %v2321
    %v2355 = vpop.xlane.xlu0 %2354
    %2356 = vadd.xlane.f32.xlu0 %v2322
    %v2357 = vpop.xlane.xlu0 %2356
    %2358 = vadd.xlane.f32.xlu0 %v2323
    %v2359 = vpop.xlane.xlu0 %2358
    %2360 = vadd.xlane.f32.xlu0 %v2324
    %v2361 = vpop.xlane.xlu0 %2360
    %2362 = vadd.xlane.f32.xlu0 %v2325
    %v2363 = vpop.xlane.xlu0 %2362
    %2364 = vadd.xlane.f32.xlu0 %v2326
    %v2365 = vpop.xlane.xlu0 %2364
    %2366 = vadd.xlane.f32.xlu0 %v2327
    %v2367 = vpop.xlane.xlu0 %2366
    %2368 = vadd.xlane.f32.xlu0 %v2328
    %v2369 = vpop.xlane.xlu0 %2368
    %2370 = vadd.xlane.f32.xlu0 %v2329
    %v2371 = vpop.xlane.xlu0 %2370
    %2372 = vadd.xlane.f32.xlu0 %v2330
    %v2373 = vpop.xlane.xlu0 %2372
    %2374 = vadd.xlane.f32.xlu0 %v2331
    %v2375 = vpop.xlane.xlu0 %2374
    %2376 = vadd.xlane.f32.xlu0 %v2332
    %v2377 = vpop.xlane.xlu0 %2376
    %2378 = vadd.xlane.f32.xlu0 %v2333
    %v2379 = vpop.xlane.xlu0 %2378
    %2380 = vadd.xlane.f32.xlu0 %v2334
    %v2381 = vpop.xlane.xlu0 %2380
    %2382 = vadd.xlane.f32.xlu0 %v2335
    %v2383 = vpop.xlane.xlu0 %2382
    %2384 = vadd.xlane.f32.xlu0 %v2336
    %v2385 = vpop.xlane.xlu0 %2384
    %2386 = vadd.xlane.f32.xlu0 %v2337
    %v2387 = vpop.xlane.xlu0 %2386
    %2388 = vadd.xlane.f32.xlu0 %v2338
    %v2389 = vpop.xlane.xlu0 %2388
    %2390 = vadd.xlane.f32.xlu0 %v2339
    %v2391 = vpop.xlane.xlu0 %2390
    %2392 = vadd.xlane.f32.xlu0 %v2340
    %v2393 = vpop.xlane.xlu0 %2392
    %2394 = vadd.xlane.f32.xlu0 %v2341
    %v2395 = vpop.xlane.xlu0 %2394
    %2396 = vadd.xlane.f32.xlu0 %v2342
    %v2397 = vpop.xlane.xlu0 %2396
    %2398 = vadd.xlane.f32.xlu0 %v2343
    %v2399 = vpop.xlane.xlu0 %2398
    %2400 = vadd.xlane.f32.xlu0 %v2344
    %v2401 = vpop.xlane.xlu0 %2400
    %2402 = vadd.xlane.f32.xlu0 %v2345
    %v2403 = vpop.xlane.xlu0 %2402
    %2404 = vadd.xlane.f32.xlu0 %v2346
    %v2405 = vpop.xlane.xlu0 %2404
    %2406 = vadd.xlane.f32.xlu0 %v2347
    %v2407 = vpop.xlane.xlu0 %2406
    %2408 = vadd.xlane.f32.xlu0 %v2348
    %v2409 = vpop.xlane.xlu0 %2408
    %2410 = vadd.xlane.f32.xlu0 %v2349
    %v2411 = vpop.xlane.xlu0 %2410
    %2412 = vadd.xlane.f32.xlu0 %v2350
    %v2413 = vpop.xlane.xlu0 %2412
    %2414 = vadd.xlane.f32.xlu0 %v2351
    %v2415 = vpop.xlane.xlu0 %2414
    %v2416 = vmul.f32 %v2353, 0.03125
    %v2417 = vmul.f32 %v2355, 0.03125
    %v2418 = vmul.f32 %v2357, 0.03125
    %v2419 = vmul.f32 %v2359, 0.03125
    %v2420 = vmul.f32 %v2361, 0.03125
    %v2421 = vmul.f32 %v2363, 0.03125
    %v2422 = vmul.f32 %v2365, 0.03125
    %v2423 = vmul.f32 %v2367, 0.03125
    %v2424 = vmul.f32 %v2369, 0.03125
    %v2425 = vmul.f32 %v2371, 0.03125
    %v2426 = vmul.f32 %v2373, 0.03125
    %v2427 = vmul.f32 %v2375, 0.03125
    %v2428 = vmul.f32 %v2377, 0.03125
    %v2429 = vmul.f32 %v2379, 0.03125
    %v2430 = vmul.f32 %v2381, 0.03125
    %v2431 = vmul.f32 %v2383, 0.03125
    %v2432 = vmul.f32 %v2385, 0.03125
    %v2433 = vmul.f32 %v2387, 0.03125
    %v2434 = vmul.f32 %v2389, 0.03125
    %v2435 = vmul.f32 %v2391, 0.03125
    %v2436 = vmul.f32 %v2393, 0.03125
    %v2437 = vmul.f32 %v2395, 0.03125
    %v2438 = vmul.f32 %v2397, 0.03125
    %v2439 = vmul.f32 %v2399, 0.03125
    %v2440 = vmul.f32 %v2401, 0.03125
    %v2441 = vmul.f32 %v2403, 0.03125
    %v2442 = vmul.f32 %v2405, 0.03125
    %v2443 = vmul.f32 %v2407, 0.03125
    %v2444 = vmul.f32 %v2409, 0.03125
    %v2445 = vmul.f32 %v2411, 0.03125
    %v2446 = vmul.f32 %v2413, 0.03125
    %v2447 = vmul.f32 %v2415, 0.03125
    %v2448 = vsub.f32 %v2320, %v2416
    %v2449 = vsub.f32 %v2321, %v2417
    %v2450 = vsub.f32 %v2322, %v2418
    %v2451 = vsub.f32 %v2323, %v2419
    %v2452 = vsub.f32 %v2324, %v2420
    %v2453 = vsub.f32 %v2325, %v2421
    %v2454 = vsub.f32 %v2326, %v2422
    %v2455 = vsub.f32 %v2327, %v2423
    %v2456 = vsub.f32 %v2328, %v2424
    %v2457 = vsub.f32 %v2329, %v2425
    %v2458 = vsub.f32 %v2330, %v2426
    %v2459 = vsub.f32 %v2331, %v2427
    %v2460 = vsub.f32 %v2332, %v2428
    %v2461 = vsub.f32 %v2333, %v2429
    %v2462 = vsub.f32 %v2334, %v2430
    %v2463 = vsub.f32 %v2335, %v2431
    %v2464 = vsub.f32 %v2336, %v2432
    %v2465 = vsub.f32 %v2337, %v2433
    %v2466 = vsub.f32 %v2338, %v2434
    %v2467 = vsub.f32 %v2339, %v2435
    %v2468 = vsub.f32 %v2340, %v2436
    %v2469 = vsub.f32 %v2341, %v2437
    %v2470 = vsub.f32 %v2342, %v2438
    %v2471 = vsub.f32 %v2343, %v2439
    %v2472 = vsub.f32 %v2344, %v2440
    %v2473 = vsub.f32 %v2345, %v2441
    %v2474 = vsub.f32 %v2346, %v2442
    %v2475 = vsub.f32 %v2347, %v2443
    %v2476 = vsub.f32 %v2348, %v2444
    %v2477 = vsub.f32 %v2349, %v2445
    %v2478 = vsub.f32 %v2350, %v2446
    %v2479 = vsub.f32 %v2351, %v2447
    %v2480 = vmul.f32 %v2448, %v157
    %v2481 = vmul.f32 %v2449, %v157
    %v2482 = vmul.f32 %v2450, %v157
    %v2483 = vmul.f32 %v2451, %v157
    %v2484 = vmul.f32 %v2452, %v157
    %v2485 = vmul.f32 %v2453, %v157
    %v2486 = vmul.f32 %v2454, %v157
    %v2487 = vmul.f32 %v2455, %v157
    %v2488 = vmul.f32 %v2456, %v157
    %v2489 = vmul.f32 %v2457, %v157
    %v2490 = vmul.f32 %v2458, %v157
    %v2491 = vmul.f32 %v2459, %v157
    %v2492 = vmul.f32 %v2460, %v157
    %v2493 = vmul.f32 %v2461, %v157
    %v2494 = vmul.f32 %v2462, %v157
    %v2495 = vmul.f32 %v2463, %v157
    %v2496 = vmul.f32 %v2464, %v157
    %v2497 = vmul.f32 %v2465, %v157
    %v2498 = vmul.f32 %v2466, %v157
    %v2499 = vmul.f32 %v2467, %v157
    %v2500 = vmul.f32 %v2468, %v157
    %v2501 = vmul.f32 %v2469, %v157
    %v2502 = vmul.f32 %v2470, %v157
    %v2503 = vmul.f32 %v2471, %v157
    %v2504 = vmul.f32 %v2472, %v157
    %v2505 = vmul.f32 %v2473, %v157
    %v2506 = vmul.f32 %v2474, %v157
    %v2507 = vmul.f32 %v2475, %v157
    %v2508 = vmul.f32 %v2476, %v157
    %v2509 = vmul.f32 %v2477, %v157
    %v2510 = vmul.f32 %v2478, %v157
    %v2511 = vmul.f32 %v2479, %v157
    %v2512 = vmul.f32 %v2480, %v2480
    %v2513 = vmul.f32 %v2481, %v2481
    %v2514 = vmul.f32 %v2482, %v2482
    %v2515 = vmul.f32 %v2483, %v2483
    %v2516 = vmul.f32 %v2484, %v2484
    %v2517 = vmul.f32 %v2485, %v2485
    %v2518 = vmul.f32 %v2486, %v2486
    %v2519 = vmul.f32 %v2487, %v2487
    %v2520 = vmul.f32 %v2488, %v2488
    %v2521 = vmul.f32 %v2489, %v2489
    %v2522 = vmul.f32 %v2490, %v2490
    %v2523 = vmul.f32 %v2491, %v2491
    %v2524 = vmul.f32 %v2492, %v2492
    %v2525 = vmul.f32 %v2493, %v2493
    %v2526 = vmul.f32 %v2494, %v2494
    %v2527 = vmul.f32 %v2495, %v2495
    %v2528 = vmul.f32 %v2496, %v2496
    %v2529 = vmul.f32 %v2497, %v2497
    %v2530 = vmul.f32 %v2498, %v2498
    %v2531 = vmul.f32 %v2499, %v2499
    %v2532 = vmul.f32 %v2500, %v2500
    %v2533 = vmul.f32 %v2501, %v2501
    %v2534 = vmul.f32 %v2502, %v2502
    %v2535 = vmul.f32 %v2503, %v2503
    %v2536 = vmul.f32 %v2504, %v2504
    %v2537 = vmul.f32 %v2505, %v2505
    %v2538 = vmul.f32 %v2506, %v2506
    %v2539 = vmul.f32 %v2507, %v2507
    %v2540 = vmul.f32 %v2508, %v2508
    %v2541 = vmul.f32 %v2509, %v2509
    %v2542 = vmul.f32 %v2510, %v2510
    %v2543 = vmul.f32 %v2511, %v2511
    %2544 = vadd.xlane.f32.xlu0 %v2512
    %v2545 = vpop.xlane.xlu0 %2544
    %2546 = vadd.xlane.f32.xlu0 %v2513
    %v2547 = vpop.xlane.xlu0 %2546
    %2548 = vadd.xlane.f32.xlu0 %v2514
    %v2549 = vpop.xlane.xlu0 %2548
    %2550 = vadd.xlane.f32.xlu0 %v2515
    %v2551 = vpop.xlane.xlu0 %2550
    %2552 = vadd.xlane.f32.xlu0 %v2516
    %v2553 = vpop.xlane.xlu0 %2552
    %2554 = vadd.xlane.f32.xlu0 %v2517
    %v2555 = vpop.xlane.xlu0 %2554
    %2556 = vadd.xlane.f32.xlu0 %v2518
    %v2557 = vpop.xlane.xlu0 %2556
    %2558 = vadd.xlane.f32.xlu0 %v2519
    %v2559 = vpop.xlane.xlu0 %2558
    %2560 = vadd.xlane.f32.xlu0 %v2520
    %v2561 = vpop.xlane.xlu0 %2560
    %2562 = vadd.xlane.f32.xlu0 %v2521
    %v2563 = vpop.xlane.xlu0 %2562
    %2564 = vadd.xlane.f32.xlu0 %v2522
    %v2565 = vpop.xlane.xlu0 %2564
    %2566 = vadd.xlane.f32.xlu0 %v2523
    %v2567 = vpop.xlane.xlu0 %2566
    %2568 = vadd.xlane.f32.xlu0 %v2524
    %v2569 = vpop.xlane.xlu0 %2568
    %2570 = vadd.xlane.f32.xlu0 %v2525
    %v2571 = vpop.xlane.xlu0 %2570
    %2572 = vadd.xlane.f32.xlu0 %v2526
    %v2573 = vpop.xlane.xlu0 %2572
    %2574 = vadd.xlane.f32.xlu0 %v2527
    %v2575 = vpop.xlane.xlu0 %2574
    %2576 = vadd.xlane.f32.xlu0 %v2528
    %v2577 = vpop.xlane.xlu0 %2576
    %2578 = vadd.xlane.f32.xlu0 %v2529
    %v2579 = vpop.xlane.xlu0 %2578
    %2580 = vadd.xlane.f32.xlu0 %v2530
    %v2581 = vpop.xlane.xlu0 %2580
    %2582 = vadd.xlane.f32.xlu0 %v2531
    %v2583 = vpop.xlane.xlu0 %2582
    %2584 = vadd.xlane.f32.xlu0 %v2532
    %v2585 = vpop.xlane.xlu0 %2584
    %2586 = vadd.xlane.f32.xlu0 %v2533
    %v2587 = vpop.xlane.xlu0 %2586
    %2588 = vadd.xlane.f32.xlu0 %v2534
    %v2589 = vpop.xlane.xlu0 %2588
    %2590 = vadd.xlane.f32.xlu0 %v2535
    %v2591 = vpop.xlane.xlu0 %2590
    %2592 = vadd.xlane.f32.xlu0 %v2536
    %v2593 = vpop.xlane.xlu0 %2592
    %2594 = vadd.xlane.f32.xlu0 %v2537
    %v2595 = vpop.xlane.xlu0 %2594
    %2596 = vadd.xlane.f32.xlu0 %v2538
    %v2597 = vpop.xlane.xlu0 %2596
    %2598 = vadd.xlane.f32.xlu0 %v2539
    %v2599 = vpop.xlane.xlu0 %2598
    %2600 = vadd.xlane.f32.xlu0 %v2540
    %v2601 = vpop.xlane.xlu0 %2600
    %2602 = vadd.xlane.f32.xlu0 %v2541
    %v2603 = vpop.xlane.xlu0 %2602
    %2604 = vadd.xlane.f32.xlu0 %v2542
    %v2605 = vpop.xlane.xlu0 %2604
    %2606 = vadd.xlane.f32.xlu0 %v2543
    %v2607 = vpop.xlane.xlu0 %2606
    %v2608 = vmul.f32 %v2545, 0.03125
    %v2609 = vmul.f32 %v2547, 0.03125
    %v2610 = vmul.f32 %v2549, 0.03125
    %v2611 = vmul.f32 %v2551, 0.03125
    %v2612 = vmul.f32 %v2553, 0.03125
    %v2613 = vmul.f32 %v2555, 0.03125
    %v2614 = vmul.f32 %v2557, 0.03125
    %v2615 = vmul.f32 %v2559, 0.03125
    %v2616 = vmul.f32 %v2561, 0.03125
    %v2617 = vmul.f32 %v2563, 0.03125
    %v2618 = vmul.f32 %v2565, 0.03125
    %v2619 = vmul.f32 %v2567, 0.03125
    %v2620 = vmul.f32 %v2569, 0.03125
    %v2621 = vmul.f32 %v2571, 0.03125
    %v2622 = vmul.f32 %v2573, 0.03125
    %v2623 = vmul.f32 %v2575, 0.03125
    %v2624 = vmul.f32 %v2577, 0.03125
    %v2625 = vmul.f32 %v2579, 0.03125
    %v2626 = vmul.f32 %v2581, 0.03125
    %v2627 = vmul.f32 %v2583, 0.03125
    %v2628 = vmul.f32 %v2585, 0.03125
    %v2629 = vmul.f32 %v2587, 0.03125
    %v2630 = vmul.f32 %v2589, 0.03125
    %v2631 = vmul.f32 %v2591, 0.03125
    %v2632 = vmul.f32 %v2593, 0.03125
    %v2633 = vmul.f32 %v2595, 0.03125
    %v2634 = vmul.f32 %v2597, 0.03125
    %v2635 = vmul.f32 %v2599, 0.03125
    %v2636 = vmul.f32 %v2601, 0.03125
    %v2637 = vmul.f32 %v2603, 0.03125
    %v2638 = vmul.f32 %v2605, 0.03125
    %v2639 = vmul.f32 %v2607, 0.03125
    %v2640 = vadd.f32 %v2608, 1e-05
    %v2641 = vadd.f32 %v2609, 1e-05
    %v2642 = vadd.f32 %v2610, 1e-05
    %v2643 = vadd.f32 %v2611, 1e-05
    %v2644 = vadd.f32 %v2612, 1e-05
    %v2645 = vadd.f32 %v2613, 1e-05
    %v2646 = vadd.f32 %v2614, 1e-05
    %v2647 = vadd.f32 %v2615, 1e-05
    %v2648 = vadd.f32 %v2616, 1e-05
    %v2649 = vadd.f32 %v2617, 1e-05
    %v2650 = vadd.f32 %v2618, 1e-05
    %v2651 = vadd.f32 %v2619, 1e-05
    %v2652 = vadd.f32 %v2620, 1e-05
    %v2653 = vadd.f32 %v2621, 1e-05
    %v2654 = vadd.f32 %v2622, 1e-05
    %v2655 = vadd.f32 %v2623, 1e-05
    %v2656 = vadd.f32 %v2624, 1e-05
    %v2657 = vadd.f32 %v2625, 1e-05
    %v2658 = vadd.f32 %v2626, 1e-05
    %v2659 = vadd.f32 %v2627, 1e-05
    %v2660 = vadd.f32 %v2628, 1e-05
    %v2661 = vadd.f32 %v2629, 1e-05
    %v2662 = vadd.f32 %v2630, 1e-05
    %v2663 = vadd.f32 %v2631, 1e-05
    %v2664 = vadd.f32 %v2632, 1e-05
    %v2665 = vadd.f32 %v2633, 1e-05
    %v2666 = vadd.f32 %v2634, 1e-05
    %v2667 = vadd.f32 %v2635, 1e-05
    %v2668 = vadd.f32 %v2636, 1e-05
    %v2669 = vadd.f32 %v2637, 1e-05
    %v2670 = vadd.f32 %v2638, 1e-05
    %v2671 = vadd.f32 %v2639, 1e-05
    %v2672 = vrsqrt.pop %v2640
    %v2673 = vrsqrt.pop %v2641
    %v2674 = vrsqrt.pop %v2642
    %v2675 = vrsqrt.pop %v2643
    %v2676 = vrsqrt.pop %v2644
    %v2677 = vrsqrt.pop %v2645
    %v2678 = vrsqrt.pop %v2646
    %v2679 = vrsqrt.pop %v2647
    %v2680 = vrsqrt.pop %v2648
    %v2681 = vrsqrt.pop %v2649
    %v2682 = vrsqrt.pop %v2650
    %v2683 = vrsqrt.pop %v2651
    %v2684 = vrsqrt.pop %v2652
    %v2685 = vrsqrt.pop %v2653
    %v2686 = vrsqrt.pop %v2654
    %v2687 = vrsqrt.pop %v2655
    %v2688 = vrsqrt.pop %v2656
    %v2689 = vrsqrt.pop %v2657
    %v2690 = vrsqrt.pop %v2658
    %v2691 = vrsqrt.pop %v2659
    %v2692 = vrsqrt.pop %v2660
    %v2693 = vrsqrt.pop %v2661
    %v2694 = vrsqrt.pop %v2662
    %v2695 = vrsqrt.pop %v2663
    %v2696 = vrsqrt.pop %v2664
    %v2697 = vrsqrt.pop %v2665
    %v2698 = vrsqrt.pop %v2666
    %v2699 = vrsqrt.pop %v2667
    %v2700 = vrsqrt.pop %v2668
    %v2701 = vrsqrt.pop %v2669
    %v2702 = vrsqrt.pop %v2670
    %v2703 = vrsqrt.pop %v2671
    %v2704 = vmul.f32 %v2480, %v2672
    %v2705 = vmul.f32 %v2481, %v2673
    %v2706 = vmul.f32 %v2482, %v2674
    %v2707 = vmul.f32 %v2483, %v2675
    %v2708 = vmul.f32 %v2484, %v2676
    %v2709 = vmul.f32 %v2485, %v2677
    %v2710 = vmul.f32 %v2486, %v2678
    %v2711 = vmul.f32 %v2487, %v2679
    %v2712 = vmul.f32 %v2488, %v2680
    %v2713 = vmul.f32 %v2489, %v2681
    %v2714 = vmul.f32 %v2490, %v2682
    %v2715 = vmul.f32 %v2491, %v2683
    %v2716 = vmul.f32 %v2492, %v2684
    %v2717 = vmul.f32 %v2493, %v2685
    %v2718 = vmul.f32 %v2494, %v2686
    %v2719 = vmul.f32 %v2495, %v2687
    %v2720 = vmul.f32 %v2496, %v2688
    %v2721 = vmul.f32 %v2497, %v2689
    %v2722 = vmul.f32 %v2498, %v2690
    %v2723 = vmul.f32 %v2499, %v2691
    %v2724 = vmul.f32 %v2500, %v2692
    %v2725 = vmul.f32 %v2501, %v2693
    %v2726 = vmul.f32 %v2502, %v2694
    %v2727 = vmul.f32 %v2503, %v2695
    %v2728 = vmul.f32 %v2504, %v2696
    %v2729 = vmul.f32 %v2505, %v2697
    %v2730 = vmul.f32 %v2506, %v2698
    %v2731 = vmul.f32 %v2507, %v2699
    %v2732 = vmul.f32 %v2508, %v2700
    %v2733 = vmul.f32 %v2509, %v2701
    %v2734 = vmul.f32 %v2510, %v2702
    %v2735 = vmul.f32 %v2511, %v2703
    %v2736 = vlaneseq
    %v2737 = vshrl.u32 %v2736, 7
    %v2738 = vsub.s32 4, %v2737
    %v2739 = vrot.slane %v151, %v2738
    %v2740 = vmul.f32 %v2704, %v2739
    %v2741 = vmul.f32 %v2705, %v2739
    %v2742 = vmul.f32 %v2706, %v2739
    %v2743 = vmul.f32 %v2707, %v2739
    %v2744 = vmul.f32 %v2708, %v2739
    %v2745 = vmul.f32 %v2709, %v2739
    %v2746 = vmul.f32 %v2710, %v2739
    %v2747 = vmul.f32 %v2711, %v2739
    %v2748 = vmul.f32 %v2712, %v2739
    %v2749 = vmul.f32 %v2713, %v2739
    %v2750 = vmul.f32 %v2714, %v2739
    %v2751 = vmul.f32 %v2715, %v2739
    %v2752 = vmul.f32 %v2716, %v2739
    %v2753 = vmul.f32 %v2717, %v2739
    %v2754 = vmul.f32 %v2718, %v2739
    %v2755 = vmul.f32 %v2719, %v2739
    %v2756 = vmul.f32 %v2720, %v2739
    %v2757 = vmul.f32 %v2721, %v2739
    %v2758 = vmul.f32 %v2722, %v2739
    %v2759 = vmul.f32 %v2723, %v2739
    %v2760 = vmul.f32 %v2724, %v2739
    %v2761 = vmul.f32 %v2725, %v2739
    %v2762 = vmul.f32 %v2726, %v2739
    %v2763 = vmul.f32 %v2727, %v2739
    %v2764 = vmul.f32 %v2728, %v2739
    %v2765 = vmul.f32 %v2729, %v2739
    %v2766 = vmul.f32 %v2730, %v2739
    %v2767 = vmul.f32 %v2731, %v2739
    %v2768 = vmul.f32 %v2732, %v2739
    %v2769 = vmul.f32 %v2733, %v2739
    %v2770 = vmul.f32 %v2734, %v2739
    %v2771 = vmul.f32 %v2735, %v2739
    %v2772 = vlaneseq
    %v2773 = vshrl.u32 %v2772, 7
    %v2774 = vsub.s32 5, %v2773
    %v2775 = vrot.slane %v151, %v2774
    %v2776 = vadd.f32 %v2740, %v2775
    %v2777 = vadd.f32 %v2741, %v2775
    %v2778 = vadd.f32 %v2742, %v2775
    %v2779 = vadd.f32 %v2743, %v2775
    %v2780 = vadd.f32 %v2744, %v2775
    %v2781 = vadd.f32 %v2745, %v2775
    %v2782 = vadd.f32 %v2746, %v2775
    %v2783 = vadd.f32 %v2747, %v2775
    %v2784 = vadd.f32 %v2748, %v2775
    %v2785 = vadd.f32 %v2749, %v2775
    %v2786 = vadd.f32 %v2750, %v2775
    %v2787 = vadd.f32 %v2751, %v2775
    %v2788 = vadd.f32 %v2752, %v2775
    %v2789 = vadd.f32 %v2753, %v2775
    %v2790 = vadd.f32 %v2754, %v2775
    %v2791 = vadd.f32 %v2755, %v2775
    %v2792 = vadd.f32 %v2756, %v2775
    %v2793 = vadd.f32 %v2757, %v2775
    %v2794 = vadd.f32 %v2758, %v2775
    %v2795 = vadd.f32 %v2759, %v2775
    %v2796 = vadd.f32 %v2760, %v2775
    %v2797 = vadd.f32 %v2761, %v2775
    %v2798 = vadd.f32 %v2762, %v2775
    %v2799 = vadd.f32 %v2763, %v2775
    %v2800 = vadd.f32 %v2764, %v2775
    %v2801 = vadd.f32 %v2765, %v2775
    %v2802 = vadd.f32 %v2766, %v2775
    %v2803 = vadd.f32 %v2767, %v2775
    %v2804 = vadd.f32 %v2768, %v2775
    %v2805 = vadd.f32 %v2769, %v2775
    %v2806 = vadd.f32 %v2770, %v2775
    %v2807 = vadd.f32 %v2771, %v2775
    %v2808 = vmax.f32 %v2776, 0.0
    %v2809 = vmax.f32 %v2777, 0.0
    %v2810 = vmax.f32 %v2778, 0.0
    %v2811 = vmax.f32 %v2779, 0.0
    %v2812 = vmax.f32 %v2780, 0.0
    %v2813 = vmax.f32 %v2781, 0.0
    %v2814 = vmax.f32 %v2782, 0.0
    %v2815 = vmax.f32 %v2783, 0.0
    %v2816 = vmax.f32 %v2784, 0.0
    %v2817 = vmax.f32 %v2785, 0.0
    %v2818 = vmax.f32 %v2786, 0.0
    %v2819 = vmax.f32 %v2787, 0.0
    %v2820 = vmax.f32 %v2788, 0.0
    %v2821 = vmax.f32 %v2789, 0.0
    %v2822 = vmax.f32 %v2790, 0.0
    %v2823 = vmax.f32 %v2791, 0.0
    %v2824 = vmax.f32 %v2792, 0.0
    %v2825 = vmax.f32 %v2793, 0.0
    %v2826 = vmax.f32 %v2794, 0.0
    %v2827 = vmax.f32 %v2795, 0.0
    %v2828 = vmax.f32 %v2796, 0.0
    %v2829 = vmax.f32 %v2797, 0.0
    %v2830 = vmax.f32 %v2798, 0.0
    %v2831 = vmax.f32 %v2799, 0.0
    %v2832 = vmax.f32 %v2800, 0.0
    %v2833 = vmax.f32 %v2801, 0.0
    %v2834 = vmax.f32 %v2802, 0.0
    %v2835 = vmax.f32 %v2803, 0.0
    %v2836 = vmax.f32 %v2804, 0.0
    %v2837 = vmax.f32 %v2805, 0.0
    %v2838 = vmax.f32 %v2806, 0.0
    %v2839 = vmax.f32 %v2807, 0.0
    %v2840 = vld [vmem:[#allocation8] sm:$0xff]
    %v2841 = vld [vmem:[#allocation8 + $0x8] sm:$0xff]
    %v2842 = vld [vmem:[#allocation8 + $0x10] sm:$0xff]
    %v2843 = vld [vmem:[#allocation8 + $0x18] sm:$0xff]
    %v2844 = vld [vmem:[#allocation8 + $0x20] sm:$0xff]
    %v2845 = vld [vmem:[#allocation8 + $0x28] sm:$0xff]
    %v2846 = vld [vmem:[#allocation8 + $0x30] sm:$0xff]
    %v2847 = vld [vmem:[#allocation8 + $0x38] sm:$0xff]
    %v2848 = vld [vmem:[#allocation8 + $0x40] sm:$0xff]
    %v2849 = vld [vmem:[#allocation8 + $0x48] sm:$0xff]
    %v2850 = vld [vmem:[#allocation8 + $0x50] sm:$0xff]
    %v2851 = vld [vmem:[#allocation8 + $0x58] sm:$0xff]
    %v2852 = vld [vmem:[#allocation8 + $0x60] sm:$0xff]
    %v2853 = vld [vmem:[#allocation8 + $0x68] sm:$0xff]
    %v2854 = vld [vmem:[#allocation8 + $0x70] sm:$0xff]
    %v2855 = vld [vmem:[#allocation8 + $0x78] sm:$0xff]
    %2856 = vmatprep.subr.mxu0 0.0
    %2857 = vmatpush1.msra.mxu0 %v2840
    %2858 = vmatprep.subr.mxu0 0.0
    %2859 = vmatpush1.msra.mxu0 %v2841
    %2860 = vmatprep.subr.mxu0 0.0
    %2861 = vmatpush1.msra.mxu0 %v2842
    %2862 = vmatprep.subr.mxu0 0.0
    %2863 = vmatpush1.msra.mxu0 %v2843
    %2864 = vmatprep.subr.mxu0 0.0
    %2865 = vmatpush1.msra.mxu0 %v2844
    %2866 = vmatprep.subr.mxu0 0.0
    %2867 = vmatpush1.msra.mxu0 %v2845
    %2868 = vmatprep.subr.mxu0 0.0
    %2869 = vmatpush1.msra.mxu0 %v2846
    %2870 = vmatprep.subr.mxu0 0.0
    %2871 = vmatpush1.msra.mxu0 %v2847
    %2872 = vmatprep.subr.mxu0 0.0
    %2873 = vmatpush1.msra.mxu0 %v2848
    %2874 = vmatprep.subr.mxu0 0.0
    %2875 = vmatpush1.msra.mxu0 %v2849
    %2876 = vmatprep.subr.mxu0 0.0
    %2877 = vmatpush1.msra.mxu0 %v2850
    %2878 = vmatprep.subr.mxu0 0.0
    %2879 = vmatpush1.msra.mxu0 %v2851
    %2880 = vmatprep.subr.mxu0 0.0
    %2881 = vmatpush1.msra.mxu0 %v2852
    %2882 = vmatprep.subr.mxu0 0.0
    %2883 = vmatpush1.msra.mxu0 %v2853
    %2884 = vmatprep.subr.mxu0 0.0
    %2885 = vmatpush1.msra.mxu0 %v2854
    %2886 = vmatprep.subr.mxu0 0.0
    %2887 = vmatpush1.msra.mxu0 %v2855
    %2888 = vmatprep.subr.mxu0 0.0
    %2889 = vmatpush1.msra.mxu0 0.0
    %2890 = vmatprep.subr.mxu0 0.0
    %2891 = vmatpush1.msra.mxu0 0.0
    %2892 = vmatprep.subr.mxu0 0.0
    %2893 = vmatpush1.msra.mxu0 0.0
    %2894 = vmatprep.subr.mxu0 0.0
    %2895 = vmatpush1.msra.mxu0 0.0
    %2896 = vmatprep.subr.mxu0 0.0
    %2897 = vmatpush1.msra.mxu0 0.0
    %2898 = vmatprep.subr.mxu0 0.0
    %2899 = vmatpush1.msra.mxu0 0.0
    %2900 = vmatprep.subr.mxu0 0.0
    %2901 = vmatpush1.msra.mxu0 0.0
    %2902 = vmatprep.subr.mxu0 0.0
    %2903 = vmatpush1.msra.mxu0 0.0
    %2904 = vmatprep.subr.mxu0 0.0
    %2905 = vmatpush1.msra.mxu0 0.0
    %2906 = vmatprep.subr.mxu0 0.0
    %2907 = vmatpush1.msra.mxu0 0.0
    %2908 = vmatprep.subr.mxu0 0.0
    %2909 = vmatpush1.msra.mxu0 0.0
    %2910 = vmatprep.subr.mxu0 0.0
    %2911 = vmatpush1.msra.mxu0 0.0
    %2912 = vmatprep.subr.mxu0 0.0
    %2913 = vmatpush1.msra.mxu0 0.0
    %2914 = vmatprep.subr.mxu0 0.0
    %2915 = vmatpush1.msra.mxu0 0.0
    %2916 = vmatprep.subr.mxu0 0.0
    %2917 = vmatpush1.msra.mxu0 0.0
    %2918 = vmatprep.subr.mxu0 0.0
    %2919 = vmatpush1.msra.mxu0 0.0
    %2920 = vmatprep.mubr.f32.mxu0 0.0
    %2921 = vmatmul.mubr.f32.gmra.mrb[0].mxu0 %v2808
    %v2922 = vpop.f32.mrb[0].mxu0
    %v2923 = vadd.f32 0.0, %v2922
    %v2924 = vpop.f32.mrb[0].mxu0
    %2925 = vmatprep.mubr.f32.mxu0 0.0
    %2926 = vmatmul.mubr.f32.gmra.mrb[0].mxu0 %v2809
    %v2927 = vpop.f32.mrb[0].mxu0
    %v2928 = vadd.f32 0.0, %v2927
    %v2929 = vpop.f32.mrb[0].mxu0
    %2930 = vmatprep.mubr.f32.mxu0 0.0
    %2931 = vmatmul.mubr.f32.gmra.mrb[0].mxu0 %v2810
    %v2932 = vpop.f32.mrb[0].mxu0
    %v2933 = vadd.f32 0.0, %v2932
    %v2934 = vpop.f32.mrb[0].mxu0
    %2935 = vmatprep.mubr.f32.mxu0 0.0
    %2936 = vmatmul.mubr.f32.gmra.mrb[0].mxu0 %v2811
    %v2937 = vpop.f32.mrb[0].mxu0
    %v2938 = vadd.f32 0.0, %v2937
    %v2939 = vpop.f32.mrb[0].mxu0
    %2940 = vmatprep.mubr.f32.mxu0 0.0
    %2941 = vmatmul.mubr.f32.gmra.mrb[0].mxu0 %v2812
    %v2942 = vpop.f32.mrb[0].mxu0
    %v2943 = vadd.f32 0.0, %v2942
    %v2944 = vpop.f32.mrb[0].mxu0
    %2945 = vmatprep.mubr.f32.mxu0 0.0
    %2946 = vmatmul.mubr.f32.gmra.mrb[0].mxu0 %v2813
    %v2947 = vpop.f32.mrb[0].mxu0
    %v2948 = vadd.f32 0.0, %v2947
    %v2949 = vpop.f32.mrb[0].mxu0
    %2950 = vmatprep.mubr.f32.mxu0 0.0
    %2951 = vmatmul.mubr.f32.gmra.mrb[0].mxu0 %v2814
    %v2952 = vpop.f32.mrb[0].mxu0
    %v2953 = vadd.f32 0.0, %v2952
    %v2954 = vpop.f32.mrb[0].mxu0
    %2955 = vmatprep.mubr.f32.mxu0 0.0
    %2956 = vmatmul.mubr.f32.gmra.mrb[0].mxu0 %v2815
    %v2957 = vpop.f32.mrb[0].mxu0
    %v2958 = vadd.f32 0.0, %v2957
    %v2959 = vpop.f32.mrb[0].mxu0
    %2960 = vmatprep.mubr.f32.mxu0 0.0
    %2961 = vmatmul.mubr.f32.gmra.mrb[0].mxu0 %v2816
    %v2962 = vpop.f32.mrb[0].mxu0
    %v2963 = vadd.f32 0.0, %v2962
    %v2964 = vpop.f32.mrb[0].mxu0
    %2965 = vmatprep.mubr.f32.mxu0 0.0
    %2966 = vmatmul.mubr.f32.gmra.mrb[0].mxu0 %v2817
    %v2967 = vpop.f32.mrb[0].mxu0
    %v2968 = vadd.f32 0.0, %v2967
    %v2969 = vpop.f32.mrb[0].mxu0
    %2970 = vmatprep.mubr.f32.mxu0 0.0
    %2971 = vmatmul.mubr.f32.gmra.mrb[0].mxu0 %v2818
    %v2972 = vpop.f32.mrb[0].mxu0
    %v2973 = vadd.f32 0.0, %v2972
    %v2974 = vpop.f32.mrb[0].mxu0
    %2975 = vmatprep.mubr.f32.mxu0 0.0
    %2976 = vmatmul.mubr.f32.gmra.mrb[0].mxu0 %v2819
    %v2977 = vpop.f32.mrb[0].mxu0
    %v2978 = vadd.f32 0.0, %v2977
    %v2979 = vpop.f32.mrb[0].mxu0
    %2980 = vmatprep.mubr.f32.mxu0 0.0
    %2981 = vmatmul.mubr.f32.gmra.mrb[0].mxu0 %v2820
    %v2982 = vpop.f32.mrb[0].mxu0
    %v2983 = vadd.f32 0.0, %v2982
    %v2984 = vpop.f32.mrb[0].mxu0
    %2985 = vmatprep.mubr.f32.mxu0 0.0
    %2986 = vmatmul.mubr.f32.gmra.mrb[0].mxu0 %v2821
    %v2987 = vpop.f32.mrb[0].mxu0
    %v2988 = vadd.f32 0.0, %v2987
    %v2989 = vpop.f32.mrb[0].mxu0
    %2990 = vmatprep.mubr.f32.mxu0 0.0
    %2991 = vmatmul.mubr.f32.gmra.mrb[0].mxu0 %v2822
    %v2992 = vpop.f32.mrb[0].mxu0
    %v2993 = vadd.f32 0.0, %v2992
    %v2994 = vpop.f32.mrb[0].mxu0
    %2995 = vmatprep.mubr.f32.mxu0 0.0
    %2996 = vmatmul.mubr.f32.gmra.mrb[0].mxu0 %v2823
    %v2997 = vpop.f32.mrb[0].mxu0
    %v2998 = vadd.f32 0.0, %v2997
    %v2999 = vpop.f32.mrb[0].mxu0
    %3000 = vmatprep.mubr.f32.mxu0 0.0
    %3001 = vmatmul.mubr.f32.gmra.mrb[0].mxu0 %v2824
    %v3002 = vpop.f32.mrb[0].mxu0
    %v3003 = vadd.f32 0.0, %v3002
    %v3004 = vpop.f32.mrb[0].mxu0
    %3005 = vmatprep.mubr.f32.mxu0 0.0
    %3006 = vmatmul.mubr.f32.gmra.mrb[0].mxu0 %v2825
    %v3007 = vpop.f32.mrb[0].mxu0
    %v3008 = vadd.f32 0.0, %v3007
    %v3009 = vpop.f32.mrb[0].mxu0
    %3010 = vmatprep.mubr.f32.mxu0 0.0
    %3011 = vmatmul.mubr.f32.gmra.mrb[0].mxu0 %v2826
    %v3012 = vpop.f32.mrb[0].mxu0
    %v3013 = vadd.f32 0.0, %v3012
    %v3014 = vpop.f32.mrb[0].mxu0
    %3015 = vmatprep.mubr.f32.mxu0 0.0
    %3016 = vmatmul.mubr.f32.gmra.mrb[0].mxu0 %v2827
    %v3017 = vpop.f32.mrb[0].mxu0
    %v3018 = vadd.f32 0.0, %v3017
    %v3019 = vpop.f32.mrb[0].mxu0
    %3020 = vmatprep.mubr.f32.mxu0 0.0
    %3021 = vmatmul.mubr.f32.gmra.mrb[0].mxu0 %v2828
    %v3022 = vpop.f32.mrb[0].mxu0
    %v3023 = vadd.f32 0.0, %v3022
    %v3024 = vpop.f32.mrb[0].mxu0
    %3025 = vmatprep.mubr.f32.mxu0 0.0
    %3026 = vmatmul.mubr.f32.gmra.mrb[0].mxu0 %v2829
    %v3027 = vpop.f32.mrb[0].mxu0
    %v3028 = vadd.f32 0.0, %v3027
    %v3029 = vpop.f32.mrb[0].mxu0
    %3030 = vmatprep.mubr.f32.mxu0 0.0
    %3031 = vmatmul.mubr.f32.gmra.mrb[0].mxu0 %v2830
    %v3032 = vpop.f32.mrb[0].mxu0
    %v3033 = vadd.f32 0.0, %v3032
    %v3034 = vpop.f32.mrb[0].mxu0
    %3035 = vmatprep.mubr.f32.mxu0 0.0
    %3036 = vmatmul.mubr.f32.gmra.mrb[0].mxu0 %v2831
    %v3037 = vpop.f32.mrb[0].mxu0
    %v3038 = vadd.f32 0.0, %v3037
    %v3039 = vpop.f32.mrb[0].mxu0
    %3040 = vmatprep.mubr.f32.mxu0 0.0
    %3041 = vmatmul.mubr.f32.gmra.mrb[0].mxu0 %v2832
    %v3042 = vpop.f32.mrb[0].mxu0
    %v3043 = vadd.f32 0.0, %v3042
    %v3044 = vpop.f32.mrb[0].mxu0
    %3045 = vmatprep.mubr.f32.mxu0 0.0
    %3046 = vmatmul.mubr.f32.gmra.mrb[0].mxu0 %v2833
    %v3047 = vpop.f32.mrb[0].mxu0
    %v3048 = vadd.f32 0.0, %v3047
    %v3049 = vpop.f32.mrb[0].mxu0
    %3050 = vmatprep.mubr.f32.mxu0 0.0
    %3051 = vmatmul.mubr.f32.gmra.mrb[0].mxu0 %v2834
    %v3052 = vpop.f32.mrb[0].mxu0
    %v3053 = vadd.f32 0.0, %v3052
    %v3054 = vpop.f32.mrb[0].mxu0
    %3055 = vmatprep.mubr.f32.mxu0 0.0
    %3056 = vmatmul.mubr.f32.gmra.mrb[0].mxu0 %v2835
    %v3057 = vpop.f32.mrb[0].mxu0
    %v3058 = vadd.f32 0.0, %v3057
    %v3059 = vpop.f32.mrb[0].mxu0
    %3060 = vmatprep.mubr.f32.mxu0 0.0
    %3061 = vmatmul.mubr.f32.gmra.mrb[0].mxu0 %v2836
    %v3062 = vpop.f32.mrb[0].mxu0
    %v3063 = vadd.f32 0.0, %v3062
    %v3064 = vpop.f32.mrb[0].mxu0
    %3065 = vmatprep.mubr.f32.mxu0 0.0
    %3066 = vmatmul.mubr.f32.gmra.mrb[0].mxu0 %v2837
    %v3067 = vpop.f32.mrb[0].mxu0
    %v3068 = vadd.f32 0.0, %v3067
    %v3069 = vpop.f32.mrb[0].mxu0
    %3070 = vmatprep.mubr.f32.mxu0 0.0
    %3071 = vmatmul.mubr.f32.gmra.mrb[0].mxu0 %v2838
    %v3072 = vpop.f32.mrb[0].mxu0
    %v3073 = vadd.f32 0.0, %v3072
    %v3074 = vpop.f32.mrb[0].mxu0
    %3075 = vmatprep.mubr.f32.mxu0 0.0
    %3076 = vmatmul.mubr.f32.gmra.mrb[0].mxu0 %v2839
    %v3077 = vpop.f32.mrb[0].mxu0
    %v3078 = vadd.f32 0.0, %v3077
    %v3079 = vpop.f32.mrb[0].mxu0
    %3080 = vdwg.mxu0
    %3081 = vmatprep.subr.mxu0 0.0
    %3082 = vmatpush1.msra.mxu0 %v2923
    %3083 = vmatprep.subr.mxu0 0.0
    %3084 = vmatpush1.msra.mxu0 %v2928
    %3085 = vmatprep.subr.mxu0 0.0
    %3086 = vmatpush1.msra.mxu0 0.0
    %3087 = vmatprep.subr.mxu0 0.0
    %3088 = vmatpush1.msra.mxu0 0.0
    %3089 = vmatprep.subr.mxu0 0.0
    %3090 = vmatpush1.msra.mxu0 0.0
    %3091 = vmatprep.subr.mxu0 0.0
    %3092 = vmatpush1.msra.mxu0 0.0
    %3093 = vmatprep.subr.mxu0 0.0
    %3094 = vmatpush1.msra.mxu0 0.0
    %3095 = vmatprep.subr.mxu0 0.0
    %3096 = vmatpush1.msra.mxu0 0.0
    %3097 = vmatprep.subr.mxu0 0.0
    %3098 = vmatpush1.msra.mxu0 0.0
    %3099 = vmatprep.subr.mxu0 0.0
    %3100 = vmatpush1.msra.mxu0 0.0
    %3101 = vmatprep.subr.mxu0 0.0
    %3102 = vmatpush1.msra.mxu0 0.0
    %3103 = vmatprep.subr.mxu0 0.0
    %3104 = vmatpush1.msra.mxu0 0.0
    %3105 = vmatprep.subr.mxu0 0.0
    %3106 = vmatpush1.msra.mxu0 0.0
    %3107 = vmatprep.subr.mxu0 0.0
    %3108 = vmatpush1.msra.mxu0 0.0
    %3109 = vmatprep.subr.mxu0 0.0
    %3110 = vmatpush1.msra.mxu0 0.0
    %3111 = vmatprep.subr.mxu0 0.0
    %3112 = vmatpush1.msra.mxu0 0.0
    %3113 = vmatprep.subr.mxu0 0.0
    %3114 = vmatpush1.msra.mxu0 0.0
    %3115 = vmatprep.subr.mxu0 0.0
    %3116 = vmatpush1.msra.mxu0 0.0
    %3117 = vmatprep.subr.mxu0 0.0
    %3118 = vmatpush1.msra.mxu0 0.0
    %3119 = vmatprep.subr.mxu0 0.0
    %3120 = vmatpush1.msra.mxu0 0.0
    %3121 = vmatprep.subr.mxu0 0.0
    %3122 = vmatpush1.msra.mxu0 0.0
    %3123 = vmatprep.subr.mxu0 0.0
    %3124 = vmatpush1.msra.mxu0 0.0
    %3125 = vmatprep.subr.mxu0 0.0
    %3126 = vmatpush1.msra.mxu0 0.0
    %3127 = vmatprep.subr.mxu0 0.0
    %3128 = vmatpush1.msra.mxu0 0.0
    %3129 = vmatprep.subr.mxu0 0.0
    %3130 = vmatpush1.msra.mxu0 0.0
    %3131 = vmatprep.subr.mxu0 0.0
    %3132 = vmatpush1.msra.mxu0 0.0
    %3133 = vmatprep.subr.mxu0 0.0
    %3134 = vmatpush1.msra.mxu0 0.0
    %3135 = vmatprep.subr.mxu0 0.0
    %3136 = vmatpush1.msra.mxu0 0.0
    %3137 = vmatprep.subr.mxu0 0.0
    %3138 = vmatpush1.msra.mxu0 0.0
    %3139 = vmatprep.subr.mxu0 0.0
    %3140 = vmatpush1.msra.mxu0 0.0
    %3141 = vmatprep.subr.mxu0 0.0
    %3142 = vmatpush1.msra.mxu0 0.0
    %3143 = vmatprep.subr.mxu0 0.0
    %3144 = vmatpush1.msra.mxu0 0.0
    %3145 = vmatprep.mubr.f32.mxu0 0.0
    %3146 = vmatmul.mubr.f32.gmra.mrb[0].mxu0 %v1021
    %v3147 = vpop.f32.mrb[0].mxu0
    %v3148 = vadd.f32 0.0, %v3147
    %v3149 = vpop.f32.mrb[0].mxu0
    %3150 = vmatprep.mubr.f32.mxu0 0.0
    %3151 = vmatmul.mubr.f32.gmra.mrb[0].mxu0 %v1024
    %v3152 = vpop.f32.mrb[0].mxu0
    %v3153 = vadd.f32 0.0, %v3152
    %v3154 = vpop.f32.mrb[0].mxu0
    %3155 = vdwg.mxu0
    %3156 = vmatprep.subr.mxu0 0.0
    %3157 = vmatpush1.msra.mxu0 %v2933
    %3158 = vmatprep.subr.mxu0 0.0
    %3159 = vmatpush1.msra.mxu0 %v2938
    %3160 = vmatprep.subr.mxu0 0.0
    %3161 = vmatpush1.msra.mxu0 0.0
    %3162 = vmatprep.subr.mxu0 0.0
    %3163 = vmatpush1.msra.mxu0 0.0
    %3164 = vmatprep.subr.mxu0 0.0
    %3165 = vmatpush1.msra.mxu0 0.0
    %3166 = vmatprep.subr.mxu0 0.0
    %3167 = vmatpush1.msra.mxu0 0.0
    %3168 = vmatprep.subr.mxu0 0.0
    %3169 = vmatpush1.msra.mxu0 0.0
    %3170 = vmatprep.subr.mxu0 0.0
    %3171 = vmatpush1.msra.mxu0 0.0
    %3172 = vmatprep.subr.mxu0 0.0
    %3173 = vmatpush1.msra.mxu0 0.0
    %3174 = vmatprep.subr.mxu0 0.0
    %3175 = vmatpush1.msra.mxu0 0.0
    %3176 = vmatprep.subr.mxu0 0.0
    %3177 = vmatpush1.msra.mxu0 0.0
    %3178 = vmatprep.subr.mxu0 0.0
    %3179 = vmatpush1.msra.mxu0 0.0
    %3180 = vmatprep.subr.mxu0 0.0
    %3181 = vmatpush1.msra.mxu0 0.0
    %3182 = vmatprep.subr.mxu0 0.0
    %3183 = vmatpush1.msra.mxu0 0.0
    %3184 = vmatprep.subr.mxu0 0.0
    %3185 = vmatpush1.msra.mxu0 0.0
    %3186 = vmatprep.subr.mxu0 0.0
    %3187 = vmatpush1.msra.mxu0 0.0
    %3188 = vmatprep.subr.mxu0 0.0
    %3189 = vmatpush1.msra.mxu0 0.0
    %3190 = vmatprep.subr.mxu0 0.0
    %3191 = vmatpush1.msra.mxu0 0.0
    %3192 = vmatprep.subr.mxu0 0.0
    %3193 = vmatpush1.msra.mxu0 0.0
    %3194 = vmatprep.subr.mxu0 0.0
    %3195 = vmatpush1.msra.mxu0 0.0
    %3196 = vmatprep.subr.mxu0 0.0
    %3197 = vmatpush1.msra.mxu0 0.0
    %3198 = vmatprep.subr.mxu0 0.0
    %3199 = vmatpush1.msra.mxu0 0.0
    %3200 = vmatprep.subr.mxu0 0.0
    %3201 = vmatpush1.msra.mxu0 0.0
    %3202 = vmatprep.subr.mxu0 0.0
    %3203 = vmatpush1.msra.mxu0 0.0
    %3204 = vmatprep.subr.mxu0 0.0
    %3205 = vmatpush1.msra.mxu0 0.0
    %3206 = vmatprep.subr.mxu0 0.0
    %3207 = vmatpush1.msra.mxu0 0.0
    %3208 = vmatprep.subr.mxu0 0.0
    %3209 = vmatpush1.msra.mxu0 0.0
    %3210 = vmatprep.subr.mxu0 0.0
    %3211 = vmatpush1.msra.mxu0 0.0
    %3212 = vmatprep.subr.mxu0 0.0
    %3213 = vmatpush1.msra.mxu0 0.0
    %3214 = vmatprep.subr.mxu0 0.0
    %3215 = vmatpush1.msra.mxu0 0.0
    %3216 = vmatprep.subr.mxu0 0.0
    %3217 = vmatpush1.msra.mxu0 0.0
    %3218 = vmatprep.subr.mxu0 0.0
    %3219 = vmatpush1.msra.mxu0 0.0
    %3220 = vmatprep.mubr.f32.mxu0 0.0
    %3221 = vmatmul.mubr.f32.gmra.mrb[0].mxu0 %v1102
    %v3222 = vpop.f32.mrb[0].mxu0
    %v3223 = vadd.f32 0.0, %v3222
    %v3224 = vpop.f32.mrb[0].mxu0
    %3225 = vmatprep.mubr.f32.mxu0 0.0
    %3226 = vmatmul.mubr.f32.gmra.mrb[0].mxu0 %v1105
    %v3227 = vpop.f32.mrb[0].mxu0
    %v3228 = vadd.f32 0.0, %v3227
    %v3229 = vpop.f32.mrb[0].mxu0
    %3230 = vdwg.mxu0
    %3231 = vmatprep.subr.mxu0 0.0
    %3232 = vmatpush1.msra.mxu0 %v2943
    %3233 = vmatprep.subr.mxu0 0.0
    %3234 = vmatpush1.msra.mxu0 %v2948
    %3235 = vmatprep.subr.mxu0 0.0
    %3236 = vmatpush1.msra.mxu0 0.0
    %3237 = vmatprep.subr.mxu0 0.0
    %3238 = vmatpush1.msra.mxu0 0.0
    %3239 = vmatprep.subr.mxu0 0.0
    %3240 = vmatpush1.msra.mxu0 0.0
    %3241 = vmatprep.subr.mxu0 0.0
    %3242 = vmatpush1.msra.mxu0 0.0
    %3243 = vmatprep.subr.mxu0 0.0
    %3244 = vmatpush1.msra.mxu0 0.0
    %3245 = vmatprep.subr.mxu0 0.0
    %3246 = vmatpush1.msra.mxu0 0.0
    %3247 = vmatprep.subr.mxu0 0.0
    %3248 = vmatpush1.msra.mxu0 0.0
    %3249 = vmatprep.subr.mxu0 0.0
    %3250 = vmatpush1.msra.mxu0 0.0
    %3251 = vmatprep.subr.mxu0 0.0
    %3252 = vmatpush1.msra.mxu0 0.0
    %3253 = vmatprep.subr.mxu0 0.0
    %3254 = vmatpush1.msra.mxu0 0.0
    %3255 = vmatprep.subr.mxu0 0.0
    %3256 = vmatpush1.msra.mxu0 0.0
    %3257 = vmatprep.subr.mxu0 0.0
    %3258 = vmatpush1.msra.mxu0 0.0
    %3259 = vmatprep.subr.mxu0 0.0
    %3260 = vmatpush1.msra.mxu0 0.0
    %3261 = vmatprep.subr.mxu0 0.0
    %3262 = vmatpush1.msra.mxu0 0.0
    %3263 = vmatprep.subr.mxu0 0.0
    %3264 = vmatpush1.msra.mxu0 0.0
    %3265 = vmatprep.subr.mxu0 0.0
    %3266 = vmatpush1.msra.mxu0 0.0
    %3267 = vmatprep.subr.mxu0 0.0
    %3268 = vmatpush1.msra.mxu0 0.0
    %3269 = vmatprep.subr.mxu0 0.0
    %3270 = vmatpush1.msra.mxu0 0.0
    %3271 = vmatprep.subr.mxu0 0.0
    %3272 = vmatpush1.msra.mxu0 0.0
    %3273 = vmatprep.subr.mxu0 0.0
    %3274 = vmatpush1.msra.mxu0 0.0
    %3275 = vmatprep.subr.mxu0 0.0
    %3276 = vmatpush1.msra.mxu0 0.0
    %3277 = vmatprep.subr.mxu0 0.0
    %3278 = vmatpush1.msra.mxu0 0.0
    %3279 = vmatprep.subr.mxu0 0.0
    %3280 = vmatpush1.msra.mxu0 0.0
    %3281 = vmatprep.subr.mxu0 0.0
    %3282 = vmatpush1.msra.mxu0 0.0
    %3283 = vmatprep.subr.mxu0 0.0
    %3284 = vmatpush1.msra.mxu0 0.0
    %3285 = vmatprep.subr.mxu0 0.0
    %3286 = vmatpush1.msra.mxu0 0.0
    %3287 = vmatprep.subr.mxu0 0.0
    %3288 = vmatpush1.msra.mxu0 0.0
    %3289 = vmatprep.subr.mxu0 0.0
    %3290 = vmatpush1.msra.mxu0 0.0
    %3291 = vmatprep.subr.mxu0 0.0
    %3292 = vmatpush1.msra.mxu0 0.0
    %3293 = vmatprep.subr.mxu0 0.0
    %3294 = vmatpush1.msra.mxu0 0.0
    %3295 = vmatprep.mubr.f32.mxu0 0.0
    %3296 = vmatmul.mubr.f32.gmra.mrb[0].mxu0 %v1183
    %v3297 = vpop.f32.mrb[0].mxu0
    %v3298 = vadd.f32 0.0, %v3297
    %v3299 = vpop.f32.mrb[0].mxu0
    %3300 = vmatprep.mubr.f32.mxu0 0.0
    %3301 = vmatmul.mubr.f32.gmra.mrb[0].mxu0 %v1186
    %v3302 = vpop.f32.mrb[0].mxu0
    %v3303 = vadd.f32 0.0, %v3302
    %v3304 = vpop.f32.mrb[0].mxu0
    %3305 = vdwg.mxu0
    %3306 = vmatprep.subr.mxu0 0.0
    %3307 = vmatpush1.msra.mxu0 %v2953
    %3308 = vmatprep.subr.mxu0 0.0
    %3309 = vmatpush1.msra.mxu0 %v2958
    %3310 = vmatprep.subr.mxu0 0.0
    %3311 = vmatpush1.msra.mxu0 0.0
    %3312 = vmatprep.subr.mxu0 0.0
    %3313 = vmatpush1.msra.mxu0 0.0
    %3314 = vmatprep.subr.mxu0 0.0
    %3315 = vmatpush1.msra.mxu0 0.0
    %3316 = vmatprep.subr.mxu0 0.0
    %3317 = vmatpush1.msra.mxu0 0.0
    %3318 = vmatprep.subr.mxu0 0.0
    %3319 = vmatpush1.msra.mxu0 0.0
    %3320 = vmatprep.subr.mxu0 0.0
    %3321 = vmatpush1.msra.mxu0 0.0
    %3322 = vmatprep.subr.mxu0 0.0
    %3323 = vmatpush1.msra.mxu0 0.0
    %3324 = vmatprep.subr.mxu0 0.0
    %3325 = vmatpush1.msra.mxu0 0.0
    %3326 = vmatprep.subr.mxu0 0.0
    %3327 = vmatpush1.msra.mxu0 0.0
    %3328 = vmatprep.subr.mxu0 0.0
    %3329 = vmatpush1.msra.mxu0 0.0
    %3330 = vmatprep.subr.mxu0 0.0
    %3331 = vmatpush1.msra.mxu0 0.0
    %3332 = vmatprep.subr.mxu0 0.0
    %3333 = vmatpush1.msra.mxu0 0.0
    %3334 = vmatprep.subr.mxu0 0.0
    %3335 = vmatpush1.msra.mxu0 0.0
    %3336 = vmatprep.subr.mxu0 0.0
    %3337 = vmatpush1.msra.mxu0 0.0
    %3338 = vmatprep.subr.mxu0 0.0
    %3339 = vmatpush1.msra.mxu0 0.0
    %3340 = vmatprep.subr.mxu0 0.0
    %3341 = vmatpush1.msra.mxu0 0.0
    %3342 = vmatprep.subr.mxu0 0.0
    %3343 = vmatpush1.msra.mxu0 0.0
    %3344 = vmatprep.subr.mxu0 0.0
    %3345 = vmatpush1.msra.mxu0 0.0
    %3346 = vmatprep.subr.mxu0 0.0
    %3347 = vmatpush1.msra.mxu0 0.0
    %3348 = vmatprep.subr.mxu0 0.0
    %3349 = vmatpush1.msra.mxu0 0.0
    %3350 = vmatprep.subr.mxu0 0.0
    %3351 = vmatpush1.msra.mxu0 0.0
    %3352 = vmatprep.subr.mxu0 0.0
    %3353 = vmatpush1.msra.mxu0 0.0
    %3354 = vmatprep.subr.mxu0 0.0
    %3355 = vmatpush1.msra.mxu0 0.0
    %3356 = vmatprep.subr.mxu0 0.0
    %3357 = vmatpush1.msra.mxu0 0.0
    %3358 = vmatprep.subr.mxu0 0.0
    %3359 = vmatpush1.msra.mxu0 0.0
    %3360 = vmatprep.subr.mxu0 0.0
    %3361 = vmatpush1.msra.mxu0 0.0
    %3362 = vmatprep.subr.mxu0 0.0
    %3363 = vmatpush1.msra.mxu0 0.0
    %3364 = vmatprep.subr.mxu0 0.0
    %3365 = vmatpush1.msra.mxu0 0.0
    %3366 = vmatprep.subr.mxu0 0.0
    %3367 = vmatpush1.msra.mxu0 0.0
    %3368 = vmatprep.subr.mxu0 0.0
    %3369 = vmatpush1.msra.mxu0 0.0
    %3370 = vmatprep.mubr.f32.mxu0 0.0
    %3371 = vmatmul.mubr.f32.gmra.mrb[0].mxu0 %v1264
    %v3372 = vpop.f32.mrb[0].mxu0
    %v3373 = vadd.f32 0.0, %v3372
    %v3374 = vpop.f32.mrb[0].mxu0
    %3375 = vmatprep.mubr.f32.mxu0 0.0
    %3376 = vmatmul.mubr.f32.gmra.mrb[0].mxu0 %v1267
    %v3377 = vpop.f32.mrb[0].mxu0
    %v3378 = vadd.f32 0.0, %v3377
    %v3379 = vpop.f32.mrb[0].mxu0
    %3380 = vdwg.mxu0
    %3381 = vmatprep.subr.mxu0 0.0
    %3382 = vmatpush1.msra.mxu0 %v2963
    %3383 = vmatprep.subr.mxu0 0.0
    %3384 = vmatpush1.msra.mxu0 %v2968
    %3385 = vmatprep.subr.mxu0 0.0
    %3386 = vmatpush1.msra.mxu0 0.0
    %3387 = vmatprep.subr.mxu0 0.0
    %3388 = vmatpush1.msra.mxu0 0.0
    %3389 = vmatprep.subr.mxu0 0.0
    %3390 = vmatpush1.msra.mxu0 0.0
    %3391 = vmatprep.subr.mxu0 0.0
    %3392 = vmatpush1.msra.mxu0 0.0
    %3393 = vmatprep.subr.mxu0 0.0
    %3394 = vmatpush1.msra.mxu0 0.0
    %3395 = vmatprep.subr.mxu0 0.0
    %3396 = vmatpush1.msra.mxu0 0.0
    %3397 = vmatprep.subr.mxu0 0.0
    %3398 = vmatpush1.msra.mxu0 0.0
    %3399 = vmatprep.subr.mxu0 0.0
    %3400 = vmatpush1.msra.mxu0 0.0
    %3401 = vmatprep.subr.mxu0 0.0
    %3402 = vmatpush1.msra.mxu0 0.0
    %3403 = vmatprep.subr.mxu0 0.0
    %3404 = vmatpush1.msra.mxu0 0.0
    %3405 = vmatprep.subr.mxu0 0.0
    %3406 = vmatpush1.msra.mxu0 0.0
    %3407 = vmatprep.subr.mxu0 0.0
    %3408 = vmatpush1.msra.mxu0 0.0
    %3409 = vmatprep.subr.mxu0 0.0
    %3410 = vmatpush1.msra.mxu0 0.0
    %3411 = vmatprep.subr.mxu0 0.0
    %3412 = vmatpush1.msra.mxu0 0.0
    %3413 = vmatprep.subr.mxu0 0.0
    %3414 = vmatpush1.msra.mxu0 0.0
    %3415 = vmatprep.subr.mxu0 0.0
    %3416 = vmatpush1.msra.mxu0 0.0
    %3417 = vmatprep.subr.mxu0 0.0
    %3418 = vmatpush1.msra.mxu0 0.0
    %3419 = vmatprep.subr.mxu0 0.0
    %3420 = vmatpush1.msra.mxu0 0.0
    %3421 = vmatprep.subr.mxu0 0.0
    %3422 = vmatpush1.msra.mxu0 0.0
    %3423 = vmatprep.subr.mxu0 0.0
    %3424 = vmatpush1.msra.mxu0 0.0
    %3425 = vmatprep.subr.mxu0 0.0
    %3426 = vmatpush1.msra.mxu0 0.0
    %3427 = vmatprep.subr.mxu0 0.0
    %3428 = vmatpush1.msra.mxu0 0.0
    %3429 = vmatprep.subr.mxu0 0.0
    %3430 = vmatpush1.msra.mxu0 0.0
    %3431 = vmatprep.subr.mxu0 0.0
    %3432 = vmatpush1.msra.mxu0 0.0
    %3433 = vmatprep.subr.mxu0 0.0
    %3434 = vmatpush1.msra.mxu0 0.0
    %3435 = vmatprep.subr.mxu0 0.0
    %3436 = vmatpush1.msra.mxu0 0.0
    %3437 = vmatprep.subr.mxu0 0.0
    %3438 = vmatpush1.msra.mxu0 0.0
    %3439 = vmatprep.subr.mxu0 0.0
    %3440 = vmatpush1.msra.mxu0 0.0
    %3441 = vmatprep.subr.mxu0 0.0
    %3442 = vmatpush1.msra.mxu0 0.0
    %3443 = vmatprep.subr.mxu0 0.0
    %3444 = vmatpush1.msra.mxu0 0.0
    %3445 = vmatprep.mubr.f32.mxu0 0.0
    %3446 = vmatmul.mubr.f32.gmra.mrb[0].mxu0 %v1345
    %v3447 = vpop.f32.mrb[0].mxu0
    %v3448 = vadd.f32 0.0, %v3447
    %v3449 = vpop.f32.mrb[0].mxu0
    %3450 = vmatprep.mubr.f32.mxu0 0.0
    %3451 = vmatmul.mubr.f32.gmra.mrb[0].mxu0 %v1348
    %v3452 = vpop.f32.mrb[0].mxu0
    %v3453 = vadd.f32 0.0, %v3452
    %v3454 = vpop.f32.mrb[0].mxu0
    %3455 = vdwg.mxu0
    %3456 = vmatprep.subr.mxu0 0.0
    %3457 = vmatpush1.msra.mxu0 %v2973
    %3458 = vmatprep.subr.mxu0 0.0
    %3459 = vmatpush1.msra.mxu0 %v2978
    %3460 = vmatprep.subr.mxu0 0.0
    %3461 = vmatpush1.msra.mxu0 0.0
    %3462 = vmatprep.subr.mxu0 0.0
    %3463 = vmatpush1.msra.mxu0 0.0
    %3464 = vmatprep.subr.mxu0 0.0
    %3465 = vmatpush1.msra.mxu0 0.0
    %3466 = vmatprep.subr.mxu0 0.0
    %3467 = vmatpush1.msra.mxu0 0.0
    %3468 = vmatprep.subr.mxu0 0.0
    %3469 = vmatpush1.msra.mxu0 0.0
    %3470 = vmatprep.subr.mxu0 0.0
    %3471 = vmatpush1.msra.mxu0 0.0
    %3472 = vmatprep.subr.mxu0 0.0
    %3473 = vmatpush1.msra.mxu0 0.0
    %3474 = vmatprep.subr.mxu0 0.0
    %3475 = vmatpush1.msra.mxu0 0.0
    %3476 = vmatprep.subr.mxu0 0.0
    %3477 = vmatpush1.msra.mxu0 0.0
    %3478 = vmatprep.subr.mxu0 0.0
    %3479 = vmatpush1.msra.mxu0 0.0
    %3480 = vmatprep.subr.mxu0 0.0
    %3481 = vmatpush1.msra.mxu0 0.0
    %3482 = vmatprep.subr.mxu0 0.0
    %3483 = vmatpush1.msra.mxu0 0.0
    %3484 = vmatprep.subr.mxu0 0.0
    %3485 = vmatpush1.msra.mxu0 0.0
    %3486 = vmatprep.subr.mxu0 0.0
    %3487 = vmatpush1.msra.mxu0 0.0
    %3488 = vmatprep.subr.mxu0 0.0
    %3489 = vmatpush1.msra.mxu0 0.0
    %3490 = vmatprep.subr.mxu0 0.0
    %3491 = vmatpush1.msra.mxu0 0.0
    %3492 = vmatprep.subr.mxu0 0.0
    %3493 = vmatpush1.msra.mxu0 0.0
    %3494 = vmatprep.subr.mxu0 0.0
    %3495 = vmatpush1.msra.mxu0 0.0
    %3496 = vmatprep.subr.mxu0 0.0
    %3497 = vmatpush1.msra.mxu0 0.0
    %3498 = vmatprep.subr.mxu0 0.0
    %3499 = vmatpush1.msra.mxu0 0.0
    %3500 = vmatprep.subr.mxu0 0.0
    %3501 = vmatpush1.msra.mxu0 0.0
    %3502 = vmatprep.subr.mxu0 0.0
    %3503 = vmatpush1.msra.mxu0 0.0
    %3504 = vmatprep.subr.mxu0 0.0
    %3505 = vmatpush1.msra.mxu0 0.0
    %3506 = vmatprep.subr.mxu0 0.0
    %3507 = vmatpush1.msra.mxu0 0.0
    %3508 = vmatprep.subr.mxu0 0.0
    %3509 = vmatpush1.msra.mxu0 0.0
    %3510 = vmatprep.subr.mxu0 0.0
    %3511 = vmatpush1.msra.mxu0 0.0
    %3512 = vmatprep.subr.mxu0 0.0
    %3513 = vmatpush1.msra.mxu0 0.0
    %3514 = vmatprep.subr.mxu0 0.0
    %3515 = vmatpush1.msra.mxu0 0.0
    %3516 = vmatprep.subr.mxu0 0.0
    %3517 = vmatpush1.msra.mxu0 0.0
    %3518 = vmatprep.subr.mxu0 0.0
    %3519 = vmatpush1.msra.mxu0 0.0
    %3520 = vmatprep.mubr.f32.mxu0 0.0
    %3521 = vmatmul.mubr.f32.gmra.mrb[0].mxu0 %v1426
    %v3522 = vpop.f32.mrb[0].mxu0
    %v3523 = vadd.f32 0.0, %v3522
    %v3524 = vpop.f32.mrb[0].mxu0
    %3525 = vmatprep.mubr.f32.mxu0 0.0
    %3526 = vmatmul.mubr.f32.gmra.mrb[0].mxu0 %v1429
    %v3527 = vpop.f32.mrb[0].mxu0
    %v3528 = vadd.f32 0.0, %v3527
    %v3529 = vpop.f32.mrb[0].mxu0
    %3530 = vdwg.mxu0
    %3531 = vmatprep.subr.mxu0 0.0
    %3532 = vmatpush1.msra.mxu0 %v2983
    %3533 = vmatprep.subr.mxu0 0.0
    %3534 = vmatpush1.msra.mxu0 %v2988
    %3535 = vmatprep.subr.mxu0 0.0
    %3536 = vmatpush1.msra.mxu0 0.0
    %3537 = vmatprep.subr.mxu0 0.0
    %3538 = vmatpush1.msra.mxu0 0.0
    %3539 = vmatprep.subr.mxu0 0.0
    %3540 = vmatpush1.msra.mxu0 0.0
    %3541 = vmatprep.subr.mxu0 0.0
    %3542 = vmatpush1.msra.mxu0 0.0
    %3543 = vmatprep.subr.mxu0 0.0
    %3544 = vmatpush1.msra.mxu0 0.0
    %3545 = vmatprep.subr.mxu0 0.0
    %3546 = vmatpush1.msra.mxu0 0.0
    %3547 = vmatprep.subr.mxu0 0.0
    %3548 = vmatpush1.msra.mxu0 0.0
    %3549 = vmatprep.subr.mxu0 0.0
    %3550 = vmatpush1.msra.mxu0 0.0
    %3551 = vmatprep.subr.mxu0 0.0
    %3552 = vmatpush1.msra.mxu0 0.0
    %3553 = vmatprep.subr.mxu0 0.0
    %3554 = vmatpush1.msra.mxu0 0.0
    %3555 = vmatprep.subr.mxu0 0.0
    %3556 = vmatpush1.msra.mxu0 0.0
    %3557 = vmatprep.subr.mxu0 0.0
    %3558 = vmatpush1.msra.mxu0 0.0
    %3559 = vmatprep.subr.mxu0 0.0
    %3560 = vmatpush1.msra.mxu0 0.0
    %3561 = vmatprep.subr.mxu0 0.0
    %3562 = vmatpush1.msra.mxu0 0.0
    %3563 = vmatprep.subr.mxu0 0.0
    %3564 = vmatpush1.msra.mxu0 0.0
    %3565 = vmatprep.subr.mxu0 0.0
    %3566 = vmatpush1.msra.mxu0 0.0
    %3567 = vmatprep.subr.mxu0 0.0
    %3568 = vmatpush1.msra.mxu0 0.0
    %3569 = vmatprep.subr.mxu0 0.0
    %3570 = vmatpush1.msra.mxu0 0.0
    %3571 = vmatprep.subr.mxu0 0.0
    %3572 = vmatpush1.msra.mxu0 0.0
    %3573 = vmatprep.subr.mxu0 0.0
    %3574 = vmatpush1.msra.mxu0 0.0
    %3575 = vmatprep.subr.mxu0 0.0
    %3576 = vmatpush1.msra.mxu0 0.0
    %3577 = vmatprep.subr.mxu0 0.0
    %3578 = vmatpush1.msra.mxu0 0.0
    %3579 = vmatprep.subr.mxu0 0.0
    %3580 = vmatpush1.msra.mxu0 0.0
    %3581 = vmatprep.subr.mxu0 0.0
    %3582 = vmatpush1.msra.mxu0 0.0
    %3583 = vmatprep.subr.mxu0 0.0
    %3584 = vmatpush1.msra.mxu0 0.0
    %3585 = vmatprep.subr.mxu0 0.0
    %3586 = vmatpush1.msra.mxu0 0.0
    %3587 = vmatprep.subr.mxu0 0.0
    %3588 = vmatpush1.msra.mxu0 0.0
    %3589 = vmatprep.subr.mxu0 0.0
    %3590 = vmatpush1.msra.mxu0 0.0
    %3591 = vmatprep.subr.mxu0 0.0
    %3592 = vmatpush1.msra.mxu0 0.0
    %3593 = vmatprep.subr.mxu0 0.0
    %3594 = vmatpush1.msra.mxu0 0.0
    %3595 = vmatprep.mubr.f32.mxu0 0.0
    %3596 = vmatmul.mubr.f32.gmra.mrb[0].mxu0 %v1507
    %v3597 = vpop.f32.mrb[0].mxu0
    %v3598 = vadd.f32 0.0, %v3597
    %v3599 = vpop.f32.mrb[0].mxu0
    %3600 = vmatprep.mubr.f32.mxu0 0.0
    %3601 = vmatmul.mubr.f32.gmra.mrb[0].mxu0 %v1510
    %v3602 = vpop.f32.mrb[0].mxu0
    %v3603 = vadd.f32 0.0, %v3602
    %v3604 = vpop.f32.mrb[0].mxu0
    %3605 = vdwg.mxu0
    %3606 = vmatprep.subr.mxu0 0.0
    %3607 = vmatpush1.msra.mxu0 %v2993
    %3608 = vmatprep.subr.mxu0 0.0
    %3609 = vmatpush1.msra.mxu0 %v2998
    %3610 = vmatprep.subr.mxu0 0.0
    %3611 = vmatpush1.msra.mxu0 0.0
    %3612 = vmatprep.subr.mxu0 0.0
    %3613 = vmatpush1.msra.mxu0 0.0
    %3614 = vmatprep.subr.mxu0 0.0
    %3615 = vmatpush1.msra.mxu0 0.0
    %3616 = vmatprep.subr.mxu0 0.0
    %3617 = vmatpush1.msra.mxu0 0.0
    %3618 = vmatprep.subr.mxu0 0.0
    %3619 = vmatpush1.msra.mxu0 0.0
    %3620 = vmatprep.subr.mxu0 0.0
    %3621 = vmatpush1.msra.mxu0 0.0
    %3622 = vmatprep.subr.mxu0 0.0
    %3623 = vmatpush1.msra.mxu0 0.0
    %3624 = vmatprep.subr.mxu0 0.0
    %3625 = vmatpush1.msra.mxu0 0.0
    %3626 = vmatprep.subr.mxu0 0.0
    %3627 = vmatpush1.msra.mxu0 0.0
    %3628 = vmatprep.subr.mxu0 0.0
    %3629 = vmatpush1.msra.mxu0 0.0
    %3630 = vmatprep.subr.mxu0 0.0
    %3631 = vmatpush1.msra.mxu0 0.0
    %3632 = vmatprep.subr.mxu0 0.0
    %3633 = vmatpush1.msra.mxu0 0.0
    %3634 = vmatprep.subr.mxu0 0.0
    %3635 = vmatpush1.msra.mxu0 0.0
    %3636 = vmatprep.subr.mxu0 0.0
    %3637 = vmatpush1.msra.mxu0 0.0
    %3638 = vmatprep.subr.mxu0 0.0
    %3639 = vmatpush1.msra.mxu0 0.0
    %3640 = vmatprep.subr.mxu0 0.0
    %3641 = vmatpush1.msra.mxu0 0.0
    %3642 = vmatprep.subr.mxu0 0.0
    %3643 = vmatpush1.msra.mxu0 0.0
    %3644 = vmatprep.subr.mxu0 0.0
    %3645 = vmatpush1.msra.mxu0 0.0
    %3646 = vmatprep.subr.mxu0 0.0
    %3647 = vmatpush1.msra.mxu0 0.0
    %3648 = vmatprep.subr.mxu0 0.0
    %3649 = vmatpush1.msra.mxu0 0.0
    %3650 = vmatprep.subr.mxu0 0.0
    %3651 = vmatpush1.msra.mxu0 0.0
    %3652 = vmatprep.subr.mxu0 0.0
    %3653 = vmatpush1.msra.mxu0 0.0
    %3654 = vmatprep.subr.mxu0 0.0
    %3655 = vmatpush1.msra.mxu0 0.0
    %3656 = vmatprep.subr.mxu0 0.0
    %3657 = vmatpush1.msra.mxu0 0.0
    %3658 = vmatprep.subr.mxu0 0.0
    %3659 = vmatpush1.msra.mxu0 0.0
    %3660 = vmatprep.subr.mxu0 0.0
    %3661 = vmatpush1.msra.mxu0 0.0
    %3662 = vmatprep.subr.mxu0 0.0
    %3663 = vmatpush1.msra.mxu0 0.0
    %3664 = vmatprep.subr.mxu0 0.0
    %3665 = vmatpush1.msra.mxu0 0.0
    %3666 = vmatprep.subr.mxu0 0.0
    %3667 = vmatpush1.msra.mxu0 0.0
    %3668 = vmatprep.subr.mxu0 0.0
    %3669 = vmatpush1.msra.mxu0 0.0
    %3670 = vmatprep.mubr.f32.mxu0 0.0
    %3671 = vmatmul.mubr.f32.gmra.mrb[0].mxu0 %v1588
    %v3672 = vpop.f32.mrb[0].mxu0
    %v3673 = vadd.f32 0.0, %v3672
    %v3674 = vpop.f32.mrb[0].mxu0
    %3675 = vmatprep.mubr.f32.mxu0 0.0
    %3676 = vmatmul.mubr.f32.gmra.mrb[0].mxu0 %v1591
    %v3677 = vpop.f32.mrb[0].mxu0
    %v3678 = vadd.f32 0.0, %v3677
    %v3679 = vpop.f32.mrb[0].mxu0
    %3680 = vdwg.mxu0
    %3681 = vmatprep.subr.mxu0 0.0
    %3682 = vmatpush1.msra.mxu0 %v3003
    %3683 = vmatprep.subr.mxu0 0.0
    %3684 = vmatpush1.msra.mxu0 %v3008
    %3685 = vmatprep.subr.mxu0 0.0
    %3686 = vmatpush1.msra.mxu0 0.0
    %3687 = vmatprep.subr.mxu0 0.0
    %3688 = vmatpush1.msra.mxu0 0.0
    %3689 = vmatprep.subr.mxu0 0.0
    %3690 = vmatpush1.msra.mxu0 0.0
    %3691 = vmatprep.subr.mxu0 0.0
    %3692 = vmatpush1.msra.mxu0 0.0
    %3693 = vmatprep.subr.mxu0 0.0
    %3694 = vmatpush1.msra.mxu0 0.0
    %3695 = vmatprep.subr.mxu0 0.0
    %3696 = vmatpush1.msra.mxu0 0.0
    %3697 = vmatprep.subr.mxu0 0.0
    %3698 = vmatpush1.msra.mxu0 0.0
    %3699 = vmatprep.subr.mxu0 0.0
    %3700 = vmatpush1.msra.mxu0 0.0
    %3701 = vmatprep.subr.mxu0 0.0
    %3702 = vmatpush1.msra.mxu0 0.0
    %3703 = vmatprep.subr.mxu0 0.0
    %3704 = vmatpush1.msra.mxu0 0.0
    %3705 = vmatprep.subr.mxu0 0.0
    %3706 = vmatpush1.msra.mxu0 0.0
    %3707 = vmatprep.subr.mxu0 0.0
    %3708 = vmatpush1.msra.mxu0 0.0
    %3709 = vmatprep.subr.mxu0 0.0
    %3710 = vmatpush1.msra.mxu0 0.0
    %3711 = vmatprep.subr.mxu0 0.0
    %3712 = vmatpush1.msra.mxu0 0.0
    %3713 = vmatprep.subr.mxu0 0.0
    %3714 = vmatpush1.msra.mxu0 0.0
    %3715 = vmatprep.subr.mxu0 0.0
    %3716 = vmatpush1.msra.mxu0 0.0
    %3717 = vmatprep.subr.mxu0 0.0
    %3718 = vmatpush1.msra.mxu0 0.0
    %3719 = vmatprep.subr.mxu0 0.0
    %3720 = vmatpush1.msra.mxu0 0.0
    %3721 = vmatprep.subr.mxu0 0.0
    %3722 = vmatpush1.msra.mxu0 0.0
    %3723 = vmatprep.subr.mxu0 0.0
    %3724 = vmatpush1.msra.mxu0 0.0
    %3725 = vmatprep.subr.mxu0 0.0
    %3726 = vmatpush1.msra.mxu0 0.0
    %3727 = vmatprep.subr.mxu0 0.0
    %3728 = vmatpush1.msra.mxu0 0.0
    %3729 = vmatprep.subr.mxu0 0.0
    %3730 = vmatpush1.msra.mxu0 0.0
    %3731 = vmatprep.subr.mxu0 0.0
    %3732 = vmatpush1.msra.mxu0 0.0
    %3733 = vmatprep.subr.mxu0 0.0
    %3734 = vmatpush1.msra.mxu0 0.0
    %3735 = vmatprep.subr.mxu0 0.0
    %3736 = vmatpush1.msra.mxu0 0.0
    %3737 = vmatprep.subr.mxu0 0.0
    %3738 = vmatpush1.msra.mxu0 0.0
    %3739 = vmatprep.subr.mxu0 0.0
    %3740 = vmatpush1.msra.mxu0 0.0
    %3741 = vmatprep.subr.mxu0 0.0
    %3742 = vmatpush1.msra.mxu0 0.0
    %3743 = vmatprep.subr.mxu0 0.0
    %3744 = vmatpush1.msra.mxu0 0.0
    %3745 = vmatprep.mubr.f32.mxu0 0.0
    %3746 = vmatmul.mubr.f32.gmra.mrb[0].mxu0 %v1669
    %v3747 = vpop.f32.mrb[0].mxu0
    %v3748 = vadd.f32 0.0, %v3747
    %v3749 = vpop.f32.mrb[0].mxu0
    %3750 = vmatprep.mubr.f32.mxu0 0.0
    %3751 = vmatmul.mubr.f32.gmra.mrb[0].mxu0 %v1672
    %v3752 = vpop.f32.mrb[0].mxu0
    %v3753 = vadd.f32 0.0, %v3752
    %v3754 = vpop.f32.mrb[0].mxu0
    %3755 = vdwg.mxu0
    %3756 = vmatprep.subr.mxu0 0.0
    %3757 = vmatpush1.msra.mxu0 %v3013
    %3758 = vmatprep.subr.mxu0 0.0
    %3759 = vmatpush1.msra.mxu0 %v3018
    %3760 = vmatprep.subr.mxu0 0.0
    %3761 = vmatpush1.msra.mxu0 0.0
    %3762 = vmatprep.subr.mxu0 0.0
    %3763 = vmatpush1.msra.mxu0 0.0
    %3764 = vmatprep.subr.mxu0 0.0
    %3765 = vmatpush1.msra.mxu0 0.0
    %3766 = vmatprep.subr.mxu0 0.0
    %3767 = vmatpush1.msra.mxu0 0.0
    %3768 = vmatprep.subr.mxu0 0.0
    %3769 = vmatpush1.msra.mxu0 0.0
    %3770 = vmatprep.subr.mxu0 0.0
    %3771 = vmatpush1.msra.mxu0 0.0
    %3772 = vmatprep.subr.mxu0 0.0
    %3773 = vmatpush1.msra.mxu0 0.0
    %3774 = vmatprep.subr.mxu0 0.0
    %3775 = vmatpush1.msra.mxu0 0.0
    %3776 = vmatprep.subr.mxu0 0.0
    %3777 = vmatpush1.msra.mxu0 0.0
    %3778 = vmatprep.subr.mxu0 0.0
    %3779 = vmatpush1.msra.mxu0 0.0
    %3780 = vmatprep.subr.mxu0 0.0
    %3781 = vmatpush1.msra.mxu0 0.0
    %3782 = vmatprep.subr.mxu0 0.0
    %3783 = vmatpush1.msra.mxu0 0.0
    %3784 = vmatprep.subr.mxu0 0.0
    %3785 = vmatpush1.msra.mxu0 0.0
    %3786 = vmatprep.subr.mxu0 0.0
    %3787 = vmatpush1.msra.mxu0 0.0
    %3788 = vmatprep.subr.mxu0 0.0
    %3789 = vmatpush1.msra.mxu0 0.0
    %3790 = vmatprep.subr.mxu0 0.0
    %3791 = vmatpush1.msra.mxu0 0.0
    %3792 = vmatprep.subr.mxu0 0.0
    %3793 = vmatpush1.msra.mxu0 0.0
    %3794 = vmatprep.subr.mxu0 0.0
    %3795 = vmatpush1.msra.mxu0 0.0
    %3796 = vmatprep.subr.mxu0 0.0
    %3797 = vmatpush1.msra.mxu0 0.0
    %3798 = vmatprep.subr.mxu0 0.0
    %3799 = vmatpush1.msra.mxu0 0.0
    %3800 = vmatprep.subr.mxu0 0.0
    %3801 = vmatpush1.msra.mxu0 0.0
    %3802 = vmatprep.subr.mxu0 0.0
    %3803 = vmatpush1.msra.mxu0 0.0
    %3804 = vmatprep.subr.mxu0 0.0
    %3805 = vmatpush1.msra.mxu0 0.0
    %3806 = vmatprep.subr.mxu0 0.0
    %3807 = vmatpush1.msra.mxu0 0.0
    %3808 = vmatprep.subr.mxu0 0.0
    %3809 = vmatpush1.msra.mxu0 0.0
    %3810 = vmatprep.subr.mxu0 0.0
    %3811 = vmatpush1.msra.mxu0 0.0
    %3812 = vmatprep.subr.mxu0 0.0
    %3813 = vmatpush1.msra.mxu0 0.0
    %3814 = vmatprep.subr.mxu0 0.0
    %3815 = vmatpush1.msra.mxu0 0.0
    %3816 = vmatprep.subr.mxu0 0.0
    %3817 = vmatpush1.msra.mxu0 0.0
    %3818 = vmatprep.subr.mxu0 0.0
    %3819 = vmatpush1.msra.mxu0 0.0
    %3820 = vmatprep.mubr.f32.mxu0 0.0
    %3821 = vmatmul.mubr.f32.gmra.mrb[0].mxu0 %v1750
    %v3822 = vpop.f32.mrb[0].mxu0
    %v3823 = vadd.f32 0.0, %v3822
    %v3824 = vpop.f32.mrb[0].mxu0
    %3825 = vmatprep.mubr.f32.mxu0 0.0
    %3826 = vmatmul.mubr.f32.gmra.mrb[0].mxu0 %v1753
    %v3827 = vpop.f32.mrb[0].mxu0
    %v3828 = vadd.f32 0.0, %v3827
    %v3829 = vpop.f32.mrb[0].mxu0
    %3830 = vdwg.mxu0
    %3831 = vmatprep.subr.mxu0 0.0
    %3832 = vmatpush1.msra.mxu0 %v3023
    %3833 = vmatprep.subr.mxu0 0.0
    %3834 = vmatpush1.msra.mxu0 %v3028
    %3835 = vmatprep.subr.mxu0 0.0
    %3836 = vmatpush1.msra.mxu0 0.0
    %3837 = vmatprep.subr.mxu0 0.0
    %3838 = vmatpush1.msra.mxu0 0.0
    %3839 = vmatprep.subr.mxu0 0.0
    %3840 = vmatpush1.msra.mxu0 0.0
    %3841 = vmatprep.subr.mxu0 0.0
    %3842 = vmatpush1.msra.mxu0 0.0
    %3843 = vmatprep.subr.mxu0 0.0
    %3844 = vmatpush1.msra.mxu0 0.0
    %3845 = vmatprep.subr.mxu0 0.0
    %3846 = vmatpush1.msra.mxu0 0.0
    %3847 = vmatprep.subr.mxu0 0.0
    %3848 = vmatpush1.msra.mxu0 0.0
    %3849 = vmatprep.subr.mxu0 0.0
    %3850 = vmatpush1.msra.mxu0 0.0
    %3851 = vmatprep.subr.mxu0 0.0
    %3852 = vmatpush1.msra.mxu0 0.0
    %3853 = vmatprep.subr.mxu0 0.0
    %3854 = vmatpush1.msra.mxu0 0.0
    %3855 = vmatprep.subr.mxu0 0.0
    %3856 = vmatpush1.msra.mxu0 0.0
    %3857 = vmatprep.subr.mxu0 0.0
    %3858 = vmatpush1.msra.mxu0 0.0
    %3859 = vmatprep.subr.mxu0 0.0
    %3860 = vmatpush1.msra.mxu0 0.0
    %3861 = vmatprep.subr.mxu0 0.0
    %3862 = vmatpush1.msra.mxu0 0.0
    %3863 = vmatprep.subr.mxu0 0.0
    %3864 = vmatpush1.msra.mxu0 0.0
    %3865 = vmatprep.subr.mxu0 0.0
    %3866 = vmatpush1.msra.mxu0 0.0
    %3867 = vmatprep.subr.mxu0 0.0
    %3868 = vmatpush1.msra.mxu0 0.0
    %3869 = vmatprep.subr.mxu0 0.0
    %3870 = vmatpush1.msra.mxu0 0.0
    %3871 = vmatprep.subr.mxu0 0.0
    %3872 = vmatpush1.msra.mxu0 0.0
    %3873 = vmatprep.subr.mxu0 0.0
    %3874 = vmatpush1.msra.mxu0 0.0
    %3875 = vmatprep.subr.mxu0 0.0
    %3876 = vmatpush1.msra.mxu0 0.0
    %3877 = vmatprep.subr.mxu0 0.0
    %3878 = vmatpush1.msra.mxu0 0.0
    %3879 = vmatprep.subr.mxu0 0.0
    %3880 = vmatpush1.msra.mxu0 0.0
    %3881 = vmatprep.subr.mxu0 0.0
    %3882 = vmatpush1.msra.mxu0 0.0
    %3883 = vmatprep.subr.mxu0 0.0
    %3884 = vmatpush1.msra.mxu0 0.0
    %3885 = vmatprep.subr.mxu0 0.0
    %3886 = vmatpush1.msra.mxu0 0.0
    %3887 = vmatprep.subr.mxu0 0.0
    %3888 = vmatpush1.msra.mxu0 0.0
    %3889 = vmatprep.subr.mxu0 0.0
    %3890 = vmatpush1.msra.mxu0 0.0
    %3891 = vmatprep.subr.mxu0 0.0
    %3892 = vmatpush1.msra.mxu0 0.0
    %3893 = vmatprep.subr.mxu0 0.0
    %3894 = vmatpush1.msra.mxu0 0.0
    %3895 = vmatprep.mubr.f32.mxu0 0.0
    %3896 = vmatmul.mubr.f32.gmra.mrb[0].mxu0 %v1831
    %v3897 = vpop.f32.mrb[0].mxu0
    %v3898 = vadd.f32 0.0, %v3897
    %v3899 = vpop.f32.mrb[0].mxu0
    %3900 = vmatprep.mubr.f32.mxu0 0.0
    %3901 = vmatmul.mubr.f32.gmra.mrb[0].mxu0 %v1834
    %v3902 = vpop.f32.mrb[0].mxu0
    %v3903 = vadd.f32 0.0, %v3902
    %v3904 = vpop.f32.mrb[0].mxu0
    %3905 = vdwg.mxu0
    %3906 = vmatprep.subr.mxu0 0.0
    %3907 = vmatpush1.msra.mxu0 %v3033
    %3908 = vmatprep.subr.mxu0 0.0
    %3909 = vmatpush1.msra.mxu0 %v3038
    %3910 = vmatprep.subr.mxu0 0.0
    %3911 = vmatpush1.msra.mxu0 0.0
    %3912 = vmatprep.subr.mxu0 0.0
    %3913 = vmatpush1.msra.mxu0 0.0
    %3914 = vmatprep.subr.mxu0 0.0
    %3915 = vmatpush1.msra.mxu0 0.0
    %3916 = vmatprep.subr.mxu0 0.0
    %3917 = vmatpush1.msra.mxu0 0.0
    %3918 = vmatprep.subr.mxu0 0.0
    %3919 = vmatpush1.msra.mxu0 0.0
    %3920 = vmatprep.subr.mxu0 0.0
    %3921 = vmatpush1.msra.mxu0 0.0
    %3922 = vmatprep.subr.mxu0 0.0
    %3923 = vmatpush1.msra.mxu0 0.0
    %3924 = vmatprep.subr.mxu0 0.0
    %3925 = vmatpush1.msra.mxu0 0.0
    %3926 = vmatprep.subr.mxu0 0.0
    %3927 = vmatpush1.msra.mxu0 0.0
    %3928 = vmatprep.subr.mxu0 0.0
    %3929 = vmatpush1.msra.mxu0 0.0
    %3930 = vmatprep.subr.mxu0 0.0
    %3931 = vmatpush1.msra.mxu0 0.0
    %3932 = vmatprep.subr.mxu0 0.0
    %3933 = vmatpush1.msra.mxu0 0.0
    %3934 = vmatprep.subr.mxu0 0.0
    %3935 = vmatpush1.msra.mxu0 0.0
    %3936 = vmatprep.subr.mxu0 0.0
    %3937 = vmatpush1.msra.mxu0 0.0
    %3938 = vmatprep.subr.mxu0 0.0
    %3939 = vmatpush1.msra.mxu0 0.0
    %3940 = vmatprep.subr.mxu0 0.0
    %3941 = vmatpush1.msra.mxu0 0.0
    %3942 = vmatprep.subr.mxu0 0.0
    %3943 = vmatpush1.msra.mxu0 0.0
    %3944 = vmatprep.subr.mxu0 0.0
    %3945 = vmatpush1.msra.mxu0 0.0
    %3946 = vmatprep.subr.mxu0 0.0
    %3947 = vmatpush1.msra.mxu0 0.0
    %3948 = vmatprep.subr.mxu0 0.0
    %3949 = vmatpush1.msra.mxu0 0.0
    %3950 = vmatprep.subr.mxu0 0.0
    %3951 = vmatpush1.msra.mxu0 0.0
    %3952 = vmatprep.subr.mxu0 0.0
    %3953 = vmatpush1.msra.mxu0 0.0
    %3954 = vmatprep.subr.mxu0 0.0
    %3955 = vmatpush1.msra.mxu0 0.0
    %3956 = vmatprep.subr.mxu0 0.0
    %3957 = vmatpush1.msra.mxu0 0.0
    %3958 = vmatprep.subr.mxu0 0.0
    %3959 = vmatpush1.msra.mxu0 0.0
    %3960 = vmatprep.subr.mxu0 0.0
    %3961 = vmatpush1.msra.mxu0 0.0
    %3962 = vmatprep.subr.mxu0 0.0
    %3963 = vmatpush1.msra.mxu0 0.0
    %3964 = vmatprep.subr.mxu0 0.0
    %3965 = vmatpush1.msra.mxu0 0.0
    %3966 = vmatprep.subr.mxu0 0.0
    %3967 = vmatpush1.msra.mxu0 0.0
    %3968 = vmatprep.subr.mxu0 0.0
    %3969 = vmatpush1.msra.mxu0 0.0
    %3970 = vmatprep.mubr.f32.mxu0 0.0
    %3971 = vmatmul.mubr.f32.gmra.mrb[0].mxu0 %v1912
    %v3972 = vpop.f32.mrb[0].mxu0
    %v3973 = vadd.f32 0.0, %v3972
    %v3974 = vpop.f32.mrb[0].mxu0
    %3975 = vmatprep.mubr.f32.mxu0 0.0
    %3976 = vmatmul.mubr.f32.gmra.mrb[0].mxu0 %v1915
    %v3977 = vpop.f32.mrb[0].mxu0
    %v3978 = vadd.f32 0.0, %v3977
    %v3979 = vpop.f32.mrb[0].mxu0
    %3980 = vdwg.mxu0
    %3981 = vmatprep.subr.mxu0 0.0
    %3982 = vmatpush1.msra.mxu0 %v3043
    %3983 = vmatprep.subr.mxu0 0.0
    %3984 = vmatpush1.msra.mxu0 %v3048
    %3985 = vmatprep.subr.mxu0 0.0
    %3986 = vmatpush1.msra.mxu0 0.0
    %3987 = vmatprep.subr.mxu0 0.0
    %3988 = vmatpush1.msra.mxu0 0.0
    %3989 = vmatprep.subr.mxu0 0.0
    %3990 = vmatpush1.msra.mxu0 0.0
    %3991 = vmatprep.subr.mxu0 0.0
    %3992 = vmatpush1.msra.mxu0 0.0
    %3993 = vmatprep.subr.mxu0 0.0
    %3994 = vmatpush1.msra.mxu0 0.0
    %3995 = vmatprep.subr.mxu0 0.0
    %3996 = vmatpush1.msra.mxu0 0.0
    %3997 = vmatprep.subr.mxu0 0.0
    %3998 = vmatpush1.msra.mxu0 0.0
    %3999 = vmatprep.subr.mxu0 0.0
    %4000 = vmatpush1.msra.mxu0 0.0
    %4001 = vmatprep.subr.mxu0 0.0
    %4002 = vmatpush1.msra.mxu0 0.0
    %4003 = vmatprep.subr.mxu0 0.0
    %4004 = vmatpush1.msra.mxu0 0.0
    %4005 = vmatprep.subr.mxu0 0.0
    %4006 = vmatpush1.msra.mxu0 0.0
    %4007 = vmatprep.subr.mxu0 0.0
    %4008 = vmatpush1.msra.mxu0 0.0
    %4009 = vmatprep.subr.mxu0 0.0
    %4010 = vmatpush1.msra.mxu0 0.0
    %4011 = vmatprep.subr.mxu0 0.0
    %4012 = vmatpush1.msra.mxu0 0.0
    %4013 = vmatprep.subr.mxu0 0.0
    %4014 = vmatpush1.msra.mxu0 0.0
    %4015 = vmatprep.subr.mxu0 0.0
    %4016 = vmatpush1.msra.mxu0 0.0
    %4017 = vmatprep.subr.mxu0 0.0
    %4018 = vmatpush1.msra.mxu0 0.0
    %4019 = vmatprep.subr.mxu0 0.0
    %4020 = vmatpush1.msra.mxu0 0.0
    %4021 = vmatprep.subr.mxu0 0.0
    %4022 = vmatpush1.msra.mxu0 0.0
    %4023 = vmatprep.subr.mxu0 0.0
    %4024 = vmatpush1.msra.mxu0 0.0
    %4025 = vmatprep.subr.mxu0 0.0
    %4026 = vmatpush1.msra.mxu0 0.0
    %4027 = vmatprep.subr.mxu0 0.0
    %4028 = vmatpush1.msra.mxu0 0.0
    %4029 = vmatprep.subr.mxu0 0.0
    %4030 = vmatpush1.msra.mxu0 0.0
    %4031 = vmatprep.subr.mxu0 0.0
    %4032 = vmatpush1.msra.mxu0 0.0
    %4033 = vmatprep.subr.mxu0 0.0
    %4034 = vmatpush1.msra.mxu0 0.0
    %4035 = vmatprep.subr.mxu0 0.0
    %4036 = vmatpush1.msra.mxu0 0.0
    %4037 = vmatprep.subr.mxu0 0.0
    %4038 = vmatpush1.msra.mxu0 0.0
    %4039 = vmatprep.subr.mxu0 0.0
    %4040 = vmatpush1.msra.mxu0 0.0
    %4041 = vmatprep.subr.mxu0 0.0
    %4042 = vmatpush1.msra.mxu0 0.0
    %4043 = vmatprep.subr.mxu0 0.0
    %4044 = vmatpush1.msra.mxu0 0.0
    %4045 = vmatprep.mubr.f32.mxu0 0.0
    %4046 = vmatmul.mubr.f32.gmra.mrb[0].mxu0 %v1993
    %v4047 = vpop.f32.mrb[0].mxu0
    %v4048 = vadd.f32 0.0, %v4047
    %v4049 = vpop.f32.mrb[0].mxu0
    %4050 = vmatprep.mubr.f32.mxu0 0.0
    %4051 = vmatmul.mubr.f32.gmra.mrb[0].mxu0 %v1996
    %v4052 = vpop.f32.mrb[0].mxu0
    %v4053 = vadd.f32 0.0, %v4052
    %v4054 = vpop.f32.mrb[0].mxu0
    %4055 = vdwg.mxu0
    %4056 = vmatprep.subr.mxu0 0.0
    %4057 = vmatpush1.msra.mxu0 %v3053
    %4058 = vmatprep.subr.mxu0 0.0
    %4059 = vmatpush1.msra.mxu0 %v3058
    %4060 = vmatprep.subr.mxu0 0.0
    %4061 = vmatpush1.msra.mxu0 0.0
    %4062 = vmatprep.subr.mxu0 0.0
    %4063 = vmatpush1.msra.mxu0 0.0
    %4064 = vmatprep.subr.mxu0 0.0
    %4065 = vmatpush1.msra.mxu0 0.0
    %4066 = vmatprep.subr.mxu0 0.0
    %4067 = vmatpush1.msra.mxu0 0.0
    %4068 = vmatprep.subr.mxu0 0.0
    %4069 = vmatpush1.msra.mxu0 0.0
    %4070 = vmatprep.subr.mxu0 0.0
    %4071 = vmatpush1.msra.mxu0 0.0
    %4072 = vmatprep.subr.mxu0 0.0
    %4073 = vmatpush1.msra.mxu0 0.0
    %4074 = vmatprep.subr.mxu0 0.0
    %4075 = vmatpush1.msra.mxu0 0.0
    %4076 = vmatprep.subr.mxu0 0.0
    %4077 = vmatpush1.msra.mxu0 0.0
    %4078 = vmatprep.subr.mxu0 0.0
    %4079 = vmatpush1.msra.mxu0 0.0
    %4080 = vmatprep.subr.mxu0 0.0
    %4081 = vmatpush1.msra.mxu0 0.0
    %4082 = vmatprep.subr.mxu0 0.0
    %4083 = vmatpush1.msra.mxu0 0.0
    %4084 = vmatprep.subr.mxu0 0.0
    %4085 = vmatpush1.msra.mxu0 0.0
    %4086 = vmatprep.subr.mxu0 0.0
    %4087 = vmatpush1.msra.mxu0 0.0
    %4088 = vmatprep.subr.mxu0 0.0
    %4089 = vmatpush1.msra.mxu0 0.0
    %4090 = vmatprep.subr.mxu0 0.0
    %4091 = vmatpush1.msra.mxu0 0.0
    %4092 = vmatprep.subr.mxu0 0.0
    %4093 = vmatpush1.msra.mxu0 0.0
    %4094 = vmatprep.subr.mxu0 0.0
    %4095 = vmatpush1.msra.mxu0 0.0
    %4096 = vmatprep.subr.mxu0 0.0
    %4097 = vmatpush1.msra.mxu0 0.0
    %4098 = vmatprep.subr.mxu0 0.0
    %4099 = vmatpush1.msra.mxu0 0.0
    %4100 = vmatprep.subr.mxu0 0.0
    %4101 = vmatpush1.msra.mxu0 0.0
    %4102 = vmatprep.subr.mxu0 0.0
    %4103 = vmatpush1.msra.mxu0 0.0
    %4104 = vmatprep.subr.mxu0 0.0
    %4105 = vmatpush1.msra.mxu0 0.0
    %4106 = vmatprep.subr.mxu0 0.0
    %4107 = vmatpush1.msra.mxu0 0.0
    %4108 = vmatprep.subr.mxu0 0.0
    %4109 = vmatpush1.msra.mxu0 0.0
    %4110 = vmatprep.subr.mxu0 0.0
    %4111 = vmatpush1.msra.mxu0 0.0
    %4112 = vmatprep.subr.mxu0 0.0
    %4113 = vmatpush1.msra.mxu0 0.0
    %4114 = vmatprep.subr.mxu0 0.0
    %4115 = vmatpush1.msra.mxu0 0.0
    %4116 = vmatprep.subr.mxu0 0.0
    %4117 = vmatpush1.msra.mxu0 0.0
    %4118 = vmatprep.subr.mxu0 0.0
    %4119 = vmatpush1.msra.mxu0 0.0
    %4120 = vmatprep.mubr.f32.mxu0 0.0
    %4121 = vmatmul.mubr.f32.gmra.mrb[0].mxu0 %v2074
    %v4122 = vpop.f32.mrb[0].mxu0
    %v4123 = vadd.f32 0.0, %v4122
    %v4124 = vpop.f32.mrb[0].mxu0
    %4125 = vmatprep.mubr.f32.mxu0 0.0
    %4126 = vmatmul.mubr.f32.gmra.mrb[0].mxu0 %v2077
    %v4127 = vpop.f32.mrb[0].mxu0
    %v4128 = vadd.f32 0.0, %v4127
    %v4129 = vpop.f32.mrb[0].mxu0
    %4130 = vdwg.mxu0
    %4131 = vmatprep.subr.mxu0 0.0
    %4132 = vmatpush1.msra.mxu0 %v3063
    %4133 = vmatprep.subr.mxu0 0.0
    %4134 = vmatpush1.msra.mxu0 %v3068
    %4135 = vmatprep.subr.mxu0 0.0
    %4136 = vmatpush1.msra.mxu0 0.0
    %4137 = vmatprep.subr.mxu0 0.0
    %4138 = vmatpush1.msra.mxu0 0.0
    %4139 = vmatprep.subr.mxu0 0.0
    %4140 = vmatpush1.msra.mxu0 0.0
    %4141 = vmatprep.subr.mxu0 0.0
    %4142 = vmatpush1.msra.mxu0 0.0
    %4143 = vmatprep.subr.mxu0 0.0
    %4144 = vmatpush1.msra.mxu0 0.0
    %4145 = vmatprep.subr.mxu0 0.0
    %4146 = vmatpush1.msra.mxu0 0.0
    %4147 = vmatprep.subr.mxu0 0.0
    %4148 = vmatpush1.msra.mxu0 0.0
    %4149 = vmatprep.subr.mxu0 0.0
    %4150 = vmatpush1.msra.mxu0 0.0
    %4151 = vmatprep.subr.mxu0 0.0
    %4152 = vmatpush1.msra.mxu0 0.0
    %4153 = vmatprep.subr.mxu0 0.0
    %4154 = vmatpush1.msra.mxu0 0.0
    %4155 = vmatprep.subr.mxu0 0.0
    %4156 = vmatpush1.msra.mxu0 0.0
    %4157 = vmatprep.subr.mxu0 0.0
    %4158 = vmatpush1.msra.mxu0 0.0
    %4159 = vmatprep.subr.mxu0 0.0
    %4160 = vmatpush1.msra.mxu0 0.0
    %4161 = vmatprep.subr.mxu0 0.0
    %4162 = vmatpush1.msra.mxu0 0.0
    %4163 = vmatprep.subr.mxu0 0.0
    %4164 = vmatpush1.msra.mxu0 0.0
    %4165 = vmatprep.subr.mxu0 0.0
    %4166 = vmatpush1.msra.mxu0 0.0
    %4167 = vmatprep.subr.mxu0 0.0
    %4168 = vmatpush1.msra.mxu0 0.0
    %4169 = vmatprep.subr.mxu0 0.0
    %4170 = vmatpush1.msra.mxu0 0.0
    %4171 = vmatprep.subr.mxu0 0.0
    %4172 = vmatpush1.msra.mxu0 0.0
    %4173 = vmatprep.subr.mxu0 0.0
    %4174 = vmatpush1.msra.mxu0 0.0
    %4175 = vmatprep.subr.mxu0 0.0
    %4176 = vmatpush1.msra.mxu0 0.0
    %4177 = vmatprep.subr.mxu0 0.0
    %4178 = vmatpush1.msra.mxu0 0.0
    %4179 = vmatprep.subr.mxu0 0.0
    %4180 = vmatpush1.msra.mxu0 0.0
    %4181 = vmatprep.subr.mxu0 0.0
    %4182 = vmatpush1.msra.mxu0 0.0
    %4183 = vmatprep.subr.mxu0 0.0
    %4184 = vmatpush1.msra.mxu0 0.0
    %4185 = vmatprep.subr.mxu0 0.0
    %4186 = vmatpush1.msra.mxu0 0.0
    %4187 = vmatprep.subr.mxu0 0.0
    %4188 = vmatpush1.msra.mxu0 0.0
    %4189 = vmatprep.subr.mxu0 0.0
    %4190 = vmatpush1.msra.mxu0 0.0
    %4191 = vmatprep.subr.mxu0 0.0
    %4192 = vmatpush1.msra.mxu0 0.0
    %4193 = vmatprep.subr.mxu0 0.0
    %4194 = vmatpush1.msra.mxu0 0.0
    %4195 = vmatprep.mubr.f32.mxu0 0.0
    %4196 = vmatmul.mubr.f32.gmra.mrb[0].mxu0 %v2155
    %v4197 = vpop.f32.mrb[0].mxu0
    %v4198 = vadd.f32 0.0, %v4197
    %v4199 = vpop.f32.mrb[0].mxu0
    %4200 = vmatprep.mubr.f32.mxu0 0.0
    %4201 = vmatmul.mubr.f32.gmra.mrb[0].mxu0 %v2158
    %v4202 = vpop.f32.mrb[0].mxu0
    %v4203 = vadd.f32 0.0, %v4202
    %v4204 = vpop.f32.mrb[0].mxu0
    %4205 = vdwg.mxu0
    %4206 = vmatprep.subr.mxu0 0.0
    %4207 = vmatpush1.msra.mxu0 %v3073
    %4208 = vmatprep.subr.mxu0 0.0
    %4209 = vmatpush1.msra.mxu0 %v3078
    %4210 = vmatprep.subr.mxu0 0.0
    %4211 = vmatpush1.msra.mxu0 0.0
    %4212 = vmatprep.subr.mxu0 0.0
    %4213 = vmatpush1.msra.mxu0 0.0
    %4214 = vmatprep.subr.mxu0 0.0
    %4215 = vmatpush1.msra.mxu0 0.0
    %4216 = vmatprep.subr.mxu0 0.0
    %4217 = vmatpush1.msra.mxu0 0.0
    %4218 = vmatprep.subr.mxu0 0.0
    %4219 = vmatpush1.msra.mxu0 0.0
    %4220 = vmatprep.subr.mxu0 0.0
    %4221 = vmatpush1.msra.mxu0 0.0
    %4222 = vmatprep.subr.mxu0 0.0
    %4223 = vmatpush1.msra.mxu0 0.0
    %4224 = vmatprep.subr.mxu0 0.0
    %4225 = vmatpush1.msra.mxu0 0.0
    %4226 = vmatprep.subr.mxu0 0.0
    %4227 = vmatpush1.msra.mxu0 0.0
    %4228 = vmatprep.subr.mxu0 0.0
    %4229 = vmatpush1.msra.mxu0 0.0
    %4230 = vmatprep.subr.mxu0 0.0
    %4231 = vmatpush1.msra.mxu0 0.0
    %4232 = vmatprep.subr.mxu0 0.0
    %4233 = vmatpush1.msra.mxu0 0.0
    %4234 = vmatprep.subr.mxu0 0.0
    %4235 = vmatpush1.msra.mxu0 0.0
    %4236 = vmatprep.subr.mxu0 0.0
    %4237 = vmatpush1.msra.mxu0 0.0
    %4238 = vmatprep.subr.mxu0 0.0
    %4239 = vmatpush1.msra.mxu0 0.0
    %4240 = vmatprep.subr.mxu0 0.0
    %4241 = vmatpush1.msra.mxu0 0.0
    %4242 = vmatprep.subr.mxu0 0.0
    %4243 = vmatpush1.msra.mxu0 0.0
    %4244 = vmatprep.subr.mxu0 0.0
    %4245 = vmatpush1.msra.mxu0 0.0
    %4246 = vmatprep.subr.mxu0 0.0
    %4247 = vmatpush1.msra.mxu0 0.0
    %4248 = vmatprep.subr.mxu0 0.0
    %4249 = vmatpush1.msra.mxu0 0.0
    %4250 = vmatprep.subr.mxu0 0.0
    %4251 = vmatpush1.msra.mxu0 0.0
    %4252 = vmatprep.subr.mxu0 0.0
    %4253 = vmatpush1.msra.mxu0 0.0
    %4254 = vmatprep.subr.mxu0 0.0
    %4255 = vmatpush1.msra.mxu0 0.0
    %4256 = vmatprep.subr.mxu0 0.0
    %4257 = vmatpush1.msra.mxu0 0.0
    %4258 = vmatprep.subr.mxu0 0.0
    %4259 = vmatpush1.msra.mxu0 0.0
    %4260 = vmatprep.subr.mxu0 0.0
    %4261 = vmatpush1.msra.mxu0 0.0
    %4262 = vmatprep.subr.mxu0 0.0
    %4263 = vmatpush1.msra.mxu0 0.0
    %4264 = vmatprep.subr.mxu0 0.0
    %4265 = vmatpush1.msra.mxu0 0.0
    %4266 = vmatprep.subr.mxu0 0.0
    %4267 = vmatpush1.msra.mxu0 0.0
    %4268 = vmatprep.subr.mxu0 0.0
    %4269 = vmatpush1.msra.mxu0 0.0
    %4270 = vmatprep.mubr.f32.mxu0 0.0
    %4271 = vmatmul.mubr.f32.gmra.mrb[0].mxu0 %v2236
    %v4272 = vpop.f32.mrb[0].mxu0
    %v4273 = vadd.f32 0.0, %v4272
    %v4274 = vpop.f32.mrb[0].mxu0
    %4275 = vmatprep.mubr.f32.mxu0 0.0
    %4276 = vmatmul.mubr.f32.gmra.mrb[0].mxu0 %v2239
    %v4277 = vpop.f32.mrb[0].mxu0
    %v4278 = vadd.f32 0.0, %v4277
    %v4279 = vpop.f32.mrb[0].mxu0
    %4280 = vdwg.mxu0
    %v4281 = vlaneseq
    %v4282 = vshrl.u32 %v4281, 7
    %v4283 = vsub.s32 1, %v4282
    %v4284 = vrot.slane %v151, %v4283
    %v4285 = vadd.f32 %v3148, %v4284
    %v4286 = vadd.f32 %v3153, %v4284
    %v4287 = vadd.f32 %v3223, %v4284
    %v4288 = vadd.f32 %v3228, %v4284
    %v4289 = vadd.f32 %v3298, %v4284
    %v4290 = vadd.f32 %v3303, %v4284
    %v4291 = vadd.f32 %v3373, %v4284
    %v4292 = vadd.f32 %v3378, %v4284
    %v4293 = vadd.f32 %v3448, %v4284
    %v4294 = vadd.f32 %v3453, %v4284
    %v4295 = vadd.f32 %v3523, %v4284
    %v4296 = vadd.f32 %v3528, %v4284
    %v4297 = vadd.f32 %v3598, %v4284
    %v4298 = vadd.f32 %v3603, %v4284
    %v4299 = vadd.f32 %v3673, %v4284
    %v4300 = vadd.f32 %v3678, %v4284
    %v4301 = vadd.f32 %v3748, %v4284
    %v4302 = vadd.f32 %v3753, %v4284
    %v4303 = vadd.f32 %v3823, %v4284
    %v4304 = vadd.f32 %v3828, %v4284
    %v4305 = vadd.f32 %v3898, %v4284
    %v4306 = vadd.f32 %v3903, %v4284
    %v4307 = vadd.f32 %v3973, %v4284
    %v4308 = vadd.f32 %v3978, %v4284
    %v4309 = vadd.f32 %v4048, %v4284
    %v4310 = vadd.f32 %v4053, %v4284
    %v4311 = vadd.f32 %v4123, %v4284
    %v4312 = vadd.f32 %v4128, %v4284
    %v4313 = vadd.f32 %v4198, %v4284
    %v4314 = vadd.f32 %v4203, %v4284
    %v4315 = vadd.f32 %v4273, %v4284
    %v4316 = vadd.f32 %v4278, %v4284
    %4317 = vadd.xlane.f32.xlu0 %v4285
    %v4318 = vpop.xlane.xlu0 %4317
    %4319 = vadd.xlane.f32.xlu0 %v4286
    %v4320 = vpop.xlane.xlu0 %4319
    %4321 = vadd.xlane.f32.xlu0 %v4287
    %v4322 = vpop.xlane.xlu0 %4321
    %4323 = vadd.xlane.f32.xlu0 %v4288
    %v4324 = vpop.xlane.xlu0 %4323
    %4325 = vadd.xlane.f32.xlu0 %v4289
    %v4326 = vpop.xlane.xlu0 %4325
    %4327 = vadd.xlane.f32.xlu0 %v4290
    %v4328 = vpop.xlane.xlu0 %4327
    %4329 = vadd.xlane.f32.xlu0 %v4291
    %v4330 = vpop.xlane.xlu0 %4329
    %4331 = vadd.xlane.f32.xlu0 %v4292
    %v4332 = vpop.xlane.xlu0 %4331
    %4333 = vadd.xlane.f32.xlu0 %v4293
    %v4334 = vpop.xlane.xlu0 %4333
    %4335 = vadd.xlane.f32.xlu0 %v4294
    %v4336 = vpop.xlane.xlu0 %4335
    %4337 = vadd.xlane.f32.xlu0 %v4295
    %v4338 = vpop.xlane.xlu0 %4337
    %4339 = vadd.xlane.f32.xlu0 %v4296
    %v4340 = vpop.xlane.xlu0 %4339
    %4341 = vadd.xlane.f32.xlu0 %v4297
    %v4342 = vpop.xlane.xlu0 %4341
    %4343 = vadd.xlane.f32.xlu0 %v4298
    %v4344 = vpop.xlane.xlu0 %4343
    %4345 = vadd.xlane.f32.xlu0 %v4299
    %v4346 = vpop.xlane.xlu0 %4345
    %4347 = vadd.xlane.f32.xlu0 %v4300
    %v4348 = vpop.xlane.xlu0 %4347
    %4349 = vadd.xlane.f32.xlu0 %v4301
    %v4350 = vpop.xlane.xlu0 %4349
    %4351 = vadd.xlane.f32.xlu0 %v4302
    %v4352 = vpop.xlane.xlu0 %4351
    %4353 = vadd.xlane.f32.xlu0 %v4303
    %v4354 = vpop.xlane.xlu0 %4353
    %4355 = vadd.xlane.f32.xlu0 %v4304
    %v4356 = vpop.xlane.xlu0 %4355
    %4357 = vadd.xlane.f32.xlu0 %v4305
    %v4358 = vpop.xlane.xlu0 %4357
    %4359 = vadd.xlane.f32.xlu0 %v4306
    %v4360 = vpop.xlane.xlu0 %4359
    %4361 = vadd.xlane.f32.xlu0 %v4307
    %v4362 = vpop.xlane.xlu0 %4361
    %4363 = vadd.xlane.f32.xlu0 %v4308
    %v4364 = vpop.xlane.xlu0 %4363
    %4365 = vadd.xlane.f32.xlu0 %v4309
    %v4366 = vpop.xlane.xlu0 %4365
    %4367 = vadd.xlane.f32.xlu0 %v4310
    %v4368 = vpop.xlane.xlu0 %4367
    %4369 = vadd.xlane.f32.xlu0 %v4311
    %v4370 = vpop.xlane.xlu0 %4369
    %4371 = vadd.xlane.f32.xlu0 %v4312
    %v4372 = vpop.xlane.xlu0 %4371
    %4373 = vadd.xlane.f32.xlu0 %v4313
    %v4374 = vpop.xlane.xlu0 %4373
    %4375 = vadd.xlane.f32.xlu0 %v4314
    %v4376 = vpop.xlane.xlu0 %4375
    %4377 = vadd.xlane.f32.xlu0 %v4315
    %v4378 = vpop.xlane.xlu0 %4377
    %4379 = vadd.xlane.f32.xlu0 %v4316
    %v4380 = vpop.xlane.xlu0 %4379
    %v4381 = vmul.f32 %v4318, 0.03125
    %v4382 = vmul.f32 %v4320, 0.03125
    %v4383 = vmul.f32 %v4322, 0.03125
    %v4384 = vmul.f32 %v4324, 0.03125
    %v4385 = vmul.f32 %v4326, 0.03125
    %v4386 = vmul.f32 %v4328, 0.03125
    %v4387 = vmul.f32 %v4330, 0.03125
    %v4388 = vmul.f32 %v4332, 0.03125
    %v4389 = vmul.f32 %v4334, 0.03125
    %v4390 = vmul.f32 %v4336, 0.03125
    %v4391 = vmul.f32 %v4338, 0.03125
    %v4392 = vmul.f32 %v4340, 0.03125
    %v4393 = vmul.f32 %v4342, 0.03125
    %v4394 = vmul.f32 %v4344, 0.03125
    %v4395 = vmul.f32 %v4346, 0.03125
    %v4396 = vmul.f32 %v4348, 0.03125
    %v4397 = vmul.f32 %v4350, 0.03125
    %v4398 = vmul.f32 %v4352, 0.03125
    %v4399 = vmul.f32 %v4354, 0.03125
    %v4400 = vmul.f32 %v4356, 0.03125
    %v4401 = vmul.f32 %v4358, 0.03125
    %v4402 = vmul.f32 %v4360, 0.03125
    %v4403 = vmul.f32 %v4362, 0.03125
    %v4404 = vmul.f32 %v4364, 0.03125
    %v4405 = vmul.f32 %v4366, 0.03125
    %v4406 = vmul.f32 %v4368, 0.03125
    %v4407 = vmul.f32 %v4370, 0.03125
    %v4408 = vmul.f32 %v4372, 0.03125
    %v4409 = vmul.f32 %v4374, 0.03125
    %v4410 = vmul.f32 %v4376, 0.03125
    %v4411 = vmul.f32 %v4378, 0.03125
    %v4412 = vmul.f32 %v4380, 0.03125
    %v4413 = vsub.f32 %v4285, %v4381
    %v4414 = vsub.f32 %v4286, %v4382
    %v4415 = vsub.f32 %v4287, %v4383
    %v4416 = vsub.f32 %v4288, %v4384
    %v4417 = vsub.f32 %v4289, %v4385
    %v4418 = vsub.f32 %v4290, %v4386
    %v4419 = vsub.f32 %v4291, %v4387
    %v4420 = vsub.f32 %v4292, %v4388
    %v4421 = vsub.f32 %v4293, %v4389
    %v4422 = vsub.f32 %v4294, %v4390
    %v4423 = vsub.f32 %v4295, %v4391
    %v4424 = vsub.f32 %v4296, %v4392
    %v4425 = vsub.f32 %v4297, %v4393
    %v4426 = vsub.f32 %v4298, %v4394
    %v4427 = vsub.f32 %v4299, %v4395
    %v4428 = vsub.f32 %v4300, %v4396
    %v4429 = vsub.f32 %v4301, %v4397
    %v4430 = vsub.f32 %v4302, %v4398
    %v4431 = vsub.f32 %v4303, %v4399
    %v4432 = vsub.f32 %v4304, %v4400
    %v4433 = vsub.f32 %v4305, %v4401
    %v4434 = vsub.f32 %v4306, %v4402
    %v4435 = vsub.f32 %v4307, %v4403
    %v4436 = vsub.f32 %v4308, %v4404
    %v4437 = vsub.f32 %v4309, %v4405
    %v4438 = vsub.f32 %v4310, %v4406
    %v4439 = vsub.f32 %v4311, %v4407
    %v4440 = vsub.f32 %v4312, %v4408
    %v4441 = vsub.f32 %v4313, %v4409
    %v4442 = vsub.f32 %v4314, %v4410
    %v4443 = vsub.f32 %v4315, %v4411
    %v4444 = vsub.f32 %v4316, %v4412
    %v4445 = vmul.f32 %v4413, %v157
    %v4446 = vmul.f32 %v4414, %v157
    %v4447 = vmul.f32 %v4415, %v157
    %v4448 = vmul.f32 %v4416, %v157
    %v4449 = vmul.f32 %v4417, %v157
    %v4450 = vmul.f32 %v4418, %v157
    %v4451 = vmul.f32 %v4419, %v157
    %v4452 = vmul.f32 %v4420, %v157
    %v4453 = vmul.f32 %v4421, %v157
    %v4454 = vmul.f32 %v4422, %v157
    %v4455 = vmul.f32 %v4423, %v157
    %v4456 = vmul.f32 %v4424, %v157
    %v4457 = vmul.f32 %v4425, %v157
    %v4458 = vmul.f32 %v4426, %v157
    %v4459 = vmul.f32 %v4427, %v157
    %v4460 = vmul.f32 %v4428, %v157
    %v4461 = vmul.f32 %v4429, %v157
    %v4462 = vmul.f32 %v4430, %v157
    %v4463 = vmul.f32 %v4431, %v157
    %v4464 = vmul.f32 %v4432, %v157
    %v4465 = vmul.f32 %v4433, %v157
    %v4466 = vmul.f32 %v4434, %v157
    %v4467 = vmul.f32 %v4435, %v157
    %v4468 = vmul.f32 %v4436, %v157
    %v4469 = vmul.f32 %v4437, %v157
    %v4470 = vmul.f32 %v4438, %v157
    %v4471 = vmul.f32 %v4439, %v157
    %v4472 = vmul.f32 %v4440, %v157
    %v4473 = vmul.f32 %v4441, %v157
    %v4474 = vmul.f32 %v4442, %v157
    %v4475 = vmul.f32 %v4443, %v157
    %v4476 = vmul.f32 %v4444, %v157
    %v4477 = vmul.f32 %v4445, %v4445
    %v4478 = vmul.f32 %v4446, %v4446
    %v4479 = vmul.f32 %v4447, %v4447
    %v4480 = vmul.f32 %v4448, %v4448
    %v4481 = vmul.f32 %v4449, %v4449
    %v4482 = vmul.f32 %v4450, %v4450
    %v4483 = vmul.f32 %v4451, %v4451
    %v4484 = vmul.f32 %v4452, %v4452
    %v4485 = vmul.f32 %v4453, %v4453
    %v4486 = vmul.f32 %v4454, %v4454
    %v4487 = vmul.f32 %v4455, %v4455
    %v4488 = vmul.f32 %v4456, %v4456
    %v4489 = vmul.f32 %v4457, %v4457
    %v4490 = vmul.f32 %v4458, %v4458
    %v4491 = vmul.f32 %v4459, %v4459
    %v4492 = vmul.f32 %v4460, %v4460
    %v4493 = vmul.f32 %v4461, %v4461
    %v4494 = vmul.f32 %v4462, %v4462
    %v4495 = vmul.f32 %v4463, %v4463
    %v4496 = vmul.f32 %v4464, %v4464
    %v4497 = vmul.f32 %v4465, %v4465
    %v4498 = vmul.f32 %v4466, %v4466
    %v4499 = vmul.f32 %v4467, %v4467
    %v4500 = vmul.f32 %v4468, %v4468
    %v4501 = vmul.f32 %v4469, %v4469
    %v4502 = vmul.f32 %v4470, %v4470
    %v4503 = vmul.f32 %v4471, %v4471
    %v4504 = vmul.f32 %v4472, %v4472
    %v4505 = vmul.f32 %v4473, %v4473
    %v4506 = vmul.f32 %v4474, %v4474
    %v4507 = vmul.f32 %v4475, %v4475
    %v4508 = vmul.f32 %v4476, %v4476
    %4509 = vadd.xlane.f32.xlu0 %v4477
    %v4510 = vpop.xlane.xlu0 %4509
    %4511 = vadd.xlane.f32.xlu0 %v4478
    %v4512 = vpop.xlane.xlu0 %4511
    %4513 = vadd.xlane.f32.xlu0 %v4479
    %v4514 = vpop.xlane.xlu0 %4513
    %4515 = vadd.xlane.f32.xlu0 %v4480
    %v4516 = vpop.xlane.xlu0 %4515
    %4517 = vadd.xlane.f32.xlu0 %v4481
    %v4518 = vpop.xlane.xlu0 %4517
    %4519 = vadd.xlane.f32.xlu0 %v4482
    %v4520 = vpop.xlane.xlu0 %4519
    %4521 = vadd.xlane.f32.xlu0 %v4483
    %v4522 = vpop.xlane.xlu0 %4521
    %4523 = vadd.xlane.f32.xlu0 %v4484
    %v4524 = vpop.xlane.xlu0 %4523
    %4525 = vadd.xlane.f32.xlu0 %v4485
    %v4526 = vpop.xlane.xlu0 %4525
    %4527 = vadd.xlane.f32.xlu0 %v4486
    %v4528 = vpop.xlane.xlu0 %4527
    %4529 = vadd.xlane.f32.xlu0 %v4487
    %v4530 = vpop.xlane.xlu0 %4529
    %4531 = vadd.xlane.f32.xlu0 %v4488
    %v4532 = vpop.xlane.xlu0 %4531
    %4533 = vadd.xlane.f32.xlu0 %v4489
    %v4534 = vpop.xlane.xlu0 %4533
    %4535 = vadd.xlane.f32.xlu0 %v4490
    %v4536 = vpop.xlane.xlu0 %4535
    %4537 = vadd.xlane.f32.xlu0 %v4491
    %v4538 = vpop.xlane.xlu0 %4537
    %4539 = vadd.xlane.f32.xlu0 %v4492
    %v4540 = vpop.xlane.xlu0 %4539
    %4541 = vadd.xlane.f32.xlu0 %v4493
    %v4542 = vpop.xlane.xlu0 %4541
    %4543 = vadd.xlane.f32.xlu0 %v4494
    %v4544 = vpop.xlane.xlu0 %4543
    %4545 = vadd.xlane.f32.xlu0 %v4495
    %v4546 = vpop.xlane.xlu0 %4545
    %4547 = vadd.xlane.f32.xlu0 %v4496
    %v4548 = vpop.xlane.xlu0 %4547
    %4549 = vadd.xlane.f32.xlu0 %v4497
    %v4550 = vpop.xlane.xlu0 %4549
    %4551 = vadd.xlane.f32.xlu0 %v4498
    %v4552 = vpop.xlane.xlu0 %4551
    %4553 = vadd.xlane.f32.xlu0 %v4499
    %v4554 = vpop.xlane.xlu0 %4553
    %4555 = vadd.xlane.f32.xlu0 %v4500
    %v4556 = vpop.xlane.xlu0 %4555
    %4557 = vadd.xlane.f32.xlu0 %v4501
    %v4558 = vpop.xlane.xlu0 %4557
    %4559 = vadd.xlane.f32.xlu0 %v4502
    %v4560 = vpop.xlane.xlu0 %4559
    %4561 = vadd.xlane.f32.xlu0 %v4503
    %v4562 = vpop.xlane.xlu0 %4561
    %4563 = vadd.xlane.f32.xlu0 %v4504
    %v4564 = vpop.xlane.xlu0 %4563
    %4565 = vadd.xlane.f32.xlu0 %v4505
    %v4566 = vpop.xlane.xlu0 %4565
    %4567 = vadd.xlane.f32.xlu0 %v4506
    %v4568 = vpop.xlane.xlu0 %4567
    %4569 = vadd.xlane.f32.xlu0 %v4507
    %v4570 = vpop.xlane.xlu0 %4569
    %4571 = vadd.xlane.f32.xlu0 %v4508
    %v4572 = vpop.xlane.xlu0 %4571
    %v4573 = vmul.f32 %v4510, 0.03125
    %v4574 = vmul.f32 %v4512, 0.03125
    %v4575 = vmul.f32 %v4514, 0.03125
    %v4576 = vmul.f32 %v4516, 0.03125
    %v4577 = vmul.f32 %v4518, 0.03125
    %v4578 = vmul.f32 %v4520, 0.03125
    %v4579 = vmul.f32 %v4522, 0.03125
    %v4580 = vmul.f32 %v4524, 0.03125
    %v4581 = vmul.f32 %v4526, 0.03125
    %v4582 = vmul.f32 %v4528, 0.03125
    %v4583 = vmul.f32 %v4530, 0.03125
    %v4584 = vmul.f32 %v4532, 0.03125
    %v4585 = vmul.f32 %v4534, 0.03125
    %v4586 = vmul.f32 %v4536, 0.03125
    %v4587 = vmul.f32 %v4538, 0.03125
    %v4588 = vmul.f32 %v4540, 0.03125
    %v4589 = vmul.f32 %v4542, 0.03125
    %v4590 = vmul.f32 %v4544, 0.03125
    %v4591 = vmul.f32 %v4546, 0.03125
    %v4592 = vmul.f32 %v4548, 0.03125
    %v4593 = vmul.f32 %v4550, 0.03125
    %v4594 = vmul.f32 %v4552, 0.03125
    %v4595 = vmul.f32 %v4554, 0.03125
    %v4596 = vmul.f32 %v4556, 0.03125
    %v4597 = vmul.f32 %v4558, 0.03125
    %v4598 = vmul.f32 %v4560, 0.03125
    %v4599 = vmul.f32 %v4562, 0.03125
    %v4600 = vmul.f32 %v4564, 0.03125
    %v4601 = vmul.f32 %v4566, 0.03125
    %v4602 = vmul.f32 %v4568, 0.03125
    %v4603 = vmul.f32 %v4570, 0.03125
    %v4604 = vmul.f32 %v4572, 0.03125
    %v4605 = vadd.f32 %v4573, 1e-05
    %v4606 = vadd.f32 %v4574, 1e-05
    %v4607 = vadd.f32 %v4575, 1e-05
    %v4608 = vadd.f32 %v4576, 1e-05
    %v4609 = vadd.f32 %v4577, 1e-05
    %v4610 = vadd.f32 %v4578, 1e-05
    %v4611 = vadd.f32 %v4579, 1e-05
    %v4612 = vadd.f32 %v4580, 1e-05
    %v4613 = vadd.f32 %v4581, 1e-05
    %v4614 = vadd.f32 %v4582, 1e-05
    %v4615 = vadd.f32 %v4583, 1e-05
    %v4616 = vadd.f32 %v4584, 1e-05
    %v4617 = vadd.f32 %v4585, 1e-05
    %v4618 = vadd.f32 %v4586, 1e-05
    %v4619 = vadd.f32 %v4587, 1e-05
    %v4620 = vadd.f32 %v4588, 1e-05
    %v4621 = vadd.f32 %v4589, 1e-05
    %v4622 = vadd.f32 %v4590, 1e-05
    %v4623 = vadd.f32 %v4591, 1e-05
    %v4624 = vadd.f32 %v4592, 1e-05
    %v4625 = vadd.f32 %v4593, 1e-05
    %v4626 = vadd.f32 %v4594, 1e-05
    %v4627 = vadd.f32 %v4595, 1e-05
    %v4628 = vadd.f32 %v4596, 1e-05
    %v4629 = vadd.f32 %v4597, 1e-05
    %v4630 = vadd.f32 %v4598, 1e-05
    %v4631 = vadd.f32 %v4599, 1e-05
    %v4632 = vadd.f32 %v4600, 1e-05
    %v4633 = vadd.f32 %v4601, 1e-05
    %v4634 = vadd.f32 %v4602, 1e-05
    %v4635 = vadd.f32 %v4603, 1e-05
    %v4636 = vadd.f32 %v4604, 1e-05
    %v4637 = vrsqrt.pop %v4605
    %v4638 = vrsqrt.pop %v4606
    %v4639 = vrsqrt.pop %v4607
    %v4640 = vrsqrt.pop %v4608
    %v4641 = vrsqrt.pop %v4609
    %v4642 = vrsqrt.pop %v4610
    %v4643 = vrsqrt.pop %v4611
    %v4644 = vrsqrt.pop %v4612
    %v4645 = vrsqrt.pop %v4613
    %v4646 = vrsqrt.pop %v4614
    %v4647 = vrsqrt.pop %v4615
    %v4648 = vrsqrt.pop %v4616
    %v4649 = vrsqrt.pop %v4617
    %v4650 = vrsqrt.pop %v4618
    %v4651 = vrsqrt.pop %v4619
    %v4652 = vrsqrt.pop %v4620
    %v4653 = vrsqrt.pop %v4621
    %v4654 = vrsqrt.pop %v4622
    %v4655 = vrsqrt.pop %v4623
    %v4656 = vrsqrt.pop %v4624
    %v4657 = vrsqrt.pop %v4625
    %v4658 = vrsqrt.pop %v4626
    %v4659 = vrsqrt.pop %v4627
    %v4660 = vrsqrt.pop %v4628
    %v4661 = vrsqrt.pop %v4629
    %v4662 = vrsqrt.pop %v4630
    %v4663 = vrsqrt.pop %v4631
    %v4664 = vrsqrt.pop %v4632
    %v4665 = vrsqrt.pop %v4633
    %v4666 = vrsqrt.pop %v4634
    %v4667 = vrsqrt.pop %v4635
    %v4668 = vrsqrt.pop %v4636
    %v4669 = vmul.f32 %v4445, %v4637
    %v4670 = vmul.f32 %v4446, %v4638
    %v4671 = vmul.f32 %v4447, %v4639
    %v4672 = vmul.f32 %v4448, %v4640
    %v4673 = vmul.f32 %v4449, %v4641
    %v4674 = vmul.f32 %v4450, %v4642
    %v4675 = vmul.f32 %v4451, %v4643
    %v4676 = vmul.f32 %v4452, %v4644
    %v4677 = vmul.f32 %v4453, %v4645
    %v4678 = vmul.f32 %v4454, %v4646
    %v4679 = vmul.f32 %v4455, %v4647
    %v4680 = vmul.f32 %v4456, %v4648
    %v4681 = vmul.f32 %v4457, %v4649
    %v4682 = vmul.f32 %v4458, %v4650
    %v4683 = vmul.f32 %v4459, %v4651
    %v4684 = vmul.f32 %v4460, %v4652
    %v4685 = vmul.f32 %v4461, %v4653
    %v4686 = vmul.f32 %v4462, %v4654
    %v4687 = vmul.f32 %v4463, %v4655
    %v4688 = vmul.f32 %v4464, %v4656
    %v4689 = vmul.f32 %v4465, %v4657
    %v4690 = vmul.f32 %v4466, %v4658
    %v4691 = vmul.f32 %v4467, %v4659
    %v4692 = vmul.f32 %v4468, %v4660
    %v4693 = vmul.f32 %v4469, %v4661
    %v4694 = vmul.f32 %v4470, %v4662
    %v4695 = vmul.f32 %v4471, %v4663
    %v4696 = vmul.f32 %v4472, %v4664
    %v4697 = vmul.f32 %v4473, %v4665
    %v4698 = vmul.f32 %v4474, %v4666
    %v4699 = vmul.f32 %v4475, %v4667
    %v4700 = vmul.f32 %v4476, %v4668
    %v4701 = vlaneseq
    %v4702 = vshrl.u32 %v4701, 7
    %v4703 = vsub.s32 6, %v4702
    %v4704 = vrot.slane %v151, %v4703
    %v4705 = vmul.f32 %v4669, %v4704
    %v4706 = vmul.f32 %v4670, %v4704
    %v4707 = vmul.f32 %v4671, %v4704
    %v4708 = vmul.f32 %v4672, %v4704
    %v4709 = vmul.f32 %v4673, %v4704
    %v4710 = vmul.f32 %v4674, %v4704
    %v4711 = vmul.f32 %v4675, %v4704
    %v4712 = vmul.f32 %v4676, %v4704
    %v4713 = vmul.f32 %v4677, %v4704
    %v4714 = vmul.f32 %v4678, %v4704
    %v4715 = vmul.f32 %v4679, %v4704
    %v4716 = vmul.f32 %v4680, %v4704
    %v4717 = vmul.f32 %v4681, %v4704
    %v4718 = vmul.f32 %v4682, %v4704
    %v4719 = vmul.f32 %v4683, %v4704
    %v4720 = vmul.f32 %v4684, %v4704
    %v4721 = vmul.f32 %v4685, %v4704
    %v4722 = vmul.f32 %v4686, %v4704
    %v4723 = vmul.f32 %v4687, %v4704
    %v4724 = vmul.f32 %v4688, %v4704
    %v4725 = vmul.f32 %v4689, %v4704
    %v4726 = vmul.f32 %v4690, %v4704
    %v4727 = vmul.f32 %v4691, %v4704
    %v4728 = vmul.f32 %v4692, %v4704
    %v4729 = vmul.f32 %v4693, %v4704
    %v4730 = vmul.f32 %v4694, %v4704
    %v4731 = vmul.f32 %v4695, %v4704
    %v4732 = vmul.f32 %v4696, %v4704
    %v4733 = vmul.f32 %v4697, %v4704
    %v4734 = vmul.f32 %v4698, %v4704
    %v4735 = vmul.f32 %v4699, %v4704
    %v4736 = vmul.f32 %v4700, %v4704
    %v4737 = vlaneseq
    %v4738 = vshrl.u32 %v4737, 7
    %v4739 = vsub.s32 7, %v4738
    %v4740 = vrot.slane %v151, %v4739
    %v4741 = vadd.f32 %v4705, %v4740
    %v4742 = vadd.f32 %v4706, %v4740
    %v4743 = vadd.f32 %v4707, %v4740
    %v4744 = vadd.f32 %v4708, %v4740
    %v4745 = vadd.f32 %v4709, %v4740
    %v4746 = vadd.f32 %v4710, %v4740
    %v4747 = vadd.f32 %v4711, %v4740
    %v4748 = vadd.f32 %v4712, %v4740
    %v4749 = vadd.f32 %v4713, %v4740
    %v4750 = vadd.f32 %v4714, %v4740
    %v4751 = vadd.f32 %v4715, %v4740
    %v4752 = vadd.f32 %v4716, %v4740
    %v4753 = vadd.f32 %v4717, %v4740
    %v4754 = vadd.f32 %v4718, %v4740
    %v4755 = vadd.f32 %v4719, %v4740
    %v4756 = vadd.f32 %v4720, %v4740
    %v4757 = vadd.f32 %v4721, %v4740
    %v4758 = vadd.f32 %v4722, %v4740
    %v4759 = vadd.f32 %v4723, %v4740
    %v4760 = vadd.f32 %v4724, %v4740
    %v4761 = vadd.f32 %v4725, %v4740
    %v4762 = vadd.f32 %v4726, %v4740
    %v4763 = vadd.f32 %v4727, %v4740
    %v4764 = vadd.f32 %v4728, %v4740
    %v4765 = vadd.f32 %v4729, %v4740
    %v4766 = vadd.f32 %v4730, %v4740
    %v4767 = vadd.f32 %v4731, %v4740
    %v4768 = vadd.f32 %v4732, %v4740
    %v4769 = vadd.f32 %v4733, %v4740
    %v4770 = vadd.f32 %v4734, %v4740
    %v4771 = vadd.f32 %v4735, %v4740
    %v4772 = vadd.f32 %v4736, %v4740
    %v4773 = vmax.f32 %v4741, 0.0
    %v4774 = vmax.f32 %v4742, 0.0
    %v4775 = vmax.f32 %v4743, 0.0
    %v4776 = vmax.f32 %v4744, 0.0
    %v4777 = vmax.f32 %v4745, 0.0
    %v4778 = vmax.f32 %v4746, 0.0
    %v4779 = vmax.f32 %v4747, 0.0
    %v4780 = vmax.f32 %v4748, 0.0
    %v4781 = vmax.f32 %v4749, 0.0
    %v4782 = vmax.f32 %v4750, 0.0
    %v4783 = vmax.f32 %v4751, 0.0
    %v4784 = vmax.f32 %v4752, 0.0
    %v4785 = vmax.f32 %v4753, 0.0
    %v4786 = vmax.f32 %v4754, 0.0
    %v4787 = vmax.f32 %v4755, 0.0
    %v4788 = vmax.f32 %v4756, 0.0
    %v4789 = vmax.f32 %v4757, 0.0
    %v4790 = vmax.f32 %v4758, 0.0
    %v4791 = vmax.f32 %v4759, 0.0
    %v4792 = vmax.f32 %v4760, 0.0
    %v4793 = vmax.f32 %v4761, 0.0
    %v4794 = vmax.f32 %v4762, 0.0
    %v4795 = vmax.f32 %v4763, 0.0
    %v4796 = vmax.f32 %v4764, 0.0
    %v4797 = vmax.f32 %v4765, 0.0
    %v4798 = vmax.f32 %v4766, 0.0
    %v4799 = vmax.f32 %v4767, 0.0
    %v4800 = vmax.f32 %v4768, 0.0
    %v4801 = vmax.f32 %v4769, 0.0
    %v4802 = vmax.f32 %v4770, 0.0
    %v4803 = vmax.f32 %v4771, 0.0
    %v4804 = vmax.f32 %v4772, 0.0
    %v4805 = vmul.f32 %v4773, %v165
    %v4806 = vmul.f32 %v4774, %v166
    %v4807 = vmul.f32 %v4775, %v165
    %v4808 = vmul.f32 %v4776, %v166
    %v4809 = vmul.f32 %v4777, %v165
    %v4810 = vmul.f32 %v4778, %v166
    %v4811 = vmul.f32 %v4779, %v165
    %v4812 = vmul.f32 %v4780, %v166
    %v4813 = vmul.f32 %v4781, %v165
    %v4814 = vmul.f32 %v4782, %v166
    %v4815 = vmul.f32 %v4783, %v165
    %v4816 = vmul.f32 %v4784, %v166
    %v4817 = vmul.f32 %v4785, %v165
    %v4818 = vmul.f32 %v4786, %v166
    %v4819 = vmul.f32 %v4787, %v165
    %v4820 = vmul.f32 %v4788, %v166
    %v4821 = vmul.f32 %v4789, %v165
    %v4822 = vmul.f32 %v4790, %v166
    %v4823 = vmul.f32 %v4791, %v165
    %v4824 = vmul.f32 %v4792, %v166
    %v4825 = vmul.f32 %v4793, %v165
    %v4826 = vmul.f32 %v4794, %v166
    %v4827 = vmul.f32 %v4795, %v165
    %v4828 = vmul.f32 %v4796, %v166
    %v4829 = vmul.f32 %v4797, %v165
    %v4830 = vmul.f32 %v4798, %v166
    %v4831 = vmul.f32 %v4799, %v165
    %v4832 = vmul.f32 %v4800, %v166
    %v4833 = vmul.f32 %v4801, %v165
    %v4834 = vmul.f32 %v4802, %v166
    %v4835 = vmul.f32 %v4803, %v165
    %v4836 = vmul.f32 %v4804, %v166
    %v4837 = vadd.f32 %v4805, %v4806
    %v4838 = vrot.slane %v4837, 4
    %v4839 = vadd.f32 %v4837, %v4838
    %v4840 = vrot.slane %v4839, 2
    %v4841 = vadd.f32 %v4839, %v4840
    %v4842 = vrot.slane %v4841, 1
    %v4843 = vadd.f32 %v4841, %v4842
    %v4844 = vadd.f32 %v4807, %v4808
    %v4845 = vrot.slane %v4844, 4
    %v4846 = vadd.f32 %v4844, %v4845
    %v4847 = vrot.slane %v4846, 2
    %v4848 = vadd.f32 %v4846, %v4847
    %v4849 = vrot.slane %v4848, 1
    %v4850 = vadd.f32 %v4848, %v4849
    %v4851 = vadd.f32 %v4809, %v4810
    %v4852 = vrot.slane %v4851, 4
    %v4853 = vadd.f32 %v4851, %v4852
    %v4854 = vrot.slane %v4853, 2
    %v4855 = vadd.f32 %v4853, %v4854
    %v4856 = vrot.slane %v4855, 1
    %v4857 = vadd.f32 %v4855, %v4856
    %v4858 = vadd.f32 %v4811, %v4812
    %v4859 = vrot.slane %v4858, 4
    %v4860 = vadd.f32 %v4858, %v4859
    %v4861 = vrot.slane %v4860, 2
    %v4862 = vadd.f32 %v4860, %v4861
    %v4863 = vrot.slane %v4862, 1
    %v4864 = vadd.f32 %v4862, %v4863
    %v4865 = vadd.f32 %v4813, %v4814
    %v4866 = vrot.slane %v4865, 4
    %v4867 = vadd.f32 %v4865, %v4866
    %v4868 = vrot.slane %v4867, 2
    %v4869 = vadd.f32 %v4867, %v4868
    %v4870 = vrot.slane %v4869, 1
    %v4871 = vadd.f32 %v4869, %v4870
    %v4872 = vadd.f32 %v4815, %v4816
    %v4873 = vrot.slane %v4872, 4
    %v4874 = vadd.f32 %v4872, %v4873
    %v4875 = vrot.slane %v4874, 2
    %v4876 = vadd.f32 %v4874, %v4875
    %v4877 = vrot.slane %v4876, 1
    %v4878 = vadd.f32 %v4876, %v4877
    %v4879 = vadd.f32 %v4817, %v4818
    %v4880 = vrot.slane %v4879, 4
    %v4881 = vadd.f32 %v4879, %v4880
    %v4882 = vrot.slane %v4881, 2
    %v4883 = vadd.f32 %v4881, %v4882
    %v4884 = vrot.slane %v4883, 1
    %v4885 = vadd.f32 %v4883, %v4884
    %v4886 = vadd.f32 %v4819, %v4820
    %v4887 = vrot.slane %v4886, 4
    %v4888 = vadd.f32 %v4886, %v4887
    %v4889 = vrot.slane %v4888, 2
    %v4890 = vadd.f32 %v4888, %v4889
    %v4891 = vrot.slane %v4890, 1
    %v4892 = vadd.f32 %v4890, %v4891
    %v4893 = vadd.f32 %v4821, %v4822
    %v4894 = vrot.slane %v4893, 4
    %v4895 = vadd.f32 %v4893, %v4894
    %v4896 = vrot.slane %v4895, 2
    %v4897 = vadd.f32 %v4895, %v4896
    %v4898 = vrot.slane %v4897, 1
    %v4899 = vadd.f32 %v4897, %v4898
    %v4900 = vadd.f32 %v4823, %v4824
    %v4901 = vrot.slane %v4900, 4
    %v4902 = vadd.f32 %v4900, %v4901
    %v4903 = vrot.slane %v4902, 2
    %v4904 = vadd.f32 %v4902, %v4903
    %v4905 = vrot.slane %v4904, 1
    %v4906 = vadd.f32 %v4904, %v4905
    %v4907 = vadd.f32 %v4825, %v4826
    %v4908 = vrot.slane %v4907, 4
    %v4909 = vadd.f32 %v4907, %v4908
    %v4910 = vrot.slane %v4909, 2
    %v4911 = vadd.f32 %v4909, %v4910
    %v4912 = vrot.slane %v4911, 1
    %v4913 = vadd.f32 %v4911, %v4912
    %v4914 = vadd.f32 %v4827, %v4828
    %v4915 = vrot.slane %v4914, 4
    %v4916 = vadd.f32 %v4914, %v4915
    %v4917 = vrot.slane %v4916, 2
    %v4918 = vadd.f32 %v4916, %v4917
    %v4919 = vrot.slane %v4918, 1
    %v4920 = vadd.f32 %v4918, %v4919
    %v4921 = vadd.f32 %v4829, %v4830
    %v4922 = vrot.slane %v4921, 4
    %v4923 = vadd.f32 %v4921, %v4922
    %v4924 = vrot.slane %v4923, 2
    %v4925 = vadd.f32 %v4923, %v4924
    %v4926 = vrot.slane %v4925, 1
    %v4927 = vadd.f32 %v4925, %v4926
    %v4928 = vadd.f32 %v4831, %v4832
    %v4929 = vrot.slane %v4928, 4
    %v4930 = vadd.f32 %v4928, %v4929
    %v4931 = vrot.slane %v4930, 2
    %v4932 = vadd.f32 %v4930, %v4931
    %v4933 = vrot.slane %v4932, 1
    %v4934 = vadd.f32 %v4932, %v4933
    %v4935 = vadd.f32 %v4833, %v4834
    %v4936 = vrot.slane %v4935, 4
    %v4937 = vadd.f32 %v4935, %v4936
    %v4938 = vrot.slane %v4937, 2
    %v4939 = vadd.f32 %v4937, %v4938
    %v4940 = vrot.slane %v4939, 1
    %v4941 = vadd.f32 %v4939, %v4940
    %v4942 = vadd.f32 %v4835, %v4836
    %v4943 = vrot.slane %v4942, 4
    %v4944 = vadd.f32 %v4942, %v4943
    %v4945 = vrot.slane %v4944, 2
    %v4946 = vadd.f32 %v4944, %v4945
    %v4947 = vrot.slane %v4946, 1
    %v4948 = vadd.f32 %v4946, %v4947
    %v4949 = vmul.f32 %v4843, 0.1
    %v4950 = vmul.f32 %v4850, 0.1
    %v4951 = vmul.f32 %v4857, 0.1
    %v4952 = vmul.f32 %v4864, 0.1
    %v4953 = vmul.f32 %v4871, 0.1
    %v4954 = vmul.f32 %v4878, 0.1
    %v4955 = vmul.f32 %v4885, 0.1
    %v4956 = vmul.f32 %v4892, 0.1
    %v4957 = vmul.f32 %v4899, 0.1
    %v4958 = vmul.f32 %v4906, 0.1
    %v4959 = vmul.f32 %v4913, 0.1
    %v4960 = vmul.f32 %v4920, 0.1
    %v4961 = vmul.f32 %v4927, 0.1
    %v4962 = vmul.f32 %v4934, 0.1
    %v4963 = vmul.f32 %v4941, 0.1
    %v4964 = vmul.f32 %v4948, 0.1
    %v4965 = vmul.f32 %v4949, %v4949
    %v4966 = vmul.f32 %v4950, %v4950
    %v4967 = vmul.f32 %v4951, %v4951
    %v4968 = vmul.f32 %v4952, %v4952
    %v4969 = vmul.f32 %v4953, %v4953
    %v4970 = vmul.f32 %v4954, %v4954
    %v4971 = vmul.f32 %v4955, %v4955
    %v4972 = vmul.f32 %v4956, %v4956
    %v4973 = vmul.f32 %v4957, %v4957
    %v4974 = vmul.f32 %v4958, %v4958
    %v4975 = vmul.f32 %v4959, %v4959
    %v4976 = vmul.f32 %v4960, %v4960
    %v4977 = vmul.f32 %v4961, %v4961
    %v4978 = vmul.f32 %v4962, %v4962
    %v4979 = vmul.f32 %v4963, %v4963
    %v4980 = vmul.f32 %v4964, %v4964
    %vm4997 = vcmask 1041409
    %v4998 = vsel %vm4997, %v4966, %v4965
    %vm4999 = vcmask 1042434
    %v5000 = vsel %vm4999, %v4967, %v4998
    %vm5001 = vcmask 1043459
    %v5002 = vsel %vm5001, %v4968, %v5000
    %vm5003 = vcmask 1044484
    %v5004 = vsel %vm5003, %v4969, %v5002
    %vm5005 = vcmask 1045509
    %v5006 = vsel %vm5005, %v4970, %v5004
    %vm5007 = vcmask 1046534
    %v5008 = vsel %vm5007, %v4971, %v5006
    %vm5009 = vcmask 1047559
    %v5010 = vsel %vm5009, %v4972, %v5008
    %v5011 = vsel %vm4997, %v4974, %v4973
    %v5012 = vsel %vm4999, %v4975, %v5011
    %v5013 = vsel %vm5001, %v4976, %v5012
    %v5014 = vsel %vm5003, %v4977, %v5013
    %v5015 = vsel %vm5005, %v4978, %v5014
    %v5016 = vsel %vm5007, %v4979, %v5015
    %v5017 = vsel %vm5009, %v4980, %v5016
    %5020 = vadd.xlane.f32.xlu0 %v5010
    %v5021 = vpop.xlane.xlu0 %5020
    %5022 = vadd.xlane.f32.xlu0 %v5017
    %v5023 = vpop.xlane.xlu0 %5022
    %v5024 = vmax.f32 %v5021, 1e-24
    %v5025 = vmax.f32 %v5023, 1e-24
    %v5026 = vrsqrt.pop %v5024
    %v5027 = vrsqrt.pop %v5025
    %v5030 = vrot.slane %v5026, 1
    %v5031 = vrot.slane %v5026, 2
    %v5032 = vrot.slane %v5026, 3
    %v5033 = vrot.slane %v5026, 4
    %v5034 = vrot.slane %v5026, 5
    %v5035 = vrot.slane %v5026, 6
    %v5036 = vrot.slane %v5026, 7
    %v5037 = vrot.slane %v5027, 1
    %v5038 = vrot.slane %v5027, 2
    %v5039 = vrot.slane %v5027, 3
    %v5040 = vrot.slane %v5027, 4
    %v5041 = vrot.slane %v5027, 5
    %v5042 = vrot.slane %v5027, 6
    %v5043 = vrot.slane %v5027, 7
    %v5060 = vmul.f32 %v4949, %v5026
    %v5061 = vmul.f32 %v4950, %v5030
    %v5062 = vmul.f32 %v4951, %v5031
    %v5063 = vmul.f32 %v4952, %v5032
    %v5064 = vmul.f32 %v4953, %v5033
    %v5065 = vmul.f32 %v4954, %v5034
    %v5066 = vmul.f32 %v4955, %v5035
    %v5067 = vmul.f32 %v4956, %v5036
    %v5068 = vmul.f32 %v4957, %v5027
    %v5069 = vmul.f32 %v4958, %v5037
    %v5070 = vmul.f32 %v4959, %v5038
    %v5071 = vmul.f32 %v4960, %v5039
    %v5072 = vmul.f32 %v4961, %v5040
    %v5073 = vmul.f32 %v4962, %v5041
    %v5074 = vmul.f32 %v4963, %v5042
    %v5075 = vmul.f32 %v4964, %v5043
    %v5076 = vmax.f32 %v4805, %v4806
    %v5077 = vrot.slane %v5076, 4
    %v5078 = vmax.f32 %v5076, %v5077
    %v5079 = vrot.slane %v5078, 2
    %v5080 = vmax.f32 %v5078, %v5079
    %v5081 = vrot.slane %v5080, 1
    %v5082 = vmax.f32 %v5080, %v5081
    %v5083 = vmax.f32 %v4807, %v4808
    %v5084 = vrot.slane %v5083, 4
    %v5085 = vmax.f32 %v5083, %v5084
    %v5086 = vrot.slane %v5085, 2
    %v5087 = vmax.f32 %v5085, %v5086
    %v5088 = vrot.slane %v5087, 1
    %v5089 = vmax.f32 %v5087, %v5088
    %v5090 = vmax.f32 %v4809, %v4810
    %v5091 = vrot.slane %v5090, 4
    %v5092 = vmax.f32 %v5090, %v5091
    %v5093 = vrot.slane %v5092, 2
    %v5094 = vmax.f32 %v5092, %v5093
    %v5095 = vrot.slane %v5094, 1
    %v5096 = vmax.f32 %v5094, %v5095
    %v5097 = vmax.f32 %v4811, %v4812
    %v5098 = vrot.slane %v5097, 4
    %v5099 = vmax.f32 %v5097, %v5098
    %v5100 = vrot.slane %v5099, 2
    %v5101 = vmax.f32 %v5099, %v5100
    %v5102 = vrot.slane %v5101, 1
    %v5103 = vmax.f32 %v5101, %v5102
    %v5104 = vmax.f32 %v4813, %v4814
    %v5105 = vrot.slane %v5104, 4
    %v5106 = vmax.f32 %v5104, %v5105
    %v5107 = vrot.slane %v5106, 2
    %v5108 = vmax.f32 %v5106, %v5107
    %v5109 = vrot.slane %v5108, 1
    %v5110 = vmax.f32 %v5108, %v5109
    %v5111 = vmax.f32 %v4815, %v4816
    %v5112 = vrot.slane %v5111, 4
    %v5113 = vmax.f32 %v5111, %v5112
    %v5114 = vrot.slane %v5113, 2
    %v5115 = vmax.f32 %v5113, %v5114
    %v5116 = vrot.slane %v5115, 1
    %v5117 = vmax.f32 %v5115, %v5116
    %v5118 = vmax.f32 %v4817, %v4818
    %v5119 = vrot.slane %v5118, 4
    %v5120 = vmax.f32 %v5118, %v5119
    %v5121 = vrot.slane %v5120, 2
    %v5122 = vmax.f32 %v5120, %v5121
    %v5123 = vrot.slane %v5122, 1
    %v5124 = vmax.f32 %v5122, %v5123
    %v5125 = vmax.f32 %v4819, %v4820
    %v5126 = vrot.slane %v5125, 4
    %v5127 = vmax.f32 %v5125, %v5126
    %v5128 = vrot.slane %v5127, 2
    %v5129 = vmax.f32 %v5127, %v5128
    %v5130 = vrot.slane %v5129, 1
    %v5131 = vmax.f32 %v5129, %v5130
    %v5132 = vmax.f32 %v4821, %v4822
    %v5133 = vrot.slane %v5132, 4
    %v5134 = vmax.f32 %v5132, %v5133
    %v5135 = vrot.slane %v5134, 2
    %v5136 = vmax.f32 %v5134, %v5135
    %v5137 = vrot.slane %v5136, 1
    %v5138 = vmax.f32 %v5136, %v5137
    %v5139 = vmax.f32 %v4823, %v4824
    %v5140 = vrot.slane %v5139, 4
    %v5141 = vmax.f32 %v5139, %v5140
    %v5142 = vrot.slane %v5141, 2
    %v5143 = vmax.f32 %v5141, %v5142
    %v5144 = vrot.slane %v5143, 1
    %v5145 = vmax.f32 %v5143, %v5144
    %v5146 = vmax.f32 %v4825, %v4826
    %v5147 = vrot.slane %v5146, 4
    %v5148 = vmax.f32 %v5146, %v5147
    %v5149 = vrot.slane %v5148, 2
    %v5150 = vmax.f32 %v5148, %v5149
    %v5151 = vrot.slane %v5150, 1
    %v5152 = vmax.f32 %v5150, %v5151
    %v5153 = vmax.f32 %v4827, %v4828
    %v5154 = vrot.slane %v5153, 4
    %v5155 = vmax.f32 %v5153, %v5154
    %v5156 = vrot.slane %v5155, 2
    %v5157 = vmax.f32 %v5155, %v5156
    %v5158 = vrot.slane %v5157, 1
    %v5159 = vmax.f32 %v5157, %v5158
    %v5160 = vmax.f32 %v4829, %v4830
    %v5161 = vrot.slane %v5160, 4
    %v5162 = vmax.f32 %v5160, %v5161
    %v5163 = vrot.slane %v5162, 2
    %v5164 = vmax.f32 %v5162, %v5163
    %v5165 = vrot.slane %v5164, 1
    %v5166 = vmax.f32 %v5164, %v5165
    %v5167 = vmax.f32 %v4831, %v4832
    %v5168 = vrot.slane %v5167, 4
    %v5169 = vmax.f32 %v5167, %v5168
    %v5170 = vrot.slane %v5169, 2
    %v5171 = vmax.f32 %v5169, %v5170
    %v5172 = vrot.slane %v5171, 1
    %v5173 = vmax.f32 %v5171, %v5172
    %v5174 = vmax.f32 %v4833, %v4834
    %v5175 = vrot.slane %v5174, 4
    %v5176 = vmax.f32 %v5174, %v5175
    %v5177 = vrot.slane %v5176, 2
    %v5178 = vmax.f32 %v5176, %v5177
    %v5179 = vrot.slane %v5178, 1
    %v5180 = vmax.f32 %v5178, %v5179
    %v5181 = vmax.f32 %v4835, %v4836
    %v5182 = vrot.slane %v5181, 4
    %v5183 = vmax.f32 %v5181, %v5182
    %v5184 = vrot.slane %v5183, 2
    %v5185 = vmax.f32 %v5183, %v5184
    %v5186 = vrot.slane %v5185, 1
    %v5187 = vmax.f32 %v5185, %v5186
    %v5188 = vmul.f32 %v5082, %v5082
    %v5189 = vmul.f32 %v5089, %v5089
    %v5190 = vmul.f32 %v5096, %v5096
    %v5191 = vmul.f32 %v5103, %v5103
    %v5192 = vmul.f32 %v5110, %v5110
    %v5193 = vmul.f32 %v5117, %v5117
    %v5194 = vmul.f32 %v5124, %v5124
    %v5195 = vmul.f32 %v5131, %v5131
    %v5196 = vmul.f32 %v5138, %v5138
    %v5197 = vmul.f32 %v5145, %v5145
    %v5198 = vmul.f32 %v5152, %v5152
    %v5199 = vmul.f32 %v5159, %v5159
    %v5200 = vmul.f32 %v5166, %v5166
    %v5201 = vmul.f32 %v5173, %v5173
    %v5202 = vmul.f32 %v5180, %v5180
    %v5203 = vmul.f32 %v5187, %v5187
    %v5220 = vsel %vm4997, %v5189, %v5188
    %v5221 = vsel %vm4999, %v5190, %v5220
    %v5222 = vsel %vm5001, %v5191, %v5221
    %v5223 = vsel %vm5003, %v5192, %v5222
    %v5224 = vsel %vm5005, %v5193, %v5223
    %v5225 = vsel %vm5007, %v5194, %v5224
    %v5226 = vsel %vm5009, %v5195, %v5225
    %v5227 = vsel %vm4997, %v5197, %v5196
    %v5228 = vsel %vm4999, %v5198, %v5227
    %v5229 = vsel %vm5001, %v5199, %v5228
    %v5230 = vsel %vm5003, %v5200, %v5229
    %v5231 = vsel %vm5005, %v5201, %v5230
    %v5232 = vsel %vm5007, %v5202, %v5231
    %v5233 = vsel %vm5009, %v5203, %v5232
    %5236 = vadd.xlane.f32.xlu0 %v5226
    %v5237 = vpop.xlane.xlu0 %5236
    %5238 = vadd.xlane.f32.xlu0 %v5233
    %v5239 = vpop.xlane.xlu0 %5238
    %v5240 = vmax.f32 %v5237, 1e-24
    %v5241 = vmax.f32 %v5239, 1e-24
    %v5242 = vrsqrt.pop %v5240
    %v5243 = vrsqrt.pop %v5241
    %v5246 = vrot.slane %v5242, 1
    %v5247 = vrot.slane %v5242, 2
    %v5248 = vrot.slane %v5242, 3
    %v5249 = vrot.slane %v5242, 4
    %v5250 = vrot.slane %v5242, 5
    %v5251 = vrot.slane %v5242, 6
    %v5252 = vrot.slane %v5242, 7
    %v5253 = vrot.slane %v5243, 1
    %v5254 = vrot.slane %v5243, 2
    %v5255 = vrot.slane %v5243, 3
    %v5256 = vrot.slane %v5243, 4
    %v5257 = vrot.slane %v5243, 5
    %v5258 = vrot.slane %v5243, 6
    %v5259 = vrot.slane %v5243, 7
    %v5276 = vmul.f32 %v5082, %v5242
    %v5277 = vmul.f32 %v5089, %v5246
    %v5278 = vmul.f32 %v5096, %v5247
    %v5279 = vmul.f32 %v5103, %v5248
    %v5280 = vmul.f32 %v5110, %v5249
    %v5281 = vmul.f32 %v5117, %v5250
    %v5282 = vmul.f32 %v5124, %v5251
    %v5283 = vmul.f32 %v5131, %v5252
    %v5284 = vmul.f32 %v5138, %v5243
    %v5285 = vmul.f32 %v5145, %v5253
    %v5286 = vmul.f32 %v5152, %v5254
    %v5287 = vmul.f32 %v5159, %v5255
    %v5288 = vmul.f32 %v5166, %v5256
    %v5289 = vmul.f32 %v5173, %v5257
    %v5290 = vmul.f32 %v5180, %v5258
    %v5291 = vmul.f32 %v5187, %v5259
    %v5308 = vrot.slane %v5061, 7
    %v5309 = vsel %vm4997, %v5308, %v5060
    %v5310 = vrot.slane %v5062, 6
    %v5311 = vsel %vm4999, %v5310, %v5309
    %v5312 = vrot.slane %v5063, 5
    %v5313 = vsel %vm5001, %v5312, %v5311
    %v5314 = vrot.slane %v5064, 4
    %v5315 = vsel %vm5003, %v5314, %v5313
    %v5316 = vrot.slane %v5065, 3
    %v5317 = vsel %vm5005, %v5316, %v5315
    %v5318 = vrot.slane %v5066, 2
    %v5319 = vsel %vm5007, %v5318, %v5317
    %v5320 = vrot.slane %v5067, 1
    %v5321 = vsel %vm5009, %v5320, %v5319
    %v5322 = vrot.slane %v5069, 7
    %v5323 = vsel %vm4997, %v5322, %v5068
    %v5324 = vrot.slane %v5070, 6
    %v5325 = vsel %vm4999, %v5324, %v5323
    %v5326 = vrot.slane %v5071, 5
    %v5327 = vsel %vm5001, %v5326, %v5325
    %v5328 = vrot.slane %v5072, 4
    %v5329 = vsel %vm5003, %v5328, %v5327
    %v5330 = vrot.slane %v5073, 3
    %v5331 = vsel %vm5005, %v5330, %v5329
    %v5332 = vrot.slane %v5074, 2
    %v5333 = vsel %vm5007, %v5332, %v5331
    %v5334 = vrot.slane %v5075, 1
    %v5335 = vsel %vm5009, %v5334, %v5333
    %v5354 = vrot.slane %v5277, 7
    %v5355 = vsel %vm4997, %v5354, %v5276
    %v5356 = vrot.slane %v5278, 6
    %v5357 = vsel %vm4999, %v5356, %v5355
    %v5358 = vrot.slane %v5279, 5
    %v5359 = vsel %vm5001, %v5358, %v5357
    %v5360 = vrot.slane %v5280, 4
    %v5361 = vsel %vm5003, %v5360, %v5359
    %v5362 = vrot.slane %v5281, 3
    %v5363 = vsel %vm5005, %v5362, %v5361
    %v5364 = vrot.slane %v5282, 2
    %v5365 = vsel %vm5007, %v5364, %v5363
    %v5366 = vrot.slane %v5283, 1
    %v5367 = vsel %vm5009, %v5366, %v5365
    %v5368 = vrot.slane %v5285, 7
    %v5369 = vsel %vm4997, %v5368, %v5284
    %v5370 = vrot.slane %v5286, 6
    %v5371 = vsel %vm4999, %v5370, %v5369
    %v5372 = vrot.slane %v5287, 5
    %v5373 = vsel %vm5001, %v5372, %v5371
    %v5374 = vrot.slane %v5288, 4
    %v5375 = vsel %vm5003, %v5374, %v5373
    %v5376 = vrot.slane %v5289, 3
    %v5377 = vsel %vm5005, %v5376, %v5375
    %v5378 = vrot.slane %v5290, 2
    %v5379 = vsel %vm5007, %v5378, %v5377
    %v5380 = vrot.slane %v5291, 1
    %v5381 = vsel %vm5009, %v5380, %v5379
    %v5384 = vld [vmem:[#allocation10] sm:$0xff]
    %v5385 = vld [vmem:[#allocation10 + $0x8] sm:$0xff]
    %v5386 = vld [vmem:[#allocation10 + $0x10] sm:$0xff]
    %v5387 = vld [vmem:[#allocation10 + $0x18] sm:$0xff]
    %v5388 = vld [vmem:[#allocation10 + $0x20] sm:$0xff]
    %v5389 = vld [vmem:[#allocation10 + $0x28] sm:$0xff]
    %v5390 = vld [vmem:[#allocation10 + $0x30] sm:$0xff]
    %v5391 = vld [vmem:[#allocation10 + $0x38] sm:$0xff]
    %v5392 = vld [vmem:[#allocation10 + $0x40] sm:$0xff]
    %v5393 = vld [vmem:[#allocation10 + $0x48] sm:$0xff]
    %v5394 = vld [vmem:[#allocation10 + $0x50] sm:$0xff]
    %v5395 = vld [vmem:[#allocation10 + $0x58] sm:$0xff]
    %v5396 = vld [vmem:[#allocation10 + $0x60] sm:$0xff]
    %v5397 = vld [vmem:[#allocation10 + $0x68] sm:$0xff]
    %v5398 = vld [vmem:[#allocation10 + $0x70] sm:$0xff]
    %v5399 = vld [vmem:[#allocation10 + $0x78] sm:$0xff]
    %v5400 = vld [vmem:[#allocation10 + $0x80] sm:$0xff]
    %v5401 = vld [vmem:[#allocation10 + $0x88] sm:$0xff]
    %v5402 = vld [vmem:[#allocation10 + $0x90] sm:$0xff]
    %v5403 = vld [vmem:[#allocation10 + $0x98] sm:$0xff]
    %v5404 = vld [vmem:[#allocation10 + $0xa0] sm:$0xff]
    %v5405 = vld [vmem:[#allocation10 + $0xa8] sm:$0xff]
    %v5406 = vld [vmem:[#allocation10 + $0xb0] sm:$0xff]
    %v5407 = vld [vmem:[#allocation10 + $0xb8] sm:$0xff]
    %v5408 = vld [vmem:[#allocation10 + $0xc0] sm:$0xff]
    %v5409 = vld [vmem:[#allocation10 + $0xc8] sm:$0xff]
    %v5410 = vld [vmem:[#allocation10 + $0xd0] sm:$0xff]
    %v5411 = vld [vmem:[#allocation10 + $0xd8] sm:$0xff]
    %v5412 = vld [vmem:[#allocation10 + $0xe0] sm:$0xff]
    %v5413 = vld [vmem:[#allocation10 + $0xe8] sm:$0xff]
    %v5414 = vld [vmem:[#allocation10 + $0xf0] sm:$0xff]
    %v5415 = vld [vmem:[#allocation10 + $0xf8] sm:$0xff]
    %v5416 = vlaneseq
    %v5417 = vshrl.u32 %v5416, 7
    %v5418 = vsub.s32 2, %v5417
    %v5419 = vrot.slane %v151, %v5418
    %5420 = vmatprep.subr.mxu0 0.0
    %5421 = vmatpush1.msra.mxu0 %v5384
    %5422 = vmatprep.subr.mxu0 0.0
    %5423 = vmatpush1.msra.mxu0 %v5385
    %5424 = vmatprep.subr.mxu0 0.0
    %5425 = vmatpush1.msra.mxu0 %v5386
    %5426 = vmatprep.subr.mxu0 0.0
    %5427 = vmatpush1.msra.mxu0 %v5387
    %5428 = vmatprep.subr.mxu0 0.0
    %5429 = vmatpush1.msra.mxu0 %v5388
    %5430 = vmatprep.subr.mxu0 0.0
    %5431 = vmatpush1.msra.mxu0 %v5389
    %5432 = vmatprep.subr.mxu0 0.0
    %5433 = vmatpush1.msra.mxu0 %v5390
    %5434 = vmatprep.subr.mxu0 0.0
    %5435 = vmatpush1.msra.mxu0 %v5391
    %5436 = vmatprep.subr.mxu0 0.0
    %5437 = vmatpush1.msra.mxu0 %v5392
    %5438 = vmatprep.subr.mxu0 0.0
    %5439 = vmatpush1.msra.mxu0 %v5393
    %5440 = vmatprep.subr.mxu0 0.0
    %5441 = vmatpush1.msra.mxu0 %v5394
    %5442 = vmatprep.subr.mxu0 0.0
    %5443 = vmatpush1.msra.mxu0 %v5395
    %5444 = vmatprep.subr.mxu0 0.0
    %5445 = vmatpush1.msra.mxu0 %v5396
    %5446 = vmatprep.subr.mxu0 0.0
    %5447 = vmatpush1.msra.mxu0 %v5397
    %5448 = vmatprep.subr.mxu0 0.0
    %5449 = vmatpush1.msra.mxu0 %v5398
    %5450 = vmatprep.subr.mxu0 0.0
    %5451 = vmatpush1.msra.mxu0 %v5399
    %5452 = vmatprep.subr.mxu0 0.0
    %5453 = vmatpush1.msra.mxu0 %v5400
    %5454 = vmatprep.subr.mxu0 0.0
    %5455 = vmatpush1.msra.mxu0 %v5401
    %5456 = vmatprep.subr.mxu0 0.0
    %5457 = vmatpush1.msra.mxu0 %v5402
    %5458 = vmatprep.subr.mxu0 0.0
    %5459 = vmatpush1.msra.mxu0 %v5403
    %5460 = vmatprep.subr.mxu0 0.0
    %5461 = vmatpush1.msra.mxu0 %v5404
    %5462 = vmatprep.subr.mxu0 0.0
    %5463 = vmatpush1.msra.mxu0 %v5405
    %5464 = vmatprep.subr.mxu0 0.0
    %5465 = vmatpush1.msra.mxu0 %v5406
    %5466 = vmatprep.subr.mxu0 0.0
    %5467 = vmatpush1.msra.mxu0 %v5407
    %5468 = vmatprep.subr.mxu0 0.0
    %5469 = vmatpush1.msra.mxu0 %v5408
    %5470 = vmatprep.subr.mxu0 0.0
    %5471 = vmatpush1.msra.mxu0 %v5409
    %5472 = vmatprep.subr.mxu0 0.0
    %5473 = vmatpush1.msra.mxu0 %v5410
    %5474 = vmatprep.subr.mxu0 0.0
    %5475 = vmatpush1.msra.mxu0 %v5411
    %5476 = vmatprep.subr.mxu0 0.0
    %5477 = vmatpush1.msra.mxu0 %v5412
    %5478 = vmatprep.subr.mxu0 0.0
    %5479 = vmatpush1.msra.mxu0 %v5413
    %5480 = vmatprep.subr.mxu0 0.0
    %5481 = vmatpush1.msra.mxu0 %v5414
    %5482 = vmatprep.subr.mxu0 0.0
    %5483 = vmatpush1.msra.mxu0 %v5415
    %5484 = vmatprep.mubr.f32.mxu0 %v5367
    %5485 = vmatmul.mubr.f32.gmra.mrb[0].mxu0 %v5321
    %v5486 = vpop.f32.mrb[0].mxu0
    %v5487 = vadd.f32 %v5419, %v5486
    %v5488 = vpop.f32.mrb[0].mxu0
    %5489 = vmatprep.mubr.f32.mxu0 %v5381
    %5490 = vmatmul.mubr.f32.gmra.mrb[0].mxu0 %v5335
    %v5491 = vpop.f32.mrb[0].mxu0
    %v5492 = vadd.f32 %v5419, %v5491
    %v5493 = vpop.f32.mrb[0].mxu0
    %5494 = vdwg.mxu0
    %5495 = vadd.xlane.f32.xlu0 %v5487
    %v5496 = vpop.xlane.xlu0 %5495
    %5497 = vadd.xlane.f32.xlu0 %v5492
    %v5498 = vpop.xlane.xlu0 %5497
    %v5499 = vmul.f32 %v5496, 0.03125
    %v5500 = vmul.f32 %v5498, 0.03125
    %v5501 = vsub.f32 %v5487, %v5499
    %v5502 = vsub.f32 %v5492, %v5500
    %v5503 = vmul.f32 %v5501, %v157
    %v5504 = vmul.f32 %v5502, %v157
    %v5505 = vmul.f32 %v5503, %v5503
    %v5506 = vmul.f32 %v5504, %v5504
    %5507 = vadd.xlane.f32.xlu0 %v5505
    %v5508 = vpop.xlane.xlu0 %5507
    %5509 = vadd.xlane.f32.xlu0 %v5506
    %v5510 = vpop.xlane.xlu0 %5509
    %v5511 = vmul.f32 %v5508, 0.03125
    %v5512 = vmul.f32 %v5510, 0.03125
    %v5513 = vadd.f32 %v5511, 1e-05
    %v5514 = vadd.f32 %v5512, 1e-05
    %v5515 = vrsqrt.pop %v5513
    %v5516 = vrsqrt.pop %v5514
    %v5517 = vmul.f32 %v5503, %v5515
    %v5518 = vmul.f32 %v5504, %v5516
    %v5519 = vlaneseq
    %v5520 = vshrl.u32 %v5519, 7
    %v5521 = vsub.s32 0, %v5520
    %v5522 = vrot.slane %v152, %v5521
    %v5523 = vmul.f32 %v5517, %v5522
    %v5524 = vmul.f32 %v5518, %v5522
    %v5525 = vlaneseq
    %v5526 = vshrl.u32 %v5525, 7
    %v5527 = vsub.s32 1, %v5526
    %v5528 = vrot.slane %v152, %v5527
    %v5529 = vadd.f32 %v5523, %v5528
    %v5530 = vadd.f32 %v5524, %v5528
    %v5531 = vmax.f32 %v5529, 0.0
    %v5532 = vmax.f32 %v5530, 0.0
    %v5533 = vld [vmem:[#allocation11] sm:$0xff]
    %v5534 = vld [vmem:[#allocation11 + $0x8] sm:$0xff]
    %v5535 = vld [vmem:[#allocation11 + $0x10] sm:$0xff]
    %v5536 = vld [vmem:[#allocation11 + $0x18] sm:$0xff]
    %v5537 = vld [vmem:[#allocation11 + $0x20] sm:$0xff]
    %v5538 = vld [vmem:[#allocation11 + $0x28] sm:$0xff]
    %v5539 = vld [vmem:[#allocation11 + $0x30] sm:$0xff]
    %v5540 = vld [vmem:[#allocation11 + $0x38] sm:$0xff]
    %v5541 = vld [vmem:[#allocation11 + $0x40] sm:$0xff]
    %v5542 = vld [vmem:[#allocation11 + $0x48] sm:$0xff]
    %v5543 = vld [vmem:[#allocation11 + $0x50] sm:$0xff]
    %v5544 = vld [vmem:[#allocation11 + $0x58] sm:$0xff]
    %v5545 = vld [vmem:[#allocation11 + $0x60] sm:$0xff]
    %v5546 = vld [vmem:[#allocation11 + $0x68] sm:$0xff]
    %v5547 = vld [vmem:[#allocation11 + $0x70] sm:$0xff]
    %v5548 = vld [vmem:[#allocation11 + $0x78] sm:$0xff]
    %v5549 = vlaneseq
    %v5550 = vshrl.u32 %v5549, 7
    %v5551 = vsub.s32 3, %v5550
    %v5552 = vrot.slane %v151, %v5551
    %5553 = vmatprep.subr.mxu0 0.0
    %5554 = vmatpush1.msra.mxu0 %v5533
    %5555 = vmatprep.subr.mxu0 0.0
    %5556 = vmatpush1.msra.mxu0 %v5534
    %5557 = vmatprep.subr.mxu0 0.0
    %5558 = vmatpush1.msra.mxu0 %v5535
    %5559 = vmatprep.subr.mxu0 0.0
    %5560 = vmatpush1.msra.mxu0 %v5536
    %5561 = vmatprep.subr.mxu0 0.0
    %5562 = vmatpush1.msra.mxu0 %v5537
    %5563 = vmatprep.subr.mxu0 0.0
    %5564 = vmatpush1.msra.mxu0 %v5538
    %5565 = vmatprep.subr.mxu0 0.0
    %5566 = vmatpush1.msra.mxu0 %v5539
    %5567 = vmatprep.subr.mxu0 0.0
    %5568 = vmatpush1.msra.mxu0 %v5540
    %5569 = vmatprep.subr.mxu0 0.0
    %5570 = vmatpush1.msra.mxu0 %v5541
    %5571 = vmatprep.subr.mxu0 0.0
    %5572 = vmatpush1.msra.mxu0 %v5542
    %5573 = vmatprep.subr.mxu0 0.0
    %5574 = vmatpush1.msra.mxu0 %v5543
    %5575 = vmatprep.subr.mxu0 0.0
    %5576 = vmatpush1.msra.mxu0 %v5544
    %5577 = vmatprep.subr.mxu0 0.0
    %5578 = vmatpush1.msra.mxu0 %v5545
    %5579 = vmatprep.subr.mxu0 0.0
    %5580 = vmatpush1.msra.mxu0 %v5546
    %5581 = vmatprep.subr.mxu0 0.0
    %5582 = vmatpush1.msra.mxu0 %v5547
    %5583 = vmatprep.subr.mxu0 0.0
    %5584 = vmatpush1.msra.mxu0 %v5548
    %5585 = vmatprep.subr.mxu0 0.0
    %5586 = vmatpush1.msra.mxu0 0.0
    %5587 = vmatprep.subr.mxu0 0.0
    %5588 = vmatpush1.msra.mxu0 0.0
    %5589 = vmatprep.subr.mxu0 0.0
    %5590 = vmatpush1.msra.mxu0 0.0
    %5591 = vmatprep.subr.mxu0 0.0
    %5592 = vmatpush1.msra.mxu0 0.0
    %5593 = vmatprep.subr.mxu0 0.0
    %5594 = vmatpush1.msra.mxu0 0.0
    %5595 = vmatprep.subr.mxu0 0.0
    %5596 = vmatpush1.msra.mxu0 0.0
    %5597 = vmatprep.subr.mxu0 0.0
    %5598 = vmatpush1.msra.mxu0 0.0
    %5599 = vmatprep.subr.mxu0 0.0
    %5600 = vmatpush1.msra.mxu0 0.0
    %5601 = vmatprep.subr.mxu0 0.0
    %5602 = vmatpush1.msra.mxu0 0.0
    %5603 = vmatprep.subr.mxu0 0.0
    %5604 = vmatpush1.msra.mxu0 0.0
    %5605 = vmatprep.subr.mxu0 0.0
    %5606 = vmatpush1.msra.mxu0 0.0
    %5607 = vmatprep.subr.mxu0 0.0
    %5608 = vmatpush1.msra.mxu0 0.0
    %5609 = vmatprep.subr.mxu0 0.0
    %5610 = vmatpush1.msra.mxu0 0.0
    %5611 = vmatprep.subr.mxu0 0.0
    %5612 = vmatpush1.msra.mxu0 0.0
    %5613 = vmatprep.subr.mxu0 0.0
    %5614 = vmatpush1.msra.mxu0 0.0
    %5615 = vmatprep.subr.mxu0 0.0
    %5616 = vmatpush1.msra.mxu0 0.0
    %5617 = vmatprep.mubr.f32.mxu0 0.0
    %5618 = vmatmul.mubr.f32.gmra.mrb[0].mxu0 %v5531
    %v5619 = vpop.f32.mrb[0].mxu0
    %v5620 = vadd.f32 %v5552, %v5619
    %v5621 = vpop.f32.mrb[0].mxu0
    %5622 = vmatprep.mubr.f32.mxu0 0.0
    %5623 = vmatmul.mubr.f32.gmra.mrb[0].mxu0 %v5532
    %v5624 = vpop.f32.mrb[0].mxu0
    %v5625 = vadd.f32 %v5552, %v5624
    %v5626 = vpop.f32.mrb[0].mxu0
    %5627 = vdwg.mxu0
    %5628 = vadd.xlane.f32.xlu0 %v5620
    %v5629 = vpop.xlane.xlu0 %5628
    %5630 = vadd.xlane.f32.xlu0 %v5625
    %v5631 = vpop.xlane.xlu0 %5630
    %v5632 = vmul.f32 %v5629, 0.03125
    %v5633 = vmul.f32 %v5631, 0.03125
    %v5634 = vsub.f32 %v5620, %v5632
    %v5635 = vsub.f32 %v5625, %v5633
    %v5636 = vmul.f32 %v5634, %v157
    %v5637 = vmul.f32 %v5635, %v157
    %v5638 = vmul.f32 %v5636, %v5636
    %v5639 = vmul.f32 %v5637, %v5637
    %5640 = vadd.xlane.f32.xlu0 %v5638
    %v5641 = vpop.xlane.xlu0 %5640
    %5642 = vadd.xlane.f32.xlu0 %v5639
    %v5643 = vpop.xlane.xlu0 %5642
    %v5644 = vmul.f32 %v5641, 0.03125
    %v5645 = vmul.f32 %v5643, 0.03125
    %v5646 = vadd.f32 %v5644, 1e-05
    %v5647 = vadd.f32 %v5645, 1e-05
    %v5648 = vrsqrt.pop %v5646
    %v5649 = vrsqrt.pop %v5647
    %v5650 = vmul.f32 %v5636, %v5648
    %v5651 = vmul.f32 %v5637, %v5649
    %v5652 = vlaneseq
    %v5653 = vshrl.u32 %v5652, 7
    %v5654 = vsub.s32 2, %v5653
    %v5655 = vrot.slane %v152, %v5654
    %v5656 = vmul.f32 %v5650, %v5655
    %v5657 = vmul.f32 %v5651, %v5655
    %v5658 = vlaneseq
    %v5659 = vshrl.u32 %v5658, 7
    %v5660 = vsub.s32 3, %v5659
    %v5661 = vrot.slane %v152, %v5660
    %v5662 = vadd.f32 %v5656, %v5661
    %v5663 = vadd.f32 %v5657, %v5661
    %v5664 = vmax.f32 %v5662, 0.0
    %v5665 = vmax.f32 %v5663, 0.0
    %v5666 = vld [vmem:[#allocation13] sm:$0xff]
    %v5667 = vld [vmem:[#allocation13 + $0x8] sm:$0xff]
    %v5668 = vld [vmem:[#allocation13 + $0x10] sm:$0xff]
    %v5669 = vld [vmem:[#allocation13 + $0x18] sm:$0xff]
    %v5670 = vld [vmem:[#allocation13 + $0x20] sm:$0xff]
    %v5671 = vld [vmem:[#allocation13 + $0x28] sm:$0xff]
    %v5672 = vld [vmem:[#allocation13 + $0x30] sm:$0xff]
    %v5673 = vld [vmem:[#allocation13 + $0x38] sm:$0xff]
    %v5674 = vld [vmem:[#allocation13 + $0x40] sm:$0xff]
    %v5675 = vld [vmem:[#allocation13 + $0x48] sm:$0xff]
    %v5676 = vld [vmem:[#allocation13 + $0x50] sm:$0xff]
    %v5677 = vld [vmem:[#allocation13 + $0x58] sm:$0xff]
    %v5678 = vld [vmem:[#allocation13 + $0x60] sm:$0xff]
    %v5679 = vld [vmem:[#allocation13 + $0x68] sm:$0xff]
    %v5680 = vld [vmem:[#allocation13 + $0x70] sm:$0xff]
    %v5681 = vld [vmem:[#allocation13 + $0x78] sm:$0xff]
    %v5682 = vld [vmem:[#allocation14] sm:$0x1]
    %v5684 = vlaneseq
    %v5685 = vshrl.u32 %v5684, 7
    %v5686 = vsub.s32 0, %v5685
    %v5687 = vrot.slane %v5682, %v5686
    %5689 = vmatprep.subr.mxu0 0.0
    %5690 = vmatpush1.msra.mxu0 %v5666
    %5691 = vmatprep.subr.mxu0 0.0
    %5692 = vmatpush1.msra.mxu0 %v5667
    %5693 = vmatprep.subr.mxu0 0.0
    %5694 = vmatpush1.msra.mxu0 %v5668
    %5695 = vmatprep.subr.mxu0 0.0
    %5696 = vmatpush1.msra.mxu0 %v5669
    %5697 = vmatprep.subr.mxu0 0.0
    %5698 = vmatpush1.msra.mxu0 %v5670
    %5699 = vmatprep.subr.mxu0 0.0
    %5700 = vmatpush1.msra.mxu0 %v5671
    %5701 = vmatprep.subr.mxu0 0.0
    %5702 = vmatpush1.msra.mxu0 %v5672
    %5703 = vmatprep.subr.mxu0 0.0
    %5704 = vmatpush1.msra.mxu0 %v5673
    %5705 = vmatprep.subr.mxu0 0.0
    %5706 = vmatpush1.msra.mxu0 %v5674
    %5707 = vmatprep.subr.mxu0 0.0
    %5708 = vmatpush1.msra.mxu0 %v5675
    %5709 = vmatprep.subr.mxu0 0.0
    %5710 = vmatpush1.msra.mxu0 %v5676
    %5711 = vmatprep.subr.mxu0 0.0
    %5712 = vmatpush1.msra.mxu0 %v5677
    %5713 = vmatprep.subr.mxu0 0.0
    %5714 = vmatpush1.msra.mxu0 %v5678
    %5715 = vmatprep.subr.mxu0 0.0
    %5716 = vmatpush1.msra.mxu0 %v5679
    %5717 = vmatprep.subr.mxu0 0.0
    %5718 = vmatpush1.msra.mxu0 %v5680
    %5719 = vmatprep.subr.mxu0 0.0
    %5720 = vmatpush1.msra.mxu0 %v5681
    %5721 = vmatprep.subr.mxu0 0.0
    %5722 = vmatpush1.msra.mxu0 0.0
    %5723 = vmatprep.subr.mxu0 0.0
    %5724 = vmatpush1.msra.mxu0 0.0
    %5725 = vmatprep.subr.mxu0 0.0
    %5726 = vmatpush1.msra.mxu0 0.0
    %5727 = vmatprep.subr.mxu0 0.0
    %5728 = vmatpush1.msra.mxu0 0.0
    %5729 = vmatprep.subr.mxu0 0.0
    %5730 = vmatpush1.msra.mxu0 0.0
    %5731 = vmatprep.subr.mxu0 0.0
    %5732 = vmatpush1.msra.mxu0 0.0
    %5733 = vmatprep.subr.mxu0 0.0
    %5734 = vmatpush1.msra.mxu0 0.0
    %5735 = vmatprep.subr.mxu0 0.0
    %5736 = vmatpush1.msra.mxu0 0.0
    %5737 = vmatprep.subr.mxu0 0.0
    %5738 = vmatpush1.msra.mxu0 0.0
    %5739 = vmatprep.subr.mxu0 0.0
    %5740 = vmatpush1.msra.mxu0 0.0
    %5741 = vmatprep.subr.mxu0 0.0
    %5742 = vmatpush1.msra.mxu0 0.0
    %5743 = vmatprep.subr.mxu0 0.0
    %5744 = vmatpush1.msra.mxu0 0.0
    %5745 = vmatprep.subr.mxu0 0.0
    %5746 = vmatpush1.msra.mxu0 0.0
    %5747 = vmatprep.subr.mxu0 0.0
    %5748 = vmatpush1.msra.mxu0 0.0
    %5749 = vmatprep.subr.mxu0 0.0
    %5750 = vmatpush1.msra.mxu0 0.0
    %5751 = vmatprep.subr.mxu0 0.0
    %5752 = vmatpush1.msra.mxu0 0.0
    %5753 = vmatprep.mubr.f32.mxu0 0.0
    %5754 = vmatmul.mubr.f32.gmra.mrb[0].mxu0 %v5664
    %v5755 = vpop.f32.mrb[0].mxu0
    %v5756 = vadd.f32 %v5687, %v5755
    %v5757 = vpop.f32.mrb[0].mxu0
    %5758 = vmatprep.mubr.f32.mxu0 0.0
    %5759 = vmatmul.mubr.f32.gmra.mrb[0].mxu0 %v5665
    %v5760 = vpop.f32.mrb[0].mxu0
    %v5761 = vadd.f32 %v5687, %v5760
    %v5762 = vpop.f32.mrb[0].mxu0
    %5763 = vdwg.mxu0
    %5764 = vst [vmem:[#allocation17] sm:$0xff] %v5756
    %5765 = vst [vmem:[#allocation17 + $0x8] sm:$0xff] %v5761
    // Predicated region
    $region74: #{tpu_custom_call.1} parent=1 // pred_check
      _
    $region75: #{tpu_custom_call.1} parent=1 // pred_check_branch
      %5767 = sbr.rel (0) target = $region77
    $region76: #{tpu_custom_call.1} parent=1 // pred_region
      %s5769 = ssub.s32 256, 256
      %5770 = vsyncadd [#allocation4], %s5769
      %s5771 = sshll.u32 [#allocation17], 4
      %s5772 = int_to_ptr.vmem [resolvable:$true] %s5771
      %5777 = dma.vmem_to_hbm [thread:$0]  %s5772, 256, %s9, [#allocation4], 128, 128, 8
    $region77: #{tpu_custom_call.1} parent=1 // pred_fallthru
      _
    // Predicated region
    $region78: #{tpu_custom_call.1} parent=1 // pred_check
      _
    $region79: #{tpu_custom_call.1} parent=1 // pred_check_branch
      %5779 = sbr.rel (0) target = $region81
    $region80: #{tpu_custom_call.1} parent=1 // pred_region
      %5780 = dma.done [#allocation4], 256
    $region81: #{tpu_custom_call.1} parent=1 // pred_fallthru
      _
    %5781 = vsyncpa [#allocation3], 1
    %5782 = vsyncpa [#allocation6], 1
    %5783 = vsyncpa [#allocation9], 1
    %5784 = vsyncpa [#allocation12], 1
    %5785 = vsyncpa [#allocation15], 1
    %5786 = vsyncpa [#allocation4], 1

// kernel: tpu_custom_call.1
$region0: #{tpu_custom_call.1}
  #allocation0 [shape = 'u32[]', space=smem, size = 0x4, offset = 0x4, fixed_abs, tag = 'smem constant byte address 0x4 - core index']
  #allocation1 [shape = 'u32[144,128]{1,0:T(1,128)}', space=vmem, size = 0x12000, scoped, tag = 'internal scratch']
  %s0 = inlined_call_operand.hbm [shape: f32[16,16,16], index: 0, kind: input, shape index: {}]
  %s1 = inlined_call_operand.hbm [shape: f32[16,16,4], index: 1, kind: input, shape index: {}]
  %s2 = inlined_call_operand.hbm [shape: f32[4,128], index: 2, kind: input, shape index: {}]
  %s3 = inlined_call_operand.hbm [shape: f32[128,128], index: 3, kind: input, shape index: {}]
  %s4 = inlined_call_operand.hbm [shape: f32[256,128], index: 4, kind: input, shape index: {}]
  %s5 = inlined_call_operand.hbm [shape: f32[128,128], index: 5, kind: input, shape index: {}]
  %s6 = inlined_call_operand.hbm [shape: f32[128,128], index: 6, kind: input, shape index: {}]
  %s7 = inlined_call_operand.hbm [shape: f32[1,128], index: 7, kind: input, shape index: {}]
  %s8 = inlined_call_operand.hbm [shape: f32[16,128], index: 8, kind: input, shape index: {}]
  %s9 = inlined_call_operand.hbm [shape: f32[16,128], index: 9, kind: output, shape index: {}]
  %s10 = sld [smem:[#allocation0]]
  $region82: #{tpu_custom_call.1} parent=0
    _
  %s12 = ssub.s32 1, %s10
  %s13 = scalar_select 0, %s12, %s10
  $region1: #{tpu_custom_call.1} parent=0
    #allocation2 [shape = 'u8[131072]{0}', space=vmem, size = 0x20000, scoped, tag = 'input window, operand 0, single buffered']
    #allocation3 [shape = 's32[1]{0}', space=sflag, size = 0x4, scoped, tag = 'scoped memory for tpu_custom_call.1']
    #allocation4 [shape = 's32[1]{0}', space=sflag, size = 0x4, scoped, tag = 'scoped memory for tpu_custom_call.1']
    #allocation5 [shape = 'u8[131072]{0}', space=vmem, size = 0x20000, scoped, tag = 'input window, operand 1, single buffered']
    #allocation6 [shape = 's32[1]{0}', space=sflag, size = 0x4, scoped, tag = 'scoped memory for tpu_custom_call.1']
    #allocation7 [shape = 'u8[2048]{0}', space=vmem, size = 0x800, scoped, tag = 'input window, operand 2, single buffered']
    #allocation8 [shape = 'u8[65536]{0}', space=vmem, size = 0x10000, scoped, tag = 'input window, operand 3, single buffered']
    #allocation9 [shape = 's32[1]{0}', space=sflag, size = 0x4, scoped, tag = 'scoped memory for tpu_custom_call.1']
    #allocation10 [shape = 'u8[131072]{0}', space=vmem, size = 0x20000, scoped, tag = 'input window, operand 4, single buffered']
    #allocation11 [shape = 'u8[65536]{0}', space=vmem, size = 0x10000, scoped, tag = 'input window, operand 5, single buffered']
    #allocation12 [shape = 's32[1]{0}', space=sflag, size = 0x4, scoped, tag = 'scoped memory for tpu_custom_call.1']
    #allocation13 [shape = 'u8[65536]{0}', space=vmem, size = 0x10000, scoped, tag = 'input window, operand 6, single buffered']
    #allocation14 [shape = 'u8[512]{0}', space=vmem, size = 0x400, scoped, tag = 'input window, operand 7, single buffered']
    #allocation15 [shape = 's32[1]{0}', space=sflag, size = 0x4, scoped, tag = 'scoped memory for tpu_custom_call.1']
    #allocation16 [shape = 'u8[8192]{0}', space=vmem, size = 0x2000, scoped, tag = 'input window, operand 8, single buffered']
    #allocation17 [shape = 'u8[8192]{0}', space=vmem, size = 0x2000, scoped, tag = 'output window, operand 0, single buffered']
    %14 = vsyncpa [#allocation3], 0
    %15 = vsyncpa [#allocation6], 0
    %16 = vsyncpa [#allocation9], 0
    %17 = vsyncpa [#allocation12], 0
    %18 = vsyncpa [#allocation15], 0
    %19 = vsyncpa [#allocation4], 0
    // Predicated region
    $region2: #{tpu_custom_call.1} parent=1 // pred_check
      _
    $region3: #{tpu_custom_call.1} parent=1 // pred_check_branch
      %21 = sbr.rel (0) target = $region5
    $region4: #{tpu_custom_call.1} parent=1 // pred_region
      %s23 = ssub.s32 4096, 4096
      %24 = vsyncadd [#allocation3], %s23
      %s25 = sshll.u32 [#allocation2], 4
      %s26 = int_to_ptr.vmem [resolvable:$true] %s25
      %31 = dma.hbm_to_vmem [thread:$0]  %s0, 4096, %s26, [#allocation3], 128, 128, 8
    $region5: #{tpu_custom_call.1} parent=1 // pred_fallthru
      _
    // Predicated region
    $region6: #{tpu_custom_call.1} parent=1 // pred_check
      _
    $region7: #{tpu_custom_call.1} parent=1 // pred_check_branch
      %33 = sbr.rel (0) target = $region9
    $region8: #{tpu_custom_call.1} parent=1 // pred_region
      %s35 = ssub.s32 4096, 4096
      %36 = vsyncadd [#allocation6], %s35
      %s37 = sshll.u32 [#allocation5], 4
      %s38 = int_to_ptr.vmem [resolvable:$true] %s37
      %43 = dma.hbm_to_vmem [thread:$0]  %s1, 4096, %s38, [#allocation6], 128, 128, 8
    $region9: #{tpu_custom_call.1} parent=1 // pred_fallthru
      _
    // Predicated region
    $region10: #{tpu_custom_call.1} parent=1 // pred_check
      _
    $region11: #{tpu_custom_call.1} parent=1 // pred_check_branch
      %45 = sbr.rel (0) target = $region13
    $region12: #{tpu_custom_call.1} parent=1 // pred_region
      %s47 = ssub.s32 64, 64
      %48 = vsyncadd [#allocation6], %s47
      %s50 = sshll.u32 [#allocation7], 4
      %s51 = int_to_ptr.vmem [resolvable:$true] %s50
      %53 = dma.hbm_to_vmem [thread:$0]  %s2, 64, %s51, [#allocation6]
    $region13: #{tpu_custom_call.1} parent=1 // pred_fallthru
      _
    // Predicated region
    $region14: #{tpu_custom_call.1} parent=1 // pred_check
      _
    $region15: #{tpu_custom_call.1} parent=1 // pred_check_branch
      %55 = sbr.rel (0) target = $region17
    $region16: #{tpu_custom_call.1} parent=1 // pred_region
      %s57 = ssub.s32 2048, 2048
      %58 = vsyncadd [#allocation9], %s57
      %s59 = sshll.u32 [#allocation8], 4
      %s60 = int_to_ptr.vmem [resolvable:$true] %s59
      %65 = dma.hbm_to_vmem [thread:$0]  %s3, 2048, %s60, [#allocation9], 128, 128, 8
    $region17: #{tpu_custom_call.1} parent=1 // pred_fallthru
      _
    // Predicated region
    $region18: #{tpu_custom_call.1} parent=1 // pred_check
      _
    $region19: #{tpu_custom_call.1} parent=1 // pred_check_branch
      %67 = sbr.rel (0) target = $region21
    $region20: #{tpu_custom_call.1} parent=1 // pred_region
      %s69 = ssub.s32 4096, 4096
      %70 = vsyncadd [#allocation9], %s69
      %s71 = sshll.u32 [#allocation10], 4
      %s72 = int_to_ptr.vmem [resolvable:$true] %s71
      %77 = dma.hbm_to_vmem [thread:$0]  %s4, 4096, %s72, [#allocation9], 128, 128, 8
    $region21: #{tpu_custom_call.1} parent=1 // pred_fallthru
      _
    // Predicated region
    $region22: #{tpu_custom_call.1} parent=1 // pred_check
      _
    $region23: #{tpu_custom_call.1} parent=1 // pred_check_branch
      %79 = sbr.rel (0) target = $region25
    $region24: #{tpu_custom_call.1} parent=1 // pred_region
      %s81 = ssub.s32 2048, 2048
      %82 = vsyncadd [#allocation12], %s81
      %s83 = sshll.u32 [#allocation11], 4
      %s84 = int_to_ptr.vmem [resolvable:$true] %s83
      %89 = dma.hbm_to_vmem [thread:$0]  %s5, 2048, %s84, [#allocation12], 128, 128, 8
    $region25: #{tpu_custom_call.1} parent=1 // pred_fallthru
      _
    // Predicated region
    $region26: #{tpu_custom_call.1} parent=1 // pred_check
      _
    $region27: #{tpu_custom_call.1} parent=1 // pred_check_branch
      %91 = sbr.rel (0) target = $region29
    $region28: #{tpu_custom_call.1} parent=1 // pred_region
      %s93 = ssub.s32 2048, 2048
      %94 = vsyncadd [#allocation12], %s93
      %s95 = sshll.u32 [#allocation13], 4
      %s96 = int_to_ptr.vmem [resolvable:$true] %s95
      %101 = dma.hbm_to_vmem [thread:$0]  %s6, 2048, %s96, [#allocation12], 128, 128, 8
    $region29: #{tpu_custom_call.1} parent=1 // pred_fallthru
      _
    // Predicated region
    $region30: #{tpu_custom_call.1} parent=1 // pred_check
      _
    $region31: #{tpu_custom_call.1} parent=1 // pred_check_branch
      %103 = sbr.rel (0) target = $region33
    $region32: #{tpu_custom_call.1} parent=1 // pred_region
      %s105 = ssub.s32 16, 16
      %106 = vsyncadd [#allocation15], %s105
      %s108 = sshll.u32 [#allocation14], 4
      %s109 = int_to_ptr.vmem [resolvable:$true] %s108
      %111 = dma.hbm_to_vmem [thread:$0]  %s7, 16, %s109, [#allocation15]
    $region33: #{tpu_custom_call.1} parent=1 // pred_fallthru
      _
    // Predicated region
    $region34: #{tpu_custom_call.1} parent=1 // pred_check
      _
    $region35: #{tpu_custom_call.1} parent=1 // pred_check_branch
      %113 = sbr.rel (0) target = $region37
    $region36: #{tpu_custom_call.1} parent=1 // pred_region
      %s115 = ssub.s32 256, 256
      %116 = vsyncadd [#allocation15], %s115
      %s117 = sshll.u32 [#allocation16], 4
      %s118 = int_to_ptr.vmem [resolvable:$true] %s117
      %123 = dma.hbm_to_vmem [thread:$0]  %s8, 256, %s118, [#allocation15], 128, 128, 8
    $region37: #{tpu_custom_call.1} parent=1 // pred_fallthru
      _
    // Predicated region
    $region38: #{tpu_custom_call.1} parent=1 // pred_check
      _
    $region39: #{tpu_custom_call.1} parent=1 // pred_check_branch
      %125 = sbr.rel (0) target = $region41
    $region40: #{tpu_custom_call.1} parent=1 // pred_region
      %126 = dma.done [#allocation3], 4096
    $region41: #{tpu_custom_call.1} parent=1 // pred_fallthru
      _
    // Predicated region
    $region42: #{tpu_custom_call.1} parent=1 // pred_check
      _
    $region43: #{tpu_custom_call.1} parent=1 // pred_check_branch
      %128 = sbr.rel (0) target = $region45
    $region44: #{tpu_custom_call.1} parent=1 // pred_region
      %129 = dma.done [#allocation6], 4096
    $region45: #{tpu_custom_call.1} parent=1 // pred_fallthru
      _
    // Predicated region
    $region46: #{tpu_custom_call.1} parent=1 // pred_check
      _
    $region47: #{tpu_custom_call.1} parent=1 // pred_check_branch
      %131 = sbr.rel (0) target = $region49
    $region48: #{tpu_custom_call.1} parent=1 // pred_region
      %132 = dma.done [#allocation6], 64
    $region49: #{tpu_custom_call.1} parent=1 // pred_fallthru
      _
    // Predicated region
    $region50: #{tpu_custom_call.1} parent=1 // pred_check
      _
    $region51: #{tpu_custom_call.1} parent=1 // pred_check_branch
      %134 = sbr.rel (0) target = $region53
    $region52: #{tpu_custom_call.1} parent=1 // pred_region
      %135 = dma.done [#allocation9], 2048
    $region53: #{tpu_custom_call.1} parent=1 // pred_fallthru
      _
    // Predicated region
    $region54: #{tpu_custom_call.1} parent=1 // pred_check
      _
    $region55: #{tpu_custom_call.1} parent=1 // pred_check_branch
      %137 = sbr.rel (0) target = $region57
    $region56: #{tpu_custom_call.1} parent=1 // pred_region
      %138 = dma.done [#allocation9], 4096
    $region57: #{tpu_custom_call.1} parent=1 // pred_fallthru
      _
    // Predicated region
    $region58: #{tpu_custom_call.1} parent=1 // pred_check
      _
    $region59: #{tpu_custom_call.1} parent=1 // pred_check_branch
      %140 = sbr.rel (0) target = $region61
    $region60: #{tpu_custom_call.1} parent=1 // pred_region
      %141 = dma.done [#allocation12], 2048
    $region61: #{tpu_custom_call.1} parent=1 // pred_fallthru
      _
    // Predicated region
    $region62: #{tpu_custom_call.1} parent=1 // pred_check
      _
    $region63: #{tpu_custom_call.1} parent=1 // pred_check_branch
      %143 = sbr.rel (0) target = $region65
    $region64: #{tpu_custom_call.1} parent=1 // pred_region
      %144 = dma.done [#allocation12], 2048
    $region65: #{tpu_custom_call.1} parent=1 // pred_fallthru
      _
    // Predicated region
    $region66: #{tpu_custom_call.1} parent=1 // pred_check
      _
    $region67: #{tpu_custom_call.1} parent=1 // pred_check_branch
      %146 = sbr.rel (0) target = $region69
    $region68: #{tpu_custom_call.1} parent=1 // pred_region
      %147 = dma.done [#allocation15], 16
    $region69: #{tpu_custom_call.1} parent=1 // pred_fallthru
      _
    // Predicated region
    $region70: #{tpu_custom_call.1} parent=1 // pred_check
      _
    $region71: #{tpu_custom_call.1} parent=1 // pred_check_branch
      %149 = sbr.rel (0) target = $region73
    $region72: #{tpu_custom_call.1} parent=1 // pred_region
      %150 = dma.done [#allocation15], 256
    $region73: #{tpu_custom_call.1} parent=1 // pred_fallthru
      _
    %v151 = vld [vmem:[#allocation16] sm:$0xff]
    %v152 = vld [vmem:[#allocation16 + $0x8] sm:$0xff]
    %v153 = vlaneseq
    %v154 = vand.u32 %v153, 127
    %vm155 = vcmp.lt.s32.totalorder %v154, 32
    %v156 = vsel %vm155, 1, 0
    %v157 = vcvt.s32.f32 %v156
    %v158 = vlaneseq
    %v159 = vshrl.u32 %v158, 7
    %v160 = vadd.s32 %v159, 8
    %vm161 = vcmp.lt.s32.totalorder %v159, 10
    %vm162 = vcmp.lt.s32.totalorder %v160, 10
    %v163 = vsel %vm161, 1, 0
    %v164 = vsel %vm162, 1, 0
    %v165 = vcvt.s32.f32 %v163
    %v166 = vcvt.s32.f32 %v164
    %v167 = vld [vmem:[#allocation2] sm:$0xff]
    %v168 = vld [vmem:[#allocation2 + $0x8] sm:$0xff]
    %v169 = vld [vmem:[#allocation2 + $0x10] sm:$0xff]
    %v170 = vld [vmem:[#allocation2 + $0x18] sm:$0xff]
    %v171 = vld [vmem:[#allocation2 + $0x20] sm:$0xff]
    %v172 = vld [vmem:[#allocation2 + $0x28] sm:$0xff]
    %v173 = vld [vmem:[#allocation2 + $0x30] sm:$0xff]
    %v174 = vld [vmem:[#allocation2 + $0x38] sm:$0xff]
    %v175 = vld [vmem:[#allocation2 + $0x40] sm:$0xff]
    %v176 = vld [vmem:[#allocation2 + $0x48] sm:$0xff]
    %v177 = vld [vmem:[#allocation2 + $0x50] sm:$0xff]
    %v178 = vld [vmem:[#allocation2 + $0x58] sm:$0xff]
    %v179 = vld [vmem:[#allocation2 + $0x60] sm:$0xff]
    %v180 = vld [vmem:[#allocation2 + $0x68] sm:$0xff]
    %v181 = vld [vmem:[#allocation2 + $0x70] sm:$0xff]
    %v182 = vld [vmem:[#allocation2 + $0x78] sm:$0xff]
    %v183 = vld [vmem:[#allocation2 + $0x80] sm:$0xff]
    %v184 = vld [vmem:[#allocation2 + $0x88] sm:$0xff]
    %v185 = vld [vmem:[#allocation2 + $0x90] sm:$0xff]
    %v186 = vld [vmem:[#allocation2 + $0x98] sm:$0xff]
    %v187 = vld [vmem:[#allocation2 + $0xa0] sm:$0xff]
    %v188 = vld [vmem:[#allocation2 + $0xa8] sm:$0xff]
    %v189 = vld [vmem:[#allocation2 + $0xb0] sm:$0xff]
    %v190 = vld [vmem:[#allocation2 + $0xb8] sm:$0xff]
    %v191 = vld [vmem:[#allocation2 + $0xc0] sm:$0xff]
    %v192 = vld [vmem:[#allocation2 + $0xc8] sm:$0xff]
    %v193 = vld [vmem:[#allocation2 + $0xd0] sm:$0xff]
    %v194 = vld [vmem:[#allocation2 + $0xd8] sm:$0xff]
    %v195 = vld [vmem:[#allocation2 + $0xe0] sm:$0xff]
    %v196 = vld [vmem:[#allocation2 + $0xe8] sm:$0xff]
    %v197 = vld [vmem:[#allocation2 + $0xf0] sm:$0xff]
    %v198 = vld [vmem:[#allocation2 + $0xf8] sm:$0xff]
    %v199 = vld [vmem:[#allocation5] sm:$0xff]
    %v200 = vld [vmem:[#allocation5 + $0x8] sm:$0xff]
    %v201 = vld [vmem:[#allocation5 + $0x10] sm:$0xff]
    %v202 = vld [vmem:[#allocation5 + $0x18] sm:$0xff]
    %v203 = vld [vmem:[#allocation5 + $0x20] sm:$0xff]
    %v204 = vld [vmem:[#allocation5 + $0x28] sm:$0xff]
    %v205 = vld [vmem:[#allocation5 + $0x30] sm:$0xff]
    %v206 = vld [vmem:[#allocation5 + $0x38] sm:$0xff]
    %v207 = vld [vmem:[#allocation5 + $0x40] sm:$0xff]
    %v208 = vld [vmem:[#allocation5 + $0x48] sm:$0xff]
    %v209 = vld [vmem:[#allocation5 + $0x50] sm:$0xff]
    %v210 = vld [vmem:[#allocation5 + $0x58] sm:$0xff]
    %v211 = vld [vmem:[#allocation5 + $0x60] sm:$0xff]
    %v212 = vld [vmem:[#allocation5 + $0x68] sm:$0xff]
    %v213 = vld [vmem:[#allocation5 + $0x70] sm:$0xff]
    %v214 = vld [vmem:[#allocation5 + $0x78] sm:$0xff]
    %v215 = vld [vmem:[#allocation5 + $0x80] sm:$0xff]
    %v216 = vld [vmem:[#allocation5 + $0x88] sm:$0xff]
    %v217 = vld [vmem:[#allocation5 + $0x90] sm:$0xff]
    %v218 = vld [vmem:[#allocation5 + $0x98] sm:$0xff]
    %v219 = vld [vmem:[#allocation5 + $0xa0] sm:$0xff]
    %v220 = vld [vmem:[#allocation5 + $0xa8] sm:$0xff]
    %v221 = vld [vmem:[#allocation5 + $0xb0] sm:$0xff]
    %v222 = vld [vmem:[#allocation5 + $0xb8] sm:$0xff]
    %v223 = vld [vmem:[#allocation5 + $0xc0] sm:$0xff]
    %v224 = vld [vmem:[#allocation5 + $0xc8] sm:$0xff]
    %v225 = vld [vmem:[#allocation5 + $0xd0] sm:$0xff]
    %v226 = vld [vmem:[#allocation5 + $0xd8] sm:$0xff]
    %v227 = vld [vmem:[#allocation5 + $0xe0] sm:$0xff]
    %v228 = vld [vmem:[#allocation5 + $0xe8] sm:$0xff]
    %v229 = vld [vmem:[#allocation5 + $0xf0] sm:$0xff]
    %v230 = vld [vmem:[#allocation5 + $0xf8] sm:$0xff]
    %v231 = vld [vmem:[#allocation7] sm:$0x1]
    %233 = vset.pattern.permute.xlu0 0
    %234 = vperm.xlu0 %233, %v199
    %v235 = vpop.permute.xlu0 %234
    %238 = vset.pattern.permute.xlu0 0
    %239 = vperm.xlu0 %238, %v200
    %v240 = vpop.permute.xlu0 %239
    %243 = vset.pattern.permute.xlu0 0
    %244 = vperm.xlu0 %243, %v201
    %v245 = vpop.permute.xlu0 %244
    %248 = vset.pattern.permute.xlu0 0
    %249 = vperm.xlu0 %248, %v202
    %v250 = vpop.permute.xlu0 %249
    %253 = vset.pattern.permute.xlu0 0
    %254 = vperm.xlu0 %253, %v203
    %v255 = vpop.permute.xlu0 %254
    %258 = vset.pattern.permute.xlu0 0
    %259 = vperm.xlu0 %258, %v204
    %v260 = vpop.permute.xlu0 %259
    %263 = vset.pattern.permute.xlu0 0
    %264 = vperm.xlu0 %263, %v205
    %v265 = vpop.permute.xlu0 %264
    %268 = vset.pattern.permute.xlu0 0
    %269 = vperm.xlu0 %268, %v206
    %v270 = vpop.permute.xlu0 %269
    %273 = vset.pattern.permute.xlu0 0
    %274 = vperm.xlu0 %273, %v207
    %v275 = vpop.permute.xlu0 %274
    %278 = vset.pattern.permute.xlu0 0
    %279 = vperm.xlu0 %278, %v208
    %v280 = vpop.permute.xlu0 %279
    %283 = vset.pattern.permute.xlu0 0
    %284 = vperm.xlu0 %283, %v209
    %v285 = vpop.permute.xlu0 %284
    %288 = vset.pattern.permute.xlu0 0
    %289 = vperm.xlu0 %288, %v210
    %v290 = vpop.permute.xlu0 %289
    %293 = vset.pattern.permute.xlu0 0
    %294 = vperm.xlu0 %293, %v211
    %v295 = vpop.permute.xlu0 %294
    %298 = vset.pattern.permute.xlu0 0
    %299 = vperm.xlu0 %298, %v212
    %v300 = vpop.permute.xlu0 %299
    %303 = vset.pattern.permute.xlu0 0
    %304 = vperm.xlu0 %303, %v213
    %v305 = vpop.permute.xlu0 %304
    %308 = vset.pattern.permute.xlu0 0
    %309 = vperm.xlu0 %308, %v214
    %v310 = vpop.permute.xlu0 %309
    %313 = vset.pattern.permute.xlu0 0
    %314 = vperm.xlu0 %313, %v215
    %v315 = vpop.permute.xlu0 %314
    %318 = vset.pattern.permute.xlu0 0
    %319 = vperm.xlu0 %318, %v216
    %v320 = vpop.permute.xlu0 %319
    %323 = vset.pattern.permute.xlu0 0
    %324 = vperm.xlu0 %323, %v217
    %v325 = vpop.permute.xlu0 %324
    %328 = vset.pattern.permute.xlu0 0
    %329 = vperm.xlu0 %328, %v218
    %v330 = vpop.permute.xlu0 %329
    %333 = vset.pattern.permute.xlu0 0
    %334 = vperm.xlu0 %333, %v219
    %v335 = vpop.permute.xlu0 %334
    %338 = vset.pattern.permute.xlu0 0
    %339 = vperm.xlu0 %338, %v220
    %v340 = vpop.permute.xlu0 %339
    %343 = vset.pattern.permute.xlu0 0
    %344 = vperm.xlu0 %343, %v221
    %v345 = vpop.permute.xlu0 %344
    %348 = vset.pattern.permute.xlu0 0
    %349 = vperm.xlu0 %348, %v222
    %v350 = vpop.permute.xlu0 %349
    %353 = vset.pattern.permute.xlu0 0
    %354 = vperm.xlu0 %353, %v223
    %v355 = vpop.permute.xlu0 %354
    %358 = vset.pattern.permute.xlu0 0
    %359 = vperm.xlu0 %358, %v224
    %v360 = vpop.permute.xlu0 %359
    %363 = vset.pattern.permute.xlu0 0
    %364 = vperm.xlu0 %363, %v225
    %v365 = vpop.permute.xlu0 %364
    %368 = vset.pattern.permute.xlu0 0
    %369 = vperm.xlu0 %368, %v226
    %v370 = vpop.permute.xlu0 %369
    %373 = vset.pattern.permute.xlu0 0
    %374 = vperm.xlu0 %373, %v227
    %v375 = vpop.permute.xlu0 %374
    %378 = vset.pattern.permute.xlu0 0
    %379 = vperm.xlu0 %378, %v228
    %v380 = vpop.permute.xlu0 %379
    %383 = vset.pattern.permute.xlu0 0
    %384 = vperm.xlu0 %383, %v229
    %v385 = vpop.permute.xlu0 %384
    %388 = vset.pattern.permute.xlu0 0
    %389 = vperm.xlu0 %388, %v230
    %v390 = vpop.permute.xlu0 %389
    %v392 = vlaneseq
    %v393 = vshrl.u32 %v392, 7
    %v394 = vsub.s32 0, %v393
    %v395 = vrot.slane %v231, %v394
    %v396 = vmul.f32 %v235, %v395
    %v397 = vmul.f32 %v240, %v395
    %v398 = vmul.f32 %v245, %v395
    %v399 = vmul.f32 %v250, %v395
    %v400 = vmul.f32 %v255, %v395
    %v401 = vmul.f32 %v260, %v395
    %v402 = vmul.f32 %v265, %v395
    %v403 = vmul.f32 %v270, %v395
    %v404 = vmul.f32 %v275, %v395
    %v405 = vmul.f32 %v280, %v395
    %v406 = vmul.f32 %v285, %v395
    %v407 = vmul.f32 %v290, %v395
    %v408 = vmul.f32 %v295, %v395
    %v409 = vmul.f32 %v300, %v395
    %v410 = vmul.f32 %v305, %v395
    %v411 = vmul.f32 %v310, %v395
    %v412 = vmul.f32 %v315, %v395
    %v413 = vmul.f32 %v320, %v395
    %v414 = vmul.f32 %v325, %v395
    %v415 = vmul.f32 %v330, %v395
    %v416 = vmul.f32 %v335, %v395
    %v417 = vmul.f32 %v340, %v395
    %v418 = vmul.f32 %v345, %v395
    %v419 = vmul.f32 %v350, %v395
    %v420 = vmul.f32 %v355, %v395
    %v421 = vmul.f32 %v360, %v395
    %v422 = vmul.f32 %v365, %v395
    %v423 = vmul.f32 %v370, %v395
    %v424 = vmul.f32 %v375, %v395
    %v425 = vmul.f32 %v380, %v395
    %v426 = vmul.f32 %v385, %v395
    %v427 = vmul.f32 %v390, %v395
    %v428 = vld [vmem:[#allocation7 + $0x1] sm:$0x1]
    %429 = vset.pattern.permute.xlu0 1
    %430 = vperm.xlu0 %429, %v199
    %v431 = vpop.permute.xlu0 %430
    %433 = vset.pattern.permute.xlu0 1
    %434 = vperm.xlu0 %433, %v200
    %v435 = vpop.permute.xlu0 %434
    %437 = vset.pattern.permute.xlu0 1
    %438 = vperm.xlu0 %437, %v201
    %v439 = vpop.permute.xlu0 %438
    %441 = vset.pattern.permute.xlu0 1
    %442 = vperm.xlu0 %441, %v202
    %v443 = vpop.permute.xlu0 %442
    %445 = vset.pattern.permute.xlu0 1
    %446 = vperm.xlu0 %445, %v203
    %v447 = vpop.permute.xlu0 %446
    %449 = vset.pattern.permute.xlu0 1
    %450 = vperm.xlu0 %449, %v204
    %v451 = vpop.permute.xlu0 %450
    %453 = vset.pattern.permute.xlu0 1
    %454 = vperm.xlu0 %453, %v205
    %v455 = vpop.permute.xlu0 %454
    %457 = vset.pattern.permute.xlu0 1
    %458 = vperm.xlu0 %457, %v206
    %v459 = vpop.permute.xlu0 %458
    %461 = vset.pattern.permute.xlu0 1
    %462 = vperm.xlu0 %461, %v207
    %v463 = vpop.permute.xlu0 %462
    %465 = vset.pattern.permute.xlu0 1
    %466 = vperm.xlu0 %465, %v208
    %v467 = vpop.permute.xlu0 %466
    %469 = vset.pattern.permute.xlu0 1
    %470 = vperm.xlu0 %469, %v209
    %v471 = vpop.permute.xlu0 %470
    %473 = vset.pattern.permute.xlu0 1
    %474 = vperm.xlu0 %473, %v210
    %v475 = vpop.permute.xlu0 %474
    %477 = vset.pattern.permute.xlu0 1
    %478 = vperm.xlu0 %477, %v211
    %v479 = vpop.permute.xlu0 %478
    %481 = vset.pattern.permute.xlu0 1
    %482 = vperm.xlu0 %481, %v212
    %v483 = vpop.permute.xlu0 %482
    %485 = vset.pattern.permute.xlu0 1
    %486 = vperm.xlu0 %485, %v213
    %v487 = vpop.permute.xlu0 %486
    %489 = vset.pattern.permute.xlu0 1
    %490 = vperm.xlu0 %489, %v214
    %v491 = vpop.permute.xlu0 %490
    %493 = vset.pattern.permute.xlu0 1
    %494 = vperm.xlu0 %493, %v215
    %v495 = vpop.permute.xlu0 %494
    %497 = vset.pattern.permute.xlu0 1
    %498 = vperm.xlu0 %497, %v216
    %v499 = vpop.permute.xlu0 %498
    %501 = vset.pattern.permute.xlu0 1
    %502 = vperm.xlu0 %501, %v217
    %v503 = vpop.permute.xlu0 %502
    %505 = vset.pattern.permute.xlu0 1
    %506 = vperm.xlu0 %505, %v218
    %v507 = vpop.permute.xlu0 %506
    %509 = vset.pattern.permute.xlu0 1
    %510 = vperm.xlu0 %509, %v219
    %v511 = vpop.permute.xlu0 %510
    %513 = vset.pattern.permute.xlu0 1
    %514 = vperm.xlu0 %513, %v220
    %v515 = vpop.permute.xlu0 %514
    %517 = vset.pattern.permute.xlu0 1
    %518 = vperm.xlu0 %517, %v221
    %v519 = vpop.permute.xlu0 %518
    %521 = vset.pattern.permute.xlu0 1
    %522 = vperm.xlu0 %521, %v222
    %v523 = vpop.permute.xlu0 %522
    %525 = vset.pattern.permute.xlu0 1
    %526 = vperm.xlu0 %525, %v223
    %v527 = vpop.permute.xlu0 %526
    %529 = vset.pattern.permute.xlu0 1
    %530 = vperm.xlu0 %529, %v224
    %v531 = vpop.permute.xlu0 %530
    %533 = vset.pattern.permute.xlu0 1
    %534 = vperm.xlu0 %533, %v225
    %v535 = vpop.permute.xlu0 %534
    %537 = vset.pattern.permute.xlu0 1
    %538 = vperm.xlu0 %537, %v226
    %v539 = vpop.permute.xlu0 %538
    %541 = vset.pattern.permute.xlu0 1
    %542 = vperm.xlu0 %541, %v227
    %v543 = vpop.permute.xlu0 %542
    %545 = vset.pattern.permute.xlu0 1
    %546 = vperm.xlu0 %545, %v228
    %v547 = vpop.permute.xlu0 %546
    %549 = vset.pattern.permute.xlu0 1
    %550 = vperm.xlu0 %549, %v229
    %v551 = vpop.permute.xlu0 %550
    %553 = vset.pattern.permute.xlu0 1
    %554 = vperm.xlu0 %553, %v230
    %v555 = vpop.permute.xlu0 %554
    %v557 = vlaneseq
    %v558 = vshrl.u32 %v557, 7
    %v559 = vsub.s32 0, %v558
    %v560 = vrot.slane %v428, %v559
    %v561 = vmul.f32 %v431, %v560
    %v562 = vmul.f32 %v435, %v560
    %v563 = vmul.f32 %v439, %v560
    %v564 = vmul.f32 %v443, %v560
    %v565 = vmul.f32 %v447, %v560
    %v566 = vmul.f32 %v451, %v560
    %v567 = vmul.f32 %v455, %v560
    %v568 = vmul.f32 %v459, %v560
    %v569 = vmul.f32 %v463, %v560
    %v570 = vmul.f32 %v467, %v560
    %v571 = vmul.f32 %v471, %v560
    %v572 = vmul.f32 %v475, %v560
    %v573 = vmul.f32 %v479, %v560
    %v574 = vmul.f32 %v483, %v560
    %v575 = vmul.f32 %v487, %v560
    %v576 = vmul.f32 %v491, %v560
    %v577 = vmul.f32 %v495, %v560
    %v578 = vmul.f32 %v499, %v560
    %v579 = vmul.f32 %v503, %v560
    %v580 = vmul.f32 %v507, %v560
    %v581 = vmul.f32 %v511, %v560
    %v582 = vmul.f32 %v515, %v560
    %v583 = vmul.f32 %v519, %v560
    %v584 = vmul.f32 %v523, %v560
    %v585 = vmul.f32 %v527, %v560
    %v586 = vmul.f32 %v531, %v560
    %v587 = vmul.f32 %v535, %v560
    %v588 = vmul.f32 %v539, %v560
    %v589 = vmul.f32 %v543, %v560
    %v590 = vmul.f32 %v547, %v560
    %v591 = vmul.f32 %v551, %v560
    %v592 = vmul.f32 %v555, %v560
    %v593 = vadd.f32 %v396, %v561
    %v594 = vadd.f32 %v397, %v562
    %v595 = vadd.f32 %v398, %v563
    %v596 = vadd.f32 %v399, %v564
    %v597 = vadd.f32 %v400, %v565
    %v598 = vadd.f32 %v401, %v566
    %v599 = vadd.f32 %v402, %v567
    %v600 = vadd.f32 %v403, %v568
    %v601 = vadd.f32 %v404, %v569
    %v602 = vadd.f32 %v405, %v570
    %v603 = vadd.f32 %v406, %v571
    %v604 = vadd.f32 %v407, %v572
    %v605 = vadd.f32 %v408, %v573
    %v606 = vadd.f32 %v409, %v574
    %v607 = vadd.f32 %v410, %v575
    %v608 = vadd.f32 %v411, %v576
    %v609 = vadd.f32 %v412, %v577
    %v610 = vadd.f32 %v413, %v578
    %v611 = vadd.f32 %v414, %v579
    %v612 = vadd.f32 %v415, %v580
    %v613 = vadd.f32 %v416, %v581
    %v614 = vadd.f32 %v417, %v582
    %v615 = vadd.f32 %v418, %v583
    %v616 = vadd.f32 %v419, %v584
    %v617 = vadd.f32 %v420, %v585
    %v618 = vadd.f32 %v421, %v586
    %v619 = vadd.f32 %v422, %v587
    %v620 = vadd.f32 %v423, %v588
    %v621 = vadd.f32 %v424, %v589
    %v622 = vadd.f32 %v425, %v590
    %v623 = vadd.f32 %v426, %v591
    %v624 = vadd.f32 %v427, %v592
    %v625 = vld [vmem:[#allocation7 + $0x2] sm:$0x1]
    %626 = vset.pattern.permute.xlu0 2
    %627 = vperm.xlu0 %626, %v199
    %v628 = vpop.permute.xlu0 %627
    %630 = vset.pattern.permute.xlu0 2
    %631 = vperm.xlu0 %630, %v200
    %v632 = vpop.permute.xlu0 %631
    %634 = vset.pattern.permute.xlu0 2
    %635 = vperm.xlu0 %634, %v201
    %v636 = vpop.permute.xlu0 %635
    %638 = vset.pattern.permute.xlu0 2
    %639 = vperm.xlu0 %638, %v202
    %v640 = vpop.permute.xlu0 %639
    %642 = vset.pattern.permute.xlu0 2
    %643 = vperm.xlu0 %642, %v203
    %v644 = vpop.permute.xlu0 %643
    %646 = vset.pattern.permute.xlu0 2
    %647 = vperm.xlu0 %646, %v204
    %v648 = vpop.permute.xlu0 %647
    %650 = vset.pattern.permute.xlu0 2
    %651 = vperm.xlu0 %650, %v205
    %v652 = vpop.permute.xlu0 %651
    %654 = vset.pattern.permute.xlu0 2
    %655 = vperm.xlu0 %654, %v206
    %v656 = vpop.permute.xlu0 %655
    %658 = vset.pattern.permute.xlu0 2
    %659 = vperm.xlu0 %658, %v207
    %v660 = vpop.permute.xlu0 %659
    %662 = vset.pattern.permute.xlu0 2
    %663 = vperm.xlu0 %662, %v208
    %v664 = vpop.permute.xlu0 %663
    %666 = vset.pattern.permute.xlu0 2
    %667 = vperm.xlu0 %666, %v209
    %v668 = vpop.permute.xlu0 %667
    %670 = vset.pattern.permute.xlu0 2
    %671 = vperm.xlu0 %670, %v210
    %v672 = vpop.permute.xlu0 %671
    %674 = vset.pattern.permute.xlu0 2
    %675 = vperm.xlu0 %674, %v211
    %v676 = vpop.permute.xlu0 %675
    %678 = vset.pattern.permute.xlu0 2
    %679 = vperm.xlu0 %678, %v212
    %v680 = vpop.permute.xlu0 %679
    %682 = vset.pattern.permute.xlu0 2
    %683 = vperm.xlu0 %682, %v213
    %v684 = vpop.permute.xlu0 %683
    %686 = vset.pattern.permute.xlu0 2
    %687 = vperm.xlu0 %686, %v214
    %v688 = vpop.permute.xlu0 %687
    %690 = vset.pattern.permute.xlu0 2
    %691 = vperm.xlu0 %690, %v215
    %v692 = vpop.permute.xlu0 %691
    %694 = vset.pattern.permute.xlu0 2
    %695 = vperm.xlu0 %694, %v216
    %v696 = vpop.permute.xlu0 %695
    %698 = vset.pattern.permute.xlu0 2
    %699 = vperm.xlu0 %698, %v217
    %v700 = vpop.permute.xlu0 %699
    %702 = vset.pattern.permute.xlu0 2
    %703 = vperm.xlu0 %702, %v218
    %v704 = vpop.permute.xlu0 %703
    %706 = vset.pattern.permute.xlu0 2
    %707 = vperm.xlu0 %706, %v219
    %v708 = vpop.permute.xlu0 %707
    %710 = vset.pattern.permute.xlu0 2
    %711 = vperm.xlu0 %710, %v220
    %v712 = vpop.permute.xlu0 %711
    %714 = vset.pattern.permute.xlu0 2
    %715 = vperm.xlu0 %714, %v221
    %v716 = vpop.permute.xlu0 %715
    %718 = vset.pattern.permute.xlu0 2
    %719 = vperm.xlu0 %718, %v222
    %v720 = vpop.permute.xlu0 %719
    %722 = vset.pattern.permute.xlu0 2
    %723 = vperm.xlu0 %722, %v223
    %v724 = vpop.permute.xlu0 %723
    %726 = vset.pattern.permute.xlu0 2
    %727 = vperm.xlu0 %726, %v224
    %v728 = vpop.permute.xlu0 %727
    %730 = vset.pattern.permute.xlu0 2
    %731 = vperm.xlu0 %730, %v225
    %v732 = vpop.permute.xlu0 %731
    %734 = vset.pattern.permute.xlu0 2
    %735 = vperm.xlu0 %734, %v226
    %v736 = vpop.permute.xlu0 %735
    %738 = vset.pattern.permute.xlu0 2
    %739 = vperm.xlu0 %738, %v227
    %v740 = vpop.permute.xlu0 %739
    %742 = vset.pattern.permute.xlu0 2
    %743 = vperm.xlu0 %742, %v228
    %v744 = vpop.permute.xlu0 %743
    %746 = vset.pattern.permute.xlu0 2
    %747 = vperm.xlu0 %746, %v229
    %v748 = vpop.permute.xlu0 %747
    %750 = vset.pattern.permute.xlu0 2
    %751 = vperm.xlu0 %750, %v230
    %v752 = vpop.permute.xlu0 %751
    %v754 = vlaneseq
    %v755 = vshrl.u32 %v754, 7
    %v756 = vsub.s32 0, %v755
    %v757 = vrot.slane %v625, %v756
    %v758 = vmul.f32 %v628, %v757
    %v759 = vmul.f32 %v632, %v757
    %v760 = vmul.f32 %v636, %v757
    %v761 = vmul.f32 %v640, %v757
    %v762 = vmul.f32 %v644, %v757
    %v763 = vmul.f32 %v648, %v757
    %v764 = vmul.f32 %v652, %v757
    %v765 = vmul.f32 %v656, %v757
    %v766 = vmul.f32 %v660, %v757
    %v767 = vmul.f32 %v664, %v757
    %v768 = vmul.f32 %v668, %v757
    %v769 = vmul.f32 %v672, %v757
    %v770 = vmul.f32 %v676, %v757
    %v771 = vmul.f32 %v680, %v757
    %v772 = vmul.f32 %v684, %v757
    %v773 = vmul.f32 %v688, %v757
    %v774 = vmul.f32 %v692, %v757
    %v775 = vmul.f32 %v696, %v757
    %v776 = vmul.f32 %v700, %v757
    %v777 = vmul.f32 %v704, %v757
    %v778 = vmul.f32 %v708, %v757
    %v779 = vmul.f32 %v712, %v757
    %v780 = vmul.f32 %v716, %v757
    %v781 = vmul.f32 %v720, %v757
    %v782 = vmul.f32 %v724, %v757
    %v783 = vmul.f32 %v728, %v757
    %v784 = vmul.f32 %v732, %v757
    %v785 = vmul.f32 %v736, %v757
    %v786 = vmul.f32 %v740, %v757
    %v787 = vmul.f32 %v744, %v757
    %v788 = vmul.f32 %v748, %v757
    %v789 = vmul.f32 %v752, %v757
    %v790 = vadd.f32 %v593, %v758
    %v791 = vadd.f32 %v594, %v759
    %v792 = vadd.f32 %v595, %v760
    %v793 = vadd.f32 %v596, %v761
    %v794 = vadd.f32 %v597, %v762
    %v795 = vadd.f32 %v598, %v763
    %v796 = vadd.f32 %v599, %v764
    %v797 = vadd.f32 %v600, %v765
    %v798 = vadd.f32 %v601, %v766
    %v799 = vadd.f32 %v602, %v767
    %v800 = vadd.f32 %v603, %v768
    %v801 = vadd.f32 %v604, %v769
    %v802 = vadd.f32 %v605, %v770
    %v803 = vadd.f32 %v606, %v771
    %v804 = vadd.f32 %v607, %v772
    %v805 = vadd.f32 %v608, %v773
    %v806 = vadd.f32 %v609, %v774
    %v807 = vadd.f32 %v610, %v775
    %v808 = vadd.f32 %v611, %v776
    %v809 = vadd.f32 %v612, %v777
    %v810 = vadd.f32 %v613, %v778
    %v811 = vadd.f32 %v614, %v779
    %v812 = vadd.f32 %v615, %v780
    %v813 = vadd.f32 %v616, %v781
    %v814 = vadd.f32 %v617, %v782
    %v815 = vadd.f32 %v618, %v783
    %v816 = vadd.f32 %v619, %v784
    %v817 = vadd.f32 %v620, %v785
    %v818 = vadd.f32 %v621, %v786
    %v819 = vadd.f32 %v622, %v787
    %v820 = vadd.f32 %v623, %v788
    %v821 = vadd.f32 %v624, %v789
    %v822 = vld [vmem:[#allocation7 + $0x3] sm:$0x1]
    %823 = vset.pattern.permute.xlu0 3
    %824 = vperm.xlu0 %823, %v199
    %v825 = vpop.permute.xlu0 %824
    %827 = vset.pattern.permute.xlu0 3
    %828 = vperm.xlu0 %827, %v200
    %v829 = vpop.permute.xlu0 %828
    %831 = vset.pattern.permute.xlu0 3
    %832 = vperm.xlu0 %831, %v201
    %v833 = vpop.permute.xlu0 %832
    %835 = vset.pattern.permute.xlu0 3
    %836 = vperm.xlu0 %835, %v202
    %v837 = vpop.permute.xlu0 %836
    %839 = vset.pattern.permute.xlu0 3
    %840 = vperm.xlu0 %839, %v203
    %v841 = vpop.permute.xlu0 %840
    %843 = vset.pattern.permute.xlu0 3
    %844 = vperm.xlu0 %843, %v204
    %v845 = vpop.permute.xlu0 %844
    %847 = vset.pattern.permute.xlu0 3
    %848 = vperm.xlu0 %847, %v205
    %v849 = vpop.permute.xlu0 %848
    %851 = vset.pattern.permute.xlu0 3
    %852 = vperm.xlu0 %851, %v206
    %v853 = vpop.permute.xlu0 %852
    %855 = vset.pattern.permute.xlu0 3
    %856 = vperm.xlu0 %855, %v207
    %v857 = vpop.permute.xlu0 %856
    %859 = vset.pattern.permute.xlu0 3
    %860 = vperm.xlu0 %859, %v208
    %v861 = vpop.permute.xlu0 %860
    %863 = vset.pattern.permute.xlu0 3
    %864 = vperm.xlu0 %863, %v209
    %v865 = vpop.permute.xlu0 %864
    %867 = vset.pattern.permute.xlu0 3
    %868 = vperm.xlu0 %867, %v210
    %v869 = vpop.permute.xlu0 %868
    %871 = vset.pattern.permute.xlu0 3
    %872 = vperm.xlu0 %871, %v211
    %v873 = vpop.permute.xlu0 %872
    %875 = vset.pattern.permute.xlu0 3
    %876 = vperm.xlu0 %875, %v212
    %v877 = vpop.permute.xlu0 %876
    %879 = vset.pattern.permute.xlu0 3
    %880 = vperm.xlu0 %879, %v213
    %v881 = vpop.permute.xlu0 %880
    %883 = vset.pattern.permute.xlu0 3
    %884 = vperm.xlu0 %883, %v214
    %v885 = vpop.permute.xlu0 %884
    %887 = vset.pattern.permute.xlu0 3
    %888 = vperm.xlu0 %887, %v215
    %v889 = vpop.permute.xlu0 %888
    %891 = vset.pattern.permute.xlu0 3
    %892 = vperm.xlu0 %891, %v216
    %v893 = vpop.permute.xlu0 %892
    %895 = vset.pattern.permute.xlu0 3
    %896 = vperm.xlu0 %895, %v217
    %v897 = vpop.permute.xlu0 %896
    %899 = vset.pattern.permute.xlu0 3
    %900 = vperm.xlu0 %899, %v218
    %v901 = vpop.permute.xlu0 %900
    %903 = vset.pattern.permute.xlu0 3
    %904 = vperm.xlu0 %903, %v219
    %v905 = vpop.permute.xlu0 %904
    %907 = vset.pattern.permute.xlu0 3
    %908 = vperm.xlu0 %907, %v220
    %v909 = vpop.permute.xlu0 %908
    %911 = vset.pattern.permute.xlu0 3
    %912 = vperm.xlu0 %911, %v221
    %v913 = vpop.permute.xlu0 %912
    %915 = vset.pattern.permute.xlu0 3
    %916 = vperm.xlu0 %915, %v222
    %v917 = vpop.permute.xlu0 %916
    %919 = vset.pattern.permute.xlu0 3
    %920 = vperm.xlu0 %919, %v223
    %v921 = vpop.permute.xlu0 %920
    %923 = vset.pattern.permute.xlu0 3
    %924 = vperm.xlu0 %923, %v224
    %v925 = vpop.permute.xlu0 %924
    %927 = vset.pattern.permute.xlu0 3
    %928 = vperm.xlu0 %927, %v225
    %v929 = vpop.permute.xlu0 %928
    %931 = vset.pattern.permute.xlu0 3
    %932 = vperm.xlu0 %931, %v226
    %v933 = vpop.permute.xlu0 %932
    %935 = vset.pattern.permute.xlu0 3
    %936 = vperm.xlu0 %935, %v227
    %v937 = vpop.permute.xlu0 %936
    %939 = vset.pattern.permute.xlu0 3
    %940 = vperm.xlu0 %939, %v228
    %v941 = vpop.permute.xlu0 %940
    %943 = vset.pattern.permute.xlu0 3
    %944 = vperm.xlu0 %943, %v229
    %v945 = vpop.permute.xlu0 %944
    %947 = vset.pattern.permute.xlu0 3
    %948 = vperm.xlu0 %947, %v230
    %v949 = vpop.permute.xlu0 %948
    %v951 = vlaneseq
    %v952 = vshrl.u32 %v951, 7
    %v953 = vsub.s32 0, %v952
    %v954 = vrot.slane %v822, %v953
    %v955 = vmul.f32 %v825, %v954
    %v956 = vmul.f32 %v829, %v954
    %v957 = vmul.f32 %v833, %v954
    %v958 = vmul.f32 %v837, %v954
    %v959 = vmul.f32 %v841, %v954
    %v960 = vmul.f32 %v845, %v954
    %v961 = vmul.f32 %v849, %v954
    %v962 = vmul.f32 %v853, %v954
    %v963 = vmul.f32 %v857, %v954
    %v964 = vmul.f32 %v861, %v954
    %v965 = vmul.f32 %v865, %v954
    %v966 = vmul.f32 %v869, %v954
    %v967 = vmul.f32 %v873, %v954
    %v968 = vmul.f32 %v877, %v954
    %v969 = vmul.f32 %v881, %v954
    %v970 = vmul.f32 %v885, %v954
    %v971 = vmul.f32 %v889, %v954
    %v972 = vmul.f32 %v893, %v954
    %v973 = vmul.f32 %v897, %v954
    %v974 = vmul.f32 %v901, %v954
    %v975 = vmul.f32 %v905, %v954
    %v976 = vmul.f32 %v909, %v954
    %v977 = vmul.f32 %v913, %v954
    %v978 = vmul.f32 %v917, %v954
    %v979 = vmul.f32 %v921, %v954
    %v980 = vmul.f32 %v925, %v954
    %v981 = vmul.f32 %v929, %v954
    %v982 = vmul.f32 %v933, %v954
    %v983 = vmul.f32 %v937, %v954
    %v984 = vmul.f32 %v941, %v954
    %v985 = vmul.f32 %v945, %v954
    %v986 = vmul.f32 %v949, %v954
    %v987 = vadd.f32 %v790, %v955
    %v988 = vadd.f32 %v791, %v956
    %v989 = vadd.f32 %v792, %v957
    %v990 = vadd.f32 %v793, %v958
    %v991 = vadd.f32 %v794, %v959
    %v992 = vadd.f32 %v795, %v960
    %v993 = vadd.f32 %v796, %v961
    %v994 = vadd.f32 %v797, %v962
    %v995 = vadd.f32 %v798, %v963
    %v996 = vadd.f32 %v799, %v964
    %v997 = vadd.f32 %v800, %v965
    %v998 = vadd.f32 %v801, %v966
    %v999 = vadd.f32 %v802, %v967
    %v1000 = vadd.f32 %v803, %v968
    %v1001 = vadd.f32 %v804, %v969
    %v1002 = vadd.f32 %v805, %v970
    %v1003 = vadd.f32 %v806, %v971
    %v1004 = vadd.f32 %v807, %v972
    %v1005 = vadd.f32 %v808, %v973
    %v1006 = vadd.f32 %v809, %v974
    %v1007 = vadd.f32 %v810, %v975
    %v1008 = vadd.f32 %v811, %v976
    %v1009 = vadd.f32 %v812, %v977
    %v1010 = vadd.f32 %v813, %v978
    %v1011 = vadd.f32 %v814, %v979
    %v1012 = vadd.f32 %v815, %v980
    %v1013 = vadd.f32 %v816, %v981
    %v1014 = vadd.f32 %v817, %v982
    %v1015 = vadd.f32 %v818, %v983
    %v1016 = vadd.f32 %v819, %v984
    %v1017 = vadd.f32 %v820, %v985
    %v1018 = vadd.f32 %v821, %v986
    %vm1019 = vcmask 130048
    %v1021 = vsel %vm1019, %v167, 0
    %v1024 = vsel %vm1019, %v168, 0
    %1026 = vmatprep.subr.mxu0 0.0
    %1027 = vmatpush1.msra.mxu0 %v987
    %1028 = vmatprep.subr.mxu0 0.0
    %1029 = vmatpush1.msra.mxu0 %v988
    %1030 = vmatprep.subr.mxu0 0.0
    %1031 = vmatpush1.msra.mxu0 0.0
    %1032 = vmatprep.subr.mxu0 0.0
    %1033 = vmatpush1.msra.mxu0 0.0
    %1034 = vmatprep.subr.mxu0 0.0
    %1035 = vmatpush1.msra.mxu0 0.0
    %1036 = vmatprep.subr.mxu0 0.0
    %1037 = vmatpush1.msra.mxu0 0.0
    %1038 = vmatprep.subr.mxu0 0.0
    %1039 = vmatpush1.msra.mxu0 0.0
    %1040 = vmatprep.subr.mxu0 0.0
    %1041 = vmatpush1.msra.mxu0 0.0
    %1042 = vmatprep.subr.mxu0 0.0
    %1043 = vmatpush1.msra.mxu0 0.0
    %1044 = vmatprep.subr.mxu0 0.0
    %1045 = vmatpush1.msra.mxu0 0.0
    %1046 = vmatprep.subr.mxu0 0.0
    %1047 = vmatpush1.msra.mxu0 0.0
    %1048 = vmatprep.subr.mxu0 0.0
    %1049 = vmatpush1.msra.mxu0 0.0
    %1050 = vmatprep.subr.mxu0 0.0
    %1051 = vmatpush1.msra.mxu0 0.0
    %1052 = vmatprep.subr.mxu0 0.0
    %1053 = vmatpush1.msra.mxu0 0.0
    %1054 = vmatprep.subr.mxu0 0.0
    %1055 = vmatpush1.msra.mxu0 0.0
    %1056 = vmatprep.subr.mxu0 0.0
    %1057 = vmatpush1.msra.mxu0 0.0
    %1058 = vmatprep.subr.mxu0 0.0
    %1059 = vmatpush1.msra.mxu0 0.0
    %1060 = vmatprep.subr.mxu0 0.0
    %1061 = vmatpush1.msra.mxu0 0.0
    %1062 = vmatprep.subr.mxu0 0.0
    %1063 = vmatpush1.msra.mxu0 0.0
    %1064 = vmatprep.subr.mxu0 0.0
    %1065 = vmatpush1.msra.mxu0 0.0
    %1066 = vmatprep.subr.mxu0 0.0
    %1067 = vmatpush1.msra.mxu0 0.0
    %1068 = vmatprep.subr.mxu0 0.0
    %1069 = vmatpush1.msra.mxu0 0.0
    %1070 = vmatprep.subr.mxu0 0.0
    %1071 = vmatpush1.msra.mxu0 0.0
    %1072 = vmatprep.subr.mxu0 0.0
    %1073 = vmatpush1.msra.mxu0 0.0
    %1074 = vmatprep.subr.mxu0 0.0
    %1075 = vmatpush1.msra.mxu0 0.0
    %1076 = vmatprep.subr.mxu0 0.0
    %1077 = vmatpush1.msra.mxu0 0.0
    %1078 = vmatprep.subr.mxu0 0.0
    %1079 = vmatpush1.msra.mxu0 0.0
    %1080 = vmatprep.subr.mxu0 0.0
    %1081 = vmatpush1.msra.mxu0 0.0
    %1082 = vmatprep.subr.mxu0 0.0
    %1083 = vmatpush1.msra.mxu0 0.0
    %1084 = vmatprep.subr.mxu0 0.0
    %1085 = vmatpush1.msra.mxu0 0.0
    %1086 = vmatprep.subr.mxu0 0.0
    %1087 = vmatpush1.msra.mxu0 0.0
    %1088 = vmatprep.subr.mxu0 0.0
    %1089 = vmatpush1.msra.mxu0 0.0
    %1090 = vmatprep.mubr.f32.mxu0 0.0
    %1091 = vmatmul.mubr.f32.gmra.mrb[0].mxu0 %v1021
    %v1092 = vpop.f32.mrb[0].mxu0
    %v1093 = vadd.f32 0.0, %v1092
    %v1094 = vpop.f32.mrb[0].mxu0
    %1095 = vmatprep.mubr.f32.mxu0 0.0
    %1096 = vmatmul.mubr.f32.gmra.mrb[0].mxu0 %v1024
    %v1097 = vpop.f32.mrb[0].mxu0
    %v1098 = vadd.f32 0.0, %v1097
    %v1099 = vpop.f32.mrb[0].mxu0
    %1100 = vdwg.mxu0
    %v1102 = vsel %vm1019, %v169, 0
    %v1105 = vsel %vm1019, %v170, 0
    %1107 = vmatprep.subr.mxu0 0.0
    %1108 = vmatpush1.msra.mxu0 %v989
    %1109 = vmatprep.subr.mxu0 0.0
    %1110 = vmatpush1.msra.mxu0 %v990
    %1111 = vmatprep.subr.mxu0 0.0
    %1112 = vmatpush1.msra.mxu0 0.0
    %1113 = vmatprep.subr.mxu0 0.0
    %1114 = vmatpush1.msra.mxu0 0.0
    %1115 = vmatprep.subr.mxu0 0.0
    %1116 = vmatpush1.msra.mxu0 0.0
    %1117 = vmatprep.subr.mxu0 0.0
    %1118 = vmatpush1.msra.mxu0 0.0
    %1119 = vmatprep.subr.mxu0 0.0
    %1120 = vmatpush1.msra.mxu0 0.0
    %1121 = vmatprep.subr.mxu0 0.0
    %1122 = vmatpush1.msra.mxu0 0.0
    %1123 = vmatprep.subr.mxu0 0.0
    %1124 = vmatpush1.msra.mxu0 0.0
    %1125 = vmatprep.subr.mxu0 0.0
    %1126 = vmatpush1.msra.mxu0 0.0
    %1127 = vmatprep.subr.mxu0 0.0
    %1128 = vmatpush1.msra.mxu0 0.0
    %1129 = vmatprep.subr.mxu0 0.0
    %1130 = vmatpush1.msra.mxu0 0.0
    %1131 = vmatprep.subr.mxu0 0.0
    %1132 = vmatpush1.msra.mxu0 0.0
    %1133 = vmatprep.subr.mxu0 0.0
    %1134 = vmatpush1.msra.mxu0 0.0
    %1135 = vmatprep.subr.mxu0 0.0
    %1136 = vmatpush1.msra.mxu0 0.0
    %1137 = vmatprep.subr.mxu0 0.0
    %1138 = vmatpush1.msra.mxu0 0.0
    %1139 = vmatprep.subr.mxu0 0.0
    %1140 = vmatpush1.msra.mxu0 0.0
    %1141 = vmatprep.subr.mxu0 0.0
    %1142 = vmatpush1.msra.mxu0 0.0
    %1143 = vmatprep.subr.mxu0 0.0
    %1144 = vmatpush1.msra.mxu0 0.0
    %1145 = vmatprep.subr.mxu0 0.0
    %1146 = vmatpush1.msra.mxu0 0.0
    %1147 = vmatprep.subr.mxu0 0.0
    %1148 = vmatpush1.msra.mxu0 0.0
    %1149 = vmatprep.subr.mxu0 0.0
    %1150 = vmatpush1.msra.mxu0 0.0
    %1151 = vmatprep.subr.mxu0 0.0
    %1152 = vmatpush1.msra.mxu0 0.0
    %1153 = vmatprep.subr.mxu0 0.0
    %1154 = vmatpush1.msra.mxu0 0.0
    %1155 = vmatprep.subr.mxu0 0.0
    %1156 = vmatpush1.msra.mxu0 0.0
    %1157 = vmatprep.subr.mxu0 0.0
    %1158 = vmatpush1.msra.mxu0 0.0
    %1159 = vmatprep.subr.mxu0 0.0
    %1160 = vmatpush1.msra.mxu0 0.0
    %1161 = vmatprep.subr.mxu0 0.0
    %1162 = vmatpush1.msra.mxu0 0.0
    %1163 = vmatprep.subr.mxu0 0.0
    %1164 = vmatpush1.msra.mxu0 0.0
    %1165 = vmatprep.subr.mxu0 0.0
    %1166 = vmatpush1.msra.mxu0 0.0
    %1167 = vmatprep.subr.mxu0 0.0
    %1168 = vmatpush1.msra.mxu0 0.0
    %1169 = vmatprep.subr.mxu0 0.0
    %1170 = vmatpush1.msra.mxu0 0.0
    %1171 = vmatprep.mubr.f32.mxu0 0.0
    %1172 = vmatmul.mubr.f32.gmra.mrb[0].mxu0 %v1102
    %v1173 = vpop.f32.mrb[0].mxu0
    %v1174 = vadd.f32 0.0, %v1173
    %v1175 = vpop.f32.mrb[0].mxu0
    %1176 = vmatprep.mubr.f32.mxu0 0.0
    %1177 = vmatmul.mubr.f32.gmra.mrb[0].mxu0 %v1105
    %v1178 = vpop.f32.mrb[0].mxu0
    %v1179 = vadd.f32 0.0, %v1178
    %v1180 = vpop.f32.mrb[0].mxu0
    %1181 = vdwg.mxu0
    %v1183 = vsel %vm1019, %v171, 0
    %v1186 = vsel %vm1019, %v172, 0
    %1188 = vmatprep.subr.mxu0 0.0
    %1189 = vmatpush1.msra.mxu0 %v991
    %1190 = vmatprep.subr.mxu0 0.0
    %1191 = vmatpush1.msra.mxu0 %v992
    %1192 = vmatprep.subr.mxu0 0.0
    %1193 = vmatpush1.msra.mxu0 0.0
    %1194 = vmatprep.subr.mxu0 0.0
    %1195 = vmatpush1.msra.mxu0 0.0
    %1196 = vmatprep.subr.mxu0 0.0
    %1197 = vmatpush1.msra.mxu0 0.0
    %1198 = vmatprep.subr.mxu0 0.0
    %1199 = vmatpush1.msra.mxu0 0.0
    %1200 = vmatprep.subr.mxu0 0.0
    %1201 = vmatpush1.msra.mxu0 0.0
    %1202 = vmatprep.subr.mxu0 0.0
    %1203 = vmatpush1.msra.mxu0 0.0
    %1204 = vmatprep.subr.mxu0 0.0
    %1205 = vmatpush1.msra.mxu0 0.0
    %1206 = vmatprep.subr.mxu0 0.0
    %1207 = vmatpush1.msra.mxu0 0.0
    %1208 = vmatprep.subr.mxu0 0.0
    %1209 = vmatpush1.msra.mxu0 0.0
    %1210 = vmatprep.subr.mxu0 0.0
    %1211 = vmatpush1.msra.mxu0 0.0
    %1212 = vmatprep.subr.mxu0 0.0
    %1213 = vmatpush1.msra.mxu0 0.0
    %1214 = vmatprep.subr.mxu0 0.0
    %1215 = vmatpush1.msra.mxu0 0.0
    %1216 = vmatprep.subr.mxu0 0.0
    %1217 = vmatpush1.msra.mxu0 0.0
    %1218 = vmatprep.subr.mxu0 0.0
    %1219 = vmatpush1.msra.mxu0 0.0
    %1220 = vmatprep.subr.mxu0 0.0
    %1221 = vmatpush1.msra.mxu0 0.0
    %1222 = vmatprep.subr.mxu0 0.0
    %1223 = vmatpush1.msra.mxu0 0.0
    %1224 = vmatprep.subr.mxu0 0.0
    %1225 = vmatpush1.msra.mxu0 0.0
    %1226 = vmatprep.subr.mxu0 0.0
    %1227 = vmatpush1.msra.mxu0 0.0
    %1228 = vmatprep.subr.mxu0 0.0
    %1229 = vmatpush1.msra.mxu0 0.0
    %1230 = vmatprep.subr.mxu0 0.0
    %1231 = vmatpush1.msra.mxu0 0.0
    %1232 = vmatprep.subr.mxu0 0.0
    %1233 = vmatpush1.msra.mxu0 0.0
    %1234 = vmatprep.subr.mxu0 0.0
    %1235 = vmatpush1.msra.mxu0 0.0
    %1236 = vmatprep.subr.mxu0 0.0
    %1237 = vmatpush1.msra.mxu0 0.0
    %1238 = vmatprep.subr.mxu0 0.0
    %1239 = vmatpush1.msra.mxu0 0.0
    %1240 = vmatprep.subr.mxu0 0.0
    %1241 = vmatpush1.msra.mxu0 0.0
    %1242 = vmatprep.subr.mxu0 0.0
    %1243 = vmatpush1.msra.mxu0 0.0
    %1244 = vmatprep.subr.mxu0 0.0
    %1245 = vmatpush1.msra.mxu0 0.0
    %1246 = vmatprep.subr.mxu0 0.0
    %1247 = vmatpush1.msra.mxu0 0.0
    %1248 = vmatprep.subr.mxu0 0.0
    %1249 = vmatpush1.msra.mxu0 0.0
    %1250 = vmatprep.subr.mxu0 0.0
    %1251 = vmatpush1.msra.mxu0 0.0
    %1252 = vmatprep.mubr.f32.mxu0 0.0
    %1253 = vmatmul.mubr.f32.gmra.mrb[0].mxu0 %v1183
    %v1254 = vpop.f32.mrb[0].mxu0
    %v1255 = vadd.f32 0.0, %v1254
    %v1256 = vpop.f32.mrb[0].mxu0
    %1257 = vmatprep.mubr.f32.mxu0 0.0
    %1258 = vmatmul.mubr.f32.gmra.mrb[0].mxu0 %v1186
    %v1259 = vpop.f32.mrb[0].mxu0
    %v1260 = vadd.f32 0.0, %v1259
    %v1261 = vpop.f32.mrb[0].mxu0
    %1262 = vdwg.mxu0
    %v1264 = vsel %vm1019, %v173, 0
    %v1267 = vsel %vm1019, %v174, 0
    %1269 = vmatprep.subr.mxu0 0.0
    %1270 = vmatpush1.msra.mxu0 %v993
    %1271 = vmatprep.subr.mxu0 0.0
    %1272 = vmatpush1.msra.mxu0 %v994
    %1273 = vmatprep.subr.mxu0 0.0
    %1274 = vmatpush1.msra.mxu0 0.0
    %1275 = vmatprep.subr.mxu0 0.0
    %1276 = vmatpush1.msra.mxu0 0.0
    %1277 = vmatprep.subr.mxu0 0.0
    %1278 = vmatpush1.msra.mxu0 0.0
    %1279 = vmatprep.subr.mxu0 0.0
    %1280 = vmatpush1.msra.mxu0 0.0
    %1281 = vmatprep.subr.mxu0 0.0
    %1282 = vmatpush1.msra.mxu0 0.0
    %1283 = vmatprep.subr.mxu0 0.0
    %1284 = vmatpush1.msra.mxu0 0.0
    %1285 = vmatprep.subr.mxu0 0.0
    %1286 = vmatpush1.msra.mxu0 0.0
    %1287 = vmatprep.subr.mxu0 0.0
    %1288 = vmatpush1.msra.mxu0 0.0
    %1289 = vmatprep.subr.mxu0 0.0
    %1290 = vmatpush1.msra.mxu0 0.0
    %1291 = vmatprep.subr.mxu0 0.0
    %1292 = vmatpush1.msra.mxu0 0.0
    %1293 = vmatprep.subr.mxu0 0.0
    %1294 = vmatpush1.msra.mxu0 0.0
    %1295 = vmatprep.subr.mxu0 0.0
    %1296 = vmatpush1.msra.mxu0 0.0
    %1297 = vmatprep.subr.mxu0 0.0
    %1298 = vmatpush1.msra.mxu0 0.0
    %1299 = vmatprep.subr.mxu0 0.0
    %1300 = vmatpush1.msra.mxu0 0.0
    %1301 = vmatprep.subr.mxu0 0.0
    %1302 = vmatpush1.msra.mxu0 0.0
    %1303 = vmatprep.subr.mxu0 0.0
    %1304 = vmatpush1.msra.mxu0 0.0
    %1305 = vmatprep.subr.mxu0 0.0
    %1306 = vmatpush1.msra.mxu0 0.0
    %1307 = vmatprep.subr.mxu0 0.0
    %1308 = vmatpush1.msra.mxu0 0.0
    %1309 = vmatprep.subr.mxu0 0.0
    %1310 = vmatpush1.msra.mxu0 0.0
    %1311 = vmatprep.subr.mxu0 0.0
    %1312 = vmatpush1.msra.mxu0 0.0
    %1313 = vmatprep.subr.mxu0 0.0
    %1314 = vmatpush1.msra.mxu0 0.0
    %1315 = vmatprep.subr.mxu0 0.0
    %1316 = vmatpush1.msra.mxu0 0.0
    %1317 = vmatprep.subr.mxu0 0.0
    %1318 = vmatpush1.msra.mxu0 0.0
    %1319 = vmatprep.subr.mxu0 0.0
    %1320 = vmatpush1.msra.mxu0 0.0
    %1321 = vmatprep.subr.mxu0 0.0
    %1322 = vmatpush1.msra.mxu0 0.0
    %1323 = vmatprep.subr.mxu0 0.0
    %1324 = vmatpush1.msra.mxu0 0.0
    %1325 = vmatprep.subr.mxu0 0.0
    %1326 = vmatpush1.msra.mxu0 0.0
    %1327 = vmatprep.subr.mxu0 0.0
    %1328 = vmatpush1.msra.mxu0 0.0
    %1329 = vmatprep.subr.mxu0 0.0
    %1330 = vmatpush1.msra.mxu0 0.0
    %1331 = vmatprep.subr.mxu0 0.0
    %1332 = vmatpush1.msra.mxu0 0.0
    %1333 = vmatprep.mubr.f32.mxu0 0.0
    %1334 = vmatmul.mubr.f32.gmra.mrb[0].mxu0 %v1264
    %v1335 = vpop.f32.mrb[0].mxu0
    %v1336 = vadd.f32 0.0, %v1335
    %v1337 = vpop.f32.mrb[0].mxu0
    %1338 = vmatprep.mubr.f32.mxu0 0.0
    %1339 = vmatmul.mubr.f32.gmra.mrb[0].mxu0 %v1267
    %v1340 = vpop.f32.mrb[0].mxu0
    %v1341 = vadd.f32 0.0, %v1340
    %v1342 = vpop.f32.mrb[0].mxu0
    %1343 = vdwg.mxu0
    %v1345 = vsel %vm1019, %v175, 0
    %v1348 = vsel %vm1019, %v176, 0
    %1350 = vmatprep.subr.mxu0 0.0
    %1351 = vmatpush1.msra.mxu0 %v995
    %1352 = vmatprep.subr.mxu0 0.0
    %1353 = vmatpush1.msra.mxu0 %v996
    %1354 = vmatprep.subr.mxu0 0.0
    %1355 = vmatpush1.msra.mxu0 0.0
    %1356 = vmatprep.subr.mxu0 0.0
    %1357 = vmatpush1.msra.mxu0 0.0
    %1358 = vmatprep.subr.mxu0 0.0
    %1359 = vmatpush1.msra.mxu0 0.0
    %1360 = vmatprep.subr.mxu0 0.0
    %1361 = vmatpush1.msra.mxu0 0.0
    %1362 = vmatprep.subr.mxu0 0.0
    %1363 = vmatpush1.msra.mxu0 0.0
    %1364 = vmatprep.subr.mxu0 0.0
    %1365 = vmatpush1.msra.mxu0 0.0
    %1366 = vmatprep.subr.mxu0 0.0
    %1367 = vmatpush1.msra.mxu0 0.0
    %1368 = vmatprep.subr.mxu0 0.0
    %1369 = vmatpush1.msra.mxu0 0.0
    %1370 = vmatprep.subr.mxu0 0.0
    %1371 = vmatpush1.msra.mxu0 0.0
    %1372 = vmatprep.subr.mxu0 0.0
    %1373 = vmatpush1.msra.mxu0 0.0
    %1374 = vmatprep.subr.mxu0 0.0
    %1375 = vmatpush1.msra.mxu0 0.0
    %1376 = vmatprep.subr.mxu0 0.0
    %1377 = vmatpush1.msra.mxu0 0.0
    %1378 = vmatprep.subr.mxu0 0.0
    %1379 = vmatpush1.msra.mxu0 0.0
    %1380 = vmatprep.subr.mxu0 0.0
    %1381 = vmatpush1.msra.mxu0 0.0
    %1382 = vmatprep.subr.mxu0 0.0
    %1383 = vmatpush1.msra.mxu0 0.0
    %1384 = vmatprep.subr.mxu0 0.0
    %1385 = vmatpush1.msra.mxu0 0.0
    %1386 = vmatprep.subr.mxu0 0.0
    %1387 = vmatpush1.msra.mxu0 0.0
    %1388 = vmatprep.subr.mxu0 0.0
    %1389 = vmatpush1.msra.mxu0 0.0
    %1390 = vmatprep.subr.mxu0 0.0
    %1391 = vmatpush1.msra.mxu0 0.0
    %1392 = vmatprep.subr.mxu0 0.0
    %1393 = vmatpush1.msra.mxu0 0.0
    %1394 = vmatprep.subr.mxu0 0.0
    %1395 = vmatpush1.msra.mxu0 0.0
    %1396 = vmatprep.subr.mxu0 0.0
    %1397 = vmatpush1.msra.mxu0 0.0
    %1398 = vmatprep.subr.mxu0 0.0
    %1399 = vmatpush1.msra.mxu0 0.0
    %1400 = vmatprep.subr.mxu0 0.0
    %1401 = vmatpush1.msra.mxu0 0.0
    %1402 = vmatprep.subr.mxu0 0.0
    %1403 = vmatpush1.msra.mxu0 0.0
    %1404 = vmatprep.subr.mxu0 0.0
    %1405 = vmatpush1.msra.mxu0 0.0
    %1406 = vmatprep.subr.mxu0 0.0
    %1407 = vmatpush1.msra.mxu0 0.0
    %1408 = vmatprep.subr.mxu0 0.0
    %1409 = vmatpush1.msra.mxu0 0.0
    %1410 = vmatprep.subr.mxu0 0.0
    %1411 = vmatpush1.msra.mxu0 0.0
    %1412 = vmatprep.subr.mxu0 0.0
    %1413 = vmatpush1.msra.mxu0 0.0
    %1414 = vmatprep.mubr.f32.mxu0 0.0
    %1415 = vmatmul.mubr.f32.gmra.mrb[0].mxu0 %v1345
    %v1416 = vpop.f32.mrb[0].mxu0
    %v1417 = vadd.f32 0.0, %v1416
    %v1418 = vpop.f32.mrb[0].mxu0
    %1419 = vmatprep.mubr.f32.mxu0 0.0
    %1420 = vmatmul.mubr.f32.gmra.mrb[0].mxu0 %v1348
    %v1421 = vpop.f32.mrb[0].mxu0
    %v1422 = vadd.f32 0.0, %v1421
    %v1423 = vpop.f32.mrb[0].mxu0
    %1424 = vdwg.mxu0
    %v1426 = vsel %vm1019, %v177, 0
    %v1429 = vsel %vm1019, %v178, 0
    %1431 = vmatprep.subr.mxu0 0.0
    %1432 = vmatpush1.msra.mxu0 %v997
    %1433 = vmatprep.subr.mxu0 0.0
    %1434 = vmatpush1.msra.mxu0 %v998
    %1435 = vmatprep.subr.mxu0 0.0
    %1436 = vmatpush1.msra.mxu0 0.0
    %1437 = vmatprep.subr.mxu0 0.0
    %1438 = vmatpush1.msra.mxu0 0.0
    %1439 = vmatprep.subr.mxu0 0.0
    %1440 = vmatpush1.msra.mxu0 0.0
    %1441 = vmatprep.subr.mxu0 0.0
    %1442 = vmatpush1.msra.mxu0 0.0
    %1443 = vmatprep.subr.mxu0 0.0
    %1444 = vmatpush1.msra.mxu0 0.0
    %1445 = vmatprep.subr.mxu0 0.0
    %1446 = vmatpush1.msra.mxu0 0.0
    %1447 = vmatprep.subr.mxu0 0.0
    %1448 = vmatpush1.msra.mxu0 0.0
    %1449 = vmatprep.subr.mxu0 0.0
    %1450 = vmatpush1.msra.mxu0 0.0
    %1451 = vmatprep.subr.mxu0 0.0
    %1452 = vmatpush1.msra.mxu0 0.0
    %1453 = vmatprep.subr.mxu0 0.0
    %1454 = vmatpush1.msra.mxu0 0.0
    %1455 = vmatprep.subr.mxu0 0.0
    %1456 = vmatpush1.msra.mxu0 0.0
    %1457 = vmatprep.subr.mxu0 0.0
    %1458 = vmatpush1.msra.mxu0 0.0
    %1459 = vmatprep.subr.mxu0 0.0
    %1460 = vmatpush1.msra.mxu0 0.0
    %1461 = vmatprep.subr.mxu0 0.0
    %1462 = vmatpush1.msra.mxu0 0.0
    %1463 = vmatprep.subr.mxu0 0.0
    %1464 = vmatpush1.msra.mxu0 0.0
    %1465 = vmatprep.subr.mxu0 0.0
    %1466 = vmatpush1.msra.mxu0 0.0
    %1467 = vmatprep.subr.mxu0 0.0
    %1468 = vmatpush1.msra.mxu0 0.0
    %1469 = vmatprep.subr.mxu0 0.0
    %1470 = vmatpush1.msra.mxu0 0.0
    %1471 = vmatprep.subr.mxu0 0.0
    %1472 = vmatpush1.msra.mxu0 0.0
    %1473 = vmatprep.subr.mxu0 0.0
    %1474 = vmatpush1.msra.mxu0 0.0
    %1475 = vmatprep.subr.mxu0 0.0
    %1476 = vmatpush1.msra.mxu0 0.0
    %1477 = vmatprep.subr.mxu0 0.0
    %1478 = vmatpush1.msra.mxu0 0.0
    %1479 = vmatprep.subr.mxu0 0.0
    %1480 = vmatpush1.msra.mxu0 0.0
    %1481 = vmatprep.subr.mxu0 0.0
    %1482 = vmatpush1.msra.mxu0 0.0
    %1483 = vmatprep.subr.mxu0 0.0
    %1484 = vmatpush1.msra.mxu0 0.0
    %1485 = vmatprep.subr.mxu0 0.0
    %1486 = vmatpush1.msra.mxu0 0.0
    %1487 = vmatprep.subr.mxu0 0.0
    %1488 = vmatpush1.msra.mxu0 0.0
    %1489 = vmatprep.subr.mxu0 0.0
    %1490 = vmatpush1.msra.mxu0 0.0
    %1491 = vmatprep.subr.mxu0 0.0
    %1492 = vmatpush1.msra.mxu0 0.0
    %1493 = vmatprep.subr.mxu0 0.0
    %1494 = vmatpush1.msra.mxu0 0.0
    %1495 = vmatprep.mubr.f32.mxu0 0.0
    %1496 = vmatmul.mubr.f32.gmra.mrb[0].mxu0 %v1426
    %v1497 = vpop.f32.mrb[0].mxu0
    %v1498 = vadd.f32 0.0, %v1497
    %v1499 = vpop.f32.mrb[0].mxu0
    %1500 = vmatprep.mubr.f32.mxu0 0.0
    %1501 = vmatmul.mubr.f32.gmra.mrb[0].mxu0 %v1429
    %v1502 = vpop.f32.mrb[0].mxu0
    %v1503 = vadd.f32 0.0, %v1502
    %v1504 = vpop.f32.mrb[0].mxu0
    %1505 = vdwg.mxu0
    %v1507 = vsel %vm1019, %v179, 0
    %v1510 = vsel %vm1019, %v180, 0
    %1512 = vmatprep.subr.mxu0 0.0
    %1513 = vmatpush1.msra.mxu0 %v999
    %1514 = vmatprep.subr.mxu0 0.0
    %1515 = vmatpush1.msra.mxu0 %v1000
    %1516 = vmatprep.subr.mxu0 0.0
    %1517 = vmatpush1.msra.mxu0 0.0
    %1518 = vmatprep.subr.mxu0 0.0
    %1519 = vmatpush1.msra.mxu0 0.0
    %1520 = vmatprep.subr.mxu0 0.0
    %1521 = vmatpush1.msra.mxu0 0.0
    %1522 = vmatprep.subr.mxu0 0.0
    %1523 = vmatpush1.msra.mxu0 0.0
    %1524 = vmatprep.subr.mxu0 0.0
    %1525 = vmatpush1.msra.mxu0 0.0
    %1526 = vmatprep.subr.mxu0 0.0
    %1527 = vmatpush1.msra.mxu0 0.0
    %1528 = vmatprep.subr.mxu0 0.0
    %1529 = vmatpush1.msra.mxu0 0.0
    %1530 = vmatprep.subr.mxu0 0.0
    %1531 = vmatpush1.msra.mxu0 0.0
    %1532 = vmatprep.subr.mxu0 0.0
    %1533 = vmatpush1.msra.mxu0 0.0
    %1534 = vmatprep.subr.mxu0 0.0
    %1535 = vmatpush1.msra.mxu0 0.0
    %1536 = vmatprep.subr.mxu0 0.0
    %1537 = vmatpush1.msra.mxu0 0.0
    %1538 = vmatprep.subr.mxu0 0.0
    %1539 = vmatpush1.msra.mxu0 0.0
    %1540 = vmatprep.subr.mxu0 0.0
    %1541 = vmatpush1.msra.mxu0 0.0
    %1542 = vmatprep.subr.mxu0 0.0
    %1543 = vmatpush1.msra.mxu0 0.0
    %1544 = vmatprep.subr.mxu0 0.0
    %1545 = vmatpush1.msra.mxu0 0.0
    %1546 = vmatprep.subr.mxu0 0.0
    %1547 = vmatpush1.msra.mxu0 0.0
    %1548 = vmatprep.subr.mxu0 0.0
    %1549 = vmatpush1.msra.mxu0 0.0
    %1550 = vmatprep.subr.mxu0 0.0
    %1551 = vmatpush1.msra.mxu0 0.0
    %1552 = vmatprep.subr.mxu0 0.0
    %1553 = vmatpush1.msra.mxu0 0.0
    %1554 = vmatprep.subr.mxu0 0.0
    %1555 = vmatpush1.msra.mxu0 0.0
    %1556 = vmatprep.subr.mxu0 0.0
    %1557 = vmatpush1.msra.mxu0 0.0
    %1558 = vmatprep.subr.mxu0 0.0
    %1559 = vmatpush1.msra.mxu0 0.0
    %1560 = vmatprep.subr.mxu0 0.0
    %1561 = vmatpush1.msra.mxu0 0.0
    %1562 = vmatprep.subr.mxu0 0.0
    %1563 = vmatpush1.msra.mxu0 0.0
    %1564 = vmatprep.subr.mxu0 0.0
    %1565 = vmatpush1.msra.mxu0 0.0
    %1566 = vmatprep.subr.mxu0 0.0
    %1567 = vmatpush1.msra.mxu0 0.0
    %1568 = vmatprep.subr.mxu0 0.0
    %1569 = vmatpush1.msra.mxu0 0.0
    %1570 = vmatprep.subr.mxu0 0.0
    %1571 = vmatpush1.msra.mxu0 0.0
    %1572 = vmatprep.subr.mxu0 0.0
    %1573 = vmatpush1.msra.mxu0 0.0
    %1574 = vmatprep.subr.mxu0 0.0
    %1575 = vmatpush1.msra.mxu0 0.0
    %1576 = vmatprep.mubr.f32.mxu0 0.0
    %1577 = vmatmul.mubr.f32.gmra.mrb[0].mxu0 %v1507
    %v1578 = vpop.f32.mrb[0].mxu0
    %v1579 = vadd.f32 0.0, %v1578
    %v1580 = vpop.f32.mrb[0].mxu0
    %1581 = vmatprep.mubr.f32.mxu0 0.0
    %1582 = vmatmul.mubr.f32.gmra.mrb[0].mxu0 %v1510
    %v1583 = vpop.f32.mrb[0].mxu0
    %v1584 = vadd.f32 0.0, %v1583
    %v1585 = vpop.f32.mrb[0].mxu0
    %1586 = vdwg.mxu0
    %v1588 = vsel %vm1019, %v181, 0
    %v1591 = vsel %vm1019, %v182, 0
    %1593 = vmatprep.subr.mxu0 0.0
    %1594 = vmatpush1.msra.mxu0 %v1001
    %1595 = vmatprep.subr.mxu0 0.0
    %1596 = vmatpush1.msra.mxu0 %v1002
    %1597 = vmatprep.subr.mxu0 0.0
    %1598 = vmatpush1.msra.mxu0 0.0
    %1599 = vmatprep.subr.mxu0 0.0
    %1600 = vmatpush1.msra.mxu0 0.0
    %1601 = vmatprep.subr.mxu0 0.0
    %1602 = vmatpush1.msra.mxu0 0.0
    %1603 = vmatprep.subr.mxu0 0.0
    %1604 = vmatpush1.msra.mxu0 0.0
    %1605 = vmatprep.subr.mxu0 0.0
    %1606 = vmatpush1.msra.mxu0 0.0
    %1607 = vmatprep.subr.mxu0 0.0
    %1608 = vmatpush1.msra.mxu0 0.0
    %1609 = vmatprep.subr.mxu0 0.0
    %1610 = vmatpush1.msra.mxu0 0.0
    %1611 = vmatprep.subr.mxu0 0.0
    %1612 = vmatpush1.msra.mxu0 0.0
    %1613 = vmatprep.subr.mxu0 0.0
    %1614 = vmatpush1.msra.mxu0 0.0
    %1615 = vmatprep.subr.mxu0 0.0
    %1616 = vmatpush1.msra.mxu0 0.0
    %1617 = vmatprep.subr.mxu0 0.0
    %1618 = vmatpush1.msra.mxu0 0.0
    %1619 = vmatprep.subr.mxu0 0.0
    %1620 = vmatpush1.msra.mxu0 0.0
    %1621 = vmatprep.subr.mxu0 0.0
    %1622 = vmatpush1.msra.mxu0 0.0
    %1623 = vmatprep.subr.mxu0 0.0
    %1624 = vmatpush1.msra.mxu0 0.0
    %1625 = vmatprep.subr.mxu0 0.0
    %1626 = vmatpush1.msra.mxu0 0.0
    %1627 = vmatprep.subr.mxu0 0.0
    %1628 = vmatpush1.msra.mxu0 0.0
    %1629 = vmatprep.subr.mxu0 0.0
    %1630 = vmatpush1.msra.mxu0 0.0
    %1631 = vmatprep.subr.mxu0 0.0
    %1632 = vmatpush1.msra.mxu0 0.0
    %1633 = vmatprep.subr.mxu0 0.0
    %1634 = vmatpush1.msra.mxu0 0.0
    %1635 = vmatprep.subr.mxu0 0.0
    %1636 = vmatpush1.msra.mxu0 0.0
    %1637 = vmatprep.subr.mxu0 0.0
    %1638 = vmatpush1.msra.mxu0 0.0
    %1639 = vmatprep.subr.mxu0 0.0
    %1640 = vmatpush1.msra.mxu0 0.0
    %1641 = vmatprep.subr.mxu0 0.0
    %1642 = vmatpush1.msra.mxu0 0.0
    %1643 = vmatprep.subr.mxu0 0.0
    %1644 = vmatpush1.msra.mxu0 0.0
    %1645 = vmatprep.subr.mxu0 0.0
    %1646 = vmatpush1.msra.mxu0 0.0
    %1647 = vmatprep.subr.mxu0 0.0
    %1648 = vmatpush1.msra.mxu0 0.0
    %1649 = vmatprep.subr.mxu0 0.0
    %1650 = vmatpush1.msra.mxu0 0.0
    %1651 = vmatprep.subr.mxu0 0.0
    %1652 = vmatpush1.msra.mxu0 0.0
    %1653 = vmatprep.subr.mxu0 0.0
    %1654 = vmatpush1.msra.mxu0 0.0
    %1655 = vmatprep.subr.mxu0 0.0
    %1656 = vmatpush1.msra.mxu0 0.0
    %1657 = vmatprep.mubr.f32.mxu0 0.0
    %1658 = vmatmul.mubr.f32.gmra.mrb[0].mxu0 %v1588
    %v1659 = vpop.f32.mrb[0].mxu0
    %v1660 = vadd.f32 0.0, %v1659
    %v1661 = vpop.f32.mrb[0].mxu0
    %1662 = vmatprep.mubr.f32.mxu0 0.0
    %1663 = vmatmul.mubr.f32.gmra.mrb[0].mxu0 %v1591
    %v1664 = vpop.f32.mrb[0].mxu0
    %v1665 = vadd.f32 0.0, %v1664
    %v1666 = vpop.f32.mrb[0].mxu0
    %1667 = vdwg.mxu0
    %v1669 = vsel %vm1019, %v183, 0
    %v1672 = vsel %vm1019, %v184, 0
    %1674 = vmatprep.subr.mxu0 0.0
    %1675 = vmatpush1.msra.mxu0 %v1003
    %1676 = vmatprep.subr.mxu0 0.0
    %1677 = vmatpush1.msra.mxu0 %v1004
    %1678 = vmatprep.subr.mxu0 0.0
    %1679 = vmatpush1.msra.mxu0 0.0
    %1680 = vmatprep.subr.mxu0 0.0
    %1681 = vmatpush1.msra.mxu0 0.0
    %1682 = vmatprep.subr.mxu0 0.0
    %1683 = vmatpush1.msra.mxu0 0.0
    %1684 = vmatprep.subr.mxu0 0.0
    %1685 = vmatpush1.msra.mxu0 0.0
    %1686 = vmatprep.subr.mxu0 0.0
    %1687 = vmatpush1.msra.mxu0 0.0
    %1688 = vmatprep.subr.mxu0 0.0
    %1689 = vmatpush1.msra.mxu0 0.0
    %1690 = vmatprep.subr.mxu0 0.0
    %1691 = vmatpush1.msra.mxu0 0.0
    %1692 = vmatprep.subr.mxu0 0.0
    %1693 = vmatpush1.msra.mxu0 0.0
    %1694 = vmatprep.subr.mxu0 0.0
    %1695 = vmatpush1.msra.mxu0 0.0
    %1696 = vmatprep.subr.mxu0 0.0
    %1697 = vmatpush1.msra.mxu0 0.0
    %1698 = vmatprep.subr.mxu0 0.0
    %1699 = vmatpush1.msra.mxu0 0.0
    %1700 = vmatprep.subr.mxu0 0.0
    %1701 = vmatpush1.msra.mxu0 0.0
    %1702 = vmatprep.subr.mxu0 0.0
    %1703 = vmatpush1.msra.mxu0 0.0
    %1704 = vmatprep.subr.mxu0 0.0
    %1705 = vmatpush1.msra.mxu0 0.0
    %1706 = vmatprep.subr.mxu0 0.0
    %1707 = vmatpush1.msra.mxu0 0.0
    %1708 = vmatprep.subr.mxu0 0.0
    %1709 = vmatpush1.msra.mxu0 0.0
    %1710 = vmatprep.subr.mxu0 0.0
    %1711 = vmatpush1.msra.mxu0 0.0
    %1712 = vmatprep.subr.mxu0 0.0
    %1713 = vmatpush1.msra.mxu0 0.0
    %1714 = vmatprep.subr.mxu0 0.0
    %1715 = vmatpush1.msra.mxu0 0.0
    %1716 = vmatprep.subr.mxu0 0.0
    %1717 = vmatpush1.msra.mxu0 0.0
    %1718 = vmatprep.subr.mxu0 0.0
    %1719 = vmatpush1.msra.mxu0 0.0
    %1720 = vmatprep.subr.mxu0 0.0
    %1721 = vmatpush1.msra.mxu0 0.0
    %1722 = vmatprep.subr.mxu0 0.0
    %1723 = vmatpush1.msra.mxu0 0.0
    %1724 = vmatprep.subr.mxu0 0.0
    %1725 = vmatpush1.msra.mxu0 0.0
    %1726 = vmatprep.subr.mxu0 0.0
    %1727 = vmatpush1.msra.mxu0 0.0
    %1728 = vmatprep.subr.mxu0 0.0
    %1729 = vmatpush1.msra.mxu0 0.0
    %1730 = vmatprep.subr.mxu0 0.0
    %1731 = vmatpush1.msra.mxu0 0.0
    %1732 = vmatprep.subr.mxu0 0.0
    %1733 = vmatpush1.msra.mxu0 0.0
    %1734 = vmatprep.subr.mxu0 0.0
    %1735 = vmatpush1.msra.mxu0 0.0
    %1736 = vmatprep.subr.mxu0 0.0
    %1737 = vmatpush1.msra.mxu0 0.0
    %1738 = vmatprep.mubr.f32.mxu0 0.0
    %1739 = vmatmul.mubr.f32.gmra.mrb[0].mxu0 %v1669
    %v1740 = vpop.f32.mrb[0].mxu0
    %v1741 = vadd.f32 0.0, %v1740
    %v1742 = vpop.f32.mrb[0].mxu0
    %1743 = vmatprep.mubr.f32.mxu0 0.0
    %1744 = vmatmul.mubr.f32.gmra.mrb[0].mxu0 %v1672
    %v1745 = vpop.f32.mrb[0].mxu0
    %v1746 = vadd.f32 0.0, %v1745
    %v1747 = vpop.f32.mrb[0].mxu0
    %1748 = vdwg.mxu0
    %v1750 = vsel %vm1019, %v185, 0
    %v1753 = vsel %vm1019, %v186, 0
    %1755 = vmatprep.subr.mxu0 0.0
    %1756 = vmatpush1.msra.mxu0 %v1005
    %1757 = vmatprep.subr.mxu0 0.0
    %1758 = vmatpush1.msra.mxu0 %v1006
    %1759 = vmatprep.subr.mxu0 0.0
    %1760 = vmatpush1.msra.mxu0 0.0
    %1761 = vmatprep.subr.mxu0 0.0
    %1762 = vmatpush1.msra.mxu0 0.0
    %1763 = vmatprep.subr.mxu0 0.0
    %1764 = vmatpush1.msra.mxu0 0.0
    %1765 = vmatprep.subr.mxu0 0.0
    %1766 = vmatpush1.msra.mxu0 0.0
    %1767 = vmatprep.subr.mxu0 0.0
    %1768 = vmatpush1.msra.mxu0 0.0
    %1769 = vmatprep.subr.mxu0 0.0
    %1770 = vmatpush1.msra.mxu0 0.0
    %1771 = vmatprep.subr.mxu0 0.0
    %1772 = vmatpush1.msra.mxu0 0.0
    %1773 = vmatprep.subr.mxu0 0.0
    %1774 = vmatpush1.msra.mxu0 0.0
    %1775 = vmatprep.subr.mxu0 0.0
    %1776 = vmatpush1.msra.mxu0 0.0
    %1777 = vmatprep.subr.mxu0 0.0
    %1778 = vmatpush1.msra.mxu0 0.0
    %1779 = vmatprep.subr.mxu0 0.0
    %1780 = vmatpush1.msra.mxu0 0.0
    %1781 = vmatprep.subr.mxu0 0.0
    %1782 = vmatpush1.msra.mxu0 0.0
    %1783 = vmatprep.subr.mxu0 0.0
    %1784 = vmatpush1.msra.mxu0 0.0
    %1785 = vmatprep.subr.mxu0 0.0
    %1786 = vmatpush1.msra.mxu0 0.0
    %1787 = vmatprep.subr.mxu0 0.0
    %1788 = vmatpush1.msra.mxu0 0.0
    %1789 = vmatprep.subr.mxu0 0.0
    %1790 = vmatpush1.msra.mxu0 0.0
    %1791 = vmatprep.subr.mxu0 0.0
    %1792 = vmatpush1.msra.mxu0 0.0
    %1793 = vmatprep.subr.mxu0 0.0
    %1794 = vmatpush1.msra.mxu0 0.0
    %1795 = vmatprep.subr.mxu0 0.0
    %1796 = vmatpush1.msra.mxu0 0.0
    %1797 = vmatprep.subr.mxu0 0.0
    %1798 = vmatpush1.msra.mxu0 0.0
    %1799 = vmatprep.subr.mxu0 0.0
    %1800 = vmatpush1.msra.mxu0 0.0
    %1801 = vmatprep.subr.mxu0 0.0
    %1802 = vmatpush1.msra.mxu0 0.0
    %1803 = vmatprep.subr.mxu0 0.0
    %1804 = vmatpush1.msra.mxu0 0.0
    %1805 = vmatprep.subr.mxu0 0.0
    %1806 = vmatpush1.msra.mxu0 0.0
    %1807 = vmatprep.subr.mxu0 0.0
    %1808 = vmatpush1.msra.mxu0 0.0
    %1809 = vmatprep.subr.mxu0 0.0
    %1810 = vmatpush1.msra.mxu0 0.0
    %1811 = vmatprep.subr.mxu0 0.0
    %1812 = vmatpush1.msra.mxu0 0.0
    %1813 = vmatprep.subr.mxu0 0.0
    %1814 = vmatpush1.msra.mxu0 0.0
    %1815 = vmatprep.subr.mxu0 0.0
    %1816 = vmatpush1.msra.mxu0 0.0
    %1817 = vmatprep.subr.mxu0 0.0
    %1818 = vmatpush1.msra.mxu0 0.0
    %1819 = vmatprep.mubr.f32.mxu0 0.0
    %1820 = vmatmul.mubr.f32.gmra.mrb[0].mxu0 %v1750
    %v1821 = vpop.f32.mrb[0].mxu0
    %v1822 = vadd.f32 0.0, %v1821
    %v1823 = vpop.f32.mrb[0].mxu0
    %1824 = vmatprep.mubr.f32.mxu0 0.0
    %1825 = vmatmul.mubr.f32.gmra.mrb[0].mxu0 %v1753
    %v1826 = vpop.f32.mrb[0].mxu0
    %v1827 = vadd.f32 0.0, %v1826
    %v1828 = vpop.f32.mrb[0].mxu0
    %1829 = vdwg.mxu0
    %v1831 = vsel %vm1019, %v187, 0
    %v1834 = vsel %vm1019, %v188, 0
    %1836 = vmatprep.subr.mxu0 0.0
    %1837 = vmatpush1.msra.mxu0 %v1007
    %1838 = vmatprep.subr.mxu0 0.0
    %1839 = vmatpush1.msra.mxu0 %v1008
    %1840 = vmatprep.subr.mxu0 0.0
    %1841 = vmatpush1.msra.mxu0 0.0
    %1842 = vmatprep.subr.mxu0 0.0
    %1843 = vmatpush1.msra.mxu0 0.0
    %1844 = vmatprep.subr.mxu0 0.0
    %1845 = vmatpush1.msra.mxu0 0.0
    %1846 = vmatprep.subr.mxu0 0.0
    %1847 = vmatpush1.msra.mxu0 0.0
    %1848 = vmatprep.subr.mxu0 0.0
    %1849 = vmatpush1.msra.mxu0 0.0
    %1850 = vmatprep.subr.mxu0 0.0
    %1851 = vmatpush1.msra.mxu0 0.0
    %1852 = vmatprep.subr.mxu0 0.0
    %1853 = vmatpush1.msra.mxu0 0.0
    %1854 = vmatprep.subr.mxu0 0.0
    %1855 = vmatpush1.msra.mxu0 0.0
    %1856 = vmatprep.subr.mxu0 0.0
    %1857 = vmatpush1.msra.mxu0 0.0
    %1858 = vmatprep.subr.mxu0 0.0
    %1859 = vmatpush1.msra.mxu0 0.0
    %1860 = vmatprep.subr.mxu0 0.0
    %1861 = vmatpush1.msra.mxu0 0.0
    %1862 = vmatprep.subr.mxu0 0.0
    %1863 = vmatpush1.msra.mxu0 0.0
    %1864 = vmatprep.subr.mxu0 0.0
    %1865 = vmatpush1.msra.mxu0 0.0
    %1866 = vmatprep.subr.mxu0 0.0
    %1867 = vmatpush1.msra.mxu0 0.0
    %1868 = vmatprep.subr.mxu0 0.0
    %1869 = vmatpush1.msra.mxu0 0.0
    %1870 = vmatprep.subr.mxu0 0.0
    %1871 = vmatpush1.msra.mxu0 0.0
    %1872 = vmatprep.subr.mxu0 0.0
    %1873 = vmatpush1.msra.mxu0 0.0
    %1874 = vmatprep.subr.mxu0 0.0
    %1875 = vmatpush1.msra.mxu0 0.0
    %1876 = vmatprep.subr.mxu0 0.0
    %1877 = vmatpush1.msra.mxu0 0.0
    %1878 = vmatprep.subr.mxu0 0.0
    %1879 = vmatpush1.msra.mxu0 0.0
    %1880 = vmatprep.subr.mxu0 0.0
    %1881 = vmatpush1.msra.mxu0 0.0
    %1882 = vmatprep.subr.mxu0 0.0
    %1883 = vmatpush1.msra.mxu0 0.0
    %1884 = vmatprep.subr.mxu0 0.0
    %1885 = vmatpush1.msra.mxu0 0.0
    %1886 = vmatprep.subr.mxu0 0.0
    %1887 = vmatpush1.msra.mxu0 0.0
    %1888 = vmatprep.subr.mxu0 0.0
    %1889 = vmatpush1.msra.mxu0 0.0
    %1890 = vmatprep.subr.mxu0 0.0
    %1891 = vmatpush1.msra.mxu0 0.0
    %1892 = vmatprep.subr.mxu0 0.0
    %1893 = vmatpush1.msra.mxu0 0.0
    %1894 = vmatprep.subr.mxu0 0.0
    %1895 = vmatpush1.msra.mxu0 0.0
    %1896 = vmatprep.subr.mxu0 0.0
    %1897 = vmatpush1.msra.mxu0 0.0
    %1898 = vmatprep.subr.mxu0 0.0
    %1899 = vmatpush1.msra.mxu0 0.0
    %1900 = vmatprep.mubr.f32.mxu0 0.0
    %1901 = vmatmul.mubr.f32.gmra.mrb[0].mxu0 %v1831
    %v1902 = vpop.f32.mrb[0].mxu0
    %v1903 = vadd.f32 0.0, %v1902
    %v1904 = vpop.f32.mrb[0].mxu0
    %1905 = vmatprep.mubr.f32.mxu0 0.0
    %1906 = vmatmul.mubr.f32.gmra.mrb[0].mxu0 %v1834
    %v1907 = vpop.f32.mrb[0].mxu0
    %v1908 = vadd.f32 0.0, %v1907
    %v1909 = vpop.f32.mrb[0].mxu0
    %1910 = vdwg.mxu0
    %v1912 = vsel %vm1019, %v189, 0
    %v1915 = vsel %vm1019, %v190, 0
    %1917 = vmatprep.subr.mxu0 0.0
    %1918 = vmatpush1.msra.mxu0 %v1009
    %1919 = vmatprep.subr.mxu0 0.0
    %1920 = vmatpush1.msra.mxu0 %v1010
    %1921 = vmatprep.subr.mxu0 0.0
    %1922 = vmatpush1.msra.mxu0 0.0
    %1923 = vmatprep.subr.mxu0 0.0
    %1924 = vmatpush1.msra.mxu0 0.0
    %1925 = vmatprep.subr.mxu0 0.0
    %1926 = vmatpush1.msra.mxu0 0.0
    %1927 = vmatprep.subr.mxu0 0.0
    %1928 = vmatpush1.msra.mxu0 0.0
    %1929 = vmatprep.subr.mxu0 0.0
    %1930 = vmatpush1.msra.mxu0 0.0
    %1931 = vmatprep.subr.mxu0 0.0
    %1932 = vmatpush1.msra.mxu0 0.0
    %1933 = vmatprep.subr.mxu0 0.0
    %1934 = vmatpush1.msra.mxu0 0.0
    %1935 = vmatprep.subr.mxu0 0.0
    %1936 = vmatpush1.msra.mxu0 0.0
    %1937 = vmatprep.subr.mxu0 0.0
    %1938 = vmatpush1.msra.mxu0 0.0
    %1939 = vmatprep.subr.mxu0 0.0
    %1940 = vmatpush1.msra.mxu0 0.0
    %1941 = vmatprep.subr.mxu0 0.0
    %1942 = vmatpush1.msra.mxu0 0.0
    %1943 = vmatprep.subr.mxu0 0.0
    %1944 = vmatpush1.msra.mxu0 0.0
    %1945 = vmatprep.subr.mxu0 0.0
    %1946 = vmatpush1.msra.mxu0 0.0
    %1947 = vmatprep.subr.mxu0 0.0
    %1948 = vmatpush1.msra.mxu0 0.0
    %1949 = vmatprep.subr.mxu0 0.0
    %1950 = vmatpush1.msra.mxu0 0.0
    %1951 = vmatprep.subr.mxu0 0.0
    %1952 = vmatpush1.msra.mxu0 0.0
    %1953 = vmatprep.subr.mxu0 0.0
    %1954 = vmatpush1.msra.mxu0 0.0
    %1955 = vmatprep.subr.mxu0 0.0
    %1956 = vmatpush1.msra.mxu0 0.0
    %1957 = vmatprep.subr.mxu0 0.0
    %1958 = vmatpush1.msra.mxu0 0.0
    %1959 = vmatprep.subr.mxu0 0.0
    %1960 = vmatpush1.msra.mxu0 0.0
    %1961 = vmatprep.subr.mxu0 0.0
    %1962 = vmatpush1.msra.mxu0 0.0
    %1963 = vmatprep.subr.mxu0 0.0
    %1964 = vmatpush1.msra.mxu0 0.0
    %1965 = vmatprep.subr.mxu0 0.0
    %1966 = vmatpush1.msra.mxu0 0.0
    %1967 = vmatprep.subr.mxu0 0.0
    %1968 = vmatpush1.msra.mxu0 0.0
    %1969 = vmatprep.subr.mxu0 0.0
    %1970 = vmatpush1.msra.mxu0 0.0
    %1971 = vmatprep.subr.mxu0 0.0
    %1972 = vmatpush1.msra.mxu0 0.0
    %1973 = vmatprep.subr.mxu0 0.0
    %1974 = vmatpush1.msra.mxu0 0.0
    %1975 = vmatprep.subr.mxu0 0.0
    %1976 = vmatpush1.msra.mxu0 0.0
    %1977 = vmatprep.subr.mxu0 0.0
    %1978 = vmatpush1.msra.mxu0 0.0
    %1979 = vmatprep.subr.mxu0 0.0
    %1980 = vmatpush1.msra.mxu0 0.0
    %1981 = vmatprep.mubr.f32.mxu0 0.0
    %1982 = vmatmul.mubr.f32.gmra.mrb[0].mxu0 %v1912
    %v1983 = vpop.f32.mrb[0].mxu0
    %v1984 = vadd.f32 0.0, %v1983
    %v1985 = vpop.f32.mrb[0].mxu0
    %1986 = vmatprep.mubr.f32.mxu0 0.0
    %1987 = vmatmul.mubr.f32.gmra.mrb[0].mxu0 %v1915
    %v1988 = vpop.f32.mrb[0].mxu0
    %v1989 = vadd.f32 0.0, %v1988
    %v1990 = vpop.f32.mrb[0].mxu0
    %1991 = vdwg.mxu0
    %v1993 = vsel %vm1019, %v191, 0
    %v1996 = vsel %vm1019, %v192, 0
    %1998 = vmatprep.subr.mxu0 0.0
    %1999 = vmatpush1.msra.mxu0 %v1011
    %2000 = vmatprep.subr.mxu0 0.0
    %2001 = vmatpush1.msra.mxu0 %v1012
    %2002 = vmatprep.subr.mxu0 0.0
    %2003 = vmatpush1.msra.mxu0 0.0
    %2004 = vmatprep.subr.mxu0 0.0
    %2005 = vmatpush1.msra.mxu0 0.0
    %2006 = vmatprep.subr.mxu0 0.0
    %2007 = vmatpush1.msra.mxu0 0.0
    %2008 = vmatprep.subr.mxu0 0.0
    %2009 = vmatpush1.msra.mxu0 0.0
    %2010 = vmatprep.subr.mxu0 0.0
    %2011 = vmatpush1.msra.mxu0 0.0
    %2012 = vmatprep.subr.mxu0 0.0
    %2013 = vmatpush1.msra.mxu0 0.0
    %2014 = vmatprep.subr.mxu0 0.0
    %2015 = vmatpush1.msra.mxu0 0.0
    %2016 = vmatprep.subr.mxu0 0.0
    %2017 = vmatpush1.msra.mxu0 0.0
    %2018 = vmatprep.subr.mxu0 0.0
    %2019 = vmatpush1.msra.mxu0 0.0
    %2020 = vmatprep.subr.mxu0 0.0
    %2021 = vmatpush1.msra.mxu0 0.0
    %2022 = vmatprep.subr.mxu0 0.0
    %2023 = vmatpush1.msra.mxu0 0.0
    %2024 = vmatprep.subr.mxu0 0.0
    %2025 = vmatpush1.msra.mxu0 0.0
    %2026 = vmatprep.subr.mxu0 0.0
    %2027 = vmatpush1.msra.mxu0 0.0
    %2028 = vmatprep.subr.mxu0 0.0
    %2029 = vmatpush1.msra.mxu0 0.0
    %2030 = vmatprep.subr.mxu0 0.0
    %2031 = vmatpush1.msra.mxu0 0.0
    %2032 = vmatprep.subr.mxu0 0.0
    %2033 = vmatpush1.msra.mxu0 0.0
    %2034 = vmatprep.subr.mxu0 0.0
    %2035 = vmatpush1.msra.mxu0 0.0
    %2036 = vmatprep.subr.mxu0 0.0
    %2037 = vmatpush1.msra.mxu0 0.0
    %2038 = vmatprep.subr.mxu0 0.0
    %2039 = vmatpush1.msra.mxu0 0.0
    %2040 = vmatprep.subr.mxu0 0.0
    %2041 = vmatpush1.msra.mxu0 0.0
    %2042 = vmatprep.subr.mxu0 0.0
    %2043 = vmatpush1.msra.mxu0 0.0
    %2044 = vmatprep.subr.mxu0 0.0
    %2045 = vmatpush1.msra.mxu0 0.0
    %2046 = vmatprep.subr.mxu0 0.0
    %2047 = vmatpush1.msra.mxu0 0.0
    %2048 = vmatprep.subr.mxu0 0.0
    %2049 = vmatpush1.msra.mxu0 0.0
    %2050 = vmatprep.subr.mxu0 0.0
    %2051 = vmatpush1.msra.mxu0 0.0
    %2052 = vmatprep.subr.mxu0 0.0
    %2053 = vmatpush1.msra.mxu0 0.0
    %2054 = vmatprep.subr.mxu0 0.0
    %2055 = vmatpush1.msra.mxu0 0.0
    %2056 = vmatprep.subr.mxu0 0.0
    %2057 = vmatpush1.msra.mxu0 0.0
    %2058 = vmatprep.subr.mxu0 0.0
    %2059 = vmatpush1.msra.mxu0 0.0
    %2060 = vmatprep.subr.mxu0 0.0
    %2061 = vmatpush1.msra.mxu0 0.0
    %2062 = vmatprep.mubr.f32.mxu0 0.0
    %2063 = vmatmul.mubr.f32.gmra.mrb[0].mxu0 %v1993
    %v2064 = vpop.f32.mrb[0].mxu0
    %v2065 = vadd.f32 0.0, %v2064
    %v2066 = vpop.f32.mrb[0].mxu0
    %2067 = vmatprep.mubr.f32.mxu0 0.0
    %2068 = vmatmul.mubr.f32.gmra.mrb[0].mxu0 %v1996
    %v2069 = vpop.f32.mrb[0].mxu0
    %v2070 = vadd.f32 0.0, %v2069
    %v2071 = vpop.f32.mrb[0].mxu0
    %2072 = vdwg.mxu0
    %v2074 = vsel %vm1019, %v193, 0
    %v2077 = vsel %vm1019, %v194, 0
    %2079 = vmatprep.subr.mxu0 0.0
    %2080 = vmatpush1.msra.mxu0 %v1013
    %2081 = vmatprep.subr.mxu0 0.0
    %2082 = vmatpush1.msra.mxu0 %v1014
    %2083 = vmatprep.subr.mxu0 0.0
    %2084 = vmatpush1.msra.mxu0 0.0
    %2085 = vmatprep.subr.mxu0 0.0
    %2086 = vmatpush1.msra.mxu0 0.0
    %2087 = vmatprep.subr.mxu0 0.0
    %2088 = vmatpush1.msra.mxu0 0.0
    %2089 = vmatprep.subr.mxu0 0.0
    %2090 = vmatpush1.msra.mxu0 0.0
    %2091 = vmatprep.subr.mxu0 0.0
    %2092 = vmatpush1.msra.mxu0 0.0
    %2093 = vmatprep.subr.mxu0 0.0
    %2094 = vmatpush1.msra.mxu0 0.0
    %2095 = vmatprep.subr.mxu0 0.0
    %2096 = vmatpush1.msra.mxu0 0.0
    %2097 = vmatprep.subr.mxu0 0.0
    %2098 = vmatpush1.msra.mxu0 0.0
    %2099 = vmatprep.subr.mxu0 0.0
    %2100 = vmatpush1.msra.mxu0 0.0
    %2101 = vmatprep.subr.mxu0 0.0
    %2102 = vmatpush1.msra.mxu0 0.0
    %2103 = vmatprep.subr.mxu0 0.0
    %2104 = vmatpush1.msra.mxu0 0.0
    %2105 = vmatprep.subr.mxu0 0.0
    %2106 = vmatpush1.msra.mxu0 0.0
    %2107 = vmatprep.subr.mxu0 0.0
    %2108 = vmatpush1.msra.mxu0 0.0
    %2109 = vmatprep.subr.mxu0 0.0
    %2110 = vmatpush1.msra.mxu0 0.0
    %2111 = vmatprep.subr.mxu0 0.0
    %2112 = vmatpush1.msra.mxu0 0.0
    %2113 = vmatprep.subr.mxu0 0.0
    %2114 = vmatpush1.msra.mxu0 0.0
    %2115 = vmatprep.subr.mxu0 0.0
    %2116 = vmatpush1.msra.mxu0 0.0
    %2117 = vmatprep.subr.mxu0 0.0
    %2118 = vmatpush1.msra.mxu0 0.0
    %2119 = vmatprep.subr.mxu0 0.0
    %2120 = vmatpush1.msra.mxu0 0.0
    %2121 = vmatprep.subr.mxu0 0.0
    %2122 = vmatpush1.msra.mxu0 0.0
    %2123 = vmatprep.subr.mxu0 0.0
    %2124 = vmatpush1.msra.mxu0 0.0
    %2125 = vmatprep.subr.mxu0 0.0
    %2126 = vmatpush1.msra.mxu0 0.0
    %2127 = vmatprep.subr.mxu0 0.0
    %2128 = vmatpush1.msra.mxu0 0.0
    %2129 = vmatprep.subr.mxu0 0.0
    %2130 = vmatpush1.msra.mxu0 0.0
    %2131 = vmatprep.subr.mxu0 0.0
    %2132 = vmatpush1.msra.mxu0 0.0
    %2133 = vmatprep.subr.mxu0 0.0
    %2134 = vmatpush1.msra.mxu0 0.0
    %2135 = vmatprep.subr.mxu0 0.0
    %2136 = vmatpush1.msra.mxu0 0.0
    %2137 = vmatprep.subr.mxu0 0.0
    %2138 = vmatpush1.msra.mxu0 0.0
    %2139 = vmatprep.subr.mxu0 0.0
    %2140 = vmatpush1.msra.mxu0 0.0
    %2141 = vmatprep.subr.mxu0 0.0
    %2142 = vmatpush1.msra.mxu0 0.0
    %2143 = vmatprep.mubr.f32.mxu0 0.0
    %2144 = vmatmul.mubr.f32.gmra.mrb[0].mxu0 %v2074
    %v2145 = vpop.f32.mrb[0].mxu0
    %v2146 = vadd.f32 0.0, %v2145
    %v2147 = vpop.f32.mrb[0].mxu0
    %2148 = vmatprep.mubr.f32.mxu0 0.0
    %2149 = vmatmul.mubr.f32.gmra.mrb[0].mxu0 %v2077
    %v2150 = vpop.f32.mrb[0].mxu0
    %v2151 = vadd.f32 0.0, %v2150
    %v2152 = vpop.f32.mrb[0].mxu0
    %2153 = vdwg.mxu0
    %v2155 = vsel %vm1019, %v195, 0
    %v2158 = vsel %vm1019, %v196, 0
    %2160 = vmatprep.subr.mxu0 0.0
    %2161 = vmatpush1.msra.mxu0 %v1015
    %2162 = vmatprep.subr.mxu0 0.0
    %2163 = vmatpush1.msra.mxu0 %v1016
    %2164 = vmatprep.subr.mxu0 0.0
    %2165 = vmatpush1.msra.mxu0 0.0
    %2166 = vmatprep.subr.mxu0 0.0
    %2167 = vmatpush1.msra.mxu0 0.0
    %2168 = vmatprep.subr.mxu0 0.0
    %2169 = vmatpush1.msra.mxu0 0.0
    %2170 = vmatprep.subr.mxu0 0.0
    %2171 = vmatpush1.msra.mxu0 0.0
    %2172 = vmatprep.subr.mxu0 0.0
    %2173 = vmatpush1.msra.mxu0 0.0
    %2174 = vmatprep.subr.mxu0 0.0
    %2175 = vmatpush1.msra.mxu0 0.0
    %2176 = vmatprep.subr.mxu0 0.0
    %2177 = vmatpush1.msra.mxu0 0.0
    %2178 = vmatprep.subr.mxu0 0.0
    %2179 = vmatpush1.msra.mxu0 0.0
    %2180 = vmatprep.subr.mxu0 0.0
    %2181 = vmatpush1.msra.mxu0 0.0
    %2182 = vmatprep.subr.mxu0 0.0
    %2183 = vmatpush1.msra.mxu0 0.0
    %2184 = vmatprep.subr.mxu0 0.0
    %2185 = vmatpush1.msra.mxu0 0.0
    %2186 = vmatprep.subr.mxu0 0.0
    %2187 = vmatpush1.msra.mxu0 0.0
    %2188 = vmatprep.subr.mxu0 0.0
    %2189 = vmatpush1.msra.mxu0 0.0
    %2190 = vmatprep.subr.mxu0 0.0
    %2191 = vmatpush1.msra.mxu0 0.0
    %2192 = vmatprep.subr.mxu0 0.0
    %2193 = vmatpush1.msra.mxu0 0.0
    %2194 = vmatprep.subr.mxu0 0.0
    %2195 = vmatpush1.msra.mxu0 0.0
    %2196 = vmatprep.subr.mxu0 0.0
    %2197 = vmatpush1.msra.mxu0 0.0
    %2198 = vmatprep.subr.mxu0 0.0
    %2199 = vmatpush1.msra.mxu0 0.0
    %2200 = vmatprep.subr.mxu0 0.0
    %2201 = vmatpush1.msra.mxu0 0.0
    %2202 = vmatprep.subr.mxu0 0.0
    %2203 = vmatpush1.msra.mxu0 0.0
    %2204 = vmatprep.subr.mxu0 0.0
    %2205 = vmatpush1.msra.mxu0 0.0
    %2206 = vmatprep.subr.mxu0 0.0
    %2207 = vmatpush1.msra.mxu0 0.0
    %2208 = vmatprep.subr.mxu0 0.0
    %2209 = vmatpush1.msra.mxu0 0.0
    %2210 = vmatprep.subr.mxu0 0.0
    %2211 = vmatpush1.msra.mxu0 0.0
    %2212 = vmatprep.subr.mxu0 0.0
    %2213 = vmatpush1.msra.mxu0 0.0
    %2214 = vmatprep.subr.mxu0 0.0
    %2215 = vmatpush1.msra.mxu0 0.0
    %2216 = vmatprep.subr.mxu0 0.0
    %2217 = vmatpush1.msra.mxu0 0.0
    %2218 = vmatprep.subr.mxu0 0.0
    %2219 = vmatpush1.msra.mxu0 0.0
    %2220 = vmatprep.subr.mxu0 0.0
    %2221 = vmatpush1.msra.mxu0 0.0
    %2222 = vmatprep.subr.mxu0 0.0
    %2223 = vmatpush1.msra.mxu0 0.0
    %2224 = vmatprep.mubr.f32.mxu0 0.0
    %2225 = vmatmul.mubr.f32.gmra.mrb[0].mxu0 %v2155
    %v2226 = vpop.f32.mrb[0].mxu0
    %v2227 = vadd.f32 0.0, %v2226
    %v2228 = vpop.f32.mrb[0].mxu0
    %2229 = vmatprep.mubr.f32.mxu0 0.0
    %2230 = vmatmul.mubr.f32.gmra.mrb[0].mxu0 %v2158
    %v2231 = vpop.f32.mrb[0].mxu0
    %v2232 = vadd.f32 0.0, %v2231
    %v2233 = vpop.f32.mrb[0].mxu0
    %2234 = vdwg.mxu0
    %v2236 = vsel %vm1019, %v197, 0
    %v2239 = vsel %vm1019, %v198, 0
    %2241 = vmatprep.subr.mxu0 0.0
    %2242 = vmatpush1.msra.mxu0 %v1017
    %2243 = vmatprep.subr.mxu0 0.0
    %2244 = vmatpush1.msra.mxu0 %v1018
    %2245 = vmatprep.subr.mxu0 0.0
    %2246 = vmatpush1.msra.mxu0 0.0
    %2247 = vmatprep.subr.mxu0 0.0
    %2248 = vmatpush1.msra.mxu0 0.0
    %2249 = vmatprep.subr.mxu0 0.0
    %2250 = vmatpush1.msra.mxu0 0.0
    %2251 = vmatprep.subr.mxu0 0.0
    %2252 = vmatpush1.msra.mxu0 0.0
    %2253 = vmatprep.subr.mxu0 0.0
    %2254 = vmatpush1.msra.mxu0 0.0
    %2255 = vmatprep.subr.mxu0 0.0
    %2256 = vmatpush1.msra.mxu0 0.0
    %2257 = vmatprep.subr.mxu0 0.0
    %2258 = vmatpush1.msra.mxu0 0.0
    %2259 = vmatprep.subr.mxu0 0.0
    %2260 = vmatpush1.msra.mxu0 0.0
    %2261 = vmatprep.subr.mxu0 0.0
    %2262 = vmatpush1.msra.mxu0 0.0
    %2263 = vmatprep.subr.mxu0 0.0
    %2264 = vmatpush1.msra.mxu0 0.0
    %2265 = vmatprep.subr.mxu0 0.0
    %2266 = vmatpush1.msra.mxu0 0.0
    %2267 = vmatprep.subr.mxu0 0.0
    %2268 = vmatpush1.msra.mxu0 0.0
    %2269 = vmatprep.subr.mxu0 0.0
    %2270 = vmatpush1.msra.mxu0 0.0
    %2271 = vmatprep.subr.mxu0 0.0
    %2272 = vmatpush1.msra.mxu0 0.0
    %2273 = vmatprep.subr.mxu0 0.0
    %2274 = vmatpush1.msra.mxu0 0.0
    %2275 = vmatprep.subr.mxu0 0.0
    %2276 = vmatpush1.msra.mxu0 0.0
    %2277 = vmatprep.subr.mxu0 0.0
    %2278 = vmatpush1.msra.mxu0 0.0
    %2279 = vmatprep.subr.mxu0 0.0
    %2280 = vmatpush1.msra.mxu0 0.0
    %2281 = vmatprep.subr.mxu0 0.0
    %2282 = vmatpush1.msra.mxu0 0.0
    %2283 = vmatprep.subr.mxu0 0.0
    %2284 = vmatpush1.msra.mxu0 0.0
    %2285 = vmatprep.subr.mxu0 0.0
    %2286 = vmatpush1.msra.mxu0 0.0
    %2287 = vmatprep.subr.mxu0 0.0
    %2288 = vmatpush1.msra.mxu0 0.0
    %2289 = vmatprep.subr.mxu0 0.0
    %2290 = vmatpush1.msra.mxu0 0.0
    %2291 = vmatprep.subr.mxu0 0.0
    %2292 = vmatpush1.msra.mxu0 0.0
    %2293 = vmatprep.subr.mxu0 0.0
    %2294 = vmatpush1.msra.mxu0 0.0
    %2295 = vmatprep.subr.mxu0 0.0
    %2296 = vmatpush1.msra.mxu0 0.0
    %2297 = vmatprep.subr.mxu0 0.0
    %2298 = vmatpush1.msra.mxu0 0.0
    %2299 = vmatprep.subr.mxu0 0.0
    %2300 = vmatpush1.msra.mxu0 0.0
    %2301 = vmatprep.subr.mxu0 0.0
    %2302 = vmatpush1.msra.mxu0 0.0
    %2303 = vmatprep.subr.mxu0 0.0
    %2304 = vmatpush1.msra.mxu0 0.0
    %2305 = vmatprep.mubr.f32.mxu0 0.0
    %2306 = vmatmul.mubr.f32.gmra.mrb[0].mxu0 %v2236
    %v2307 = vpop.f32.mrb[0].mxu0
    %v2308 = vadd.f32 0.0, %v2307
    %v2309 = vpop.f32.mrb[0].mxu0
    %2310 = vmatprep.mubr.f32.mxu0 0.0
    %2311 = vmatmul.mubr.f32.gmra.mrb[0].mxu0 %v2239
    %v2312 = vpop.f32.mrb[0].mxu0
    %v2313 = vadd.f32 0.0, %v2312
    %v2314 = vpop.f32.mrb[0].mxu0
    %2315 = vdwg.mxu0
    %v2316 = vlaneseq
    %v2317 = vshrl.u32 %v2316, 7
    %v2318 = vsub.s32 0, %v2317
    %v2319 = vrot.slane %v151, %v2318
    %v2320 = vadd.f32 %v1093, %v2319
    %v2321 = vadd.f32 %v1098, %v2319
    %v2322 = vadd.f32 %v1174, %v2319
    %v2323 = vadd.f32 %v1179, %v2319
    %v2324 = vadd.f32 %v1255, %v2319
    %v2325 = vadd.f32 %v1260, %v2319
    %v2326 = vadd.f32 %v1336, %v2319
    %v2327 = vadd.f32 %v1341, %v2319
    %v2328 = vadd.f32 %v1417, %v2319
    %v2329 = vadd.f32 %v1422, %v2319
    %v2330 = vadd.f32 %v1498, %v2319
    %v2331 = vadd.f32 %v1503, %v2319
    %v2332 = vadd.f32 %v1579, %v2319
    %v2333 = vadd.f32 %v1584, %v2319
    %v2334 = vadd.f32 %v1660, %v2319
    %v2335 = vadd.f32 %v1665, %v2319
    %v2336 = vadd.f32 %v1741, %v2319
    %v2337 = vadd.f32 %v1746, %v2319
    %v2338 = vadd.f32 %v1822, %v2319
    %v2339 = vadd.f32 %v1827, %v2319
    %v2340 = vadd.f32 %v1903, %v2319
    %v2341 = vadd.f32 %v1908, %v2319
    %v2342 = vadd.f32 %v1984, %v2319
    %v2343 = vadd.f32 %v1989, %v2319
    %v2344 = vadd.f32 %v2065, %v2319
    %v2345 = vadd.f32 %v2070, %v2319
    %v2346 = vadd.f32 %v2146, %v2319
    %v2347 = vadd.f32 %v2151, %v2319
    %v2348 = vadd.f32 %v2227, %v2319
    %v2349 = vadd.f32 %v2232, %v2319
    %v2350 = vadd.f32 %v2308, %v2319
    %v2351 = vadd.f32 %v2313, %v2319
    %2352 = vadd.xlane.f32.xlu0 %v2320
    %v2353 = vpop.xlane.xlu0 %2352
    %2354 = vadd.xlane.f32.xlu0 %v2321
    %v2355 = vpop.xlane.xlu0 %2354
    %2356 = vadd.xlane.f32.xlu0 %v2322
    %v2357 = vpop.xlane.xlu0 %2356
    %2358 = vadd.xlane.f32.xlu0 %v2323
    %v2359 = vpop.xlane.xlu0 %2358
    %2360 = vadd.xlane.f32.xlu0 %v2324
    %v2361 = vpop.xlane.xlu0 %2360
    %2362 = vadd.xlane.f32.xlu0 %v2325
    %v2363 = vpop.xlane.xlu0 %2362
    %2364 = vadd.xlane.f32.xlu0 %v2326
    %v2365 = vpop.xlane.xlu0 %2364
    %2366 = vadd.xlane.f32.xlu0 %v2327
    %v2367 = vpop.xlane.xlu0 %2366
    %2368 = vadd.xlane.f32.xlu0 %v2328
    %v2369 = vpop.xlane.xlu0 %2368
    %2370 = vadd.xlane.f32.xlu0 %v2329
    %v2371 = vpop.xlane.xlu0 %2370
    %2372 = vadd.xlane.f32.xlu0 %v2330
    %v2373 = vpop.xlane.xlu0 %2372
    %2374 = vadd.xlane.f32.xlu0 %v2331
    %v2375 = vpop.xlane.xlu0 %2374
    %2376 = vadd.xlane.f32.xlu0 %v2332
    %v2377 = vpop.xlane.xlu0 %2376
    %2378 = vadd.xlane.f32.xlu0 %v2333
    %v2379 = vpop.xlane.xlu0 %2378
    %2380 = vadd.xlane.f32.xlu0 %v2334
    %v2381 = vpop.xlane.xlu0 %2380
    %2382 = vadd.xlane.f32.xlu0 %v2335
    %v2383 = vpop.xlane.xlu0 %2382
    %2384 = vadd.xlane.f32.xlu0 %v2336
    %v2385 = vpop.xlane.xlu0 %2384
    %2386 = vadd.xlane.f32.xlu0 %v2337
    %v2387 = vpop.xlane.xlu0 %2386
    %2388 = vadd.xlane.f32.xlu0 %v2338
    %v2389 = vpop.xlane.xlu0 %2388
    %2390 = vadd.xlane.f32.xlu0 %v2339
    %v2391 = vpop.xlane.xlu0 %2390
    %2392 = vadd.xlane.f32.xlu0 %v2340
    %v2393 = vpop.xlane.xlu0 %2392
    %2394 = vadd.xlane.f32.xlu0 %v2341
    %v2395 = vpop.xlane.xlu0 %2394
    %2396 = vadd.xlane.f32.xlu0 %v2342
    %v2397 = vpop.xlane.xlu0 %2396
    %2398 = vadd.xlane.f32.xlu0 %v2343
    %v2399 = vpop.xlane.xlu0 %2398
    %2400 = vadd.xlane.f32.xlu0 %v2344
    %v2401 = vpop.xlane.xlu0 %2400
    %2402 = vadd.xlane.f32.xlu0 %v2345
    %v2403 = vpop.xlane.xlu0 %2402
    %2404 = vadd.xlane.f32.xlu0 %v2346
    %v2405 = vpop.xlane.xlu0 %2404
    %2406 = vadd.xlane.f32.xlu0 %v2347
    %v2407 = vpop.xlane.xlu0 %2406
    %2408 = vadd.xlane.f32.xlu0 %v2348
    %v2409 = vpop.xlane.xlu0 %2408
    %2410 = vadd.xlane.f32.xlu0 %v2349
    %v2411 = vpop.xlane.xlu0 %2410
    %2412 = vadd.xlane.f32.xlu0 %v2350
    %v2413 = vpop.xlane.xlu0 %2412
    %2414 = vadd.xlane.f32.xlu0 %v2351
    %v2415 = vpop.xlane.xlu0 %2414
    %v2416 = vmul.f32 %v2353, 0.03125
    %v2417 = vmul.f32 %v2355, 0.03125
    %v2418 = vmul.f32 %v2357, 0.03125
    %v2419 = vmul.f32 %v2359, 0.03125
    %v2420 = vmul.f32 %v2361, 0.03125
    %v2421 = vmul.f32 %v2363, 0.03125
    %v2422 = vmul.f32 %v2365, 0.03125
    %v2423 = vmul.f32 %v2367, 0.03125
    %v2424 = vmul.f32 %v2369, 0.03125
    %v2425 = vmul.f32 %v2371, 0.03125
    %v2426 = vmul.f32 %v2373, 0.03125
    %v2427 = vmul.f32 %v2375, 0.03125
    %v2428 = vmul.f32 %v2377, 0.03125
    %v2429 = vmul.f32 %v2379, 0.03125
    %v2430 = vmul.f32 %v2381, 0.03125
    %v2431 = vmul.f32 %v2383, 0.03125
    %v2432 = vmul.f32 %v2385, 0.03125
    %v2433 = vmul.f32 %v2387, 0.03125
    %v2434 = vmul.f32 %v2389, 0.03125
    %v2435 = vmul.f32 %v2391, 0.03125
    %v2436 = vmul.f32 %v2393, 0.03125
    %v2437 = vmul.f32 %v2395, 0.03125
    %v2438 = vmul.f32 %v2397, 0.03125
    %v2439 = vmul.f32 %v2399, 0.03125
    %v2440 = vmul.f32 %v2401, 0.03125
    %v2441 = vmul.f32 %v2403, 0.03125
    %v2442 = vmul.f32 %v2405, 0.03125
    %v2443 = vmul.f32 %v2407, 0.03125
    %v2444 = vmul.f32 %v2409, 0.03125
    %v2445 = vmul.f32 %v2411, 0.03125
    %v2446 = vmul.f32 %v2413, 0.03125
    %v2447 = vmul.f32 %v2415, 0.03125
    %v2448 = vsub.f32 %v2320, %v2416
    %v2449 = vsub.f32 %v2321, %v2417
    %v2450 = vsub.f32 %v2322, %v2418
    %v2451 = vsub.f32 %v2323, %v2419
    %v2452 = vsub.f32 %v2324, %v2420
    %v2453 = vsub.f32 %v2325, %v2421
    %v2454 = vsub.f32 %v2326, %v2422
    %v2455 = vsub.f32 %v2327, %v2423
    %v2456 = vsub.f32 %v2328, %v2424
    %v2457 = vsub.f32 %v2329, %v2425
    %v2458 = vsub.f32 %v2330, %v2426
    %v2459 = vsub.f32 %v2331, %v2427
    %v2460 = vsub.f32 %v2332, %v2428
    %v2461 = vsub.f32 %v2333, %v2429
    %v2462 = vsub.f32 %v2334, %v2430
    %v2463 = vsub.f32 %v2335, %v2431
    %v2464 = vsub.f32 %v2336, %v2432
    %v2465 = vsub.f32 %v2337, %v2433
    %v2466 = vsub.f32 %v2338, %v2434
    %v2467 = vsub.f32 %v2339, %v2435
    %v2468 = vsub.f32 %v2340, %v2436
    %v2469 = vsub.f32 %v2341, %v2437
    %v2470 = vsub.f32 %v2342, %v2438
    %v2471 = vsub.f32 %v2343, %v2439
    %v2472 = vsub.f32 %v2344, %v2440
    %v2473 = vsub.f32 %v2345, %v2441
    %v2474 = vsub.f32 %v2346, %v2442
    %v2475 = vsub.f32 %v2347, %v2443
    %v2476 = vsub.f32 %v2348, %v2444
    %v2477 = vsub.f32 %v2349, %v2445
    %v2478 = vsub.f32 %v2350, %v2446
    %v2479 = vsub.f32 %v2351, %v2447
    %v2480 = vmul.f32 %v2448, %v157
    %v2481 = vmul.f32 %v2449, %v157
    %v2482 = vmul.f32 %v2450, %v157
    %v2483 = vmul.f32 %v2451, %v157
    %v2484 = vmul.f32 %v2452, %v157
    %v2485 = vmul.f32 %v2453, %v157
    %v2486 = vmul.f32 %v2454, %v157
    %v2487 = vmul.f32 %v2455, %v157
    %v2488 = vmul.f32 %v2456, %v157
    %v2489 = vmul.f32 %v2457, %v157
    %v2490 = vmul.f32 %v2458, %v157
    %v2491 = vmul.f32 %v2459, %v157
    %v2492 = vmul.f32 %v2460, %v157
    %v2493 = vmul.f32 %v2461, %v157
    %v2494 = vmul.f32 %v2462, %v157
    %v2495 = vmul.f32 %v2463, %v157
    %v2496 = vmul.f32 %v2464, %v157
    %v2497 = vmul.f32 %v2465, %v157
    %v2498 = vmul.f32 %v2466, %v157
    %v2499 = vmul.f32 %v2467, %v157
    %v2500 = vmul.f32 %v2468, %v157
    %v2501 = vmul.f32 %v2469, %v157
    %v2502 = vmul.f32 %v2470, %v157
    %v2503 = vmul.f32 %v2471, %v157
    %v2504 = vmul.f32 %v2472, %v157
    %v2505 = vmul.f32 %v2473, %v157
    %v2506 = vmul.f32 %v2474, %v157
    %v2507 = vmul.f32 %v2475, %v157
    %v2508 = vmul.f32 %v2476, %v157
    %v2509 = vmul.f32 %v2477, %v157
    %v2510 = vmul.f32 %v2478, %v157
    %v2511 = vmul.f32 %v2479, %v157
    %v2512 = vmul.f32 %v2480, %v2480
    %v2513 = vmul.f32 %v2481, %v2481
    %v2514 = vmul.f32 %v2482, %v2482
    %v2515 = vmul.f32 %v2483, %v2483
    %v2516 = vmul.f32 %v2484, %v2484
    %v2517 = vmul.f32 %v2485, %v2485
    %v2518 = vmul.f32 %v2486, %v2486
    %v2519 = vmul.f32 %v2487, %v2487
    %v2520 = vmul.f32 %v2488, %v2488
    %v2521 = vmul.f32 %v2489, %v2489
    %v2522 = vmul.f32 %v2490, %v2490
    %v2523 = vmul.f32 %v2491, %v2491
    %v2524 = vmul.f32 %v2492, %v2492
    %v2525 = vmul.f32 %v2493, %v2493
    %v2526 = vmul.f32 %v2494, %v2494
    %v2527 = vmul.f32 %v2495, %v2495
    %v2528 = vmul.f32 %v2496, %v2496
    %v2529 = vmul.f32 %v2497, %v2497
    %v2530 = vmul.f32 %v2498, %v2498
    %v2531 = vmul.f32 %v2499, %v2499
    %v2532 = vmul.f32 %v2500, %v2500
    %v2533 = vmul.f32 %v2501, %v2501
    %v2534 = vmul.f32 %v2502, %v2502
    %v2535 = vmul.f32 %v2503, %v2503
    %v2536 = vmul.f32 %v2504, %v2504
    %v2537 = vmul.f32 %v2505, %v2505
    %v2538 = vmul.f32 %v2506, %v2506
    %v2539 = vmul.f32 %v2507, %v2507
    %v2540 = vmul.f32 %v2508, %v2508
    %v2541 = vmul.f32 %v2509, %v2509
    %v2542 = vmul.f32 %v2510, %v2510
    %v2543 = vmul.f32 %v2511, %v2511
    %2544 = vadd.xlane.f32.xlu0 %v2512
    %v2545 = vpop.xlane.xlu0 %2544
    %2546 = vadd.xlane.f32.xlu0 %v2513
    %v2547 = vpop.xlane.xlu0 %2546
    %2548 = vadd.xlane.f32.xlu0 %v2514
    %v2549 = vpop.xlane.xlu0 %2548
    %2550 = vadd.xlane.f32.xlu0 %v2515
    %v2551 = vpop.xlane.xlu0 %2550
    %2552 = vadd.xlane.f32.xlu0 %v2516
    %v2553 = vpop.xlane.xlu0 %2552
    %2554 = vadd.xlane.f32.xlu0 %v2517
    %v2555 = vpop.xlane.xlu0 %2554
    %2556 = vadd.xlane.f32.xlu0 %v2518
    %v2557 = vpop.xlane.xlu0 %2556
    %2558 = vadd.xlane.f32.xlu0 %v2519
    %v2559 = vpop.xlane.xlu0 %2558
    %2560 = vadd.xlane.f32.xlu0 %v2520
    %v2561 = vpop.xlane.xlu0 %2560
    %2562 = vadd.xlane.f32.xlu0 %v2521
    %v2563 = vpop.xlane.xlu0 %2562
    %2564 = vadd.xlane.f32.xlu0 %v2522
    %v2565 = vpop.xlane.xlu0 %2564
    %2566 = vadd.xlane.f32.xlu0 %v2523
    %v2567 = vpop.xlane.xlu0 %2566
    %2568 = vadd.xlane.f32.xlu0 %v2524
    %v2569 = vpop.xlane.xlu0 %2568
    %2570 = vadd.xlane.f32.xlu0 %v2525
    %v2571 = vpop.xlane.xlu0 %2570
    %2572 = vadd.xlane.f32.xlu0 %v2526
    %v2573 = vpop.xlane.xlu0 %2572
    %2574 = vadd.xlane.f32.xlu0 %v2527
    %v2575 = vpop.xlane.xlu0 %2574
    %2576 = vadd.xlane.f32.xlu0 %v2528
    %v2577 = vpop.xlane.xlu0 %2576
    %2578 = vadd.xlane.f32.xlu0 %v2529
    %v2579 = vpop.xlane.xlu0 %2578
    %2580 = vadd.xlane.f32.xlu0 %v2530
    %v2581 = vpop.xlane.xlu0 %2580
    %2582 = vadd.xlane.f32.xlu0 %v2531
    %v2583 = vpop.xlane.xlu0 %2582
    %2584 = vadd.xlane.f32.xlu0 %v2532
    %v2585 = vpop.xlane.xlu0 %2584
    %2586 = vadd.xlane.f32.xlu0 %v2533
    %v2587 = vpop.xlane.xlu0 %2586
    %2588 = vadd.xlane.f32.xlu0 %v2534
    %v2589 = vpop.xlane.xlu0 %2588
    %2590 = vadd.xlane.f32.xlu0 %v2535
    %v2591 = vpop.xlane.xlu0 %2590
    %2592 = vadd.xlane.f32.xlu0 %v2536
    %v2593 = vpop.xlane.xlu0 %2592
    %2594 = vadd.xlane.f32.xlu0 %v2537
    %v2595 = vpop.xlane.xlu0 %2594
    %2596 = vadd.xlane.f32.xlu0 %v2538
    %v2597 = vpop.xlane.xlu0 %2596
    %2598 = vadd.xlane.f32.xlu0 %v2539
    %v2599 = vpop.xlane.xlu0 %2598
    %2600 = vadd.xlane.f32.xlu0 %v2540
    %v2601 = vpop.xlane.xlu0 %2600
    %2602 = vadd.xlane.f32.xlu0 %v2541
    %v2603 = vpop.xlane.xlu0 %2602
    %2604 = vadd.xlane.f32.xlu0 %v2542
    %v2605 = vpop.xlane.xlu0 %2604
    %2606 = vadd.xlane.f32.xlu0 %v2543
    %v2607 = vpop.xlane.xlu0 %2606
    %v2608 = vmul.f32 %v2545, 0.03125
    %v2609 = vmul.f32 %v2547, 0.03125
    %v2610 = vmul.f32 %v2549, 0.03125
    %v2611 = vmul.f32 %v2551, 0.03125
    %v2612 = vmul.f32 %v2553, 0.03125
    %v2613 = vmul.f32 %v2555, 0.03125
    %v2614 = vmul.f32 %v2557, 0.03125
    %v2615 = vmul.f32 %v2559, 0.03125
    %v2616 = vmul.f32 %v2561, 0.03125
    %v2617 = vmul.f32 %v2563, 0.03125
    %v2618 = vmul.f32 %v2565, 0.03125
    %v2619 = vmul.f32 %v2567, 0.03125
    %v2620 = vmul.f32 %v2569, 0.03125
    %v2621 = vmul.f32 %v2571, 0.03125
    %v2622 = vmul.f32 %v2573, 0.03125
    %v2623 = vmul.f32 %v2575, 0.03125
    %v2624 = vmul.f32 %v2577, 0.03125
    %v2625 = vmul.f32 %v2579, 0.03125
    %v2626 = vmul.f32 %v2581, 0.03125
    %v2627 = vmul.f32 %v2583, 0.03125
    %v2628 = vmul.f32 %v2585, 0.03125
    %v2629 = vmul.f32 %v2587, 0.03125
    %v2630 = vmul.f32 %v2589, 0.03125
    %v2631 = vmul.f32 %v2591, 0.03125
    %v2632 = vmul.f32 %v2593, 0.03125
    %v2633 = vmul.f32 %v2595, 0.03125
    %v2634 = vmul.f32 %v2597, 0.03125
    %v2635 = vmul.f32 %v2599, 0.03125
    %v2636 = vmul.f32 %v2601, 0.03125
    %v2637 = vmul.f32 %v2603, 0.03125
    %v2638 = vmul.f32 %v2605, 0.03125
    %v2639 = vmul.f32 %v2607, 0.03125
    %v2640 = vadd.f32 %v2608, 1e-05
    %v2641 = vadd.f32 %v2609, 1e-05
    %v2642 = vadd.f32 %v2610, 1e-05
    %v2643 = vadd.f32 %v2611, 1e-05
    %v2644 = vadd.f32 %v2612, 1e-05
    %v2645 = vadd.f32 %v2613, 1e-05
    %v2646 = vadd.f32 %v2614, 1e-05
    %v2647 = vadd.f32 %v2615, 1e-05
    %v2648 = vadd.f32 %v2616, 1e-05
    %v2649 = vadd.f32 %v2617, 1e-05
    %v2650 = vadd.f32 %v2618, 1e-05
    %v2651 = vadd.f32 %v2619, 1e-05
    %v2652 = vadd.f32 %v2620, 1e-05
    %v2653 = vadd.f32 %v2621, 1e-05
    %v2654 = vadd.f32 %v2622, 1e-05
    %v2655 = vadd.f32 %v2623, 1e-05
    %v2656 = vadd.f32 %v2624, 1e-05
    %v2657 = vadd.f32 %v2625, 1e-05
    %v2658 = vadd.f32 %v2626, 1e-05
    %v2659 = vadd.f32 %v2627, 1e-05
    %v2660 = vadd.f32 %v2628, 1e-05
    %v2661 = vadd.f32 %v2629, 1e-05
    %v2662 = vadd.f32 %v2630, 1e-05
    %v2663 = vadd.f32 %v2631, 1e-05
    %v2664 = vadd.f32 %v2632, 1e-05
    %v2665 = vadd.f32 %v2633, 1e-05
    %v2666 = vadd.f32 %v2634, 1e-05
    %v2667 = vadd.f32 %v2635, 1e-05
    %v2668 = vadd.f32 %v2636, 1e-05
    %v2669 = vadd.f32 %v2637, 1e-05
    %v2670 = vadd.f32 %v2638, 1e-05
    %v2671 = vadd.f32 %v2639, 1e-05
    %v2672 = vrsqrt.pop %v2640
    %v2673 = vrsqrt.pop %v2641
    %v2674 = vrsqrt.pop %v2642
    %v2675 = vrsqrt.pop %v2643
    %v2676 = vrsqrt.pop %v2644
    %v2677 = vrsqrt.pop %v2645
    %v2678 = vrsqrt.pop %v2646
    %v2679 = vrsqrt.pop %v2647
    %v2680 = vrsqrt.pop %v2648
    %v2681 = vrsqrt.pop %v2649
    %v2682 = vrsqrt.pop %v2650
    %v2683 = vrsqrt.pop %v2651
    %v2684 = vrsqrt.pop %v2652
    %v2685 = vrsqrt.pop %v2653
    %v2686 = vrsqrt.pop %v2654
    %v2687 = vrsqrt.pop %v2655
    %v2688 = vrsqrt.pop %v2656
    %v2689 = vrsqrt.pop %v2657
    %v2690 = vrsqrt.pop %v2658
    %v2691 = vrsqrt.pop %v2659
    %v2692 = vrsqrt.pop %v2660
    %v2693 = vrsqrt.pop %v2661
    %v2694 = vrsqrt.pop %v2662
    %v2695 = vrsqrt.pop %v2663
    %v2696 = vrsqrt.pop %v2664
    %v2697 = vrsqrt.pop %v2665
    %v2698 = vrsqrt.pop %v2666
    %v2699 = vrsqrt.pop %v2667
    %v2700 = vrsqrt.pop %v2668
    %v2701 = vrsqrt.pop %v2669
    %v2702 = vrsqrt.pop %v2670
    %v2703 = vrsqrt.pop %v2671
    %v2704 = vmul.f32 %v2480, %v2672
    %v2705 = vmul.f32 %v2481, %v2673
    %v2706 = vmul.f32 %v2482, %v2674
    %v2707 = vmul.f32 %v2483, %v2675
    %v2708 = vmul.f32 %v2484, %v2676
    %v2709 = vmul.f32 %v2485, %v2677
    %v2710 = vmul.f32 %v2486, %v2678
    %v2711 = vmul.f32 %v2487, %v2679
    %v2712 = vmul.f32 %v2488, %v2680
    %v2713 = vmul.f32 %v2489, %v2681
    %v2714 = vmul.f32 %v2490, %v2682
    %v2715 = vmul.f32 %v2491, %v2683
    %v2716 = vmul.f32 %v2492, %v2684
    %v2717 = vmul.f32 %v2493, %v2685
    %v2718 = vmul.f32 %v2494, %v2686
    %v2719 = vmul.f32 %v2495, %v2687
    %v2720 = vmul.f32 %v2496, %v2688
    %v2721 = vmul.f32 %v2497, %v2689
    %v2722 = vmul.f32 %v2498, %v2690
    %v2723 = vmul.f32 %v2499, %v2691
    %v2724 = vmul.f32 %v2500, %v2692
    %v2725 = vmul.f32 %v2501, %v2693
    %v2726 = vmul.f32 %v2502, %v2694
    %v2727 = vmul.f32 %v2503, %v2695
    %v2728 = vmul.f32 %v2504, %v2696
    %v2729 = vmul.f32 %v2505, %v2697
    %v2730 = vmul.f32 %v2506, %v2698
    %v2731 = vmul.f32 %v2507, %v2699
    %v2732 = vmul.f32 %v2508, %v2700
    %v2733 = vmul.f32 %v2509, %v2701
    %v2734 = vmul.f32 %v2510, %v2702
    %v2735 = vmul.f32 %v2511, %v2703
    %v2736 = vlaneseq
    %v2737 = vshrl.u32 %v2736, 7
    %v2738 = vsub.s32 4, %v2737
    %v2739 = vrot.slane %v151, %v2738
    %v2740 = vmul.f32 %v2704, %v2739
    %v2741 = vmul.f32 %v2705, %v2739
    %v2742 = vmul.f32 %v2706, %v2739
    %v2743 = vmul.f32 %v2707, %v2739
    %v2744 = vmul.f32 %v2708, %v2739
    %v2745 = vmul.f32 %v2709, %v2739
    %v2746 = vmul.f32 %v2710, %v2739
    %v2747 = vmul.f32 %v2711, %v2739
    %v2748 = vmul.f32 %v2712, %v2739
    %v2749 = vmul.f32 %v2713, %v2739
    %v2750 = vmul.f32 %v2714, %v2739
    %v2751 = vmul.f32 %v2715, %v2739
    %v2752 = vmul.f32 %v2716, %v2739
    %v2753 = vmul.f32 %v2717, %v2739
    %v2754 = vmul.f32 %v2718, %v2739
    %v2755 = vmul.f32 %v2719, %v2739
    %v2756 = vmul.f32 %v2720, %v2739
    %v2757 = vmul.f32 %v2721, %v2739
    %v2758 = vmul.f32 %v2722, %v2739
    %v2759 = vmul.f32 %v2723, %v2739
    %v2760 = vmul.f32 %v2724, %v2739
    %v2761 = vmul.f32 %v2725, %v2739
    %v2762 = vmul.f32 %v2726, %v2739
    %v2763 = vmul.f32 %v2727, %v2739
    %v2764 = vmul.f32 %v2728, %v2739
    %v2765 = vmul.f32 %v2729, %v2739
    %v2766 = vmul.f32 %v2730, %v2739
    %v2767 = vmul.f32 %v2731, %v2739
    %v2768 = vmul.f32 %v2732, %v2739
    %v2769 = vmul.f32 %v2733, %v2739
    %v2770 = vmul.f32 %v2734, %v2739
    %v2771 = vmul.f32 %v2735, %v2739
    %v2772 = vlaneseq
    %v2773 = vshrl.u32 %v2772, 7
    %v2774 = vsub.s32 5, %v2773
    %v2775 = vrot.slane %v151, %v2774
    %v2776 = vadd.f32 %v2740, %v2775
    %v2777 = vadd.f32 %v2741, %v2775
    %v2778 = vadd.f32 %v2742, %v2775
    %v2779 = vadd.f32 %v2743, %v2775
    %v2780 = vadd.f32 %v2744, %v2775
    %v2781 = vadd.f32 %v2745, %v2775
    %v2782 = vadd.f32 %v2746, %v2775
    %v2783 = vadd.f32 %v2747, %v2775
    %v2784 = vadd.f32 %v2748, %v2775
    %v2785 = vadd.f32 %v2749, %v2775
    %v2786 = vadd.f32 %v2750, %v2775
    %v2787 = vadd.f32 %v2751, %v2775
    %v2788 = vadd.f32 %v2752, %v2775
    %v2789 = vadd.f32 %v2753, %v2775
    %v2790 = vadd.f32 %v2754, %v2775
    %v2791 = vadd.f32 %v2755, %v2775
    %v2792 = vadd.f32 %v2756, %v2775
    %v2793 = vadd.f32 %v2757, %v2775
    %v2794 = vadd.f32 %v2758, %v2775
    %v2795 = vadd.f32 %v2759, %v2775
    %v2796 = vadd.f32 %v2760, %v2775
    %v2797 = vadd.f32 %v2761, %v2775
    %v2798 = vadd.f32 %v2762, %v2775
    %v2799 = vadd.f32 %v2763, %v2775
    %v2800 = vadd.f32 %v2764, %v2775
    %v2801 = vadd.f32 %v2765, %v2775
    %v2802 = vadd.f32 %v2766, %v2775
    %v2803 = vadd.f32 %v2767, %v2775
    %v2804 = vadd.f32 %v2768, %v2775
    %v2805 = vadd.f32 %v2769, %v2775
    %v2806 = vadd.f32 %v2770, %v2775
    %v2807 = vadd.f32 %v2771, %v2775
    %v2808 = vmax.f32 %v2776, 0.0
    %v2809 = vmax.f32 %v2777, 0.0
    %v2810 = vmax.f32 %v2778, 0.0
    %v2811 = vmax.f32 %v2779, 0.0
    %v2812 = vmax.f32 %v2780, 0.0
    %v2813 = vmax.f32 %v2781, 0.0
    %v2814 = vmax.f32 %v2782, 0.0
    %v2815 = vmax.f32 %v2783, 0.0
    %v2816 = vmax.f32 %v2784, 0.0
    %v2817 = vmax.f32 %v2785, 0.0
    %v2818 = vmax.f32 %v2786, 0.0
    %v2819 = vmax.f32 %v2787, 0.0
    %v2820 = vmax.f32 %v2788, 0.0
    %v2821 = vmax.f32 %v2789, 0.0
    %v2822 = vmax.f32 %v2790, 0.0
    %v2823 = vmax.f32 %v2791, 0.0
    %v2824 = vmax.f32 %v2792, 0.0
    %v2825 = vmax.f32 %v2793, 0.0
    %v2826 = vmax.f32 %v2794, 0.0
    %v2827 = vmax.f32 %v2795, 0.0
    %v2828 = vmax.f32 %v2796, 0.0
    %v2829 = vmax.f32 %v2797, 0.0
    %v2830 = vmax.f32 %v2798, 0.0
    %v2831 = vmax.f32 %v2799, 0.0
    %v2832 = vmax.f32 %v2800, 0.0
    %v2833 = vmax.f32 %v2801, 0.0
    %v2834 = vmax.f32 %v2802, 0.0
    %v2835 = vmax.f32 %v2803, 0.0
    %v2836 = vmax.f32 %v2804, 0.0
    %v2837 = vmax.f32 %v2805, 0.0
    %v2838 = vmax.f32 %v2806, 0.0
    %v2839 = vmax.f32 %v2807, 0.0
    %v2840 = vld [vmem:[#allocation8] sm:$0xff]
    %v2841 = vld [vmem:[#allocation8 + $0x8] sm:$0xff]
    %v2842 = vld [vmem:[#allocation8 + $0x10] sm:$0xff]
    %v2843 = vld [vmem:[#allocation8 + $0x18] sm:$0xff]
    %v2844 = vld [vmem:[#allocation8 + $0x20] sm:$0xff]
    %v2845 = vld [vmem:[#allocation8 + $0x28] sm:$0xff]
    %v2846 = vld [vmem:[#allocation8 + $0x30] sm:$0xff]
    %v2847 = vld [vmem:[#allocation8 + $0x38] sm:$0xff]
    %v2848 = vld [vmem:[#allocation8 + $0x40] sm:$0xff]
    %v2849 = vld [vmem:[#allocation8 + $0x48] sm:$0xff]
    %v2850 = vld [vmem:[#allocation8 + $0x50] sm:$0xff]
    %v2851 = vld [vmem:[#allocation8 + $0x58] sm:$0xff]
    %v2852 = vld [vmem:[#allocation8 + $0x60] sm:$0xff]
    %v2853 = vld [vmem:[#allocation8 + $0x68] sm:$0xff]
    %v2854 = vld [vmem:[#allocation8 + $0x70] sm:$0xff]
    %v2855 = vld [vmem:[#allocation8 + $0x78] sm:$0xff]
    %2856 = vmatprep.subr.mxu0 0.0
    %2857 = vmatpush1.msra.mxu0 %v2840
    %2858 = vmatprep.subr.mxu0 0.0
    %2859 = vmatpush1.msra.mxu0 %v2841
    %2860 = vmatprep.subr.mxu0 0.0
    %2861 = vmatpush1.msra.mxu0 %v2842
    %2862 = vmatprep.subr.mxu0 0.0
    %2863 = vmatpush1.msra.mxu0 %v2843
    %2864 = vmatprep.subr.mxu0 0.0
    %2865 = vmatpush1.msra.mxu0 %v2844
    %2866 = vmatprep.subr.mxu0 0.0
    %2867 = vmatpush1.msra.mxu0 %v2845
    %2868 = vmatprep.subr.mxu0 0.0
    %2869 = vmatpush1.msra.mxu0 %v2846
    %2870 = vmatprep.subr.mxu0 0.0
    %2871 = vmatpush1.msra.mxu0 %v2847
    %2872 = vmatprep.subr.mxu0 0.0
    %2873 = vmatpush1.msra.mxu0 %v2848
    %2874 = vmatprep.subr.mxu0 0.0
    %2875 = vmatpush1.msra.mxu0 %v2849
    %2876 = vmatprep.subr.mxu0 0.0
    %2877 = vmatpush1.msra.mxu0 %v2850
    %2878 = vmatprep.subr.mxu0 0.0
    %2879 = vmatpush1.msra.mxu0 %v2851
    %2880 = vmatprep.subr.mxu0 0.0
    %2881 = vmatpush1.msra.mxu0 %v2852
    %2882 = vmatprep.subr.mxu0 0.0
    %2883 = vmatpush1.msra.mxu0 %v2853
    %2884 = vmatprep.subr.mxu0 0.0
    %2885 = vmatpush1.msra.mxu0 %v2854
    %2886 = vmatprep.subr.mxu0 0.0
    %2887 = vmatpush1.msra.mxu0 %v2855
    %2888 = vmatprep.subr.mxu0 0.0
    %2889 = vmatpush1.msra.mxu0 0.0
    %2890 = vmatprep.subr.mxu0 0.0
    %2891 = vmatpush1.msra.mxu0 0.0
    %2892 = vmatprep.subr.mxu0 0.0
    %2893 = vmatpush1.msra.mxu0 0.0
    %2894 = vmatprep.subr.mxu0 0.0
    %2895 = vmatpush1.msra.mxu0 0.0
    %2896 = vmatprep.subr.mxu0 0.0
    %2897 = vmatpush1.msra.mxu0 0.0
    %2898 = vmatprep.subr.mxu0 0.0
    %2899 = vmatpush1.msra.mxu0 0.0
    %2900 = vmatprep.subr.mxu0 0.0
    %2901 = vmatpush1.msra.mxu0 0.0
    %2902 = vmatprep.subr.mxu0 0.0
    %2903 = vmatpush1.msra.mxu0 0.0
    %2904 = vmatprep.subr.mxu0 0.0
    %2905 = vmatpush1.msra.mxu0 0.0
    %2906 = vmatprep.subr.mxu0 0.0
    %2907 = vmatpush1.msra.mxu0 0.0
    %2908 = vmatprep.subr.mxu0 0.0
    %2909 = vmatpush1.msra.mxu0 0.0
    %2910 = vmatprep.subr.mxu0 0.0
    %2911 = vmatpush1.msra.mxu0 0.0
    %2912 = vmatprep.subr.mxu0 0.0
    %2913 = vmatpush1.msra.mxu0 0.0
    %2914 = vmatprep.subr.mxu0 0.0
    %2915 = vmatpush1.msra.mxu0 0.0
    %2916 = vmatprep.subr.mxu0 0.0
    %2917 = vmatpush1.msra.mxu0 0.0
    %2918 = vmatprep.subr.mxu0 0.0
    %2919 = vmatpush1.msra.mxu0 0.0
    %2920 = vmatprep.mubr.f32.mxu0 0.0
    %2921 = vmatmul.mubr.f32.gmra.mrb[0].mxu0 %v2808
    %v2922 = vpop.f32.mrb[0].mxu0
    %v2923 = vadd.f32 0.0, %v2922
    %v2924 = vpop.f32.mrb[0].mxu0
    %2925 = vmatprep.mubr.f32.mxu0 0.0
    %2926 = vmatmul.mubr.f32.gmra.mrb[0].mxu0 %v2809
    %v2927 = vpop.f32.mrb[0].mxu0
    %v2928 = vadd.f32 0.0, %v2927
    %v2929 = vpop.f32.mrb[0].mxu0
    %2930 = vmatprep.mubr.f32.mxu0 0.0
    %2931 = vmatmul.mubr.f32.gmra.mrb[0].mxu0 %v2810
    %v2932 = vpop.f32.mrb[0].mxu0
    %v2933 = vadd.f32 0.0, %v2932
    %v2934 = vpop.f32.mrb[0].mxu0
    %2935 = vmatprep.mubr.f32.mxu0 0.0
    %2936 = vmatmul.mubr.f32.gmra.mrb[0].mxu0 %v2811
    %v2937 = vpop.f32.mrb[0].mxu0
    %v2938 = vadd.f32 0.0, %v2937
    %v2939 = vpop.f32.mrb[0].mxu0
    %2940 = vmatprep.mubr.f32.mxu0 0.0
    %2941 = vmatmul.mubr.f32.gmra.mrb[0].mxu0 %v2812
    %v2942 = vpop.f32.mrb[0].mxu0
    %v2943 = vadd.f32 0.0, %v2942
    %v2944 = vpop.f32.mrb[0].mxu0
    %2945 = vmatprep.mubr.f32.mxu0 0.0
    %2946 = vmatmul.mubr.f32.gmra.mrb[0].mxu0 %v2813
    %v2947 = vpop.f32.mrb[0].mxu0
    %v2948 = vadd.f32 0.0, %v2947
    %v2949 = vpop.f32.mrb[0].mxu0
    %2950 = vmatprep.mubr.f32.mxu0 0.0
    %2951 = vmatmul.mubr.f32.gmra.mrb[0].mxu0 %v2814
    %v2952 = vpop.f32.mrb[0].mxu0
    %v2953 = vadd.f32 0.0, %v2952
    %v2954 = vpop.f32.mrb[0].mxu0
    %2955 = vmatprep.mubr.f32.mxu0 0.0
    %2956 = vmatmul.mubr.f32.gmra.mrb[0].mxu0 %v2815
    %v2957 = vpop.f32.mrb[0].mxu0
    %v2958 = vadd.f32 0.0, %v2957
    %v2959 = vpop.f32.mrb[0].mxu0
    %2960 = vmatprep.mubr.f32.mxu0 0.0
    %2961 = vmatmul.mubr.f32.gmra.mrb[0].mxu0 %v2816
    %v2962 = vpop.f32.mrb[0].mxu0
    %v2963 = vadd.f32 0.0, %v2962
    %v2964 = vpop.f32.mrb[0].mxu0
    %2965 = vmatprep.mubr.f32.mxu0 0.0
    %2966 = vmatmul.mubr.f32.gmra.mrb[0].mxu0 %v2817
    %v2967 = vpop.f32.mrb[0].mxu0
    %v2968 = vadd.f32 0.0, %v2967
    %v2969 = vpop.f32.mrb[0].mxu0
    %2970 = vmatprep.mubr.f32.mxu0 0.0
    %2971 = vmatmul.mubr.f32.gmra.mrb[0].mxu0 %v2818
    %v2972 = vpop.f32.mrb[0].mxu0
    %v2973 = vadd.f32 0.0, %v2972
    %v2974 = vpop.f32.mrb[0].mxu0
    %2975 = vmatprep.mubr.f32.mxu0 0.0
    %2976 = vmatmul.mubr.f32.gmra.mrb[0].mxu0 %v2819
    %v2977 = vpop.f32.mrb[0].mxu0
    %v2978 = vadd.f32 0.0, %v2977
    %v2979 = vpop.f32.mrb[0].mxu0
    %2980 = vmatprep.mubr.f32.mxu0 0.0
    %2981 = vmatmul.mubr.f32.gmra.mrb[0].mxu0 %v2820
    %v2982 = vpop.f32.mrb[0].mxu0
    %v2983 = vadd.f32 0.0, %v2982
    %v2984 = vpop.f32.mrb[0].mxu0
    %2985 = vmatprep.mubr.f32.mxu0 0.0
    %2986 = vmatmul.mubr.f32.gmra.mrb[0].mxu0 %v2821
    %v2987 = vpop.f32.mrb[0].mxu0
    %v2988 = vadd.f32 0.0, %v2987
    %v2989 = vpop.f32.mrb[0].mxu0
    %2990 = vmatprep.mubr.f32.mxu0 0.0
    %2991 = vmatmul.mubr.f32.gmra.mrb[0].mxu0 %v2822
    %v2992 = vpop.f32.mrb[0].mxu0
    %v2993 = vadd.f32 0.0, %v2992
    %v2994 = vpop.f32.mrb[0].mxu0
    %2995 = vmatprep.mubr.f32.mxu0 0.0
    %2996 = vmatmul.mubr.f32.gmra.mrb[0].mxu0 %v2823
    %v2997 = vpop.f32.mrb[0].mxu0
    %v2998 = vadd.f32 0.0, %v2997
    %v2999 = vpop.f32.mrb[0].mxu0
    %3000 = vmatprep.mubr.f32.mxu0 0.0
    %3001 = vmatmul.mubr.f32.gmra.mrb[0].mxu0 %v2824
    %v3002 = vpop.f32.mrb[0].mxu0
    %v3003 = vadd.f32 0.0, %v3002
    %v3004 = vpop.f32.mrb[0].mxu0
    %3005 = vmatprep.mubr.f32.mxu0 0.0
    %3006 = vmatmul.mubr.f32.gmra.mrb[0].mxu0 %v2825
    %v3007 = vpop.f32.mrb[0].mxu0
    %v3008 = vadd.f32 0.0, %v3007
    %v3009 = vpop.f32.mrb[0].mxu0
    %3010 = vmatprep.mubr.f32.mxu0 0.0
    %3011 = vmatmul.mubr.f32.gmra.mrb[0].mxu0 %v2826
    %v3012 = vpop.f32.mrb[0].mxu0
    %v3013 = vadd.f32 0.0, %v3012
    %v3014 = vpop.f32.mrb[0].mxu0
    %3015 = vmatprep.mubr.f32.mxu0 0.0
    %3016 = vmatmul.mubr.f32.gmra.mrb[0].mxu0 %v2827
    %v3017 = vpop.f32.mrb[0].mxu0
    %v3018 = vadd.f32 0.0, %v3017
    %v3019 = vpop.f32.mrb[0].mxu0
    %3020 = vmatprep.mubr.f32.mxu0 0.0
    %3021 = vmatmul.mubr.f32.gmra.mrb[0].mxu0 %v2828
    %v3022 = vpop.f32.mrb[0].mxu0
    %v3023 = vadd.f32 0.0, %v3022
    %v3024 = vpop.f32.mrb[0].mxu0
    %3025 = vmatprep.mubr.f32.mxu0 0.0
    %3026 = vmatmul.mubr.f32.gmra.mrb[0].mxu0 %v2829
    %v3027 = vpop.f32.mrb[0].mxu0
    %v3028 = vadd.f32 0.0, %v3027
    %v3029 = vpop.f32.mrb[0].mxu0
    %3030 = vmatprep.mubr.f32.mxu0 0.0
    %3031 = vmatmul.mubr.f32.gmra.mrb[0].mxu0 %v2830
    %v3032 = vpop.f32.mrb[0].mxu0
    %v3033 = vadd.f32 0.0, %v3032
    %v3034 = vpop.f32.mrb[0].mxu0
    %3035 = vmatprep.mubr.f32.mxu0 0.0
    %3036 = vmatmul.mubr.f32.gmra.mrb[0].mxu0 %v2831
    %v3037 = vpop.f32.mrb[0].mxu0
    %v3038 = vadd.f32 0.0, %v3037
    %v3039 = vpop.f32.mrb[0].mxu0
    %3040 = vmatprep.mubr.f32.mxu0 0.0
    %3041 = vmatmul.mubr.f32.gmra.mrb[0].mxu0 %v2832
    %v3042 = vpop.f32.mrb[0].mxu0
    %v3043 = vadd.f32 0.0, %v3042
    %v3044 = vpop.f32.mrb[0].mxu0
    %3045 = vmatprep.mubr.f32.mxu0 0.0
    %3046 = vmatmul.mubr.f32.gmra.mrb[0].mxu0 %v2833
    %v3047 = vpop.f32.mrb[0].mxu0
    %v3048 = vadd.f32 0.0, %v3047
    %v3049 = vpop.f32.mrb[0].mxu0
    %3050 = vmatprep.mubr.f32.mxu0 0.0
    %3051 = vmatmul.mubr.f32.gmra.mrb[0].mxu0 %v2834
    %v3052 = vpop.f32.mrb[0].mxu0
    %v3053 = vadd.f32 0.0, %v3052
    %v3054 = vpop.f32.mrb[0].mxu0
    %3055 = vmatprep.mubr.f32.mxu0 0.0
    %3056 = vmatmul.mubr.f32.gmra.mrb[0].mxu0 %v2835
    %v3057 = vpop.f32.mrb[0].mxu0
    %v3058 = vadd.f32 0.0, %v3057
    %v3059 = vpop.f32.mrb[0].mxu0
    %3060 = vmatprep.mubr.f32.mxu0 0.0
    %3061 = vmatmul.mubr.f32.gmra.mrb[0].mxu0 %v2836
    %v3062 = vpop.f32.mrb[0].mxu0
    %v3063 = vadd.f32 0.0, %v3062
    %v3064 = vpop.f32.mrb[0].mxu0
    %3065 = vmatprep.mubr.f32.mxu0 0.0
    %3066 = vmatmul.mubr.f32.gmra.mrb[0].mxu0 %v2837
    %v3067 = vpop.f32.mrb[0].mxu0
    %v3068 = vadd.f32 0.0, %v3067
    %v3069 = vpop.f32.mrb[0].mxu0
    %3070 = vmatprep.mubr.f32.mxu0 0.0
    %3071 = vmatmul.mubr.f32.gmra.mrb[0].mxu0 %v2838
    %v3072 = vpop.f32.mrb[0].mxu0
    %v3073 = vadd.f32 0.0, %v3072
    %v3074 = vpop.f32.mrb[0].mxu0
    %3075 = vmatprep.mubr.f32.mxu0 0.0
    %3076 = vmatmul.mubr.f32.gmra.mrb[0].mxu0 %v2839
    %v3077 = vpop.f32.mrb[0].mxu0
    %v3078 = vadd.f32 0.0, %v3077
    %v3079 = vpop.f32.mrb[0].mxu0
    %3080 = vdwg.mxu0
    %3081 = vmatprep.subr.mxu0 0.0
    %3082 = vmatpush1.msra.mxu0 %v2923
    %3083 = vmatprep.subr.mxu0 0.0
    %3084 = vmatpush1.msra.mxu0 %v2928
    %3085 = vmatprep.subr.mxu0 0.0
    %3086 = vmatpush1.msra.mxu0 0.0
    %3087 = vmatprep.subr.mxu0 0.0
    %3088 = vmatpush1.msra.mxu0 0.0
    %3089 = vmatprep.subr.mxu0 0.0
    %3090 = vmatpush1.msra.mxu0 0.0
    %3091 = vmatprep.subr.mxu0 0.0
    %3092 = vmatpush1.msra.mxu0 0.0
    %3093 = vmatprep.subr.mxu0 0.0
    %3094 = vmatpush1.msra.mxu0 0.0
    %3095 = vmatprep.subr.mxu0 0.0
    %3096 = vmatpush1.msra.mxu0 0.0
    %3097 = vmatprep.subr.mxu0 0.0
    %3098 = vmatpush1.msra.mxu0 0.0
    %3099 = vmatprep.subr.mxu0 0.0
    %3100 = vmatpush1.msra.mxu0 0.0
    %3101 = vmatprep.subr.mxu0 0.0
    %3102 = vmatpush1.msra.mxu0 0.0
    %3103 = vmatprep.subr.mxu0 0.0
    %3104 = vmatpush1.msra.mxu0 0.0
    %3105 = vmatprep.subr.mxu0 0.0
    %3106 = vmatpush1.msra.mxu0 0.0
    %3107 = vmatprep.subr.mxu0 0.0
    %3108 = vmatpush1.msra.mxu0 0.0
    %3109 = vmatprep.subr.mxu0 0.0
    %3110 = vmatpush1.msra.mxu0 0.0
    %3111 = vmatprep.subr.mxu0 0.0
    %3112 = vmatpush1.msra.mxu0 0.0
    %3113 = vmatprep.subr.mxu0 0.0
    %3114 = vmatpush1.msra.mxu0 0.0
    %3115 = vmatprep.subr.mxu0 0.0
    %3116 = vmatpush1.msra.mxu0 0.0
    %3117 = vmatprep.subr.mxu0 0.0
    %3118 = vmatpush1.msra.mxu0 0.0
    %3119 = vmatprep.subr.mxu0 0.0
    %3120 = vmatpush1.msra.mxu0 0.0
    %3121 = vmatprep.subr.mxu0 0.0
    %3122 = vmatpush1.msra.mxu0 0.0
    %3123 = vmatprep.subr.mxu0 0.0
    %3124 = vmatpush1.msra.mxu0 0.0
    %3125 = vmatprep.subr.mxu0 0.0
    %3126 = vmatpush1.msra.mxu0 0.0
    %3127 = vmatprep.subr.mxu0 0.0
    %3128 = vmatpush1.msra.mxu0 0.0
    %3129 = vmatprep.subr.mxu0 0.0
    %3130 = vmatpush1.msra.mxu0 0.0
    %3131 = vmatprep.subr.mxu0 0.0
    %3132 = vmatpush1.msra.mxu0 0.0
    %3133 = vmatprep.subr.mxu0 0.0
    %3134 = vmatpush1.msra.mxu0 0.0
    %3135 = vmatprep.subr.mxu0 0.0
    %3136 = vmatpush1.msra.mxu0 0.0
    %3137 = vmatprep.subr.mxu0 0.0
    %3138 = vmatpush1.msra.mxu0 0.0
    %3139 = vmatprep.subr.mxu0 0.0
    %3140 = vmatpush1.msra.mxu0 0.0
    %3141 = vmatprep.subr.mxu0 0.0
    %3142 = vmatpush1.msra.mxu0 0.0
    %3143 = vmatprep.subr.mxu0 0.0
    %3144 = vmatpush1.msra.mxu0 0.0
    %3145 = vmatprep.mubr.f32.mxu0 0.0
    %3146 = vmatmul.mubr.f32.gmra.mrb[0].mxu0 %v1021
    %v3147 = vpop.f32.mrb[0].mxu0
    %v3148 = vadd.f32 0.0, %v3147
    %v3149 = vpop.f32.mrb[0].mxu0
    %3150 = vmatprep.mubr.f32.mxu0 0.0
    %3151 = vmatmul.mubr.f32.gmra.mrb[0].mxu0 %v1024
    %v3152 = vpop.f32.mrb[0].mxu0
    %v3153 = vadd.f32 0.0, %v3152
    %v3154 = vpop.f32.mrb[0].mxu0
    %3155 = vdwg.mxu0
    %3156 = vmatprep.subr.mxu0 0.0
    %3157 = vmatpush1.msra.mxu0 %v2933
    %3158 = vmatprep.subr.mxu0 0.0
    %3159 = vmatpush1.msra.mxu0 %v2938
    %3160 = vmatprep.subr.mxu0 0.0
    %3161 = vmatpush1.msra.mxu0 0.0
    %3162 = vmatprep.subr.mxu0 0.0
    %3163 = vmatpush1.msra.mxu0 0.0
    %3164 = vmatprep.subr.mxu0 0.0
    %3165 = vmatpush1.msra.mxu0 0.0
    %3166 = vmatprep.subr.mxu0 0.0
    %3167 = vmatpush1.msra.mxu0 0.0
    %3168 = vmatprep.subr.mxu0 0.0
    %3169 = vmatpush1.msra.mxu0 0.0
    %3170 = vmatprep.subr.mxu0 0.0
    %3171 = vmatpush1.msra.mxu0 0.0
    %3172 = vmatprep.subr.mxu0 0.0
    %3173 = vmatpush1.msra.mxu0 0.0
    %3174 = vmatprep.subr.mxu0 0.0
    %3175 = vmatpush1.msra.mxu0 0.0
    %3176 = vmatprep.subr.mxu0 0.0
    %3177 = vmatpush1.msra.mxu0 0.0
    %3178 = vmatprep.subr.mxu0 0.0
    %3179 = vmatpush1.msra.mxu0 0.0
    %3180 = vmatprep.subr.mxu0 0.0
    %3181 = vmatpush1.msra.mxu0 0.0
    %3182 = vmatprep.subr.mxu0 0.0
    %3183 = vmatpush1.msra.mxu0 0.0
    %3184 = vmatprep.subr.mxu0 0.0
    %3185 = vmatpush1.msra.mxu0 0.0
    %3186 = vmatprep.subr.mxu0 0.0
    %3187 = vmatpush1.msra.mxu0 0.0
    %3188 = vmatprep.subr.mxu0 0.0
    %3189 = vmatpush1.msra.mxu0 0.0
    %3190 = vmatprep.subr.mxu0 0.0
    %3191 = vmatpush1.msra.mxu0 0.0
    %3192 = vmatprep.subr.mxu0 0.0
    %3193 = vmatpush1.msra.mxu0 0.0
    %3194 = vmatprep.subr.mxu0 0.0
    %3195 = vmatpush1.msra.mxu0 0.0
    %3196 = vmatprep.subr.mxu0 0.0
    %3197 = vmatpush1.msra.mxu0 0.0
    %3198 = vmatprep.subr.mxu0 0.0
    %3199 = vmatpush1.msra.mxu0 0.0
    %3200 = vmatprep.subr.mxu0 0.0
    %3201 = vmatpush1.msra.mxu0 0.0
    %3202 = vmatprep.subr.mxu0 0.0
    %3203 = vmatpush1.msra.mxu0 0.0
    %3204 = vmatprep.subr.mxu0 0.0
    %3205 = vmatpush1.msra.mxu0 0.0
    %3206 = vmatprep.subr.mxu0 0.0
    %3207 = vmatpush1.msra.mxu0 0.0
    %3208 = vmatprep.subr.mxu0 0.0
    %3209 = vmatpush1.msra.mxu0 0.0
    %3210 = vmatprep.subr.mxu0 0.0
    %3211 = vmatpush1.msra.mxu0 0.0
    %3212 = vmatprep.subr.mxu0 0.0
    %3213 = vmatpush1.msra.mxu0 0.0
    %3214 = vmatprep.subr.mxu0 0.0
    %3215 = vmatpush1.msra.mxu0 0.0
    %3216 = vmatprep.subr.mxu0 0.0
    %3217 = vmatpush1.msra.mxu0 0.0
    %3218 = vmatprep.subr.mxu0 0.0
    %3219 = vmatpush1.msra.mxu0 0.0
    %3220 = vmatprep.mubr.f32.mxu0 0.0
    %3221 = vmatmul.mubr.f32.gmra.mrb[0].mxu0 %v1102
    %v3222 = vpop.f32.mrb[0].mxu0
    %v3223 = vadd.f32 0.0, %v3222
    %v3224 = vpop.f32.mrb[0].mxu0
    %3225 = vmatprep.mubr.f32.mxu0 0.0
    %3226 = vmatmul.mubr.f32.gmra.mrb[0].mxu0 %v1105
    %v3227 = vpop.f32.mrb[0].mxu0
    %v3228 = vadd.f32 0.0, %v3227
    %v3229 = vpop.f32.mrb[0].mxu0
    %3230 = vdwg.mxu0
    %3231 = vmatprep.subr.mxu0 0.0
    %3232 = vmatpush1.msra.mxu0 %v2943
    %3233 = vmatprep.subr.mxu0 0.0
    %3234 = vmatpush1.msra.mxu0 %v2948
    %3235 = vmatprep.subr.mxu0 0.0
    %3236 = vmatpush1.msra.mxu0 0.0
    %3237 = vmatprep.subr.mxu0 0.0
    %3238 = vmatpush1.msra.mxu0 0.0
    %3239 = vmatprep.subr.mxu0 0.0
    %3240 = vmatpush1.msra.mxu0 0.0
    %3241 = vmatprep.subr.mxu0 0.0
    %3242 = vmatpush1.msra.mxu0 0.0
    %3243 = vmatprep.subr.mxu0 0.0
    %3244 = vmatpush1.msra.mxu0 0.0
    %3245 = vmatprep.subr.mxu0 0.0
    %3246 = vmatpush1.msra.mxu0 0.0
    %3247 = vmatprep.subr.mxu0 0.0
    %3248 = vmatpush1.msra.mxu0 0.0
    %3249 = vmatprep.subr.mxu0 0.0
    %3250 = vmatpush1.msra.mxu0 0.0
    %3251 = vmatprep.subr.mxu0 0.0
    %3252 = vmatpush1.msra.mxu0 0.0
    %3253 = vmatprep.subr.mxu0 0.0
    %3254 = vmatpush1.msra.mxu0 0.0
    %3255 = vmatprep.subr.mxu0 0.0
    %3256 = vmatpush1.msra.mxu0 0.0
    %3257 = vmatprep.subr.mxu0 0.0
    %3258 = vmatpush1.msra.mxu0 0.0
    %3259 = vmatprep.subr.mxu0 0.0
    %3260 = vmatpush1.msra.mxu0 0.0
    %3261 = vmatprep.subr.mxu0 0.0
    %3262 = vmatpush1.msra.mxu0 0.0
    %3263 = vmatprep.subr.mxu0 0.0
    %3264 = vmatpush1.msra.mxu0 0.0
    %3265 = vmatprep.subr.mxu0 0.0
    %3266 = vmatpush1.msra.mxu0 0.0
    %3267 = vmatprep.subr.mxu0 0.0
    %3268 = vmatpush1.msra.mxu0 0.0
    %3269 = vmatprep.subr.mxu0 0.0
    %3270 = vmatpush1.msra.mxu0 0.0
    %3271 = vmatprep.subr.mxu0 0.0
    %3272 = vmatpush1.msra.mxu0 0.0
    %3273 = vmatprep.subr.mxu0 0.0
    %3274 = vmatpush1.msra.mxu0 0.0
    %3275 = vmatprep.subr.mxu0 0.0
    %3276 = vmatpush1.msra.mxu0 0.0
    %3277 = vmatprep.subr.mxu0 0.0
    %3278 = vmatpush1.msra.mxu0 0.0
    %3279 = vmatprep.subr.mxu0 0.0
    %3280 = vmatpush1.msra.mxu0 0.0
    %3281 = vmatprep.subr.mxu0 0.0
    %3282 = vmatpush1.msra.mxu0 0.0
    %3283 = vmatprep.subr.mxu0 0.0
    %3284 = vmatpush1.msra.mxu0 0.0
    %3285 = vmatprep.subr.mxu0 0.0
    %3286 = vmatpush1.msra.mxu0 0.0
    %3287 = vmatprep.subr.mxu0 0.0
    %3288 = vmatpush1.msra.mxu0 0.0
    %3289 = vmatprep.subr.mxu0 0.0
    %3290 = vmatpush1.msra.mxu0 0.0
    %3291 = vmatprep.subr.mxu0 0.0
    %3292 = vmatpush1.msra.mxu0 0.0
    %3293 = vmatprep.subr.mxu0 0.0
    %3294 = vmatpush1.msra.mxu0 0.0
    %3295 = vmatprep.mubr.f32.mxu0 0.0
    %3296 = vmatmul.mubr.f32.gmra.mrb[0].mxu0 %v1183
    %v3297 = vpop.f32.mrb[0].mxu0
    %v3298 = vadd.f32 0.0, %v3297
    %v3299 = vpop.f32.mrb[0].mxu0
    %3300 = vmatprep.mubr.f32.mxu0 0.0
    %3301 = vmatmul.mubr.f32.gmra.mrb[0].mxu0 %v1186
    %v3302 = vpop.f32.mrb[0].mxu0
    %v3303 = vadd.f32 0.0, %v3302
    %v3304 = vpop.f32.mrb[0].mxu0
    %3305 = vdwg.mxu0
    %3306 = vmatprep.subr.mxu0 0.0
    %3307 = vmatpush1.msra.mxu0 %v2953
    %3308 = vmatprep.subr.mxu0 0.0
    %3309 = vmatpush1.msra.mxu0 %v2958
    %3310 = vmatprep.subr.mxu0 0.0
    %3311 = vmatpush1.msra.mxu0 0.0
    %3312 = vmatprep.subr.mxu0 0.0
    %3313 = vmatpush1.msra.mxu0 0.0
    %3314 = vmatprep.subr.mxu0 0.0
    %3315 = vmatpush1.msra.mxu0 0.0
    %3316 = vmatprep.subr.mxu0 0.0
    %3317 = vmatpush1.msra.mxu0 0.0
    %3318 = vmatprep.subr.mxu0 0.0
    %3319 = vmatpush1.msra.mxu0 0.0
    %3320 = vmatprep.subr.mxu0 0.0
    %3321 = vmatpush1.msra.mxu0 0.0
    %3322 = vmatprep.subr.mxu0 0.0
    %3323 = vmatpush1.msra.mxu0 0.0
    %3324 = vmatprep.subr.mxu0 0.0
    %3325 = vmatpush1.msra.mxu0 0.0
    %3326 = vmatprep.subr.mxu0 0.0
    %3327 = vmatpush1.msra.mxu0 0.0
    %3328 = vmatprep.subr.mxu0 0.0
    %3329 = vmatpush1.msra.mxu0 0.0
    %3330 = vmatprep.subr.mxu0 0.0
    %3331 = vmatpush1.msra.mxu0 0.0
    %3332 = vmatprep.subr.mxu0 0.0
    %3333 = vmatpush1.msra.mxu0 0.0
    %3334 = vmatprep.subr.mxu0 0.0
    %3335 = vmatpush1.msra.mxu0 0.0
    %3336 = vmatprep.subr.mxu0 0.0
    %3337 = vmatpush1.msra.mxu0 0.0
    %3338 = vmatprep.subr.mxu0 0.0
    %3339 = vmatpush1.msra.mxu0 0.0
    %3340 = vmatprep.subr.mxu0 0.0
    %3341 = vmatpush1.msra.mxu0 0.0
    %3342 = vmatprep.subr.mxu0 0.0
    %3343 = vmatpush1.msra.mxu0 0.0
    %3344 = vmatprep.subr.mxu0 0.0
    %3345 = vmatpush1.msra.mxu0 0.0
    %3346 = vmatprep.subr.mxu0 0.0
    %3347 = vmatpush1.msra.mxu0 0.0
    %3348 = vmatprep.subr.mxu0 0.0
    %3349 = vmatpush1.msra.mxu0 0.0
    %3350 = vmatprep.subr.mxu0 0.0
    %3351 = vmatpush1.msra.mxu0 0.0
    %3352 = vmatprep.subr.mxu0 0.0
    %3353 = vmatpush1.msra.mxu0 0.0
    %3354 = vmatprep.subr.mxu0 0.0
    %3355 = vmatpush1.msra.mxu0 0.0
    %3356 = vmatprep.subr.mxu0 0.0
    %3357 = vmatpush1.msra.mxu0 0.0
    %3358 = vmatprep.subr.mxu0 0.0
    %3359 = vmatpush1.msra.mxu0 0.0
    %3360 = vmatprep.subr.mxu0 0.0
    %3361 = vmatpush1.msra.mxu0 0.0
    %3362 = vmatprep.subr.mxu0 0.0
    %3363 = vmatpush1.msra.mxu0 0.0
    %3364 = vmatprep.subr.mxu0 0.0
    %3365 = vmatpush1.msra.mxu0 0.0
    %3366 = vmatprep.subr.mxu0 0.0
    %3367 = vmatpush1.msra.mxu0 0.0
    %3368 = vmatprep.subr.mxu0 0.0
    %3369 = vmatpush1.msra.mxu0 0.0
    %3370 = vmatprep.mubr.f32.mxu0 0.0
    %3371 = vmatmul.mubr.f32.gmra.mrb[0].mxu0 %v1264
    %v3372 = vpop.f32.mrb[0].mxu0
    %v3373 = vadd.f32 0.0, %v3372
    %v3374 = vpop.f32.mrb[0].mxu0
    %3375 = vmatprep.mubr.f32.mxu0 0.0
    %3376 = vmatmul.mubr.f32.gmra.mrb[0].mxu0 %v1267
    %v3377 = vpop.f32.mrb[0].mxu0
    %v3378 = vadd.f32 0.0, %v3377
    %v3379 = vpop.f32.mrb[0].mxu0
    %3380 = vdwg.mxu0
    %3381 = vmatprep.subr.mxu0 0.0
    %3382 = vmatpush1.msra.mxu0 %v2963
    %3383 = vmatprep.subr.mxu0 0.0
    %3384 = vmatpush1.msra.mxu0 %v2968
    %3385 = vmatprep.subr.mxu0 0.0
    %3386 = vmatpush1.msra.mxu0 0.0
    %3387 = vmatprep.subr.mxu0 0.0
    %3388 = vmatpush1.msra.mxu0 0.0
    %3389 = vmatprep.subr.mxu0 0.0
    %3390 = vmatpush1.msra.mxu0 0.0
    %3391 = vmatprep.subr.mxu0 0.0
    %3392 = vmatpush1.msra.mxu0 0.0
    %3393 = vmatprep.subr.mxu0 0.0
    %3394 = vmatpush1.msra.mxu0 0.0
    %3395 = vmatprep.subr.mxu0 0.0
    %3396 = vmatpush1.msra.mxu0 0.0
    %3397 = vmatprep.subr.mxu0 0.0
    %3398 = vmatpush1.msra.mxu0 0.0
    %3399 = vmatprep.subr.mxu0 0.0
    %3400 = vmatpush1.msra.mxu0 0.0
    %3401 = vmatprep.subr.mxu0 0.0
    %3402 = vmatpush1.msra.mxu0 0.0
    %3403 = vmatprep.subr.mxu0 0.0
    %3404 = vmatpush1.msra.mxu0 0.0
    %3405 = vmatprep.subr.mxu0 0.0
    %3406 = vmatpush1.msra.mxu0 0.0
    %3407 = vmatprep.subr.mxu0 0.0
    %3408 = vmatpush1.msra.mxu0 0.0
    %3409 = vmatprep.subr.mxu0 0.0
    %3410 = vmatpush1.msra.mxu0 0.0
    %3411 = vmatprep.subr.mxu0 0.0
    %3412 = vmatpush1.msra.mxu0 0.0
    %3413 = vmatprep.subr.mxu0 0.0
    %3414 = vmatpush1.msra.mxu0 0.0
    %3415 = vmatprep.subr.mxu0 0.0
    %3416 = vmatpush1.msra.mxu0 0.0
    %3417 = vmatprep.subr.mxu0 0.0
    %3418 = vmatpush1.msra.mxu0 0.0
    %3419 = vmatprep.subr.mxu0 0.0
    %3420 = vmatpush1.msra.mxu0 0.0
    %3421 = vmatprep.subr.mxu0 0.0
    %3422 = vmatpush1.msra.mxu0 0.0
    %3423 = vmatprep.subr.mxu0 0.0
    %3424 = vmatpush1.msra.mxu0 0.0
    %3425 = vmatprep.subr.mxu0 0.0
    %3426 = vmatpush1.msra.mxu0 0.0
    %3427 = vmatprep.subr.mxu0 0.0
    %3428 = vmatpush1.msra.mxu0 0.0
    %3429 = vmatprep.subr.mxu0 0.0
    %3430 = vmatpush1.msra.mxu0 0.0
    %3431 = vmatprep.subr.mxu0 0.0
    %3432 = vmatpush1.msra.mxu0 0.0
    %3433 = vmatprep.subr.mxu0 0.0
    %3434 = vmatpush1.msra.mxu0 0.0
    %3435 = vmatprep.subr.mxu0 0.0
    %3436 = vmatpush1.msra.mxu0 0.0
    %3437 = vmatprep.subr.mxu0 0.0
    %3438 = vmatpush1.msra.mxu0 0.0
    %3439 = vmatprep.subr.mxu0 0.0
    %3440 = vmatpush1.msra.mxu0 0.0
    %3441 = vmatprep.subr.mxu0 0.0
    %3442 = vmatpush1.msra.mxu0 0.0
    %3443 = vmatprep.subr.mxu0 0.0
    %3444 = vmatpush1.msra.mxu0 0.0
    %3445 = vmatprep.mubr.f32.mxu0 0.0
    %3446 = vmatmul.mubr.f32.gmra.mrb[0].mxu0 %v1345
    %v3447 = vpop.f32.mrb[0].mxu0
    %v3448 = vadd.f32 0.0, %v3447
    %v3449 = vpop.f32.mrb[0].mxu0
    %3450 = vmatprep.mubr.f32.mxu0 0.0
    %3451 = vmatmul.mubr.f32.gmra.mrb[0].mxu0 %v1348
    %v3452 = vpop.f32.mrb[0].mxu0
    %v3453 = vadd.f32 0.0, %v3452
    %v3454 = vpop.f32.mrb[0].mxu0
    %3455 = vdwg.mxu0
    %3456 = vmatprep.subr.mxu0 0.0
    %3457 = vmatpush1.msra.mxu0 %v2973
    %3458 = vmatprep.subr.mxu0 0.0
    %3459 = vmatpush1.msra.mxu0 %v2978
    %3460 = vmatprep.subr.mxu0 0.0
    %3461 = vmatpush1.msra.mxu0 0.0
    %3462 = vmatprep.subr.mxu0 0.0
    %3463 = vmatpush1.msra.mxu0 0.0
    %3464 = vmatprep.subr.mxu0 0.0
    %3465 = vmatpush1.msra.mxu0 0.0
    %3466 = vmatprep.subr.mxu0 0.0
    %3467 = vmatpush1.msra.mxu0 0.0
    %3468 = vmatprep.subr.mxu0 0.0
    %3469 = vmatpush1.msra.mxu0 0.0
    %3470 = vmatprep.subr.mxu0 0.0
    %3471 = vmatpush1.msra.mxu0 0.0
    %3472 = vmatprep.subr.mxu0 0.0
    %3473 = vmatpush1.msra.mxu0 0.0
    %3474 = vmatprep.subr.mxu0 0.0
    %3475 = vmatpush1.msra.mxu0 0.0
    %3476 = vmatprep.subr.mxu0 0.0
    %3477 = vmatpush1.msra.mxu0 0.0
    %3478 = vmatprep.subr.mxu0 0.0
    %3479 = vmatpush1.msra.mxu0 0.0
    %3480 = vmatprep.subr.mxu0 0.0
    %3481 = vmatpush1.msra.mxu0 0.0
    %3482 = vmatprep.subr.mxu0 0.0
    %3483 = vmatpush1.msra.mxu0 0.0
    %3484 = vmatprep.subr.mxu0 0.0
    %3485 = vmatpush1.msra.mxu0 0.0
    %3486 = vmatprep.subr.mxu0 0.0
    %3487 = vmatpush1.msra.mxu0 0.0
    %3488 = vmatprep.subr.mxu0 0.0
    %3489 = vmatpush1.msra.mxu0 0.0
    %3490 = vmatprep.subr.mxu0 0.0
    %3491 = vmatpush1.msra.mxu0 0.0
    %3492 = vmatprep.subr.mxu0 0.0
    %3493 = vmatpush1.msra.mxu0 0.0
    %3494 = vmatprep.subr.mxu0 0.0
    %3495 = vmatpush1.msra.mxu0 0.0
    %3496 = vmatprep.subr.mxu0 0.0
    %3497 = vmatpush1.msra.mxu0 0.0
    %3498 = vmatprep.subr.mxu0 0.0
    %3499 = vmatpush1.msra.mxu0 0.0
    %3500 = vmatprep.subr.mxu0 0.0
    %3501 = vmatpush1.msra.mxu0 0.0
    %3502 = vmatprep.subr.mxu0 0.0
    %3503 = vmatpush1.msra.mxu0 0.0
    %3504 = vmatprep.subr.mxu0 0.0
    %3505 = vmatpush1.msra.mxu0 0.0
    %3506 = vmatprep.subr.mxu0 0.0
    %3507 = vmatpush1.msra.mxu0 0.0
    %3508 = vmatprep.subr.mxu0 0.0
    %3509 = vmatpush1.msra.mxu0 0.0
    %3510 = vmatprep.subr.mxu0 0.0
    %3511 = vmatpush1.msra.mxu0 0.0
    %3512 = vmatprep.subr.mxu0 0.0
    %3513 = vmatpush1.msra.mxu0 0.0
    %3514 = vmatprep.subr.mxu0 0.0
    %3515 = vmatpush1.msra.mxu0 0.0
    %3516 = vmatprep.subr.mxu0 0.0
    %3517 = vmatpush1.msra.mxu0 0.0
    %3518 = vmatprep.subr.mxu0 0.0
    %3519 = vmatpush1.msra.mxu0 0.0
    %3520 = vmatprep.mubr.f32.mxu0 0.0
    %3521 = vmatmul.mubr.f32.gmra.mrb[0].mxu0 %v1426
    %v3522 = vpop.f32.mrb[0].mxu0
    %v3523 = vadd.f32 0.0, %v3522
    %v3524 = vpop.f32.mrb[0].mxu0
    %3525 = vmatprep.mubr.f32.mxu0 0.0
    %3526 = vmatmul.mubr.f32.gmra.mrb[0].mxu0 %v1429
    %v3527 = vpop.f32.mrb[0].mxu0
    %v3528 = vadd.f32 0.0, %v3527
    %v3529 = vpop.f32.mrb[0].mxu0
    %3530 = vdwg.mxu0
    %3531 = vmatprep.subr.mxu0 0.0
    %3532 = vmatpush1.msra.mxu0 %v2983
    %3533 = vmatprep.subr.mxu0 0.0
    %3534 = vmatpush1.msra.mxu0 %v2988
    %3535 = vmatprep.subr.mxu0 0.0
    %3536 = vmatpush1.msra.mxu0 0.0
    %3537 = vmatprep.subr.mxu0 0.0
    %3538 = vmatpush1.msra.mxu0 0.0
    %3539 = vmatprep.subr.mxu0 0.0
    %3540 = vmatpush1.msra.mxu0 0.0
    %3541 = vmatprep.subr.mxu0 0.0
    %3542 = vmatpush1.msra.mxu0 0.0
    %3543 = vmatprep.subr.mxu0 0.0
    %3544 = vmatpush1.msra.mxu0 0.0
    %3545 = vmatprep.subr.mxu0 0.0
    %3546 = vmatpush1.msra.mxu0 0.0
    %3547 = vmatprep.subr.mxu0 0.0
    %3548 = vmatpush1.msra.mxu0 0.0
    %3549 = vmatprep.subr.mxu0 0.0
    %3550 = vmatpush1.msra.mxu0 0.0
    %3551 = vmatprep.subr.mxu0 0.0
    %3552 = vmatpush1.msra.mxu0 0.0
    %3553 = vmatprep.subr.mxu0 0.0
    %3554 = vmatpush1.msra.mxu0 0.0
    %3555 = vmatprep.subr.mxu0 0.0
    %3556 = vmatpush1.msra.mxu0 0.0
    %3557 = vmatprep.subr.mxu0 0.0
    %3558 = vmatpush1.msra.mxu0 0.0
    %3559 = vmatprep.subr.mxu0 0.0
    %3560 = vmatpush1.msra.mxu0 0.0
    %3561 = vmatprep.subr.mxu0 0.0
    %3562 = vmatpush1.msra.mxu0 0.0
    %3563 = vmatprep.subr.mxu0 0.0
    %3564 = vmatpush1.msra.mxu0 0.0
    %3565 = vmatprep.subr.mxu0 0.0
    %3566 = vmatpush1.msra.mxu0 0.0
    %3567 = vmatprep.subr.mxu0 0.0
    %3568 = vmatpush1.msra.mxu0 0.0
    %3569 = vmatprep.subr.mxu0 0.0
    %3570 = vmatpush1.msra.mxu0 0.0
    %3571 = vmatprep.subr.mxu0 0.0
    %3572 = vmatpush1.msra.mxu0 0.0
    %3573 = vmatprep.subr.mxu0 0.0
    %3574 = vmatpush1.msra.mxu0 0.0
    %3575 = vmatprep.subr.mxu0 0.0
    %3576 = vmatpush1.msra.mxu0 0.0
    %3577 = vmatprep.subr.mxu0 0.0
    %3578 = vmatpush1.msra.mxu0 0.0
    %3579 = vmatprep.subr.mxu0 0.0
    %3580 = vmatpush1.msra.mxu0 0.0
    %3581 = vmatprep.subr.mxu0 0.0
    %3582 = vmatpush1.msra.mxu0 0.0
    %3583 = vmatprep.subr.mxu0 0.0
    %3584 = vmatpush1.msra.mxu0 0.0
    %3585 = vmatprep.subr.mxu0 0.0
    %3586 = vmatpush1.msra.mxu0 0.0
    %3587 = vmatprep.subr.mxu0 0.0
    %3588 = vmatpush1.msra.mxu0 0.0
    %3589 = vmatprep.subr.mxu0 0.0
    %3590 = vmatpush1.msra.mxu0 0.0
    %3591 = vmatprep.subr.mxu0 0.0
    %3592 = vmatpush1.msra.mxu0 0.0
    %3593 = vmatprep.subr.mxu0 0.0
    %3594 = vmatpush1.msra.mxu0 0.0
    %3595 = vmatprep.mubr.f32.mxu0 0.0
    %3596 = vmatmul.mubr.f32.gmra.mrb[0].mxu0 %v1507
    %v3597 = vpop.f32.mrb[0].mxu0
    %v3598 = vadd.f32 0.0, %v3597
    %v3599 = vpop.f32.mrb[0].mxu0
    %3600 = vmatprep.mubr.f32.mxu0 0.0
    %3601 = vmatmul.mubr.f32.gmra.mrb[0].mxu0 %v1510
    %v3602 = vpop.f32.mrb[0].mxu0
    %v3603 = vadd.f32 0.0, %v3602
    %v3604 = vpop.f32.mrb[0].mxu0
    %3605 = vdwg.mxu0
    %3606 = vmatprep.subr.mxu0 0.0
    %3607 = vmatpush1.msra.mxu0 %v2993
    %3608 = vmatprep.subr.mxu0 0.0
    %3609 = vmatpush1.msra.mxu0 %v2998
    %3610 = vmatprep.subr.mxu0 0.0
    %3611 = vmatpush1.msra.mxu0 0.0
    %3612 = vmatprep.subr.mxu0 0.0
    %3613 = vmatpush1.msra.mxu0 0.0
    %3614 = vmatprep.subr.mxu0 0.0
    %3615 = vmatpush1.msra.mxu0 0.0
    %3616 = vmatprep.subr.mxu0 0.0
    %3617 = vmatpush1.msra.mxu0 0.0
    %3618 = vmatprep.subr.mxu0 0.0
    %3619 = vmatpush1.msra.mxu0 0.0
    %3620 = vmatprep.subr.mxu0 0.0
    %3621 = vmatpush1.msra.mxu0 0.0
    %3622 = vmatprep.subr.mxu0 0.0
    %3623 = vmatpush1.msra.mxu0 0.0
    %3624 = vmatprep.subr.mxu0 0.0
    %3625 = vmatpush1.msra.mxu0 0.0
    %3626 = vmatprep.subr.mxu0 0.0
    %3627 = vmatpush1.msra.mxu0 0.0
    %3628 = vmatprep.subr.mxu0 0.0
    %3629 = vmatpush1.msra.mxu0 0.0
    %3630 = vmatprep.subr.mxu0 0.0
    %3631 = vmatpush1.msra.mxu0 0.0
    %3632 = vmatprep.subr.mxu0 0.0
    %3633 = vmatpush1.msra.mxu0 0.0
    %3634 = vmatprep.subr.mxu0 0.0
    %3635 = vmatpush1.msra.mxu0 0.0
    %3636 = vmatprep.subr.mxu0 0.0
    %3637 = vmatpush1.msra.mxu0 0.0
    %3638 = vmatprep.subr.mxu0 0.0
    %3639 = vmatpush1.msra.mxu0 0.0
    %3640 = vmatprep.subr.mxu0 0.0
    %3641 = vmatpush1.msra.mxu0 0.0
    %3642 = vmatprep.subr.mxu0 0.0
    %3643 = vmatpush1.msra.mxu0 0.0
    %3644 = vmatprep.subr.mxu0 0.0
    %3645 = vmatpush1.msra.mxu0 0.0
    %3646 = vmatprep.subr.mxu0 0.0
    %3647 = vmatpush1.msra.mxu0 0.0
    %3648 = vmatprep.subr.mxu0 0.0
    %3649 = vmatpush1.msra.mxu0 0.0
    %3650 = vmatprep.subr.mxu0 0.0
    %3651 = vmatpush1.msra.mxu0 0.0
    %3652 = vmatprep.subr.mxu0 0.0
    %3653 = vmatpush1.msra.mxu0 0.0
    %3654 = vmatprep.subr.mxu0 0.0
    %3655 = vmatpush1.msra.mxu0 0.0
    %3656 = vmatprep.subr.mxu0 0.0
    %3657 = vmatpush1.msra.mxu0 0.0
    %3658 = vmatprep.subr.mxu0 0.0
    %3659 = vmatpush1.msra.mxu0 0.0
    %3660 = vmatprep.subr.mxu0 0.0
    %3661 = vmatpush1.msra.mxu0 0.0
    %3662 = vmatprep.subr.mxu0 0.0
    %3663 = vmatpush1.msra.mxu0 0.0
    %3664 = vmatprep.subr.mxu0 0.0
    %3665 = vmatpush1.msra.mxu0 0.0
    %3666 = vmatprep.subr.mxu0 0.0
    %3667 = vmatpush1.msra.mxu0 0.0
    %3668 = vmatprep.subr.mxu0 0.0
    %3669 = vmatpush1.msra.mxu0 0.0
    %3670 = vmatprep.mubr.f32.mxu0 0.0
    %3671 = vmatmul.mubr.f32.gmra.mrb[0].mxu0 %v1588
    %v3672 = vpop.f32.mrb[0].mxu0
    %v3673 = vadd.f32 0.0, %v3672
    %v3674 = vpop.f32.mrb[0].mxu0
    %3675 = vmatprep.mubr.f32.mxu0 0.0
    %3676 = vmatmul.mubr.f32.gmra.mrb[0].mxu0 %v1591
    %v3677 = vpop.f32.mrb[0].mxu0
    %v3678 = vadd.f32 0.0, %v3677
    %v3679 = vpop.f32.mrb[0].mxu0
    %3680 = vdwg.mxu0
    %3681 = vmatprep.subr.mxu0 0.0
    %3682 = vmatpush1.msra.mxu0 %v3003
    %3683 = vmatprep.subr.mxu0 0.0
    %3684 = vmatpush1.msra.mxu0 %v3008
    %3685 = vmatprep.subr.mxu0 0.0
    %3686 = vmatpush1.msra.mxu0 0.0
    %3687 = vmatprep.subr.mxu0 0.0
    %3688 = vmatpush1.msra.mxu0 0.0
    %3689 = vmatprep.subr.mxu0 0.0
    %3690 = vmatpush1.msra.mxu0 0.0
    %3691 = vmatprep.subr.mxu0 0.0
    %3692 = vmatpush1.msra.mxu0 0.0
    %3693 = vmatprep.subr.mxu0 0.0
    %3694 = vmatpush1.msra.mxu0 0.0
    %3695 = vmatprep.subr.mxu0 0.0
    %3696 = vmatpush1.msra.mxu0 0.0
    %3697 = vmatprep.subr.mxu0 0.0
    %3698 = vmatpush1.msra.mxu0 0.0
    %3699 = vmatprep.subr.mxu0 0.0
    %3700 = vmatpush1.msra.mxu0 0.0
    %3701 = vmatprep.subr.mxu0 0.0
    %3702 = vmatpush1.msra.mxu0 0.0
    %3703 = vmatprep.subr.mxu0 0.0
    %3704 = vmatpush1.msra.mxu0 0.0
    %3705 = vmatprep.subr.mxu0 0.0
    %3706 = vmatpush1.msra.mxu0 0.0
    %3707 = vmatprep.subr.mxu0 0.0
    %3708 = vmatpush1.msra.mxu0 0.0
    %3709 = vmatprep.subr.mxu0 0.0
    %3710 = vmatpush1.msra.mxu0 0.0
    %3711 = vmatprep.subr.mxu0 0.0
    %3712 = vmatpush1.msra.mxu0 0.0
    %3713 = vmatprep.subr.mxu0 0.0
    %3714 = vmatpush1.msra.mxu0 0.0
    %3715 = vmatprep.subr.mxu0 0.0
    %3716 = vmatpush1.msra.mxu0 0.0
    %3717 = vmatprep.subr.mxu0 0.0
    %3718 = vmatpush1.msra.mxu0 0.0
    %3719 = vmatprep.subr.mxu0 0.0
    %3720 = vmatpush1.msra.mxu0 0.0
    %3721 = vmatprep.subr.mxu0 0.0
    %3722 = vmatpush1.msra.mxu0 0.0
    %3723 = vmatprep.subr.mxu0 0.0
    %3724 = vmatpush1.msra.mxu0 0.0
    %3725 = vmatprep.subr.mxu0 0.0
    %3726 = vmatpush1.msra.mxu0 0.0
    %3727 = vmatprep.subr.mxu0 0.0
    %3728 = vmatpush1.msra.mxu0 0.0
    %3729 = vmatprep.subr.mxu0 0.0
    %3730 = vmatpush1.msra.mxu0 0.0
    %3731 = vmatprep.subr.mxu0 0.0
    %3732 = vmatpush1.msra.mxu0 0.0
    %3733 = vmatprep.subr.mxu0 0.0
    %3734 = vmatpush1.msra.mxu0 0.0
    %3735 = vmatprep.subr.mxu0 0.0
    %3736 = vmatpush1.msra.mxu0 0.0
    %3737 = vmatprep.subr.mxu0 0.0
    %3738 = vmatpush1.msra.mxu0 0.0
    %3739 = vmatprep.subr.mxu0 0.0
    %3740 = vmatpush1.msra.mxu0 0.0
    %3741 = vmatprep.subr.mxu0 0.0
    %3742 = vmatpush1.msra.mxu0 0.0
    %3743 = vmatprep.subr.mxu0 0.0
    %3744 = vmatpush1.msra.mxu0 0.0
    %3745 = vmatprep.mubr.f32.mxu0 0.0
    %3746 = vmatmul.mubr.f32.gmra.mrb[0].mxu0 %v1669
    %v3747 = vpop.f32.mrb[0].mxu0
    %v3748 = vadd.f32 0.0, %v3747
    %v3749 = vpop.f32.mrb[0].mxu0
    %3750 = vmatprep.mubr.f32.mxu0 0.0
    %3751 = vmatmul.mubr.f32.gmra.mrb[0].mxu0 %v1672
    %v3752 = vpop.f32.mrb[0].mxu0
    %v3753 = vadd.f32 0.0, %v3752
    %v3754 = vpop.f32.mrb[0].mxu0
    %3755 = vdwg.mxu0
    %3756 = vmatprep.subr.mxu0 0.0
    %3757 = vmatpush1.msra.mxu0 %v3013
    %3758 = vmatprep.subr.mxu0 0.0
    %3759 = vmatpush1.msra.mxu0 %v3018
    %3760 = vmatprep.subr.mxu0 0.0
    %3761 = vmatpush1.msra.mxu0 0.0
    %3762 = vmatprep.subr.mxu0 0.0
    %3763 = vmatpush1.msra.mxu0 0.0
    %3764 = vmatprep.subr.mxu0 0.0
    %3765 = vmatpush1.msra.mxu0 0.0
    %3766 = vmatprep.subr.mxu0 0.0
    %3767 = vmatpush1.msra.mxu0 0.0
    %3768 = vmatprep.subr.mxu0 0.0
    %3769 = vmatpush1.msra.mxu0 0.0
    %3770 = vmatprep.subr.mxu0 0.0
    %3771 = vmatpush1.msra.mxu0 0.0
    %3772 = vmatprep.subr.mxu0 0.0
    %3773 = vmatpush1.msra.mxu0 0.0
    %3774 = vmatprep.subr.mxu0 0.0
    %3775 = vmatpush1.msra.mxu0 0.0
    %3776 = vmatprep.subr.mxu0 0.0
    %3777 = vmatpush1.msra.mxu0 0.0
    %3778 = vmatprep.subr.mxu0 0.0
    %3779 = vmatpush1.msra.mxu0 0.0
    %3780 = vmatprep.subr.mxu0 0.0
    %3781 = vmatpush1.msra.mxu0 0.0
    %3782 = vmatprep.subr.mxu0 0.0
    %3783 = vmatpush1.msra.mxu0 0.0
    %3784 = vmatprep.subr.mxu0 0.0
    %3785 = vmatpush1.msra.mxu0 0.0
    %3786 = vmatprep.subr.mxu0 0.0
    %3787 = vmatpush1.msra.mxu0 0.0
    %3788 = vmatprep.subr.mxu0 0.0
    %3789 = vmatpush1.msra.mxu0 0.0
    %3790 = vmatprep.subr.mxu0 0.0
    %3791 = vmatpush1.msra.mxu0 0.0
    %3792 = vmatprep.subr.mxu0 0.0
    %3793 = vmatpush1.msra.mxu0 0.0
    %3794 = vmatprep.subr.mxu0 0.0
    %3795 = vmatpush1.msra.mxu0 0.0
    %3796 = vmatprep.subr.mxu0 0.0
    %3797 = vmatpush1.msra.mxu0 0.0
    %3798 = vmatprep.subr.mxu0 0.0
    %3799 = vmatpush1.msra.mxu0 0.0
    %3800 = vmatprep.subr.mxu0 0.0
    %3801 = vmatpush1.msra.mxu0 0.0
    %3802 = vmatprep.subr.mxu0 0.0
    %3803 = vmatpush1.msra.mxu0 0.0
    %3804 = vmatprep.subr.mxu0 0.0
    %3805 = vmatpush1.msra.mxu0 0.0
    %3806 = vmatprep.subr.mxu0 0.0
    %3807 = vmatpush1.msra.mxu0 0.0
    %3808 = vmatprep.subr.mxu0 0.0
    %3809 = vmatpush1.msra.mxu0 0.0
    %3810 = vmatprep.subr.mxu0 0.0
    %3811 = vmatpush1.msra.mxu0 0.0
    %3812 = vmatprep.subr.mxu0 0.0
    %3813 = vmatpush1.msra.mxu0 0.0
    %3814 = vmatprep.subr.mxu0 0.0
    %3815 = vmatpush1.msra.mxu0 0.0
    %3816 = vmatprep.subr.mxu0 0.0
    %3817 = vmatpush1.msra.mxu0 0.0
    %3818 = vmatprep.subr.mxu0 0.0
    %3819 = vmatpush1.msra.mxu0 0.0
    %3820 = vmatprep.mubr.f32.mxu0 0.0
    %3821 = vmatmul.mubr.f32.gmra.mrb[0].mxu0 %v1750
    %v3822 = vpop.f32.mrb[0].mxu0
    %v3823 = vadd.f32 0.0, %v3822
    %v3824 = vpop.f32.mrb[0].mxu0
    %3825 = vmatprep.mubr.f32.mxu0 0.0
    %3826 = vmatmul.mubr.f32.gmra.mrb[0].mxu0 %v1753
    %v3827 = vpop.f32.mrb[0].mxu0
    %v3828 = vadd.f32 0.0, %v3827
    %v3829 = vpop.f32.mrb[0].mxu0
    %3830 = vdwg.mxu0
    %3831 = vmatprep.subr.mxu0 0.0
    %3832 = vmatpush1.msra.mxu0 %v3023
    %3833 = vmatprep.subr.mxu0 0.0
    %3834 = vmatpush1.msra.mxu0 %v3028
    %3835 = vmatprep.subr.mxu0 0.0
    %3836 = vmatpush1.msra.mxu0 0.0
    %3837 = vmatprep.subr.mxu0 0.0
    %3838 = vmatpush1.msra.mxu0 0.0
    %3839 = vmatprep.subr.mxu0 0.0
    %3840 = vmatpush1.msra.mxu0 0.0
    %3841 = vmatprep.subr.mxu0 0.0
    %3842 = vmatpush1.msra.mxu0 0.0
    %3843 = vmatprep.subr.mxu0 0.0
    %3844 = vmatpush1.msra.mxu0 0.0
    %3845 = vmatprep.subr.mxu0 0.0
    %3846 = vmatpush1.msra.mxu0 0.0
    %3847 = vmatprep.subr.mxu0 0.0
    %3848 = vmatpush1.msra.mxu0 0.0
    %3849 = vmatprep.subr.mxu0 0.0
    %3850 = vmatpush1.msra.mxu0 0.0
    %3851 = vmatprep.subr.mxu0 0.0
    %3852 = vmatpush1.msra.mxu0 0.0
    %3853 = vmatprep.subr.mxu0 0.0
    %3854 = vmatpush1.msra.mxu0 0.0
    %3855 = vmatprep.subr.mxu0 0.0
    %3856 = vmatpush1.msra.mxu0 0.0
    %3857 = vmatprep.subr.mxu0 0.0
    %3858 = vmatpush1.msra.mxu0 0.0
    %3859 = vmatprep.subr.mxu0 0.0
    %3860 = vmatpush1.msra.mxu0 0.0
    %3861 = vmatprep.subr.mxu0 0.0
    %3862 = vmatpush1.msra.mxu0 0.0
    %3863 = vmatprep.subr.mxu0 0.0
    %3864 = vmatpush1.msra.mxu0 0.0
    %3865 = vmatprep.subr.mxu0 0.0
    %3866 = vmatpush1.msra.mxu0 0.0
    %3867 = vmatprep.subr.mxu0 0.0
    %3868 = vmatpush1.msra.mxu0 0.0
    %3869 = vmatprep.subr.mxu0 0.0
    %3870 = vmatpush1.msra.mxu0 0.0
    %3871 = vmatprep.subr.mxu0 0.0
    %3872 = vmatpush1.msra.mxu0 0.0
    %3873 = vmatprep.subr.mxu0 0.0
    %3874 = vmatpush1.msra.mxu0 0.0
    %3875 = vmatprep.subr.mxu0 0.0
    %3876 = vmatpush1.msra.mxu0 0.0
    %3877 = vmatprep.subr.mxu0 0.0
    %3878 = vmatpush1.msra.mxu0 0.0
    %3879 = vmatprep.subr.mxu0 0.0
    %3880 = vmatpush1.msra.mxu0 0.0
    %3881 = vmatprep.subr.mxu0 0.0
    %3882 = vmatpush1.msra.mxu0 0.0
    %3883 = vmatprep.subr.mxu0 0.0
    %3884 = vmatpush1.msra.mxu0 0.0
    %3885 = vmatprep.subr.mxu0 0.0
    %3886 = vmatpush1.msra.mxu0 0.0
    %3887 = vmatprep.subr.mxu0 0.0
    %3888 = vmatpush1.msra.mxu0 0.0
    %3889 = vmatprep.subr.mxu0 0.0
    %3890 = vmatpush1.msra.mxu0 0.0
    %3891 = vmatprep.subr.mxu0 0.0
    %3892 = vmatpush1.msra.mxu0 0.0
    %3893 = vmatprep.subr.mxu0 0.0
    %3894 = vmatpush1.msra.mxu0 0.0
    %3895 = vmatprep.mubr.f32.mxu0 0.0
    %3896 = vmatmul.mubr.f32.gmra.mrb[0].mxu0 %v1831
    %v3897 = vpop.f32.mrb[0].mxu0
    %v3898 = vadd.f32 0.0, %v3897
    %v3899 = vpop.f32.mrb[0].mxu0
    %3900 = vmatprep.mubr.f32.mxu0 0.0
    %3901 = vmatmul.mubr.f32.gmra.mrb[0].mxu0 %v1834
    %v3902 = vpop.f32.mrb[0].mxu0
    %v3903 = vadd.f32 0.0, %v3902
    %v3904 = vpop.f32.mrb[0].mxu0
    %3905 = vdwg.mxu0
    %3906 = vmatprep.subr.mxu0 0.0
    %3907 = vmatpush1.msra.mxu0 %v3033
    %3908 = vmatprep.subr.mxu0 0.0
    %3909 = vmatpush1.msra.mxu0 %v3038
    %3910 = vmatprep.subr.mxu0 0.0
    %3911 = vmatpush1.msra.mxu0 0.0
    %3912 = vmatprep.subr.mxu0 0.0
    %3913 = vmatpush1.msra.mxu0 0.0
    %3914 = vmatprep.subr.mxu0 0.0
    %3915 = vmatpush1.msra.mxu0 0.0
    %3916 = vmatprep.subr.mxu0 0.0
    %3917 = vmatpush1.msra.mxu0 0.0
    %3918 = vmatprep.subr.mxu0 0.0
    %3919 = vmatpush1.msra.mxu0 0.0
    %3920 = vmatprep.subr.mxu0 0.0
    %3921 = vmatpush1.msra.mxu0 0.0
    %3922 = vmatprep.subr.mxu0 0.0
    %3923 = vmatpush1.msra.mxu0 0.0
    %3924 = vmatprep.subr.mxu0 0.0
    %3925 = vmatpush1.msra.mxu0 0.0
    %3926 = vmatprep.subr.mxu0 0.0
    %3927 = vmatpush1.msra.mxu0 0.0
    %3928 = vmatprep.subr.mxu0 0.0
    %3929 = vmatpush1.msra.mxu0 0.0
    %3930 = vmatprep.subr.mxu0 0.0
    %3931 = vmatpush1.msra.mxu0 0.0
    %3932 = vmatprep.subr.mxu0 0.0
    %3933 = vmatpush1.msra.mxu0 0.0
    %3934 = vmatprep.subr.mxu0 0.0
    %3935 = vmatpush1.msra.mxu0 0.0
    %3936 = vmatprep.subr.mxu0 0.0
    %3937 = vmatpush1.msra.mxu0 0.0
    %3938 = vmatprep.subr.mxu0 0.0
    %3939 = vmatpush1.msra.mxu0 0.0
    %3940 = vmatprep.subr.mxu0 0.0
    %3941 = vmatpush1.msra.mxu0 0.0
    %3942 = vmatprep.subr.mxu0 0.0
    %3943 = vmatpush1.msra.mxu0 0.0
    %3944 = vmatprep.subr.mxu0 0.0
    %3945 = vmatpush1.msra.mxu0 0.0
    %3946 = vmatprep.subr.mxu0 0.0
    %3947 = vmatpush1.msra.mxu0 0.0
    %3948 = vmatprep.subr.mxu0 0.0
    %3949 = vmatpush1.msra.mxu0 0.0
    %3950 = vmatprep.subr.mxu0 0.0
    %3951 = vmatpush1.msra.mxu0 0.0
    %3952 = vmatprep.subr.mxu0 0.0
    %3953 = vmatpush1.msra.mxu0 0.0
    %3954 = vmatprep.subr.mxu0 0.0
    %3955 = vmatpush1.msra.mxu0 0.0
    %3956 = vmatprep.subr.mxu0 0.0
    %3957 = vmatpush1.msra.mxu0 0.0
    %3958 = vmatprep.subr.mxu0 0.0
    %3959 = vmatpush1.msra.mxu0 0.0
    %3960 = vmatprep.subr.mxu0 0.0
    %3961 = vmatpush1.msra.mxu0 0.0
    %3962 = vmatprep.subr.mxu0 0.0
    %3963 = vmatpush1.msra.mxu0 0.0
    %3964 = vmatprep.subr.mxu0 0.0
    %3965 = vmatpush1.msra.mxu0 0.0
    %3966 = vmatprep.subr.mxu0 0.0
    %3967 = vmatpush1.msra.mxu0 0.0
    %3968 = vmatprep.subr.mxu0 0.0
    %3969 = vmatpush1.msra.mxu0 0.0
    %3970 = vmatprep.mubr.f32.mxu0 0.0
    %3971 = vmatmul.mubr.f32.gmra.mrb[0].mxu0 %v1912
    %v3972 = vpop.f32.mrb[0].mxu0
    %v3973 = vadd.f32 0.0, %v3972
    %v3974 = vpop.f32.mrb[0].mxu0
    %3975 = vmatprep.mubr.f32.mxu0 0.0
    %3976 = vmatmul.mubr.f32.gmra.mrb[0].mxu0 %v1915
    %v3977 = vpop.f32.mrb[0].mxu0
    %v3978 = vadd.f32 0.0, %v3977
    %v3979 = vpop.f32.mrb[0].mxu0
    %3980 = vdwg.mxu0
    %3981 = vmatprep.subr.mxu0 0.0
    %3982 = vmatpush1.msra.mxu0 %v3043
    %3983 = vmatprep.subr.mxu0 0.0
    %3984 = vmatpush1.msra.mxu0 %v3048
    %3985 = vmatprep.subr.mxu0 0.0
    %3986 = vmatpush1.msra.mxu0 0.0
    %3987 = vmatprep.subr.mxu0 0.0
    %3988 = vmatpush1.msra.mxu0 0.0
    %3989 = vmatprep.subr.mxu0 0.0
    %3990 = vmatpush1.msra.mxu0 0.0
    %3991 = vmatprep.subr.mxu0 0.0
    %3992 = vmatpush1.msra.mxu0 0.0
    %3993 = vmatprep.subr.mxu0 0.0
    %3994 = vmatpush1.msra.mxu0 0.0
    %3995 = vmatprep.subr.mxu0 0.0
    %3996 = vmatpush1.msra.mxu0 0.0
    %3997 = vmatprep.subr.mxu0 0.0
    %3998 = vmatpush1.msra.mxu0 0.0
    %3999 = vmatprep.subr.mxu0 0.0
    %4000 = vmatpush1.msra.mxu0 0.0
    %4001 = vmatprep.subr.mxu0 0.0
    %4002 = vmatpush1.msra.mxu0 0.0
    %4003 = vmatprep.subr.mxu0 0.0
    %4004 = vmatpush1.msra.mxu0 0.0
    %4005 = vmatprep.subr.mxu0 0.0
    %4006 = vmatpush1.msra.mxu0 0.0
    %4007 = vmatprep.subr.mxu0 0.0
    %4008 = vmatpush1.msra.mxu0 0.0
    %4009 = vmatprep.subr.mxu0 0.0
    %4010 = vmatpush1.msra.mxu0 0.0
    %4011 = vmatprep.subr.mxu0 0.0
    %4012 = vmatpush1.msra.mxu0 0.0
    %4013 = vmatprep.subr.mxu0 0.0
    %4014 = vmatpush1.msra.mxu0 0.0
    %4015 = vmatprep.subr.mxu0 0.0
    %4016 = vmatpush1.msra.mxu0 0.0
    %4017 = vmatprep.subr.mxu0 0.0
    %4018 = vmatpush1.msra.mxu0 0.0
    %4019 = vmatprep.subr.mxu0 0.0
    %4020 = vmatpush1.msra.mxu0 0.0
    %4021 = vmatprep.subr.mxu0 0.0
    %4022 = vmatpush1.msra.mxu0 0.0
    %4023 = vmatprep.subr.mxu0 0.0
    %4024 = vmatpush1.msra.mxu0 0.0
    %4025 = vmatprep.subr.mxu0 0.0
    %4026 = vmatpush1.msra.mxu0 0.0
    %4027 = vmatprep.subr.mxu0 0.0
    %4028 = vmatpush1.msra.mxu0 0.0
    %4029 = vmatprep.subr.mxu0 0.0
    %4030 = vmatpush1.msra.mxu0 0.0
    %4031 = vmatprep.subr.mxu0 0.0
    %4032 = vmatpush1.msra.mxu0 0.0
    %4033 = vmatprep.subr.mxu0 0.0
    %4034 = vmatpush1.msra.mxu0 0.0
    %4035 = vmatprep.subr.mxu0 0.0
    %4036 = vmatpush1.msra.mxu0 0.0
    %4037 = vmatprep.subr.mxu0 0.0
    %4038 = vmatpush1.msra.mxu0 0.0
    %4039 = vmatprep.subr.mxu0 0.0
    %4040 = vmatpush1.msra.mxu0 0.0
    %4041 = vmatprep.subr.mxu0 0.0
    %4042 = vmatpush1.msra.mxu0 0.0
    %4043 = vmatprep.subr.mxu0 0.0
    %4044 = vmatpush1.msra.mxu0 0.0
    %4045 = vmatprep.mubr.f32.mxu0 0.0
    %4046 = vmatmul.mubr.f32.gmra.mrb[0].mxu0 %v1993
    %v4047 = vpop.f32.mrb[0].mxu0
    %v4048 = vadd.f32 0.0, %v4047
    %v4049 = vpop.f32.mrb[0].mxu0
    %4050 = vmatprep.mubr.f32.mxu0 0.0
    %4051 = vmatmul.mubr.f32.gmra.mrb[0].mxu0 %v1996
    %v4052 = vpop.f32.mrb[0].mxu0
    %v4053 = vadd.f32 0.0, %v4052
    %v4054 = vpop.f32.mrb[0].mxu0
    %4055 = vdwg.mxu0
    %4056 = vmatprep.subr.mxu0 0.0
    %4057 = vmatpush1.msra.mxu0 %v3053
    %4058 = vmatprep.subr.mxu0 0.0
    %4059 = vmatpush1.msra.mxu0 %v3058
    %4060 = vmatprep.subr.mxu0 0.0
    %4061 = vmatpush1.msra.mxu0 0.0
    %4062 = vmatprep.subr.mxu0 0.0
    %4063 = vmatpush1.msra.mxu0 0.0
    %4064 = vmatprep.subr.mxu0 0.0
    %4065 = vmatpush1.msra.mxu0 0.0
    %4066 = vmatprep.subr.mxu0 0.0
    %4067 = vmatpush1.msra.mxu0 0.0
    %4068 = vmatprep.subr.mxu0 0.0
    %4069 = vmatpush1.msra.mxu0 0.0
    %4070 = vmatprep.subr.mxu0 0.0
    %4071 = vmatpush1.msra.mxu0 0.0
    %4072 = vmatprep.subr.mxu0 0.0
    %4073 = vmatpush1.msra.mxu0 0.0
    %4074 = vmatprep.subr.mxu0 0.0
    %4075 = vmatpush1.msra.mxu0 0.0
    %4076 = vmatprep.subr.mxu0 0.0
    %4077 = vmatpush1.msra.mxu0 0.0
    %4078 = vmatprep.subr.mxu0 0.0
    %4079 = vmatpush1.msra.mxu0 0.0
    %4080 = vmatprep.subr.mxu0 0.0
    %4081 = vmatpush1.msra.mxu0 0.0
    %4082 = vmatprep.subr.mxu0 0.0
    %4083 = vmatpush1.msra.mxu0 0.0
    %4084 = vmatprep.subr.mxu0 0.0
    %4085 = vmatpush1.msra.mxu0 0.0
    %4086 = vmatprep.subr.mxu0 0.0
    %4087 = vmatpush1.msra.mxu0 0.0
    %4088 = vmatprep.subr.mxu0 0.0
    %4089 = vmatpush1.msra.mxu0 0.0
    %4090 = vmatprep.subr.mxu0 0.0
    %4091 = vmatpush1.msra.mxu0 0.0
    %4092 = vmatprep.subr.mxu0 0.0
    %4093 = vmatpush1.msra.mxu0 0.0
    %4094 = vmatprep.subr.mxu0 0.0
    %4095 = vmatpush1.msra.mxu0 0.0
    %4096 = vmatprep.subr.mxu0 0.0
    %4097 = vmatpush1.msra.mxu0 0.0
    %4098 = vmatprep.subr.mxu0 0.0
    %4099 = vmatpush1.msra.mxu0 0.0
    %4100 = vmatprep.subr.mxu0 0.0
    %4101 = vmatpush1.msra.mxu0 0.0
    %4102 = vmatprep.subr.mxu0 0.0
    %4103 = vmatpush1.msra.mxu0 0.0
    %4104 = vmatprep.subr.mxu0 0.0
    %4105 = vmatpush1.msra.mxu0 0.0
    %4106 = vmatprep.subr.mxu0 0.0
    %4107 = vmatpush1.msra.mxu0 0.0
    %4108 = vmatprep.subr.mxu0 0.0
    %4109 = vmatpush1.msra.mxu0 0.0
    %4110 = vmatprep.subr.mxu0 0.0
    %4111 = vmatpush1.msra.mxu0 0.0
    %4112 = vmatprep.subr.mxu0 0.0
    %4113 = vmatpush1.msra.mxu0 0.0
    %4114 = vmatprep.subr.mxu0 0.0
    %4115 = vmatpush1.msra.mxu0 0.0
    %4116 = vmatprep.subr.mxu0 0.0
    %4117 = vmatpush1.msra.mxu0 0.0
    %4118 = vmatprep.subr.mxu0 0.0
    %4119 = vmatpush1.msra.mxu0 0.0
    %4120 = vmatprep.mubr.f32.mxu0 0.0
    %4121 = vmatmul.mubr.f32.gmra.mrb[0].mxu0 %v2074
    %v4122 = vpop.f32.mrb[0].mxu0
    %v4123 = vadd.f32 0.0, %v4122
    %v4124 = vpop.f32.mrb[0].mxu0
    %4125 = vmatprep.mubr.f32.mxu0 0.0
    %4126 = vmatmul.mubr.f32.gmra.mrb[0].mxu0 %v2077
    %v4127 = vpop.f32.mrb[0].mxu0
    %v4128 = vadd.f32 0.0, %v4127
    %v4129 = vpop.f32.mrb[0].mxu0
    %4130 = vdwg.mxu0
    %4131 = vmatprep.subr.mxu0 0.0
    %4132 = vmatpush1.msra.mxu0 %v3063
    %4133 = vmatprep.subr.mxu0 0.0
    %4134 = vmatpush1.msra.mxu0 %v3068
    %4135 = vmatprep.subr.mxu0 0.0
    %4136 = vmatpush1.msra.mxu0 0.0
    %4137 = vmatprep.subr.mxu0 0.0
    %4138 = vmatpush1.msra.mxu0 0.0
    %4139 = vmatprep.subr.mxu0 0.0
    %4140 = vmatpush1.msra.mxu0 0.0
    %4141 = vmatprep.subr.mxu0 0.0
    %4142 = vmatpush1.msra.mxu0 0.0
    %4143 = vmatprep.subr.mxu0 0.0
    %4144 = vmatpush1.msra.mxu0 0.0
    %4145 = vmatprep.subr.mxu0 0.0
    %4146 = vmatpush1.msra.mxu0 0.0
    %4147 = vmatprep.subr.mxu0 0.0
    %4148 = vmatpush1.msra.mxu0 0.0
    %4149 = vmatprep.subr.mxu0 0.0
    %4150 = vmatpush1.msra.mxu0 0.0
    %4151 = vmatprep.subr.mxu0 0.0
    %4152 = vmatpush1.msra.mxu0 0.0
    %4153 = vmatprep.subr.mxu0 0.0
    %4154 = vmatpush1.msra.mxu0 0.0
    %4155 = vmatprep.subr.mxu0 0.0
    %4156 = vmatpush1.msra.mxu0 0.0
    %4157 = vmatprep.subr.mxu0 0.0
    %4158 = vmatpush1.msra.mxu0 0.0
    %4159 = vmatprep.subr.mxu0 0.0
    %4160 = vmatpush1.msra.mxu0 0.0
    %4161 = vmatprep.subr.mxu0 0.0
    %4162 = vmatpush1.msra.mxu0 0.0
    %4163 = vmatprep.subr.mxu0 0.0
    %4164 = vmatpush1.msra.mxu0 0.0
    %4165 = vmatprep.subr.mxu0 0.0
    %4166 = vmatpush1.msra.mxu0 0.0
    %4167 = vmatprep.subr.mxu0 0.0
    %4168 = vmatpush1.msra.mxu0 0.0
    %4169 = vmatprep.subr.mxu0 0.0
    %4170 = vmatpush1.msra.mxu0 0.0
    %4171 = vmatprep.subr.mxu0 0.0
    %4172 = vmatpush1.msra.mxu0 0.0
    %4173 = vmatprep.subr.mxu0 0.0
    %4174 = vmatpush1.msra.mxu0 0.0
    %4175 = vmatprep.subr.mxu0 0.0
    %4176 = vmatpush1.msra.mxu0 0.0
    %4177 = vmatprep.subr.mxu0 0.0
    %4178 = vmatpush1.msra.mxu0 0.0
    %4179 = vmatprep.subr.mxu0 0.0
    %4180 = vmatpush1.msra.mxu0 0.0
    %4181 = vmatprep.subr.mxu0 0.0
    %4182 = vmatpush1.msra.mxu0 0.0
    %4183 = vmatprep.subr.mxu0 0.0
    %4184 = vmatpush1.msra.mxu0 0.0
    %4185 = vmatprep.subr.mxu0 0.0
    %4186 = vmatpush1.msra.mxu0 0.0
    %4187 = vmatprep.subr.mxu0 0.0
    %4188 = vmatpush1.msra.mxu0 0.0
    %4189 = vmatprep.subr.mxu0 0.0
    %4190 = vmatpush1.msra.mxu0 0.0
    %4191 = vmatprep.subr.mxu0 0.0
    %4192 = vmatpush1.msra.mxu0 0.0
    %4193 = vmatprep.subr.mxu0 0.0
    %4194 = vmatpush1.msra.mxu0 0.0
    %4195 = vmatprep.mubr.f32.mxu0 0.0
    %4196 = vmatmul.mubr.f32.gmra.mrb[0].mxu0 %v2155
    %v4197 = vpop.f32.mrb[0].mxu0
    %v4198 = vadd.f32 0.0, %v4197
    %v4199 = vpop.f32.mrb[0].mxu0
    %4200 = vmatprep.mubr.f32.mxu0 0.0
    %4201 = vmatmul.mubr.f32.gmra.mrb[0].mxu0 %v2158
    %v4202 = vpop.f32.mrb[0].mxu0
    %v4203 = vadd.f32 0.0, %v4202
    %v4204 = vpop.f32.mrb[0].mxu0
    %4205 = vdwg.mxu0
    %4206 = vmatprep.subr.mxu0 0.0
    %4207 = vmatpush1.msra.mxu0 %v3073
    %4208 = vmatprep.subr.mxu0 0.0
    %4209 = vmatpush1.msra.mxu0 %v3078
    %4210 = vmatprep.subr.mxu0 0.0
    %4211 = vmatpush1.msra.mxu0 0.0
    %4212 = vmatprep.subr.mxu0 0.0
    %4213 = vmatpush1.msra.mxu0 0.0
    %4214 = vmatprep.subr.mxu0 0.0
    %4215 = vmatpush1.msra.mxu0 0.0
    %4216 = vmatprep.subr.mxu0 0.0
    %4217 = vmatpush1.msra.mxu0 0.0
    %4218 = vmatprep.subr.mxu0 0.0
    %4219 = vmatpush1.msra.mxu0 0.0
    %4220 = vmatprep.subr.mxu0 0.0
    %4221 = vmatpush1.msra.mxu0 0.0
    %4222 = vmatprep.subr.mxu0 0.0
    %4223 = vmatpush1.msra.mxu0 0.0
    %4224 = vmatprep.subr.mxu0 0.0
    %4225 = vmatpush1.msra.mxu0 0.0
    %4226 = vmatprep.subr.mxu0 0.0
    %4227 = vmatpush1.msra.mxu0 0.0
    %4228 = vmatprep.subr.mxu0 0.0
    %4229 = vmatpush1.msra.mxu0 0.0
    %4230 = vmatprep.subr.mxu0 0.0
    %4231 = vmatpush1.msra.mxu0 0.0
    %4232 = vmatprep.subr.mxu0 0.0
    %4233 = vmatpush1.msra.mxu0 0.0
    %4234 = vmatprep.subr.mxu0 0.0
    %4235 = vmatpush1.msra.mxu0 0.0
    %4236 = vmatprep.subr.mxu0 0.0
    %4237 = vmatpush1.msra.mxu0 0.0
    %4238 = vmatprep.subr.mxu0 0.0
    %4239 = vmatpush1.msra.mxu0 0.0
    %4240 = vmatprep.subr.mxu0 0.0
    %4241 = vmatpush1.msra.mxu0 0.0
    %4242 = vmatprep.subr.mxu0 0.0
    %4243 = vmatpush1.msra.mxu0 0.0
    %4244 = vmatprep.subr.mxu0 0.0
    %4245 = vmatpush1.msra.mxu0 0.0
    %4246 = vmatprep.subr.mxu0 0.0
    %4247 = vmatpush1.msra.mxu0 0.0
    %4248 = vmatprep.subr.mxu0 0.0
    %4249 = vmatpush1.msra.mxu0 0.0
    %4250 = vmatprep.subr.mxu0 0.0
    %4251 = vmatpush1.msra.mxu0 0.0
    %4252 = vmatprep.subr.mxu0 0.0
    %4253 = vmatpush1.msra.mxu0 0.0
    %4254 = vmatprep.subr.mxu0 0.0
    %4255 = vmatpush1.msra.mxu0 0.0
    %4256 = vmatprep.subr.mxu0 0.0
    %4257 = vmatpush1.msra.mxu0 0.0
    %4258 = vmatprep.subr.mxu0 0.0
    %4259 = vmatpush1.msra.mxu0 0.0
    %4260 = vmatprep.subr.mxu0 0.0
    %4261 = vmatpush1.msra.mxu0 0.0
    %4262 = vmatprep.subr.mxu0 0.0
    %4263 = vmatpush1.msra.mxu0 0.0
    %4264 = vmatprep.subr.mxu0 0.0
    %4265 = vmatpush1.msra.mxu0 0.0
    %4266 = vmatprep.subr.mxu0 0.0
    %4267 = vmatpush1.msra.mxu0 0.0
    %4268 = vmatprep.subr.mxu0 0.0
    %4269 = vmatpush1.msra.mxu0 0.0
    %4270 = vmatprep.mubr.f32.mxu0 0.0
    %4271 = vmatmul.mubr.f32.gmra.mrb[0].mxu0 %v2236
    %v4272 = vpop.f32.mrb[0].mxu0
    %v4273 = vadd.f32 0.0, %v4272
    %v4274 = vpop.f32.mrb[0].mxu0
    %4275 = vmatprep.mubr.f32.mxu0 0.0
    %4276 = vmatmul.mubr.f32.gmra.mrb[0].mxu0 %v2239
    %v4277 = vpop.f32.mrb[0].mxu0
    %v4278 = vadd.f32 0.0, %v4277
    %v4279 = vpop.f32.mrb[0].mxu0
    %4280 = vdwg.mxu0
    %v4281 = vlaneseq
    %v4282 = vshrl.u32 %v4281, 7
    %v4283 = vsub.s32 1, %v4282
    %v4284 = vrot.slane %v151, %v4283
    %v4285 = vadd.f32 %v3148, %v4284
    %v4286 = vadd.f32 %v3153, %v4284
    %v4287 = vadd.f32 %v3223, %v4284
    %v4288 = vadd.f32 %v3228, %v4284
    %v4289 = vadd.f32 %v3298, %v4284
    %v4290 = vadd.f32 %v3303, %v4284
    %v4291 = vadd.f32 %v3373, %v4284
    %v4292 = vadd.f32 %v3378, %v4284
    %v4293 = vadd.f32 %v3448, %v4284
    %v4294 = vadd.f32 %v3453, %v4284
    %v4295 = vadd.f32 %v3523, %v4284
    %v4296 = vadd.f32 %v3528, %v4284
    %v4297 = vadd.f32 %v3598, %v4284
    %v4298 = vadd.f32 %v3603, %v4284
    %v4299 = vadd.f32 %v3673, %v4284
    %v4300 = vadd.f32 %v3678, %v4284
    %v4301 = vadd.f32 %v3748, %v4284
    %v4302 = vadd.f32 %v3753, %v4284
    %v4303 = vadd.f32 %v3823, %v4284
    %v4304 = vadd.f32 %v3828, %v4284
    %v4305 = vadd.f32 %v3898, %v4284
    %v4306 = vadd.f32 %v3903, %v4284
    %v4307 = vadd.f32 %v3973, %v4284
    %v4308 = vadd.f32 %v3978, %v4284
    %v4309 = vadd.f32 %v4048, %v4284
    %v4310 = vadd.f32 %v4053, %v4284
    %v4311 = vadd.f32 %v4123, %v4284
    %v4312 = vadd.f32 %v4128, %v4284
    %v4313 = vadd.f32 %v4198, %v4284
    %v4314 = vadd.f32 %v4203, %v4284
    %v4315 = vadd.f32 %v4273, %v4284
    %v4316 = vadd.f32 %v4278, %v4284
    %4317 = vadd.xlane.f32.xlu0 %v4285
    %v4318 = vpop.xlane.xlu0 %4317
    %4319 = vadd.xlane.f32.xlu0 %v4286
    %v4320 = vpop.xlane.xlu0 %4319
    %4321 = vadd.xlane.f32.xlu0 %v4287
    %v4322 = vpop.xlane.xlu0 %4321
    %4323 = vadd.xlane.f32.xlu0 %v4288
    %v4324 = vpop.xlane.xlu0 %4323
    %4325 = vadd.xlane.f32.xlu0 %v4289
    %v4326 = vpop.xlane.xlu0 %4325
    %4327 = vadd.xlane.f32.xlu0 %v4290
    %v4328 = vpop.xlane.xlu0 %4327
    %4329 = vadd.xlane.f32.xlu0 %v4291
    %v4330 = vpop.xlane.xlu0 %4329
    %4331 = vadd.xlane.f32.xlu0 %v4292
    %v4332 = vpop.xlane.xlu0 %4331
    %4333 = vadd.xlane.f32.xlu0 %v4293
    %v4334 = vpop.xlane.xlu0 %4333
    %4335 = vadd.xlane.f32.xlu0 %v4294
    %v4336 = vpop.xlane.xlu0 %4335
    %4337 = vadd.xlane.f32.xlu0 %v4295
    %v4338 = vpop.xlane.xlu0 %4337
    %4339 = vadd.xlane.f32.xlu0 %v4296
    %v4340 = vpop.xlane.xlu0 %4339
    %4341 = vadd.xlane.f32.xlu0 %v4297
    %v4342 = vpop.xlane.xlu0 %4341
    %4343 = vadd.xlane.f32.xlu0 %v4298
    %v4344 = vpop.xlane.xlu0 %4343
    %4345 = vadd.xlane.f32.xlu0 %v4299
    %v4346 = vpop.xlane.xlu0 %4345
    %4347 = vadd.xlane.f32.xlu0 %v4300
    %v4348 = vpop.xlane.xlu0 %4347
    %4349 = vadd.xlane.f32.xlu0 %v4301
    %v4350 = vpop.xlane.xlu0 %4349
    %4351 = vadd.xlane.f32.xlu0 %v4302
    %v4352 = vpop.xlane.xlu0 %4351
    %4353 = vadd.xlane.f32.xlu0 %v4303
    %v4354 = vpop.xlane.xlu0 %4353
    %4355 = vadd.xlane.f32.xlu0 %v4304
    %v4356 = vpop.xlane.xlu0 %4355
    %4357 = vadd.xlane.f32.xlu0 %v4305
    %v4358 = vpop.xlane.xlu0 %4357
    %4359 = vadd.xlane.f32.xlu0 %v4306
    %v4360 = vpop.xlane.xlu0 %4359
    %4361 = vadd.xlane.f32.xlu0 %v4307
    %v4362 = vpop.xlane.xlu0 %4361
    %4363 = vadd.xlane.f32.xlu0 %v4308
    %v4364 = vpop.xlane.xlu0 %4363
    %4365 = vadd.xlane.f32.xlu0 %v4309
    %v4366 = vpop.xlane.xlu0 %4365
    %4367 = vadd.xlane.f32.xlu0 %v4310
    %v4368 = vpop.xlane.xlu0 %4367
    %4369 = vadd.xlane.f32.xlu0 %v4311
    %v4370 = vpop.xlane.xlu0 %4369
    %4371 = vadd.xlane.f32.xlu0 %v4312
    %v4372 = vpop.xlane.xlu0 %4371
    %4373 = vadd.xlane.f32.xlu0 %v4313
    %v4374 = vpop.xlane.xlu0 %4373
    %4375 = vadd.xlane.f32.xlu0 %v4314
    %v4376 = vpop.xlane.xlu0 %4375
    %4377 = vadd.xlane.f32.xlu0 %v4315
    %v4378 = vpop.xlane.xlu0 %4377
    %4379 = vadd.xlane.f32.xlu0 %v4316
    %v4380 = vpop.xlane.xlu0 %4379
    %v4381 = vmul.f32 %v4318, 0.03125
    %v4382 = vmul.f32 %v4320, 0.03125
    %v4383 = vmul.f32 %v4322, 0.03125
    %v4384 = vmul.f32 %v4324, 0.03125
    %v4385 = vmul.f32 %v4326, 0.03125
    %v4386 = vmul.f32 %v4328, 0.03125
    %v4387 = vmul.f32 %v4330, 0.03125
    %v4388 = vmul.f32 %v4332, 0.03125
    %v4389 = vmul.f32 %v4334, 0.03125
    %v4390 = vmul.f32 %v4336, 0.03125
    %v4391 = vmul.f32 %v4338, 0.03125
    %v4392 = vmul.f32 %v4340, 0.03125
    %v4393 = vmul.f32 %v4342, 0.03125
    %v4394 = vmul.f32 %v4344, 0.03125
    %v4395 = vmul.f32 %v4346, 0.03125
    %v4396 = vmul.f32 %v4348, 0.03125
    %v4397 = vmul.f32 %v4350, 0.03125
    %v4398 = vmul.f32 %v4352, 0.03125
    %v4399 = vmul.f32 %v4354, 0.03125
    %v4400 = vmul.f32 %v4356, 0.03125
    %v4401 = vmul.f32 %v4358, 0.03125
    %v4402 = vmul.f32 %v4360, 0.03125
    %v4403 = vmul.f32 %v4362, 0.03125
    %v4404 = vmul.f32 %v4364, 0.03125
    %v4405 = vmul.f32 %v4366, 0.03125
    %v4406 = vmul.f32 %v4368, 0.03125
    %v4407 = vmul.f32 %v4370, 0.03125
    %v4408 = vmul.f32 %v4372, 0.03125
    %v4409 = vmul.f32 %v4374, 0.03125
    %v4410 = vmul.f32 %v4376, 0.03125
    %v4411 = vmul.f32 %v4378, 0.03125
    %v4412 = vmul.f32 %v4380, 0.03125
    %v4413 = vsub.f32 %v4285, %v4381
    %v4414 = vsub.f32 %v4286, %v4382
    %v4415 = vsub.f32 %v4287, %v4383
    %v4416 = vsub.f32 %v4288, %v4384
    %v4417 = vsub.f32 %v4289, %v4385
    %v4418 = vsub.f32 %v4290, %v4386
    %v4419 = vsub.f32 %v4291, %v4387
    %v4420 = vsub.f32 %v4292, %v4388
    %v4421 = vsub.f32 %v4293, %v4389
    %v4422 = vsub.f32 %v4294, %v4390
    %v4423 = vsub.f32 %v4295, %v4391
    %v4424 = vsub.f32 %v4296, %v4392
    %v4425 = vsub.f32 %v4297, %v4393
    %v4426 = vsub.f32 %v4298, %v4394
    %v4427 = vsub.f32 %v4299, %v4395
    %v4428 = vsub.f32 %v4300, %v4396
    %v4429 = vsub.f32 %v4301, %v4397
    %v4430 = vsub.f32 %v4302, %v4398
    %v4431 = vsub.f32 %v4303, %v4399
    %v4432 = vsub.f32 %v4304, %v4400
    %v4433 = vsub.f32 %v4305, %v4401
    %v4434 = vsub.f32 %v4306, %v4402
    %v4435 = vsub.f32 %v4307, %v4403
    %v4436 = vsub.f32 %v4308, %v4404
    %v4437 = vsub.f32 %v4309, %v4405
    %v4438 = vsub.f32 %v4310, %v4406
    %v4439 = vsub.f32 %v4311, %v4407
    %v4440 = vsub.f32 %v4312, %v4408
    %v4441 = vsub.f32 %v4313, %v4409
    %v4442 = vsub.f32 %v4314, %v4410
    %v4443 = vsub.f32 %v4315, %v4411
    %v4444 = vsub.f32 %v4316, %v4412
    %v4445 = vmul.f32 %v4413, %v157
    %v4446 = vmul.f32 %v4414, %v157
    %v4447 = vmul.f32 %v4415, %v157
    %v4448 = vmul.f32 %v4416, %v157
    %v4449 = vmul.f32 %v4417, %v157
    %v4450 = vmul.f32 %v4418, %v157
    %v4451 = vmul.f32 %v4419, %v157
    %v4452 = vmul.f32 %v4420, %v157
    %v4453 = vmul.f32 %v4421, %v157
    %v4454 = vmul.f32 %v4422, %v157
    %v4455 = vmul.f32 %v4423, %v157
    %v4456 = vmul.f32 %v4424, %v157
    %v4457 = vmul.f32 %v4425, %v157
    %v4458 = vmul.f32 %v4426, %v157
    %v4459 = vmul.f32 %v4427, %v157
    %v4460 = vmul.f32 %v4428, %v157
    %v4461 = vmul.f32 %v4429, %v157
    %v4462 = vmul.f32 %v4430, %v157
    %v4463 = vmul.f32 %v4431, %v157
    %v4464 = vmul.f32 %v4432, %v157
    %v4465 = vmul.f32 %v4433, %v157
    %v4466 = vmul.f32 %v4434, %v157
    %v4467 = vmul.f32 %v4435, %v157
    %v4468 = vmul.f32 %v4436, %v157
    %v4469 = vmul.f32 %v4437, %v157
    %v4470 = vmul.f32 %v4438, %v157
    %v4471 = vmul.f32 %v4439, %v157
    %v4472 = vmul.f32 %v4440, %v157
    %v4473 = vmul.f32 %v4441, %v157
    %v4474 = vmul.f32 %v4442, %v157
    %v4475 = vmul.f32 %v4443, %v157
    %v4476 = vmul.f32 %v4444, %v157
    %v4477 = vmul.f32 %v4445, %v4445
    %v4478 = vmul.f32 %v4446, %v4446
    %v4479 = vmul.f32 %v4447, %v4447
    %v4480 = vmul.f32 %v4448, %v4448
    %v4481 = vmul.f32 %v4449, %v4449
    %v4482 = vmul.f32 %v4450, %v4450
    %v4483 = vmul.f32 %v4451, %v4451
    %v4484 = vmul.f32 %v4452, %v4452
    %v4485 = vmul.f32 %v4453, %v4453
    %v4486 = vmul.f32 %v4454, %v4454
    %v4487 = vmul.f32 %v4455, %v4455
    %v4488 = vmul.f32 %v4456, %v4456
    %v4489 = vmul.f32 %v4457, %v4457
    %v4490 = vmul.f32 %v4458, %v4458
    %v4491 = vmul.f32 %v4459, %v4459
    %v4492 = vmul.f32 %v4460, %v4460
    %v4493 = vmul.f32 %v4461, %v4461
    %v4494 = vmul.f32 %v4462, %v4462
    %v4495 = vmul.f32 %v4463, %v4463
    %v4496 = vmul.f32 %v4464, %v4464
    %v4497 = vmul.f32 %v4465, %v4465
    %v4498 = vmul.f32 %v4466, %v4466
    %v4499 = vmul.f32 %v4467, %v4467
    %v4500 = vmul.f32 %v4468, %v4468
    %v4501 = vmul.f32 %v4469, %v4469
    %v4502 = vmul.f32 %v4470, %v4470
    %v4503 = vmul.f32 %v4471, %v4471
    %v4504 = vmul.f32 %v4472, %v4472
    %v4505 = vmul.f32 %v4473, %v4473
    %v4506 = vmul.f32 %v4474, %v4474
    %v4507 = vmul.f32 %v4475, %v4475
    %v4508 = vmul.f32 %v4476, %v4476
    %4509 = vadd.xlane.f32.xlu0 %v4477
    %v4510 = vpop.xlane.xlu0 %4509
    %4511 = vadd.xlane.f32.xlu0 %v4478
    %v4512 = vpop.xlane.xlu0 %4511
    %4513 = vadd.xlane.f32.xlu0 %v4479
    %v4514 = vpop.xlane.xlu0 %4513
    %4515 = vadd.xlane.f32.xlu0 %v4480
    %v4516 = vpop.xlane.xlu0 %4515
    %4517 = vadd.xlane.f32.xlu0 %v4481
    %v4518 = vpop.xlane.xlu0 %4517
    %4519 = vadd.xlane.f32.xlu0 %v4482
    %v4520 = vpop.xlane.xlu0 %4519
    %4521 = vadd.xlane.f32.xlu0 %v4483
    %v4522 = vpop.xlane.xlu0 %4521
    %4523 = vadd.xlane.f32.xlu0 %v4484
    %v4524 = vpop.xlane.xlu0 %4523
    %4525 = vadd.xlane.f32.xlu0 %v4485
    %v4526 = vpop.xlane.xlu0 %4525
    %4527 = vadd.xlane.f32.xlu0 %v4486
    %v4528 = vpop.xlane.xlu0 %4527
    %4529 = vadd.xlane.f32.xlu0 %v4487
    %v4530 = vpop.xlane.xlu0 %4529
    %4531 = vadd.xlane.f32.xlu0 %v4488
    %v4532 = vpop.xlane.xlu0 %4531
    %4533 = vadd.xlane.f32.xlu0 %v4489
    %v4534 = vpop.xlane.xlu0 %4533
    %4535 = vadd.xlane.f32.xlu0 %v4490
    %v4536 = vpop.xlane.xlu0 %4535
    %4537 = vadd.xlane.f32.xlu0 %v4491
    %v4538 = vpop.xlane.xlu0 %4537
    %4539 = vadd.xlane.f32.xlu0 %v4492
    %v4540 = vpop.xlane.xlu0 %4539
    %4541 = vadd.xlane.f32.xlu0 %v4493
    %v4542 = vpop.xlane.xlu0 %4541
    %4543 = vadd.xlane.f32.xlu0 %v4494
    %v4544 = vpop.xlane.xlu0 %4543
    %4545 = vadd.xlane.f32.xlu0 %v4495
    %v4546 = vpop.xlane.xlu0 %4545
    %4547 = vadd.xlane.f32.xlu0 %v4496
    %v4548 = vpop.xlane.xlu0 %4547
    %4549 = vadd.xlane.f32.xlu0 %v4497
    %v4550 = vpop.xlane.xlu0 %4549
    %4551 = vadd.xlane.f32.xlu0 %v4498
    %v4552 = vpop.xlane.xlu0 %4551
    %4553 = vadd.xlane.f32.xlu0 %v4499
    %v4554 = vpop.xlane.xlu0 %4553
    %4555 = vadd.xlane.f32.xlu0 %v4500
    %v4556 = vpop.xlane.xlu0 %4555
    %4557 = vadd.xlane.f32.xlu0 %v4501
    %v4558 = vpop.xlane.xlu0 %4557
    %4559 = vadd.xlane.f32.xlu0 %v4502
    %v4560 = vpop.xlane.xlu0 %4559
    %4561 = vadd.xlane.f32.xlu0 %v4503
    %v4562 = vpop.xlane.xlu0 %4561
    %4563 = vadd.xlane.f32.xlu0 %v4504
    %v4564 = vpop.xlane.xlu0 %4563
    %4565 = vadd.xlane.f32.xlu0 %v4505
    %v4566 = vpop.xlane.xlu0 %4565
    %4567 = vadd.xlane.f32.xlu0 %v4506
    %v4568 = vpop.xlane.xlu0 %4567
    %4569 = vadd.xlane.f32.xlu0 %v4507
    %v4570 = vpop.xlane.xlu0 %4569
    %4571 = vadd.xlane.f32.xlu0 %v4508
    %v4572 = vpop.xlane.xlu0 %4571
    %v4573 = vmul.f32 %v4510, 0.03125
    %v4574 = vmul.f32 %v4512, 0.03125
    %v4575 = vmul.f32 %v4514, 0.03125
    %v4576 = vmul.f32 %v4516, 0.03125
    %v4577 = vmul.f32 %v4518, 0.03125
    %v4578 = vmul.f32 %v4520, 0.03125
    %v4579 = vmul.f32 %v4522, 0.03125
    %v4580 = vmul.f32 %v4524, 0.03125
    %v4581 = vmul.f32 %v4526, 0.03125
    %v4582 = vmul.f32 %v4528, 0.03125
    %v4583 = vmul.f32 %v4530, 0.03125
    %v4584 = vmul.f32 %v4532, 0.03125
    %v4585 = vmul.f32 %v4534, 0.03125
    %v4586 = vmul.f32 %v4536, 0.03125
    %v4587 = vmul.f32 %v4538, 0.03125
    %v4588 = vmul.f32 %v4540, 0.03125
    %v4589 = vmul.f32 %v4542, 0.03125
    %v4590 = vmul.f32 %v4544, 0.03125
    %v4591 = vmul.f32 %v4546, 0.03125
    %v4592 = vmul.f32 %v4548, 0.03125
    %v4593 = vmul.f32 %v4550, 0.03125
    %v4594 = vmul.f32 %v4552, 0.03125
    %v4595 = vmul.f32 %v4554, 0.03125
    %v4596 = vmul.f32 %v4556, 0.03125
    %v4597 = vmul.f32 %v4558, 0.03125
    %v4598 = vmul.f32 %v4560, 0.03125
    %v4599 = vmul.f32 %v4562, 0.03125
    %v4600 = vmul.f32 %v4564, 0.03125
    %v4601 = vmul.f32 %v4566, 0.03125
    %v4602 = vmul.f32 %v4568, 0.03125
    %v4603 = vmul.f32 %v4570, 0.03125
    %v4604 = vmul.f32 %v4572, 0.03125
    %v4605 = vadd.f32 %v4573, 1e-05
    %v4606 = vadd.f32 %v4574, 1e-05
    %v4607 = vadd.f32 %v4575, 1e-05
    %v4608 = vadd.f32 %v4576, 1e-05
    %v4609 = vadd.f32 %v4577, 1e-05
    %v4610 = vadd.f32 %v4578, 1e-05
    %v4611 = vadd.f32 %v4579, 1e-05
    %v4612 = vadd.f32 %v4580, 1e-05
    %v4613 = vadd.f32 %v4581, 1e-05
    %v4614 = vadd.f32 %v4582, 1e-05
    %v4615 = vadd.f32 %v4583, 1e-05
    %v4616 = vadd.f32 %v4584, 1e-05
    %v4617 = vadd.f32 %v4585, 1e-05
    %v4618 = vadd.f32 %v4586, 1e-05
    %v4619 = vadd.f32 %v4587, 1e-05
    %v4620 = vadd.f32 %v4588, 1e-05
    %v4621 = vadd.f32 %v4589, 1e-05
    %v4622 = vadd.f32 %v4590, 1e-05
    %v4623 = vadd.f32 %v4591, 1e-05
    %v4624 = vadd.f32 %v4592, 1e-05
    %v4625 = vadd.f32 %v4593, 1e-05
    %v4626 = vadd.f32 %v4594, 1e-05
    %v4627 = vadd.f32 %v4595, 1e-05
    %v4628 = vadd.f32 %v4596, 1e-05
    %v4629 = vadd.f32 %v4597, 1e-05
    %v4630 = vadd.f32 %v4598, 1e-05
    %v4631 = vadd.f32 %v4599, 1e-05
    %v4632 = vadd.f32 %v4600, 1e-05
    %v4633 = vadd.f32 %v4601, 1e-05
    %v4634 = vadd.f32 %v4602, 1e-05
    %v4635 = vadd.f32 %v4603, 1e-05
    %v4636 = vadd.f32 %v4604, 1e-05
    %v4637 = vrsqrt.pop %v4605
    %v4638 = vrsqrt.pop %v4606
    %v4639 = vrsqrt.pop %v4607
    %v4640 = vrsqrt.pop %v4608
    %v4641 = vrsqrt.pop %v4609
    %v4642 = vrsqrt.pop %v4610
    %v4643 = vrsqrt.pop %v4611
    %v4644 = vrsqrt.pop %v4612
    %v4645 = vrsqrt.pop %v4613
    %v4646 = vrsqrt.pop %v4614
    %v4647 = vrsqrt.pop %v4615
    %v4648 = vrsqrt.pop %v4616
    %v4649 = vrsqrt.pop %v4617
    %v4650 = vrsqrt.pop %v4618
    %v4651 = vrsqrt.pop %v4619
    %v4652 = vrsqrt.pop %v4620
    %v4653 = vrsqrt.pop %v4621
    %v4654 = vrsqrt.pop %v4622
    %v4655 = vrsqrt.pop %v4623
    %v4656 = vrsqrt.pop %v4624
    %v4657 = vrsqrt.pop %v4625
    %v4658 = vrsqrt.pop %v4626
    %v4659 = vrsqrt.pop %v4627
    %v4660 = vrsqrt.pop %v4628
    %v4661 = vrsqrt.pop %v4629
    %v4662 = vrsqrt.pop %v4630
    %v4663 = vrsqrt.pop %v4631
    %v4664 = vrsqrt.pop %v4632
    %v4665 = vrsqrt.pop %v4633
    %v4666 = vrsqrt.pop %v4634
    %v4667 = vrsqrt.pop %v4635
    %v4668 = vrsqrt.pop %v4636
    %v4669 = vmul.f32 %v4445, %v4637
    %v4670 = vmul.f32 %v4446, %v4638
    %v4671 = vmul.f32 %v4447, %v4639
    %v4672 = vmul.f32 %v4448, %v4640
    %v4673 = vmul.f32 %v4449, %v4641
    %v4674 = vmul.f32 %v4450, %v4642
    %v4675 = vmul.f32 %v4451, %v4643
    %v4676 = vmul.f32 %v4452, %v4644
    %v4677 = vmul.f32 %v4453, %v4645
    %v4678 = vmul.f32 %v4454, %v4646
    %v4679 = vmul.f32 %v4455, %v4647
    %v4680 = vmul.f32 %v4456, %v4648
    %v4681 = vmul.f32 %v4457, %v4649
    %v4682 = vmul.f32 %v4458, %v4650
    %v4683 = vmul.f32 %v4459, %v4651
    %v4684 = vmul.f32 %v4460, %v4652
    %v4685 = vmul.f32 %v4461, %v4653
    %v4686 = vmul.f32 %v4462, %v4654
    %v4687 = vmul.f32 %v4463, %v4655
    %v4688 = vmul.f32 %v4464, %v4656
    %v4689 = vmul.f32 %v4465, %v4657
    %v4690 = vmul.f32 %v4466, %v4658
    %v4691 = vmul.f32 %v4467, %v4659
    %v4692 = vmul.f32 %v4468, %v4660
    %v4693 = vmul.f32 %v4469, %v4661
    %v4694 = vmul.f32 %v4470, %v4662
    %v4695 = vmul.f32 %v4471, %v4663
    %v4696 = vmul.f32 %v4472, %v4664
    %v4697 = vmul.f32 %v4473, %v4665
    %v4698 = vmul.f32 %v4474, %v4666
    %v4699 = vmul.f32 %v4475, %v4667
    %v4700 = vmul.f32 %v4476, %v4668
    %v4701 = vlaneseq
    %v4702 = vshrl.u32 %v4701, 7
    %v4703 = vsub.s32 6, %v4702
    %v4704 = vrot.slane %v151, %v4703
    %v4705 = vmul.f32 %v4669, %v4704
    %v4706 = vmul.f32 %v4670, %v4704
    %v4707 = vmul.f32 %v4671, %v4704
    %v4708 = vmul.f32 %v4672, %v4704
    %v4709 = vmul.f32 %v4673, %v4704
    %v4710 = vmul.f32 %v4674, %v4704
    %v4711 = vmul.f32 %v4675, %v4704
    %v4712 = vmul.f32 %v4676, %v4704
    %v4713 = vmul.f32 %v4677, %v4704
    %v4714 = vmul.f32 %v4678, %v4704
    %v4715 = vmul.f32 %v4679, %v4704
    %v4716 = vmul.f32 %v4680, %v4704
    %v4717 = vmul.f32 %v4681, %v4704
    %v4718 = vmul.f32 %v4682, %v4704
    %v4719 = vmul.f32 %v4683, %v4704
    %v4720 = vmul.f32 %v4684, %v4704
    %v4721 = vmul.f32 %v4685, %v4704
    %v4722 = vmul.f32 %v4686, %v4704
    %v4723 = vmul.f32 %v4687, %v4704
    %v4724 = vmul.f32 %v4688, %v4704
    %v4725 = vmul.f32 %v4689, %v4704
    %v4726 = vmul.f32 %v4690, %v4704
    %v4727 = vmul.f32 %v4691, %v4704
    %v4728 = vmul.f32 %v4692, %v4704
    %v4729 = vmul.f32 %v4693, %v4704
    %v4730 = vmul.f32 %v4694, %v4704
    %v4731 = vmul.f32 %v4695, %v4704
    %v4732 = vmul.f32 %v4696, %v4704
    %v4733 = vmul.f32 %v4697, %v4704
    %v4734 = vmul.f32 %v4698, %v4704
    %v4735 = vmul.f32 %v4699, %v4704
    %v4736 = vmul.f32 %v4700, %v4704
    %v4737 = vlaneseq
    %v4738 = vshrl.u32 %v4737, 7
    %v4739 = vsub.s32 7, %v4738
    %v4740 = vrot.slane %v151, %v4739
    %v4741 = vadd.f32 %v4705, %v4740
    %v4742 = vadd.f32 %v4706, %v4740
    %v4743 = vadd.f32 %v4707, %v4740
    %v4744 = vadd.f32 %v4708, %v4740
    %v4745 = vadd.f32 %v4709, %v4740
    %v4746 = vadd.f32 %v4710, %v4740
    %v4747 = vadd.f32 %v4711, %v4740
    %v4748 = vadd.f32 %v4712, %v4740
    %v4749 = vadd.f32 %v4713, %v4740
    %v4750 = vadd.f32 %v4714, %v4740
    %v4751 = vadd.f32 %v4715, %v4740
    %v4752 = vadd.f32 %v4716, %v4740
    %v4753 = vadd.f32 %v4717, %v4740
    %v4754 = vadd.f32 %v4718, %v4740
    %v4755 = vadd.f32 %v4719, %v4740
    %v4756 = vadd.f32 %v4720, %v4740
    %v4757 = vadd.f32 %v4721, %v4740
    %v4758 = vadd.f32 %v4722, %v4740
    %v4759 = vadd.f32 %v4723, %v4740
    %v4760 = vadd.f32 %v4724, %v4740
    %v4761 = vadd.f32 %v4725, %v4740
    %v4762 = vadd.f32 %v4726, %v4740
    %v4763 = vadd.f32 %v4727, %v4740
    %v4764 = vadd.f32 %v4728, %v4740
    %v4765 = vadd.f32 %v4729, %v4740
    %v4766 = vadd.f32 %v4730, %v4740
    %v4767 = vadd.f32 %v4731, %v4740
    %v4768 = vadd.f32 %v4732, %v4740
    %v4769 = vadd.f32 %v4733, %v4740
    %v4770 = vadd.f32 %v4734, %v4740
    %v4771 = vadd.f32 %v4735, %v4740
    %v4772 = vadd.f32 %v4736, %v4740
    %v4773 = vmax.f32 %v4741, 0.0
    %v4774 = vmax.f32 %v4742, 0.0
    %v4775 = vmax.f32 %v4743, 0.0
    %v4776 = vmax.f32 %v4744, 0.0
    %v4777 = vmax.f32 %v4745, 0.0
    %v4778 = vmax.f32 %v4746, 0.0
    %v4779 = vmax.f32 %v4747, 0.0
    %v4780 = vmax.f32 %v4748, 0.0
    %v4781 = vmax.f32 %v4749, 0.0
    %v4782 = vmax.f32 %v4750, 0.0
    %v4783 = vmax.f32 %v4751, 0.0
    %v4784 = vmax.f32 %v4752, 0.0
    %v4785 = vmax.f32 %v4753, 0.0
    %v4786 = vmax.f32 %v4754, 0.0
    %v4787 = vmax.f32 %v4755, 0.0
    %v4788 = vmax.f32 %v4756, 0.0
    %v4789 = vmax.f32 %v4757, 0.0
    %v4790 = vmax.f32 %v4758, 0.0
    %v4791 = vmax.f32 %v4759, 0.0
    %v4792 = vmax.f32 %v4760, 0.0
    %v4793 = vmax.f32 %v4761, 0.0
    %v4794 = vmax.f32 %v4762, 0.0
    %v4795 = vmax.f32 %v4763, 0.0
    %v4796 = vmax.f32 %v4764, 0.0
    %v4797 = vmax.f32 %v4765, 0.0
    %v4798 = vmax.f32 %v4766, 0.0
    %v4799 = vmax.f32 %v4767, 0.0
    %v4800 = vmax.f32 %v4768, 0.0
    %v4801 = vmax.f32 %v4769, 0.0
    %v4802 = vmax.f32 %v4770, 0.0
    %v4803 = vmax.f32 %v4771, 0.0
    %v4804 = vmax.f32 %v4772, 0.0
    %v4805 = vmul.f32 %v4773, %v165
    %v4806 = vmul.f32 %v4774, %v166
    %v4807 = vmul.f32 %v4775, %v165
    %v4808 = vmul.f32 %v4776, %v166
    %v4809 = vmul.f32 %v4777, %v165
    %v4810 = vmul.f32 %v4778, %v166
    %v4811 = vmul.f32 %v4779, %v165
    %v4812 = vmul.f32 %v4780, %v166
    %v4813 = vmul.f32 %v4781, %v165
    %v4814 = vmul.f32 %v4782, %v166
    %v4815 = vmul.f32 %v4783, %v165
    %v4816 = vmul.f32 %v4784, %v166
    %v4817 = vmul.f32 %v4785, %v165
    %v4818 = vmul.f32 %v4786, %v166
    %v4819 = vmul.f32 %v4787, %v165
    %v4820 = vmul.f32 %v4788, %v166
    %v4821 = vmul.f32 %v4789, %v165
    %v4822 = vmul.f32 %v4790, %v166
    %v4823 = vmul.f32 %v4791, %v165
    %v4824 = vmul.f32 %v4792, %v166
    %v4825 = vmul.f32 %v4793, %v165
    %v4826 = vmul.f32 %v4794, %v166
    %v4827 = vmul.f32 %v4795, %v165
    %v4828 = vmul.f32 %v4796, %v166
    %v4829 = vmul.f32 %v4797, %v165
    %v4830 = vmul.f32 %v4798, %v166
    %v4831 = vmul.f32 %v4799, %v165
    %v4832 = vmul.f32 %v4800, %v166
    %v4833 = vmul.f32 %v4801, %v165
    %v4834 = vmul.f32 %v4802, %v166
    %v4835 = vmul.f32 %v4803, %v165
    %v4836 = vmul.f32 %v4804, %v166
    %v4837 = vadd.f32 %v4805, %v4806
    %v4838 = vrot.slane %v4837, 4
    %v4839 = vadd.f32 %v4837, %v4838
    %v4840 = vrot.slane %v4839, 2
    %v4841 = vadd.f32 %v4839, %v4840
    %v4842 = vrot.slane %v4841, 1
    %v4843 = vadd.f32 %v4841, %v4842
    %v4844 = vadd.f32 %v4807, %v4808
    %v4845 = vrot.slane %v4844, 4
    %v4846 = vadd.f32 %v4844, %v4845
    %v4847 = vrot.slane %v4846, 2
    %v4848 = vadd.f32 %v4846, %v4847
    %v4849 = vrot.slane %v4848, 1
    %v4850 = vadd.f32 %v4848, %v4849
    %v4851 = vadd.f32 %v4809, %v4810
    %v4852 = vrot.slane %v4851, 4
    %v4853 = vadd.f32 %v4851, %v4852
    %v4854 = vrot.slane %v4853, 2
    %v4855 = vadd.f32 %v4853, %v4854
    %v4856 = vrot.slane %v4855, 1
    %v4857 = vadd.f32 %v4855, %v4856
    %v4858 = vadd.f32 %v4811, %v4812
    %v4859 = vrot.slane %v4858, 4
    %v4860 = vadd.f32 %v4858, %v4859
    %v4861 = vrot.slane %v4860, 2
    %v4862 = vadd.f32 %v4860, %v4861
    %v4863 = vrot.slane %v4862, 1
    %v4864 = vadd.f32 %v4862, %v4863
    %v4865 = vadd.f32 %v4813, %v4814
    %v4866 = vrot.slane %v4865, 4
    %v4867 = vadd.f32 %v4865, %v4866
    %v4868 = vrot.slane %v4867, 2
    %v4869 = vadd.f32 %v4867, %v4868
    %v4870 = vrot.slane %v4869, 1
    %v4871 = vadd.f32 %v4869, %v4870
    %v4872 = vadd.f32 %v4815, %v4816
    %v4873 = vrot.slane %v4872, 4
    %v4874 = vadd.f32 %v4872, %v4873
    %v4875 = vrot.slane %v4874, 2
    %v4876 = vadd.f32 %v4874, %v4875
    %v4877 = vrot.slane %v4876, 1
    %v4878 = vadd.f32 %v4876, %v4877
    %v4879 = vadd.f32 %v4817, %v4818
    %v4880 = vrot.slane %v4879, 4
    %v4881 = vadd.f32 %v4879, %v4880
    %v4882 = vrot.slane %v4881, 2
    %v4883 = vadd.f32 %v4881, %v4882
    %v4884 = vrot.slane %v4883, 1
    %v4885 = vadd.f32 %v4883, %v4884
    %v4886 = vadd.f32 %v4819, %v4820
    %v4887 = vrot.slane %v4886, 4
    %v4888 = vadd.f32 %v4886, %v4887
    %v4889 = vrot.slane %v4888, 2
    %v4890 = vadd.f32 %v4888, %v4889
    %v4891 = vrot.slane %v4890, 1
    %v4892 = vadd.f32 %v4890, %v4891
    %v4893 = vadd.f32 %v4821, %v4822
    %v4894 = vrot.slane %v4893, 4
    %v4895 = vadd.f32 %v4893, %v4894
    %v4896 = vrot.slane %v4895, 2
    %v4897 = vadd.f32 %v4895, %v4896
    %v4898 = vrot.slane %v4897, 1
    %v4899 = vadd.f32 %v4897, %v4898
    %v4900 = vadd.f32 %v4823, %v4824
    %v4901 = vrot.slane %v4900, 4
    %v4902 = vadd.f32 %v4900, %v4901
    %v4903 = vrot.slane %v4902, 2
    %v4904 = vadd.f32 %v4902, %v4903
    %v4905 = vrot.slane %v4904, 1
    %v4906 = vadd.f32 %v4904, %v4905
    %v4907 = vadd.f32 %v4825, %v4826
    %v4908 = vrot.slane %v4907, 4
    %v4909 = vadd.f32 %v4907, %v4908
    %v4910 = vrot.slane %v4909, 2
    %v4911 = vadd.f32 %v4909, %v4910
    %v4912 = vrot.slane %v4911, 1
    %v4913 = vadd.f32 %v4911, %v4912
    %v4914 = vadd.f32 %v4827, %v4828
    %v4915 = vrot.slane %v4914, 4
    %v4916 = vadd.f32 %v4914, %v4915
    %v4917 = vrot.slane %v4916, 2
    %v4918 = vadd.f32 %v4916, %v4917
    %v4919 = vrot.slane %v4918, 1
    %v4920 = vadd.f32 %v4918, %v4919
    %v4921 = vadd.f32 %v4829, %v4830
    %v4922 = vrot.slane %v4921, 4
    %v4923 = vadd.f32 %v4921, %v4922
    %v4924 = vrot.slane %v4923, 2
    %v4925 = vadd.f32 %v4923, %v4924
    %v4926 = vrot.slane %v4925, 1
    %v4927 = vadd.f32 %v4925, %v4926
    %v4928 = vadd.f32 %v4831, %v4832
    %v4929 = vrot.slane %v4928, 4
    %v4930 = vadd.f32 %v4928, %v4929
    %v4931 = vrot.slane %v4930, 2
    %v4932 = vadd.f32 %v4930, %v4931
    %v4933 = vrot.slane %v4932, 1
    %v4934 = vadd.f32 %v4932, %v4933
    %v4935 = vadd.f32 %v4833, %v4834
    %v4936 = vrot.slane %v4935, 4
    %v4937 = vadd.f32 %v4935, %v4936
    %v4938 = vrot.slane %v4937, 2
    %v4939 = vadd.f32 %v4937, %v4938
    %v4940 = vrot.slane %v4939, 1
    %v4941 = vadd.f32 %v4939, %v4940
    %v4942 = vadd.f32 %v4835, %v4836
    %v4943 = vrot.slane %v4942, 4
    %v4944 = vadd.f32 %v4942, %v4943
    %v4945 = vrot.slane %v4944, 2
    %v4946 = vadd.f32 %v4944, %v4945
    %v4947 = vrot.slane %v4946, 1
    %v4948 = vadd.f32 %v4946, %v4947
    %v4949 = vmul.f32 %v4843, 0.1
    %v4950 = vmul.f32 %v4850, 0.1
    %v4951 = vmul.f32 %v4857, 0.1
    %v4952 = vmul.f32 %v4864, 0.1
    %v4953 = vmul.f32 %v4871, 0.1
    %v4954 = vmul.f32 %v4878, 0.1
    %v4955 = vmul.f32 %v4885, 0.1
    %v4956 = vmul.f32 %v4892, 0.1
    %v4957 = vmul.f32 %v4899, 0.1
    %v4958 = vmul.f32 %v4906, 0.1
    %v4959 = vmul.f32 %v4913, 0.1
    %v4960 = vmul.f32 %v4920, 0.1
    %v4961 = vmul.f32 %v4927, 0.1
    %v4962 = vmul.f32 %v4934, 0.1
    %v4963 = vmul.f32 %v4941, 0.1
    %v4964 = vmul.f32 %v4948, 0.1
    %v4965 = vmul.f32 %v4949, %v4949
    %v4966 = vmul.f32 %v4950, %v4950
    %v4967 = vmul.f32 %v4951, %v4951
    %v4968 = vmul.f32 %v4952, %v4952
    %v4969 = vmul.f32 %v4953, %v4953
    %v4970 = vmul.f32 %v4954, %v4954
    %v4971 = vmul.f32 %v4955, %v4955
    %v4972 = vmul.f32 %v4956, %v4956
    %v4973 = vmul.f32 %v4957, %v4957
    %v4974 = vmul.f32 %v4958, %v4958
    %v4975 = vmul.f32 %v4959, %v4959
    %v4976 = vmul.f32 %v4960, %v4960
    %v4977 = vmul.f32 %v4961, %v4961
    %v4978 = vmul.f32 %v4962, %v4962
    %v4979 = vmul.f32 %v4963, %v4963
    %v4980 = vmul.f32 %v4964, %v4964
    %vm4997 = vcmask 1041409
    %v4998 = vsel %vm4997, %v4966, %v4965
    %vm4999 = vcmask 1042434
    %v5000 = vsel %vm4999, %v4967, %v4998
    %vm5001 = vcmask 1043459
    %v5002 = vsel %vm5001, %v4968, %v5000
    %vm5003 = vcmask 1044484
    %v5004 = vsel %vm5003, %v4969, %v5002
    %vm5005 = vcmask 1045509
    %v5006 = vsel %vm5005, %v4970, %v5004
    %vm5007 = vcmask 1046534
    %v5008 = vsel %vm5007, %v4971, %v5006
    %vm5009 = vcmask 1047559
    %v5010 = vsel %vm5009, %v4972, %v5008
    %v5011 = vsel %vm4997, %v4974, %v4973
    %v5012 = vsel %vm4999, %v4975, %v5011
    %v5013 = vsel %vm5001, %v4976, %v5012
    %v5014 = vsel %vm5003, %v4977, %v5013
    %v5015 = vsel %vm5005, %v4978, %v5014
    %v5016 = vsel %vm5007, %v4979, %v5015
    %v5017 = vsel %vm5009, %v4980, %v5016
    %5020 = vadd.xlane.f32.xlu0 %v5010
    %v5021 = vpop.xlane.xlu0 %5020
    %5022 = vadd.xlane.f32.xlu0 %v5017
    %v5023 = vpop.xlane.xlu0 %5022
    %v5024 = vmax.f32 %v5021, 1e-24
    %v5025 = vmax.f32 %v5023, 1e-24
    %v5026 = vrsqrt.pop %v5024
    %v5027 = vrsqrt.pop %v5025
    %v5030 = vrot.slane %v5026, 1
    %v5031 = vrot.slane %v5026, 2
    %v5032 = vrot.slane %v5026, 3
    %v5033 = vrot.slane %v5026, 4
    %v5034 = vrot.slane %v5026, 5
    %v5035 = vrot.slane %v5026, 6
    %v5036 = vrot.slane %v5026, 7
    %v5037 = vrot.slane %v5027, 1
    %v5038 = vrot.slane %v5027, 2
    %v5039 = vrot.slane %v5027, 3
    %v5040 = vrot.slane %v5027, 4
    %v5041 = vrot.slane %v5027, 5
    %v5042 = vrot.slane %v5027, 6
    %v5043 = vrot.slane %v5027, 7
    %v5060 = vmul.f32 %v4949, %v5026
    %v5061 = vmul.f32 %v4950, %v5030
    %v5062 = vmul.f32 %v4951, %v5031
    %v5063 = vmul.f32 %v4952, %v5032
    %v5064 = vmul.f32 %v4953, %v5033
    %v5065 = vmul.f32 %v4954, %v5034
    %v5066 = vmul.f32 %v4955, %v5035
    %v5067 = vmul.f32 %v4956, %v5036
    %v5068 = vmul.f32 %v4957, %v5027
    %v5069 = vmul.f32 %v4958, %v5037
    %v5070 = vmul.f32 %v4959, %v5038
    %v5071 = vmul.f32 %v4960, %v5039
    %v5072 = vmul.f32 %v4961, %v5040
    %v5073 = vmul.f32 %v4962, %v5041
    %v5074 = vmul.f32 %v4963, %v5042
    %v5075 = vmul.f32 %v4964, %v5043
    %v5076 = vmax.f32 %v4805, %v4806
    %v5077 = vrot.slane %v5076, 4
    %v5078 = vmax.f32 %v5076, %v5077
    %v5079 = vrot.slane %v5078, 2
    %v5080 = vmax.f32 %v5078, %v5079
    %v5081 = vrot.slane %v5080, 1
    %v5082 = vmax.f32 %v5080, %v5081
    %v5083 = vmax.f32 %v4807, %v4808
    %v5084 = vrot.slane %v5083, 4
    %v5085 = vmax.f32 %v5083, %v5084
    %v5086 = vrot.slane %v5085, 2
    %v5087 = vmax.f32 %v5085, %v5086
    %v5088 = vrot.slane %v5087, 1
    %v5089 = vmax.f32 %v5087, %v5088
    %v5090 = vmax.f32 %v4809, %v4810
    %v5091 = vrot.slane %v5090, 4
    %v5092 = vmax.f32 %v5090, %v5091
    %v5093 = vrot.slane %v5092, 2
    %v5094 = vmax.f32 %v5092, %v5093
    %v5095 = vrot.slane %v5094, 1
    %v5096 = vmax.f32 %v5094, %v5095
    %v5097 = vmax.f32 %v4811, %v4812
    %v5098 = vrot.slane %v5097, 4
    %v5099 = vmax.f32 %v5097, %v5098
    %v5100 = vrot.slane %v5099, 2
    %v5101 = vmax.f32 %v5099, %v5100
    %v5102 = vrot.slane %v5101, 1
    %v5103 = vmax.f32 %v5101, %v5102
    %v5104 = vmax.f32 %v4813, %v4814
    %v5105 = vrot.slane %v5104, 4
    %v5106 = vmax.f32 %v5104, %v5105
    %v5107 = vrot.slane %v5106, 2
    %v5108 = vmax.f32 %v5106, %v5107
    %v5109 = vrot.slane %v5108, 1
    %v5110 = vmax.f32 %v5108, %v5109
    %v5111 = vmax.f32 %v4815, %v4816
    %v5112 = vrot.slane %v5111, 4
    %v5113 = vmax.f32 %v5111, %v5112
    %v5114 = vrot.slane %v5113, 2
    %v5115 = vmax.f32 %v5113, %v5114
    %v5116 = vrot.slane %v5115, 1
    %v5117 = vmax.f32 %v5115, %v5116
    %v5118 = vmax.f32 %v4817, %v4818
    %v5119 = vrot.slane %v5118, 4
    %v5120 = vmax.f32 %v5118, %v5119
    %v5121 = vrot.slane %v5120, 2
    %v5122 = vmax.f32 %v5120, %v5121
    %v5123 = vrot.slane %v5122, 1
    %v5124 = vmax.f32 %v5122, %v5123
    %v5125 = vmax.f32 %v4819, %v4820
    %v5126 = vrot.slane %v5125, 4
    %v5127 = vmax.f32 %v5125, %v5126
    %v5128 = vrot.slane %v5127, 2
    %v5129 = vmax.f32 %v5127, %v5128
    %v5130 = vrot.slane %v5129, 1
    %v5131 = vmax.f32 %v5129, %v5130
    %v5132 = vmax.f32 %v4821, %v4822
    %v5133 = vrot.slane %v5132, 4
    %v5134 = vmax.f32 %v5132, %v5133
    %v5135 = vrot.slane %v5134, 2
    %v5136 = vmax.f32 %v5134, %v5135
    %v5137 = vrot.slane %v5136, 1
    %v5138 = vmax.f32 %v5136, %v5137
    %v5139 = vmax.f32 %v4823, %v4824
    %v5140 = vrot.slane %v5139, 4
    %v5141 = vmax.f32 %v5139, %v5140
    %v5142 = vrot.slane %v5141, 2
    %v5143 = vmax.f32 %v5141, %v5142
    %v5144 = vrot.slane %v5143, 1
    %v5145 = vmax.f32 %v5143, %v5144
    %v5146 = vmax.f32 %v4825, %v4826
    %v5147 = vrot.slane %v5146, 4
    %v5148 = vmax.f32 %v5146, %v5147
    %v5149 = vrot.slane %v5148, 2
    %v5150 = vmax.f32 %v5148, %v5149
    %v5151 = vrot.slane %v5150, 1
    %v5152 = vmax.f32 %v5150, %v5151
    %v5153 = vmax.f32 %v4827, %v4828
    %v5154 = vrot.slane %v5153, 4
    %v5155 = vmax.f32 %v5153, %v5154
    %v5156 = vrot.slane %v5155, 2
    %v5157 = vmax.f32 %v5155, %v5156
    %v5158 = vrot.slane %v5157, 1
    %v5159 = vmax.f32 %v5157, %v5158
    %v5160 = vmax.f32 %v4829, %v4830
    %v5161 = vrot.slane %v5160, 4
    %v5162 = vmax.f32 %v5160, %v5161
    %v5163 = vrot.slane %v5162, 2
    %v5164 = vmax.f32 %v5162, %v5163
    %v5165 = vrot.slane %v5164, 1
    %v5166 = vmax.f32 %v5164, %v5165
    %v5167 = vmax.f32 %v4831, %v4832
    %v5168 = vrot.slane %v5167, 4
    %v5169 = vmax.f32 %v5167, %v5168
    %v5170 = vrot.slane %v5169, 2
    %v5171 = vmax.f32 %v5169, %v5170
    %v5172 = vrot.slane %v5171, 1
    %v5173 = vmax.f32 %v5171, %v5172
    %v5174 = vmax.f32 %v4833, %v4834
    %v5175 = vrot.slane %v5174, 4
    %v5176 = vmax.f32 %v5174, %v5175
    %v5177 = vrot.slane %v5176, 2
    %v5178 = vmax.f32 %v5176, %v5177
    %v5179 = vrot.slane %v5178, 1
    %v5180 = vmax.f32 %v5178, %v5179
    %v5181 = vmax.f32 %v4835, %v4836
    %v5182 = vrot.slane %v5181, 4
    %v5183 = vmax.f32 %v5181, %v5182
    %v5184 = vrot.slane %v5183, 2
    %v5185 = vmax.f32 %v5183, %v5184
    %v5186 = vrot.slane %v5185, 1
    %v5187 = vmax.f32 %v5185, %v5186
    %v5188 = vmul.f32 %v5082, %v5082
    %v5189 = vmul.f32 %v5089, %v5089
    %v5190 = vmul.f32 %v5096, %v5096
    %v5191 = vmul.f32 %v5103, %v5103
    %v5192 = vmul.f32 %v5110, %v5110
    %v5193 = vmul.f32 %v5117, %v5117
    %v5194 = vmul.f32 %v5124, %v5124
    %v5195 = vmul.f32 %v5131, %v5131
    %v5196 = vmul.f32 %v5138, %v5138
    %v5197 = vmul.f32 %v5145, %v5145
    %v5198 = vmul.f32 %v5152, %v5152
    %v5199 = vmul.f32 %v5159, %v5159
    %v5200 = vmul.f32 %v5166, %v5166
    %v5201 = vmul.f32 %v5173, %v5173
    %v5202 = vmul.f32 %v5180, %v5180
    %v5203 = vmul.f32 %v5187, %v5187
    %v5220 = vsel %vm4997, %v5189, %v5188
    %v5221 = vsel %vm4999, %v5190, %v5220
    %v5222 = vsel %vm5001, %v5191, %v5221
    %v5223 = vsel %vm5003, %v5192, %v5222
    %v5224 = vsel %vm5005, %v5193, %v5223
    %v5225 = vsel %vm5007, %v5194, %v5224
    %v5226 = vsel %vm5009, %v5195, %v5225
    %v5227 = vsel %vm4997, %v5197, %v5196
    %v5228 = vsel %vm4999, %v5198, %v5227
    %v5229 = vsel %vm5001, %v5199, %v5228
    %v5230 = vsel %vm5003, %v5200, %v5229
    %v5231 = vsel %vm5005, %v5201, %v5230
    %v5232 = vsel %vm5007, %v5202, %v5231
    %v5233 = vsel %vm5009, %v5203, %v5232
    %5236 = vadd.xlane.f32.xlu0 %v5226
    %v5237 = vpop.xlane.xlu0 %5236
    %5238 = vadd.xlane.f32.xlu0 %v5233
    %v5239 = vpop.xlane.xlu0 %5238
    %v5240 = vmax.f32 %v5237, 1e-24
    %v5241 = vmax.f32 %v5239, 1e-24
    %v5242 = vrsqrt.pop %v5240
    %v5243 = vrsqrt.pop %v5241
    %v5246 = vrot.slane %v5242, 1
    %v5247 = vrot.slane %v5242, 2
    %v5248 = vrot.slane %v5242, 3
    %v5249 = vrot.slane %v5242, 4
    %v5250 = vrot.slane %v5242, 5
    %v5251 = vrot.slane %v5242, 6
    %v5252 = vrot.slane %v5242, 7
    %v5253 = vrot.slane %v5243, 1
    %v5254 = vrot.slane %v5243, 2
    %v5255 = vrot.slane %v5243, 3
    %v5256 = vrot.slane %v5243, 4
    %v5257 = vrot.slane %v5243, 5
    %v5258 = vrot.slane %v5243, 6
    %v5259 = vrot.slane %v5243, 7
    %v5276 = vmul.f32 %v5082, %v5242
    %v5277 = vmul.f32 %v5089, %v5246
    %v5278 = vmul.f32 %v5096, %v5247
    %v5279 = vmul.f32 %v5103, %v5248
    %v5280 = vmul.f32 %v5110, %v5249
    %v5281 = vmul.f32 %v5117, %v5250
    %v5282 = vmul.f32 %v5124, %v5251
    %v5283 = vmul.f32 %v5131, %v5252
    %v5284 = vmul.f32 %v5138, %v5243
    %v5285 = vmul.f32 %v5145, %v5253
    %v5286 = vmul.f32 %v5152, %v5254
    %v5287 = vmul.f32 %v5159, %v5255
    %v5288 = vmul.f32 %v5166, %v5256
    %v5289 = vmul.f32 %v5173, %v5257
    %v5290 = vmul.f32 %v5180, %v5258
    %v5291 = vmul.f32 %v5187, %v5259
    %v5308 = vrot.slane %v5061, 7
    %v5309 = vsel %vm4997, %v5308, %v5060
    %v5310 = vrot.slane %v5062, 6
    %v5311 = vsel %vm4999, %v5310, %v5309
    %v5312 = vrot.slane %v5063, 5
    %v5313 = vsel %vm5001, %v5312, %v5311
    %v5314 = vrot.slane %v5064, 4
    %v5315 = vsel %vm5003, %v5314, %v5313
    %v5316 = vrot.slane %v5065, 3
    %v5317 = vsel %vm5005, %v5316, %v5315
    %v5318 = vrot.slane %v5066, 2
    %v5319 = vsel %vm5007, %v5318, %v5317
    %v5320 = vrot.slane %v5067, 1
    %v5321 = vsel %vm5009, %v5320, %v5319
    %v5322 = vrot.slane %v5069, 7
    %v5323 = vsel %vm4997, %v5322, %v5068
    %v5324 = vrot.slane %v5070, 6
    %v5325 = vsel %vm4999, %v5324, %v5323
    %v5326 = vrot.slane %v5071, 5
    %v5327 = vsel %vm5001, %v5326, %v5325
    %v5328 = vrot.slane %v5072, 4
    %v5329 = vsel %vm5003, %v5328, %v5327
    %v5330 = vrot.slane %v5073, 3
    %v5331 = vsel %vm5005, %v5330, %v5329
    %v5332 = vrot.slane %v5074, 2
    %v5333 = vsel %vm5007, %v5332, %v5331
    %v5334 = vrot.slane %v5075, 1
    %v5335 = vsel %vm5009, %v5334, %v5333
    %v5354 = vrot.slane %v5277, 7
    %v5355 = vsel %vm4997, %v5354, %v5276
    %v5356 = vrot.slane %v5278, 6
    %v5357 = vsel %vm4999, %v5356, %v5355
    %v5358 = vrot.slane %v5279, 5
    %v5359 = vsel %vm5001, %v5358, %v5357
    %v5360 = vrot.slane %v5280, 4
    %v5361 = vsel %vm5003, %v5360, %v5359
    %v5362 = vrot.slane %v5281, 3
    %v5363 = vsel %vm5005, %v5362, %v5361
    %v5364 = vrot.slane %v5282, 2
    %v5365 = vsel %vm5007, %v5364, %v5363
    %v5366 = vrot.slane %v5283, 1
    %v5367 = vsel %vm5009, %v5366, %v5365
    %v5368 = vrot.slane %v5285, 7
    %v5369 = vsel %vm4997, %v5368, %v5284
    %v5370 = vrot.slane %v5286, 6
    %v5371 = vsel %vm4999, %v5370, %v5369
    %v5372 = vrot.slane %v5287, 5
    %v5373 = vsel %vm5001, %v5372, %v5371
    %v5374 = vrot.slane %v5288, 4
    %v5375 = vsel %vm5003, %v5374, %v5373
    %v5376 = vrot.slane %v5289, 3
    %v5377 = vsel %vm5005, %v5376, %v5375
    %v5378 = vrot.slane %v5290, 2
    %v5379 = vsel %vm5007, %v5378, %v5377
    %v5380 = vrot.slane %v5291, 1
    %v5381 = vsel %vm5009, %v5380, %v5379
    %v5384 = vld [vmem:[#allocation10] sm:$0xff]
    %v5385 = vld [vmem:[#allocation10 + $0x8] sm:$0xff]
    %v5386 = vld [vmem:[#allocation10 + $0x10] sm:$0xff]
    %v5387 = vld [vmem:[#allocation10 + $0x18] sm:$0xff]
    %v5388 = vld [vmem:[#allocation10 + $0x20] sm:$0xff]
    %v5389 = vld [vmem:[#allocation10 + $0x28] sm:$0xff]
    %v5390 = vld [vmem:[#allocation10 + $0x30] sm:$0xff]
    %v5391 = vld [vmem:[#allocation10 + $0x38] sm:$0xff]
    %v5392 = vld [vmem:[#allocation10 + $0x40] sm:$0xff]
    %v5393 = vld [vmem:[#allocation10 + $0x48] sm:$0xff]
    %v5394 = vld [vmem:[#allocation10 + $0x50] sm:$0xff]
    %v5395 = vld [vmem:[#allocation10 + $0x58] sm:$0xff]
    %v5396 = vld [vmem:[#allocation10 + $0x60] sm:$0xff]
    %v5397 = vld [vmem:[#allocation10 + $0x68] sm:$0xff]
    %v5398 = vld [vmem:[#allocation10 + $0x70] sm:$0xff]
    %v5399 = vld [vmem:[#allocation10 + $0x78] sm:$0xff]
    %v5400 = vld [vmem:[#allocation10 + $0x80] sm:$0xff]
    %v5401 = vld [vmem:[#allocation10 + $0x88] sm:$0xff]
    %v5402 = vld [vmem:[#allocation10 + $0x90] sm:$0xff]
    %v5403 = vld [vmem:[#allocation10 + $0x98] sm:$0xff]
    %v5404 = vld [vmem:[#allocation10 + $0xa0] sm:$0xff]
    %v5405 = vld [vmem:[#allocation10 + $0xa8] sm:$0xff]
    %v5406 = vld [vmem:[#allocation10 + $0xb0] sm:$0xff]
    %v5407 = vld [vmem:[#allocation10 + $0xb8] sm:$0xff]
    %v5408 = vld [vmem:[#allocation10 + $0xc0] sm:$0xff]
    %v5409 = vld [vmem:[#allocation10 + $0xc8] sm:$0xff]
    %v5410 = vld [vmem:[#allocation10 + $0xd0] sm:$0xff]
    %v5411 = vld [vmem:[#allocation10 + $0xd8] sm:$0xff]
    %v5412 = vld [vmem:[#allocation10 + $0xe0] sm:$0xff]
    %v5413 = vld [vmem:[#allocation10 + $0xe8] sm:$0xff]
    %v5414 = vld [vmem:[#allocation10 + $0xf0] sm:$0xff]
    %v5415 = vld [vmem:[#allocation10 + $0xf8] sm:$0xff]
    %v5416 = vlaneseq
    %v5417 = vshrl.u32 %v5416, 7
    %v5418 = vsub.s32 2, %v5417
    %v5419 = vrot.slane %v151, %v5418
    %5420 = vmatprep.subr.mxu0 0.0
    %5421 = vmatpush1.msra.mxu0 %v5384
    %5422 = vmatprep.subr.mxu0 0.0
    %5423 = vmatpush1.msra.mxu0 %v5385
    %5424 = vmatprep.subr.mxu0 0.0
    %5425 = vmatpush1.msra.mxu0 %v5386
    %5426 = vmatprep.subr.mxu0 0.0
    %5427 = vmatpush1.msra.mxu0 %v5387
    %5428 = vmatprep.subr.mxu0 0.0
    %5429 = vmatpush1.msra.mxu0 %v5388
    %5430 = vmatprep.subr.mxu0 0.0
    %5431 = vmatpush1.msra.mxu0 %v5389
    %5432 = vmatprep.subr.mxu0 0.0
    %5433 = vmatpush1.msra.mxu0 %v5390
    %5434 = vmatprep.subr.mxu0 0.0
    %5435 = vmatpush1.msra.mxu0 %v5391
    %5436 = vmatprep.subr.mxu0 0.0
    %5437 = vmatpush1.msra.mxu0 %v5392
    %5438 = vmatprep.subr.mxu0 0.0
    %5439 = vmatpush1.msra.mxu0 %v5393
    %5440 = vmatprep.subr.mxu0 0.0
    %5441 = vmatpush1.msra.mxu0 %v5394
    %5442 = vmatprep.subr.mxu0 0.0
    %5443 = vmatpush1.msra.mxu0 %v5395
    %5444 = vmatprep.subr.mxu0 0.0
    %5445 = vmatpush1.msra.mxu0 %v5396
    %5446 = vmatprep.subr.mxu0 0.0
    %5447 = vmatpush1.msra.mxu0 %v5397
    %5448 = vmatprep.subr.mxu0 0.0
    %5449 = vmatpush1.msra.mxu0 %v5398
    %5450 = vmatprep.subr.mxu0 0.0
    %5451 = vmatpush1.msra.mxu0 %v5399
    %5452 = vmatprep.subr.mxu0 0.0
    %5453 = vmatpush1.msra.mxu0 %v5400
    %5454 = vmatprep.subr.mxu0 0.0
    %5455 = vmatpush1.msra.mxu0 %v5401
    %5456 = vmatprep.subr.mxu0 0.0
    %5457 = vmatpush1.msra.mxu0 %v5402
    %5458 = vmatprep.subr.mxu0 0.0
    %5459 = vmatpush1.msra.mxu0 %v5403
    %5460 = vmatprep.subr.mxu0 0.0
    %5461 = vmatpush1.msra.mxu0 %v5404
    %5462 = vmatprep.subr.mxu0 0.0
    %5463 = vmatpush1.msra.mxu0 %v5405
    %5464 = vmatprep.subr.mxu0 0.0
    %5465 = vmatpush1.msra.mxu0 %v5406
    %5466 = vmatprep.subr.mxu0 0.0
    %5467 = vmatpush1.msra.mxu0 %v5407
    %5468 = vmatprep.subr.mxu0 0.0
    %5469 = vmatpush1.msra.mxu0 %v5408
    %5470 = vmatprep.subr.mxu0 0.0
    %5471 = vmatpush1.msra.mxu0 %v5409
    %5472 = vmatprep.subr.mxu0 0.0
    %5473 = vmatpush1.msra.mxu0 %v5410
    %5474 = vmatprep.subr.mxu0 0.0
    %5475 = vmatpush1.msra.mxu0 %v5411
    %5476 = vmatprep.subr.mxu0 0.0
    %5477 = vmatpush1.msra.mxu0 %v5412
    %5478 = vmatprep.subr.mxu0 0.0
    %5479 = vmatpush1.msra.mxu0 %v5413
    %5480 = vmatprep.subr.mxu0 0.0
    %5481 = vmatpush1.msra.mxu0 %v5414
    %5482 = vmatprep.subr.mxu0 0.0
    %5483 = vmatpush1.msra.mxu0 %v5415
    %5484 = vmatprep.mubr.f32.mxu0 %v5367
    %5485 = vmatmul.mubr.f32.gmra.mrb[0].mxu0 %v5321
    %v5486 = vpop.f32.mrb[0].mxu0
    %v5487 = vadd.f32 %v5419, %v5486
    %v5488 = vpop.f32.mrb[0].mxu0
    %5489 = vmatprep.mubr.f32.mxu0 %v5381
    %5490 = vmatmul.mubr.f32.gmra.mrb[0].mxu0 %v5335
    %v5491 = vpop.f32.mrb[0].mxu0
    %v5492 = vadd.f32 %v5419, %v5491
    %v5493 = vpop.f32.mrb[0].mxu0
    %5494 = vdwg.mxu0
    %5495 = vadd.xlane.f32.xlu0 %v5487
    %v5496 = vpop.xlane.xlu0 %5495
    %5497 = vadd.xlane.f32.xlu0 %v5492
    %v5498 = vpop.xlane.xlu0 %5497
    %v5499 = vmul.f32 %v5496, 0.03125
    %v5500 = vmul.f32 %v5498, 0.03125
    %v5501 = vsub.f32 %v5487, %v5499
    %v5502 = vsub.f32 %v5492, %v5500
    %v5503 = vmul.f32 %v5501, %v157
    %v5504 = vmul.f32 %v5502, %v157
    %v5505 = vmul.f32 %v5503, %v5503
    %v5506 = vmul.f32 %v5504, %v5504
    %5507 = vadd.xlane.f32.xlu0 %v5505
    %v5508 = vpop.xlane.xlu0 %5507
    %5509 = vadd.xlane.f32.xlu0 %v5506
    %v5510 = vpop.xlane.xlu0 %5509
    %v5511 = vmul.f32 %v5508, 0.03125
    %v5512 = vmul.f32 %v5510, 0.03125
    %v5513 = vadd.f32 %v5511, 1e-05
    %v5514 = vadd.f32 %v5512, 1e-05
    %v5515 = vrsqrt.pop %v5513
    %v5516 = vrsqrt.pop %v5514
    %v5517 = vmul.f32 %v5503, %v5515
    %v5518 = vmul.f32 %v5504, %v5516
    %v5519 = vlaneseq
    %v5520 = vshrl.u32 %v5519, 7
    %v5521 = vsub.s32 0, %v5520
    %v5522 = vrot.slane %v152, %v5521
    %v5523 = vmul.f32 %v5517, %v5522
    %v5524 = vmul.f32 %v5518, %v5522
    %v5525 = vlaneseq
    %v5526 = vshrl.u32 %v5525, 7
    %v5527 = vsub.s32 1, %v5526
    %v5528 = vrot.slane %v152, %v5527
    %v5529 = vadd.f32 %v5523, %v5528
    %v5530 = vadd.f32 %v5524, %v5528
    %v5531 = vmax.f32 %v5529, 0.0
    %v5532 = vmax.f32 %v5530, 0.0
    %v5533 = vld [vmem:[#allocation11] sm:$0xff]
    %v5534 = vld [vmem:[#allocation11 + $0x8] sm:$0xff]
    %v5535 = vld [vmem:[#allocation11 + $0x10] sm:$0xff]
    %v5536 = vld [vmem:[#allocation11 + $0x18] sm:$0xff]
    %v5537 = vld [vmem:[#allocation11 + $0x20] sm:$0xff]
    %v5538 = vld [vmem:[#allocation11 + $0x28] sm:$0xff]
    %v5539 = vld [vmem:[#allocation11 + $0x30] sm:$0xff]
    %v5540 = vld [vmem:[#allocation11 + $0x38] sm:$0xff]
    %v5541 = vld [vmem:[#allocation11 + $0x40] sm:$0xff]
    %v5542 = vld [vmem:[#allocation11 + $0x48] sm:$0xff]
    %v5543 = vld [vmem:[#allocation11 + $0x50] sm:$0xff]
    %v5544 = vld [vmem:[#allocation11 + $0x58] sm:$0xff]
    %v5545 = vld [vmem:[#allocation11 + $0x60] sm:$0xff]
    %v5546 = vld [vmem:[#allocation11 + $0x68] sm:$0xff]
    %v5547 = vld [vmem:[#allocation11 + $0x70] sm:$0xff]
    %v5548 = vld [vmem:[#allocation11 + $0x78] sm:$0xff]
    %v5549 = vlaneseq
    %v5550 = vshrl.u32 %v5549, 7
    %v5551 = vsub.s32 3, %v5550
    %v5552 = vrot.slane %v151, %v5551
    %5553 = vmatprep.subr.mxu0 0.0
    %5554 = vmatpush1.msra.mxu0 %v5533
    %5555 = vmatprep.subr.mxu0 0.0
    %5556 = vmatpush1.msra.mxu0 %v5534
    %5557 = vmatprep.subr.mxu0 0.0
    %5558 = vmatpush1.msra.mxu0 %v5535
    %5559 = vmatprep.subr.mxu0 0.0
    %5560 = vmatpush1.msra.mxu0 %v5536
    %5561 = vmatprep.subr.mxu0 0.0
    %5562 = vmatpush1.msra.mxu0 %v5537
    %5563 = vmatprep.subr.mxu0 0.0
    %5564 = vmatpush1.msra.mxu0 %v5538
    %5565 = vmatprep.subr.mxu0 0.0
    %5566 = vmatpush1.msra.mxu0 %v5539
    %5567 = vmatprep.subr.mxu0 0.0
    %5568 = vmatpush1.msra.mxu0 %v5540
    %5569 = vmatprep.subr.mxu0 0.0
    %5570 = vmatpush1.msra.mxu0 %v5541
    %5571 = vmatprep.subr.mxu0 0.0
    %5572 = vmatpush1.msra.mxu0 %v5542
    %5573 = vmatprep.subr.mxu0 0.0
    %5574 = vmatpush1.msra.mxu0 %v5543
    %5575 = vmatprep.subr.mxu0 0.0
    %5576 = vmatpush1.msra.mxu0 %v5544
    %5577 = vmatprep.subr.mxu0 0.0
    %5578 = vmatpush1.msra.mxu0 %v5545
    %5579 = vmatprep.subr.mxu0 0.0
    %5580 = vmatpush1.msra.mxu0 %v5546
    %5581 = vmatprep.subr.mxu0 0.0
    %5582 = vmatpush1.msra.mxu0 %v5547
    %5583 = vmatprep.subr.mxu0 0.0
    %5584 = vmatpush1.msra.mxu0 %v5548
    %5585 = vmatprep.subr.mxu0 0.0
    %5586 = vmatpush1.msra.mxu0 0.0
    %5587 = vmatprep.subr.mxu0 0.0
    %5588 = vmatpush1.msra.mxu0 0.0
    %5589 = vmatprep.subr.mxu0 0.0
    %5590 = vmatpush1.msra.mxu0 0.0
    %5591 = vmatprep.subr.mxu0 0.0
    %5592 = vmatpush1.msra.mxu0 0.0
    %5593 = vmatprep.subr.mxu0 0.0
    %5594 = vmatpush1.msra.mxu0 0.0
    %5595 = vmatprep.subr.mxu0 0.0
    %5596 = vmatpush1.msra.mxu0 0.0
    %5597 = vmatprep.subr.mxu0 0.0
    %5598 = vmatpush1.msra.mxu0 0.0
    %5599 = vmatprep.subr.mxu0 0.0
    %5600 = vmatpush1.msra.mxu0 0.0
    %5601 = vmatprep.subr.mxu0 0.0
    %5602 = vmatpush1.msra.mxu0 0.0
    %5603 = vmatprep.subr.mxu0 0.0
    %5604 = vmatpush1.msra.mxu0 0.0
    %5605 = vmatprep.subr.mxu0 0.0
    %5606 = vmatpush1.msra.mxu0 0.0
    %5607 = vmatprep.subr.mxu0 0.0
    %5608 = vmatpush1.msra.mxu0 0.0
    %5609 = vmatprep.subr.mxu0 0.0
    %5610 = vmatpush1.msra.mxu0 0.0
    %5611 = vmatprep.subr.mxu0 0.0
    %5612 = vmatpush1.msra.mxu0 0.0
    %5613 = vmatprep.subr.mxu0 0.0
    %5614 = vmatpush1.msra.mxu0 0.0
    %5615 = vmatprep.subr.mxu0 0.0
    %5616 = vmatpush1.msra.mxu0 0.0
    %5617 = vmatprep.mubr.f32.mxu0 0.0
    %5618 = vmatmul.mubr.f32.gmra.mrb[0].mxu0 %v5531
    %v5619 = vpop.f32.mrb[0].mxu0
    %v5620 = vadd.f32 %v5552, %v5619
    %v5621 = vpop.f32.mrb[0].mxu0
    %5622 = vmatprep.mubr.f32.mxu0 0.0
    %5623 = vmatmul.mubr.f32.gmra.mrb[0].mxu0 %v5532
    %v5624 = vpop.f32.mrb[0].mxu0
    %v5625 = vadd.f32 %v5552, %v5624
    %v5626 = vpop.f32.mrb[0].mxu0
    %5627 = vdwg.mxu0
    %5628 = vadd.xlane.f32.xlu0 %v5620
    %v5629 = vpop.xlane.xlu0 %5628
    %5630 = vadd.xlane.f32.xlu0 %v5625
    %v5631 = vpop.xlane.xlu0 %5630
    %v5632 = vmul.f32 %v5629, 0.03125
    %v5633 = vmul.f32 %v5631, 0.03125
    %v5634 = vsub.f32 %v5620, %v5632
    %v5635 = vsub.f32 %v5625, %v5633
    %v5636 = vmul.f32 %v5634, %v157
    %v5637 = vmul.f32 %v5635, %v157
    %v5638 = vmul.f32 %v5636, %v5636
    %v5639 = vmul.f32 %v5637, %v5637
    %5640 = vadd.xlane.f32.xlu0 %v5638
    %v5641 = vpop.xlane.xlu0 %5640
    %5642 = vadd.xlane.f32.xlu0 %v5639
    %v5643 = vpop.xlane.xlu0 %5642
    %v5644 = vmul.f32 %v5641, 0.03125
    %v5645 = vmul.f32 %v5643, 0.03125
    %v5646 = vadd.f32 %v5644, 1e-05
    %v5647 = vadd.f32 %v5645, 1e-05
    %v5648 = vrsqrt.pop %v5646
    %v5649 = vrsqrt.pop %v5647
    %v5650 = vmul.f32 %v5636, %v5648
    %v5651 = vmul.f32 %v5637, %v5649
    %v5652 = vlaneseq
    %v5653 = vshrl.u32 %v5652, 7
    %v5654 = vsub.s32 2, %v5653
    %v5655 = vrot.slane %v152, %v5654
    %v5656 = vmul.f32 %v5650, %v5655
    %v5657 = vmul.f32 %v5651, %v5655
    %v5658 = vlaneseq
    %v5659 = vshrl.u32 %v5658, 7
    %v5660 = vsub.s32 3, %v5659
    %v5661 = vrot.slane %v152, %v5660
    %v5662 = vadd.f32 %v5656, %v5661
    %v5663 = vadd.f32 %v5657, %v5661
    %v5664 = vmax.f32 %v5662, 0.0
    %v5665 = vmax.f32 %v5663, 0.0
    %v5666 = vld [vmem:[#allocation13] sm:$0xff]
    %v5667 = vld [vmem:[#allocation13 + $0x8] sm:$0xff]
    %v5668 = vld [vmem:[#allocation13 + $0x10] sm:$0xff]
    %v5669 = vld [vmem:[#allocation13 + $0x18] sm:$0xff]
    %v5670 = vld [vmem:[#allocation13 + $0x20] sm:$0xff]
    %v5671 = vld [vmem:[#allocation13 + $0x28] sm:$0xff]
    %v5672 = vld [vmem:[#allocation13 + $0x30] sm:$0xff]
    %v5673 = vld [vmem:[#allocation13 + $0x38] sm:$0xff]
    %v5674 = vld [vmem:[#allocation13 + $0x40] sm:$0xff]
    %v5675 = vld [vmem:[#allocation13 + $0x48] sm:$0xff]
    %v5676 = vld [vmem:[#allocation13 + $0x50] sm:$0xff]
    %v5677 = vld [vmem:[#allocation13 + $0x58] sm:$0xff]
    %v5678 = vld [vmem:[#allocation13 + $0x60] sm:$0xff]
    %v5679 = vld [vmem:[#allocation13 + $0x68] sm:$0xff]
    %v5680 = vld [vmem:[#allocation13 + $0x70] sm:$0xff]
    %v5681 = vld [vmem:[#allocation13 + $0x78] sm:$0xff]
    %v5682 = vld [vmem:[#allocation14] sm:$0x1]
    %v5684 = vlaneseq
    %v5685 = vshrl.u32 %v5684, 7
    %v5686 = vsub.s32 0, %v5685
    %v5687 = vrot.slane %v5682, %v5686
    %5689 = vmatprep.subr.mxu0 0.0
    %5690 = vmatpush1.msra.mxu0 %v5666
    %5691 = vmatprep.subr.mxu0 0.0
    %5692 = vmatpush1.msra.mxu0 %v5667
    %5693 = vmatprep.subr.mxu0 0.0
    %5694 = vmatpush1.msra.mxu0 %v5668
    %5695 = vmatprep.subr.mxu0 0.0
    %5696 = vmatpush1.msra.mxu0 %v5669
    %5697 = vmatprep.subr.mxu0 0.0
    %5698 = vmatpush1.msra.mxu0 %v5670
    %5699 = vmatprep.subr.mxu0 0.0
    %5700 = vmatpush1.msra.mxu0 %v5671
    %5701 = vmatprep.subr.mxu0 0.0
    %5702 = vmatpush1.msra.mxu0 %v5672
    %5703 = vmatprep.subr.mxu0 0.0
    %5704 = vmatpush1.msra.mxu0 %v5673
    %5705 = vmatprep.subr.mxu0 0.0
    %5706 = vmatpush1.msra.mxu0 %v5674
    %5707 = vmatprep.subr.mxu0 0.0
    %5708 = vmatpush1.msra.mxu0 %v5675
    %5709 = vmatprep.subr.mxu0 0.0
    %5710 = vmatpush1.msra.mxu0 %v5676
    %5711 = vmatprep.subr.mxu0 0.0
    %5712 = vmatpush1.msra.mxu0 %v5677
    %5713 = vmatprep.subr.mxu0 0.0
    %5714 = vmatpush1.msra.mxu0 %v5678
    %5715 = vmatprep.subr.mxu0 0.0
    %5716 = vmatpush1.msra.mxu0 %v5679
    %5717 = vmatprep.subr.mxu0 0.0
    %5718 = vmatpush1.msra.mxu0 %v5680
    %5719 = vmatprep.subr.mxu0 0.0
    %5720 = vmatpush1.msra.mxu0 %v5681
    %5721 = vmatprep.subr.mxu0 0.0
    %5722 = vmatpush1.msra.mxu0 0.0
    %5723 = vmatprep.subr.mxu0 0.0
    %5724 = vmatpush1.msra.mxu0 0.0
    %5725 = vmatprep.subr.mxu0 0.0
    %5726 = vmatpush1.msra.mxu0 0.0
    %5727 = vmatprep.subr.mxu0 0.0
    %5728 = vmatpush1.msra.mxu0 0.0
    %5729 = vmatprep.subr.mxu0 0.0
    %5730 = vmatpush1.msra.mxu0 0.0
    %5731 = vmatprep.subr.mxu0 0.0
    %5732 = vmatpush1.msra.mxu0 0.0
    %5733 = vmatprep.subr.mxu0 0.0
    %5734 = vmatpush1.msra.mxu0 0.0
    %5735 = vmatprep.subr.mxu0 0.0
    %5736 = vmatpush1.msra.mxu0 0.0
    %5737 = vmatprep.subr.mxu0 0.0
    %5738 = vmatpush1.msra.mxu0 0.0
    %5739 = vmatprep.subr.mxu0 0.0
    %5740 = vmatpush1.msra.mxu0 0.0
    %5741 = vmatprep.subr.mxu0 0.0
    %5742 = vmatpush1.msra.mxu0 0.0
    %5743 = vmatprep.subr.mxu0 0.0
    %5744 = vmatpush1.msra.mxu0 0.0
    %5745 = vmatprep.subr.mxu0 0.0
    %5746 = vmatpush1.msra.mxu0 0.0
    %5747 = vmatprep.subr.mxu0 0.0
    %5748 = vmatpush1.msra.mxu0 0.0
    %5749 = vmatprep.subr.mxu0 0.0
    %5750 = vmatpush1.msra.mxu0 0.0
    %5751 = vmatprep.subr.mxu0 0.0
    %5752 = vmatpush1.msra.mxu0 0.0
    %5753 = vmatprep.mubr.f32.mxu0 0.0
    %5754 = vmatmul.mubr.f32.gmra.mrb[0].mxu0 %v5664
    %v5755 = vpop.f32.mrb[0].mxu0
    %v5756 = vadd.f32 %v5687, %v5755
    %v5757 = vpop.f32.mrb[0].mxu0
    %5758 = vmatprep.mubr.f32.mxu0 0.0
    %5759 = vmatmul.mubr.f32.gmra.mrb[0].mxu0 %v5665
    %v5760 = vpop.f32.mrb[0].mxu0
    %v5761 = vadd.f32 %v5687, %v5760
    %v5762 = vpop.f32.mrb[0].mxu0
    %5763 = vdwg.mxu0
    %5764 = vst [vmem:[#allocation17] sm:$0xff] %v5756
    %5765 = vst [vmem:[#allocation17 + $0x8] sm:$0xff] %v5761
    // Predicated region
    $region74: #{tpu_custom_call.1} parent=1 // pred_check
      _
    $region75: #{tpu_custom_call.1} parent=1 // pred_check_branch
      %5767 = sbr.rel (0) target = $region77
    $region76: #{tpu_custom_call.1} parent=1 // pred_region
      %s5769 = ssub.s32 256, 256
      %5770 = vsyncadd [#allocation4], %s5769
      %s5771 = sshll.u32 [#allocation17], 4
      %s5772 = int_to_ptr.vmem [resolvable:$true] %s5771
      %5777 = dma.vmem_to_hbm [thread:$0]  %s5772, 256, %s9, [#allocation4], 128, 128, 8
    $region77: #{tpu_custom_call.1} parent=1 // pred_fallthru
      _
    // Predicated region
    $region78: #{tpu_custom_call.1} parent=1 // pred_check
      _
    $region79: #{tpu_custom_call.1} parent=1 // pred_check_branch
      %5779 = sbr.rel (0) target = $region81
    $region80: #{tpu_custom_call.1} parent=1 // pred_region
      %5780 = dma.done [#allocation4], 256
    $region81: #{tpu_custom_call.1} parent=1 // pred_fallthru
      _
    %5781 = vsyncpa [#allocation3], 1
    %5782 = vsyncpa [#allocation6], 1
    %5783 = vsyncpa [#allocation9], 1
    %5784 = vsyncpa [#allocation12], 1
    %5785 = vsyncpa [#allocation15], 1
    %5786 = vsyncpa [#allocation4], 1

</llo_original>
